<compile_context>
chip_gen: v7x
topology: tpu7x:2x2x1
jax: 0.10.0
libtpu: 0.0.40
codegen_flags: <defaults>
</compile_context>

<pallas_src>
import functools
import math
import numpy as np

import jax
import jax.numpy as jnp
from jax.experimental import pallas as pl
from jax.experimental.pallas import tpu as pltpu


# Matmul operands are cast to bf16 (accumulation in f32 via
# preferred_element_type) to hit the bf16 MXU path on v5e/v6e/v7x and halve
# weight/activation matmul traffic.  Set to jnp.float32 for exact f32 numerics.
MM_DT = jnp.bfloat16

_VMEM = pl.BlockSpec(memory_space=pltpu.MemorySpace.VMEM)


# ----------------------------------------------------------------------------
# In-kernel helpers (traced inside Pallas kernels).
# ----------------------------------------------------------------------------
def _torch_norm(x, axis, eps=1e-6):
    """(x - mean) / (unbiased_std + eps), matching the reference `norm`."""
    n = x.shape[axis]
    mean = jnp.mean(x, axis=axis, keepdims=True)
    diff = x - mean
    var = jnp.sum(diff * diff, axis=axis, keepdims=True) / (n - 1)
    return diff / (jnp.sqrt(var) + eps)


def _shifted(x, shift, row_idx):
    """x shifted by `shift` rows along axis 0 with zero fill (conv halo).

    Uses pltpu.roll (XLU slot, free next to the VPU accumulate / MXU matmul)
    plus an edge mask instead of materializing a zero-padded VMEM copy.
    rolled[l] = x[l - shift] for valid l, else 0.
    """
    L = x.shape[0]
    if shift % L != 0:
        x = pltpu.roll(x, shift=shift % L, axis=0)
    if shift > 0:
        x = jnp.where(row_idx >= shift, x, 0.0)
    elif shift < 0:
        x = jnp.where(row_idx < L + shift, x, 0.0)
    return x


# ----------------------------------------------------------------------------
# Kernels (one grid step == one batch element; refs are 2-D, lane-dense).
# ----------------------------------------------------------------------------
def make_dsconv_kernel(K):
    """Depthwise separable conv1d along the sequence axis (no bias)."""
    pad = K // 2

    def dsconv_kernel(x_ref, wdw_ref, wpw_ref, out_ref):
        x = x_ref[...]                                    # (L, Cin)
        L, Cin = x.shape
        row = jax.lax.broadcasted_iota(jnp.int32, (L, 1), 0)
        wdw = wdw_ref[...]                                # (K, Cin)
        acc = jnp.zeros((L, Cin), jnp.float32)
        for j in range(K):                                # depthwise: K shifted MACs
            acc = acc + _shifted(x, pad - j, row) * wdw[j:j + 1, :]
        out_ref[...] = jnp.dot(acc.astype(MM_DT), wpw_ref[...].astype(MM_DT),
                               preferred_element_type=jnp.float32)

    return dsconv_kernel


def make_encoder_kernel(n_heads):
    """Fused EncoderBlock: pos-enc + conv_num conv blocks + MHA + FFN."""

    def encoder_kernel(x_ref, pe_ref, wdw_ref, wpw_ref, wqkv_ref,
                       wo_ref, bo_ref, ww_ref, bw_ref, out_ref):
        L, D = out_ref.shape
        conv_num, K, _ = wdw_ref.shape
        pad = K // 2
        dk = D // n_heads
        scaling = 1.0 / math.sqrt(dk)
        row = jax.lax.broadcasted_iota(jnp.int32, (L, 1), 0)

        out = x_ref[...] + pe_ref[...]                    # pos_encoding

        # conv sub-blocks: out += relu(pointwise(depthwise(norm_over_seq(out))))
        for i in range(conv_num):
            xn = _torch_norm(out, axis=0)                 # torch norms (B, D, L) over L
            wdw_i = wdw_ref[i]                            # (K, D)
            acc = jnp.zeros((L, D), jnp.float32)
            for j in range(K):
                acc = acc + _shifted(xn, pad - j, row) * wdw_i[j:j + 1, :]
            y = jnp.dot(acc.astype(MM_DT), wpw_ref[i].astype(MM_DT),
                        preferred_element_type=jnp.float32)
            out = out + jnp.maximum(y, 0.0)

        # self-attention sub-block
        z = _torch_norm(out, axis=0)                      # res = out = norm(out).T
        # All heads' Q,K,V in one full-width matmul (wqkv = [Wq | Wk | Wv]).
        qkv = jnp.dot(z.astype(MM_DT), wqkv_ref[...].astype(MM_DT),
                      preferred_element_type=jnp.float32)           # (L, 3D)
        # TODO(synk): for long sequences tile keys with an online (flash) softmax
        # instead of holding the full (L, L) per-head score matrix in VMEM.
        heads = []
        for n in range(n_heads):
            q = qkv[:, n * dk:(n + 1) * dk]
            k = qkv[:, D + n * dk:D + (n + 1) * dk]
            v = qkv[:, 2 * D + n * dk:2 * D + (n + 1) * dk]
            s = jnp.einsum('qd,kd->qk', q.astype(MM_DT), k.astype(MM_DT),
                           preferred_element_type=jnp.float32) * scaling
            s = s - jnp.max(s, axis=-1, keepdims=True)
            p = jnp.exp(s)
            p = p / jnp.sum(p, axis=-1, keepdims=True)
            heads.append(jnp.dot(p.astype(MM_DT), v.astype(MM_DT),
                                 preferred_element_type=jnp.float32))
        # concat-of-heads (same order as torch split/cat) + single out-projection
        attn = jnp.concatenate(heads, axis=-1)                      # (L, D)
        attn = jnp.dot(attn.astype(MM_DT), wo_ref[...].astype(MM_DT),
                       preferred_element_type=jnp.float32) + bo_ref[...]
        y = attn + z                                                # residual inside MHA
        mean = jnp.mean(y, axis=-1, keepdims=True)
        var = jnp.mean((y - mean) ** 2, axis=-1, keepdims=True)
        ln = (y - mean) * jax.lax.rsqrt(var + 1e-5)                 # LayerNorm (gamma=1, beta=0)
        out = z + ln                                                # outer EncoderBlock residual

        # feed-forward sub-block: out += relu(Linear(norm_over_feat(out)))
        zf = _torch_norm(out, axis=1)
        y2 = jnp.dot(zf.astype(MM_DT), ww_ref[...].astype(MM_DT),
                     preferred_element_type=jnp.float32) + bw_ref[...]
        out_ref[...] = out + jnp.maximum(y2, 0.0)

    return encoder_kernel


def cqa_kernel(c_ref, q_ref, w_ref, out_ref):
    """ContextQueryAttention for one batch element: trilinear similarity,
    dual softmax, A / B; concat segments written directly into out_ref."""
    C = c_ref[...]                                        # (n, d)
    Q = q_ref[...]                                        # (m, d)
    d = C.shape[1]
    # W([C, Q, C*Q]) decomposed: w_ref rows = (w_C, w_Q, w_CQ).
    # S[i, j] = w_C.C[i] + (C[i]*w_CQ + w_Q).Q[j]  (w_Q folded into the matmul)
    cw = jnp.sum(C * w_ref[0:1, :], axis=-1, keepdims=True)                 # (n, 1)
    cq = jnp.einsum('nd,md->nm',
                    (C * w_ref[2:3, :] + w_ref[1:2, :]).astype(MM_DT),
                    Q.astype(MM_DT),
                    preferred_element_type=jnp.float32)                     # (n, m)
    S = cq + cw

    # TODO(synk): at realistic sizes (n~400, B~32) tile this flash-style over key
    # blocks; at these shapes the (n, m)/(n, n) temporaries are tiny per grid step.
    Sr = jnp.exp(S - jnp.max(S, axis=1, keepdims=True))                     # softmax over m
    Sr = Sr / jnp.sum(Sr, axis=1, keepdims=True)
    Sc = jnp.exp(S - jnp.max(S, axis=0, keepdims=True))                     # softmax over n
    Sc = Sc / jnp.sum(Sc, axis=0, keepdims=True)

    A = jnp.dot(Sr.astype(MM_DT), Q.astype(MM_DT),
                preferred_element_type=jnp.float32)                         # (n, d)
    S12 = jnp.einsum('nm,km->nk', Sr.astype(MM_DT), Sc.astype(MM_DT),
                     preferred_element_type=jnp.float32)                    # (n, n)
    Bm = jnp.dot(S12.astype(MM_DT), C.astype(MM_DT),
                 preferred_element_type=jnp.float32)                        # (n, d)

    # cat([C, A, C*A, C*B], -1): each segment is a 128-lane-aligned slice store.
    out_ref[:, 0:d] = C
    out_ref[:, d:2 * d] = A
    out_ref[:, 2 * d:3 * d] = C * A
    out_ref[:, 3 * d:4 * d] = C * Bm


def answer_kernel(m_ref, w0_ref, b0_ref, w1_ref, b1_ref, p1_ref, p2_ref):
    """AnswerStartEnd with M0=M1=M2; inference-mode softmax over the seq axis."""
    M = m_ref[...]                                        # (B, n, d)
    w0 = w0_ref[0:1, :] + w0_ref[1:2, :]                  # Linear over cat([M0, M0]) collapses
    w1 = w1_ref[0:1, :] + w1_ref[1:2, :]
    y0 = jnp.sum(M * w0, axis=-1) + b0_ref[...]           # (B, n) + (1, 1)
    y1 = jnp.sum(M * w1, axis=-1) + b1_ref[...]

    def _softmax_seq(y):
        y = y - jnp.max(y, axis=1, keepdims=True)
        e = jnp.exp(y)
        return e / jnp.sum(e, axis=1, keepdims=True)

    p1_ref[...] = _softmax_seq(y0)
    p2_ref[...] = _softmax_seq(y1)


# ----------------------------------------------------------------------------
# Wrappers: batch-parallel grid, lane-dense blocks, all-weights-in-VMEM.
# ----------------------------------------------------------------------------
def _batched_spec(rows, cols):
    """(None, rows, cols): batch dim squeezed out, kernel sees a 2-D (rows, cols) tile."""
    return pl.BlockSpec((None, rows, cols), lambda b: (b, 0, 0))


def _full_spec(shape):
    nd = len(shape)
    return pl.BlockSpec(shape, lambda b: (0,) * nd)


def _parallel_call(kernel, out_shape, grid, in_specs, out_specs, *args):
    return pl.pallas_call(
        kernel,
        out_shape=out_shape,
        grid_spec=pltpu.PrefetchScalarGridSpec(
            num_scalar_prefetch=0, grid=grid,
            in_specs=in_specs, out_specs=out_specs),
        compiler_params=pltpu.CompilerParams(
            dimension_semantics=("parallel",) * len(grid)),
    )(*args)


def _dsconv(x, p):
    B, L, Cin = x.shape
    K = p['wdw'].shape[0]
    Cout = p['wpw'].shape[1]
    return _parallel_call(
        make_dsconv_kernel(K),
        jax.ShapeDtypeStruct((B, L, Cout), jnp.float32),
        (B,),
        [_batched_spec(L, Cin), _full_spec((K, Cin)), _full_spec((Cin, Cout))],
        _batched_spec(L, Cout),
        x, p['wdw'], p['wpw'])


def _pos_encoding(max_len, model_dim):
    # Vectorized version of the reference table (pos/10000^(2i/dim), row 0 = 0,
    # sin on even columns / cos on odd columns for rows >= 1).
    pos = np.arange(max_len, dtype=np.float64)[:, None]
    i = np.arange(model_dim, dtype=np.float64)[None, :]
    enc = pos / np.power(10000.0, 2.0 * i / model_dim)
    enc[0, :] = 0.0
    enc[1:, 0::2] = np.sin(enc[1:, 0::2])
    enc[1:, 1::2] = np.cos(enc[1:, 1::2])
    return jnp.asarray(enc, dtype=jnp.float32)


def _encoder_block(x, p, n_heads):
    B, L, D = x.shape
    pe = _pos_encoding(L, D)            # folded into the fused kernel as an input
    return _parallel_call(
        make_encoder_kernel(n_heads),
        jax.ShapeDtypeStruct((B, L, D), jnp.float32),
        (B,),
        [_batched_spec(L, D), _full_spec((L, D)),
         _full_spec(p['wdw'].shape), _full_spec(p['wpw'].shape),
         _full_spec(p['wqkv'].shape), _full_spec(p['wo'].shape),
         _full_spec(p['bo'].shape), _full_spec(p['ww'].shape),
         _full_spec(p['bw'].shape)],
        _batched_spec(L, D),
        x, pe, p['wdw'], p['wpw'], p['wqkv'], p['wo'], p['bo'], p['ww'], p['bw'])


def _cqa(c, q, w):
    B, n, d = c.shape
    m = q.shape[1]
    return _parallel_call(
        cqa_kernel,
        jax.ShapeDtypeStruct((B, n, 4 * d), jnp.float32),
        (B,),
        [_batched_spec(n, d), _batched_spec(m, d), _full_spec((3, d))],
        _batched_spec(n, 4 * d),
        c, q, w)


def _answer(m0, w0, b0, w1, b1):
    B, n, _ = m0.shape
    return pl.pallas_call(
        answer_kernel,
        out_shape=(jax.ShapeDtypeStruct((B, n), jnp.float32),
                   jax.ShapeDtypeStruct((B, n), jnp.float32)),
        in_specs=[_VMEM] * 5,
        out_specs=(_VMEM, _VMEM),
    )(m0, w0, b0, w1, b1)


def qanet_tail_forward(params, cont_hidden, cont_mask, ques_hidden, ques_mask,
                       *, n_heads):
    # Masks are accepted but never read, matching the PyTorch forward().
    del cont_mask, ques_mask
    c = _dsconv(cont_hidden, params['resize_cont'])       # (B, n, hidden)
    q = _dsconv(ques_hidden, params['resize_ques'])       # (B, m, hidden)
    c = _encoder_block(c, params['cont_enc'], n_heads)
    q = _encoder_block(q, params['ques_enc'], n_heads)
    cq = _cqa(c, q, params['cqa_w'])                      # (B, n, 4*hidden)
    m0 = _dsconv(cq, params['downscale'])                 # (B, n, hidden)
    return _answer(m0, params['w0'], params['b0'], params['w1'], params['b1'])


# ----------------------------------------------------------------------------
# Deterministic parameter construction (synthetic weights).
# ----------------------------------------------------------------------------
def init_params(key, inp_sz, d, n_heads, kern_sz, conv_num):
    del n_heads  # wqkv is generated directly in fused [Wq | Wk | Wv] layout
    keys = iter(jax.random.split(key, 64))

    def nrm(shape, scale=0.1):
        return jax.random.normal(next(keys), shape, jnp.float32) * scale

    def dsc(cin, cout):                 # depthwise (K, Cin) + pointwise (Cin, Cout)
        return dict(wdw=nrm((kern_sz, cin)), wpw=nrm((cin, cout)))

    def enc():
        return dict(
            wdw=nrm((conv_num, kern_sz, d)),
            wpw=nrm((conv_num, d, d)),
            wqkv=nrm((d, 3 * d)),       # [Wq | Wk | Wv], head-major dk columns
            wo=nrm((d, d)), bo=nrm((1, d), 0.02),
            ww=nrm((d, d)), bw=nrm((1, d), 0.02),
        )

    return dict(
        resize_cont=dsc(inp_sz, d),
        resize_ques=dsc(inp_sz, d),
        cont_enc=enc(),
        ques_enc=enc(),
        cqa_w=nrm((3, d)),              # Linear(3d, 1, bias=False) split per segment
        downscale=dsc(4 * d, d),
        w0=nrm((2, d)), b0=nrm((1, 1), 0.02),
        w1=nrm((2, d)), b1=nrm((1, 1), 0.02),
    )


if __name__ == "__main__":
    # Small config with a lane-dense model dim: hidden=128 (QANet's usual d_model),
    # doc_layers=1 -> inp_sz = 2*hidden = 256, emb_enc_convs=2, n_heads=8 (dk=16),
    # emb_enc_kersize=3, batch=2, ctx_len=16, ques_len=8.
    B, n_ctx, m_q = 2, 16, 8
    hidden, n_heads, kern_sz, conv_num = 128, 8, 3, 2
    inp_sz = 2 * hidden
    assert hidden % n_heads == 0

    key = jax.random.PRNGKey(0)
    k_param, k_cont, k_ques = jax.random.split(key, 3)
    params = init_params(k_param, inp_sz, hidden, n_heads, kern_sz, conv_num)

    cont_hidden = jax.random.normal(k_cont, (B, n_ctx, inp_sz), jnp.float32)
    ques_hidden = jax.random.normal(k_ques, (B, m_q, inp_sz), jnp.float32)
    cont_mask = jnp.zeros((B, n_ctx), jnp.bool_)   # unused by forward (as in PyTorch)
    ques_mask = jnp.zeros((B, m_q), jnp.bool_)     # unused by forward (as in PyTorch)

    fwd = jax.jit(functools.partial(qanet_tail_forward, n_heads=n_heads))
    p1, p2 = fwd(params, cont_hidden, cont_mask, ques_hidden, ques_mask)
    jax.block_until_ready((p1, p2))

    assert p1.shape == (B, n_ctx) and p2.shape == (B, n_ctx)
    assert bool(jnp.all(jnp.isfinite(p1))) and bool(jnp.all(jnp.isfinite(p2)))
    assert bool(jnp.allclose(jnp.sum(p1, axis=1), 1.0, atol=1e-4))
    assert bool(jnp.allclose(jnp.sum(p2, axis=1), 1.0, atol=1e-4))
    print("KERNEL_OK")
</pallas_src>

<mosaic_0001>
module attributes {stable_mosaic.version = 11 : i64} {
  func.func @dsconv_kernel(%arg0: i32, %arg1: memref<1x8x256xf32, #tpu.memory_space<vmem>>, %arg2: memref<3x256xf32, #tpu.memory_space<vmem>>, %arg3: memref<256x128xf32, #tpu.memory_space<vmem>>, %arg4: memref<1x8x128xf32, #tpu.memory_space<vmem>>) attributes {dimension_semantics = [#tpu.dimension_semantics<parallel>], iteration_bounds = array<i64: 2>, scalar_prefetch = 0 : i64, scratch_operands = 0 : i64, tpu.core_type = #tpu.core_type<tc>, window_params = [{transform_indices = @transform_0, window_bounds = array<i64: 1, 8, 256>}, {pipeline_mode = #tpu.pipeline_mode<synchronous>, transform_indices = @transform_1, window_bounds = array<i64: 3, 256>}, {pipeline_mode = #tpu.pipeline_mode<synchronous>, transform_indices = @transform_2, window_bounds = array<i64: 256, 128>}, {transform_indices = @transform_3, window_bounds = array<i64: 1, 8, 128>}]} {
    %c0 = arith.constant 0 : index
    %c0_0 = arith.constant 0 : index
    %c0_1 = arith.constant 0 : index
    %0 = vector.load %arg1[%c0, %c0_0, %c0_1] : memref<1x8x256xf32, #tpu.memory_space<vmem>>, vector<1x8x256xf32>
    %1 = vector.shape_cast %0 : vector<1x8x256xf32> to vector<8x256xf32>
    %2 = tpu.iota {dimensions = array<i32: 0>} : vector<8x1xi32>
    %c0_2 = arith.constant 0 : index
    %c0_3 = arith.constant 0 : index
    %3 = vector.load %arg2[%c0_2, %c0_3] : memref<3x256xf32, #tpu.memory_space<vmem>>, vector<3x256xf32>
    %cst = arith.constant 0.000000e+00 : f32
    %4 = vector.broadcast %cst : f32 to vector<8x256xf32>
    %c1_i32 = arith.constant 1 : i32
    %5 = tpu.dynamic_rotate %1 by %c1_i32 dim 0 : vector<8x256xf32>, i32 -> vector<8x256xf32>
    %c1_i32_4 = arith.constant 1 : i32
    %6 = vector.broadcast %c1_i32_4 : i32 to vector<8x1xi32>
    %7 = arith.cmpi sge, %2, %6 : vector<8x1xi32>
    %cst_5 = arith.constant 0.000000e+00 : f32
    %8 = vector.shape_cast %7 : vector<8x1xi1> to vector<8x1xi1>
    %9 = vector.broadcast %8 : vector<8x1xi1> to vector<8x256xi1>
    %10 = vector.broadcast %cst_5 : f32 to vector<8x256xf32>
    %11 = arith.select %9, %5, %10 : vector<8x256xi1>, vector<8x256xf32>
    %12 = vector.extract_strided_slice %3 {offsets = [0, 0], sizes = [1, 256], strides = [1, 1]} : vector<3x256xf32> to vector<1x256xf32>
    %13 = vector.broadcast %12 : vector<1x256xf32> to vector<8x256xf32>
    %14 = arith.mulf %11, %13 : vector<8x256xf32>
    %15 = arith.addf %4, %14 : vector<8x256xf32>
    %16 = vector.extract_strided_slice %3 {offsets = [1, 0], sizes = [1, 256], strides = [1, 1]} : vector<3x256xf32> to vector<1x256xf32>
    %17 = vector.broadcast %16 : vector<1x256xf32> to vector<8x256xf32>
    %18 = arith.mulf %1, %17 : vector<8x256xf32>
    %19 = arith.addf %15, %18 : vector<8x256xf32>
    %c7_i32 = arith.constant 7 : i32
    %20 = tpu.dynamic_rotate %1 by %c7_i32 dim 0 : vector<8x256xf32>, i32 -> vector<8x256xf32>
    %c7_i32_6 = arith.constant 7 : i32
    %21 = vector.broadcast %c7_i32_6 : i32 to vector<8x1xi32>
    %22 = arith.cmpi slt, %2, %21 : vector<8x1xi32>
    %cst_7 = arith.constant 0.000000e+00 : f32
    %23 = vector.shape_cast %22 : vector<8x1xi1> to vector<8x1xi1>
    %24 = vector.broadcast %23 : vector<8x1xi1> to vector<8x256xi1>
    %25 = vector.broadcast %cst_7 : f32 to vector<8x256xf32>
    %26 = arith.select %24, %20, %25 : vector<8x256xi1>, vector<8x256xf32>
    %27 = vector.extract_strided_slice %3 {offsets = [2, 0], sizes = [1, 256], strides = [1, 1]} : vector<3x256xf32> to vector<1x256xf32>
    %28 = vector.broadcast %27 : vector<1x256xf32> to vector<8x256xf32>
    %29 = arith.mulf %26, %28 : vector<8x256xf32>
    %30 = arith.addf %19, %29 : vector<8x256xf32>
    %31 = arith.truncf %30 : vector<8x256xf32> to vector<8x256xbf16>
    %c0_8 = arith.constant 0 : index
    %c0_9 = arith.constant 0 : index
    %32 = vector.load %arg3[%c0_8, %c0_9] : memref<256x128xf32, #tpu.memory_space<vmem>>, vector<256x128xf32>
    %33 = arith.truncf %32 : vector<256x128xf32> to vector<256x128xbf16>
    %cst_10 = arith.constant dense<0.000000e+00> : vector<8x128xf32>
    %34 = tpu.matmul %31, %33, %cst_10 {dimension_numbers = #tpu.dot_dimension_numbers<[1], [0], [0], [1], [0, 0, 1, 1], [], []>} : vector<8x256xbf16>, vector<256x128xbf16>, vector<8x128xf32> -> vector<8x128xf32>
    %c0_11 = arith.constant 0 : index
    %c0_12 = arith.constant 0 : index
    %c0_13 = arith.constant 0 : index
    %35 = vector.load %arg4[%c0_11, %c0_12, %c0_13] : memref<1x8x128xf32, #tpu.memory_space<vmem>>, vector<1x8x128xf32>
    %36 = vector.shape_cast %35 : vector<1x8x128xf32> to vector<8x128xf32>
    %37 = vector.shape_cast %34 : vector<8x128xf32> to vector<1x8x128xf32>
    tpu.vector_store %arg4[%c0_11, %c0_12, %c0_13], %37 {strides = array<i32>} : memref<1x8x128xf32, #tpu.memory_space<vmem>>, vector<1x8x128xf32>,
    return
  }
  func.func @transform_0(%arg0: i32) -> (i32, i32, i32) {
    %c0_i32 = arith.constant 0 : i32
    %c0_i32_0 = arith.constant 0 : i32
    %c0_i32_1 = arith.constant 0 : i32
    return %arg0, %c0_i32, %c0_i32_0 : i32, i32, i32
  }
  func.func @transform_1(%arg0: i32) -> (i32, i32) {
    %c0_i32 = arith.constant 0 : i32
    %c0_i32_0 = arith.constant 0 : i32
    %c0_i32_1 = arith.constant 0 : i32
    return %c0_i32, %c0_i32_0 : i32, i32
  }
  func.func @transform_2(%arg0: i32) -> (i32, i32) {
    %c0_i32 = arith.constant 0 : i32
    %c0_i32_0 = arith.constant 0 : i32
    %c0_i32_1 = arith.constant 0 : i32
    return %c0_i32, %c0_i32_0 : i32, i32
  }
  func.func @transform_3(%arg0: i32) -> (i32, i32, i32) {
    %c0_i32 = arith.constant 0 : i32
    %c0_i32_0 = arith.constant 0 : i32
    %c0_i32_1 = arith.constant 0 : i32
    return %arg0, %c0_i32, %c0_i32_0 : i32, i32, i32
  }
}

module attributes {stable_mosaic.version = 11 : i64} {
  func.func @dsconv_kernel(%arg0: i32, %arg1: memref<1x16x256xf32, #tpu.memory_space<vmem>>, %arg2: memref<3x256xf32, #tpu.memory_space<vmem>>, %arg3: memref<256x128xf32, #tpu.memory_space<vmem>>, %arg4: memref<1x16x128xf32, #tpu.memory_space<vmem>>) attributes {dimension_semantics = [#tpu.dimension_semantics<parallel>], iteration_bounds = array<i64: 2>, scalar_prefetch = 0 : i64, scratch_operands = 0 : i64, tpu.core_type = #tpu.core_type<tc>, window_params = [{transform_indices = @transform_0, window_bounds = array<i64: 1, 16, 256>}, {pipeline_mode = #tpu.pipeline_mode<synchronous>, transform_indices = @transform_1, window_bounds = array<i64: 3, 256>}, {pipeline_mode = #tpu.pipeline_mode<synchronous>, transform_indices = @transform_2, window_bounds = array<i64: 256, 128>}, {transform_indices = @transform_3, window_bounds = array<i64: 1, 16, 128>}]} {
    %c0 = arith.constant 0 : index
    %c0_0 = arith.constant 0 : index
    %c0_1 = arith.constant 0 : index
    %0 = vector.load %arg1[%c0, %c0_0, %c0_1] : memref<1x16x256xf32, #tpu.memory_space<vmem>>, vector<1x16x256xf32>
    %1 = vector.shape_cast %0 : vector<1x16x256xf32> to vector<16x256xf32>
    %2 = tpu.iota {dimensions = array<i32: 0>} : vector<16x1xi32>
    %c0_2 = arith.constant 0 : index
    %c0_3 = arith.constant 0 : index
    %3 = vector.load %arg2[%c0_2, %c0_3] : memref<3x256xf32, #tpu.memory_space<vmem>>, vector<3x256xf32>
    %cst = arith.constant 0.000000e+00 : f32
    %4 = vector.broadcast %cst : f32 to vector<16x256xf32>
    %c1_i32 = arith.constant 1 : i32
    %5 = tpu.dynamic_rotate %1 by %c1_i32 dim 0 : vector<16x256xf32>, i32 -> vector<16x256xf32>
    %c1_i32_4 = arith.constant 1 : i32
    %6 = vector.broadcast %c1_i32_4 : i32 to vector<16x1xi32>
    %7 = arith.cmpi sge, %2, %6 : vector<16x1xi32>
    %cst_5 = arith.constant 0.000000e+00 : f32
    %8 = vector.shape_cast %7 : vector<16x1xi1> to vector<16x1xi1>
    %9 = vector.broadcast %8 : vector<16x1xi1> to vector<16x256xi1>
    %10 = vector.broadcast %cst_5 : f32 to vector<16x256xf32>
    %11 = arith.select %9, %5, %10 : vector<16x256xi1>, vector<16x256xf32>
    %12 = vector.extract_strided_slice %3 {offsets = [0, 0], sizes = [1, 256], strides = [1, 1]} : vector<3x256xf32> to vector<1x256xf32>
    %13 = vector.broadcast %12 : vector<1x256xf32> to vector<16x256xf32>
    %14 = arith.mulf %11, %13 : vector<16x256xf32>
    %15 = arith.addf %4, %14 : vector<16x256xf32>
    %16 = vector.extract_strided_slice %3 {offsets = [1, 0], sizes = [1, 256], strides = [1, 1]} : vector<3x256xf32> to vector<1x256xf32>
    %17 = vector.broadcast %16 : vector<1x256xf32> to vector<16x256xf32>
    %18 = arith.mulf %1, %17 : vector<16x256xf32>
    %19 = arith.addf %15, %18 : vector<16x256xf32>
    %c15_i32 = arith.constant 15 : i32
    %20 = tpu.dynamic_rotate %1 by %c15_i32 dim 0 : vector<16x256xf32>, i32 -> vector<16x256xf32>
    %c15_i32_6 = arith.constant 15 : i32
    %21 = vector.broadcast %c15_i32_6 : i32 to vector<16x1xi32>
    %22 = arith.cmpi slt, %2, %21 : vector<16x1xi32>
    %cst_7 = arith.constant 0.000000e+00 : f32
    %23 = vector.shape_cast %22 : vector<16x1xi1> to vector<16x1xi1>
    %24 = vector.broadcast %23 : vector<16x1xi1> to vector<16x256xi1>
    %25 = vector.broadcast %cst_7 : f32 to vector<16x256xf32>
    %26 = arith.select %24, %20, %25 : vector<16x256xi1>, vector<16x256xf32>
    %27 = vector.extract_strided_slice %3 {offsets = [2, 0], sizes = [1, 256], strides = [1, 1]} : vector<3x256xf32> to vector<1x256xf32>
    %28 = vector.broadcast %27 : vector<1x256xf32> to vector<16x256xf32>
    %29 = arith.mulf %26, %28 : vector<16x256xf32>
    %30 = arith.addf %19, %29 : vector<16x256xf32>
    %31 = arith.truncf %30 : vector<16x256xf32> to vector<16x256xbf16>
    %c0_8 = arith.constant 0 : index
    %c0_9 = arith.constant 0 : index
    %32 = vector.load %arg3[%c0_8, %c0_9] : memref<256x128xf32, #tpu.memory_space<vmem>>, vector<256x128xf32>
    %33 = arith.truncf %32 : vector<256x128xf32> to vector<256x128xbf16>
    %cst_10 = arith.constant dense<0.000000e+00> : vector<16x128xf32>
    %34 = tpu.matmul %31, %33, %cst_10 {dimension_numbers = #tpu.dot_dimension_numbers<[1], [0], [0], [1], [0, 0, 1, 1], [], []>} : vector<16x256xbf16>, vector<256x128xbf16>, vector<16x128xf32> -> vector<16x128xf32>
    %c0_11 = arith.constant 0 : index
    %c0_12 = arith.constant 0 : index
    %c0_13 = arith.constant 0 : index
    %35 = vector.load %arg4[%c0_11, %c0_12, %c0_13] : memref<1x16x128xf32, #tpu.memory_space<vmem>>, vector<1x16x128xf32>
    %36 = vector.shape_cast %35 : vector<1x16x128xf32> to vector<16x128xf32>
    %37 = vector.shape_cast %34 : vector<16x128xf32> to vector<1x16x128xf32>
    tpu.vector_store %arg4[%c0_11, %c0_12, %c0_13], %37 {strides = array<i32>} : memref<1x16x128xf32, #tpu.memory_space<vmem>>, vector<1x16x128xf32>,
    return
  }
  func.func @transform_0(%arg0: i32) -> (i32, i32, i32) {
    %c0_i32 = arith.constant 0 : i32
    %c0_i32_0 = arith.constant 0 : i32
    %c0_i32_1 = arith.constant 0 : i32
    return %arg0, %c0_i32, %c0_i32_0 : i32, i32, i32
  }
  func.func @transform_1(%arg0: i32) -> (i32, i32) {
    %c0_i32 = arith.constant 0 : i32
    %c0_i32_0 = arith.constant 0 : i32
    %c0_i32_1 = arith.constant 0 : i32
    return %c0_i32, %c0_i32_0 : i32, i32
  }
  func.func @transform_2(%arg0: i32) -> (i32, i32) {
    %c0_i32 = arith.constant 0 : i32
    %c0_i32_0 = arith.constant 0 : i32
    %c0_i32_1 = arith.constant 0 : i32
    return %c0_i32, %c0_i32_0 : i32, i32
  }
  func.func @transform_3(%arg0: i32) -> (i32, i32, i32) {
    %c0_i32 = arith.constant 0 : i32
    %c0_i32_0 = arith.constant 0 : i32
    %c0_i32_1 = arith.constant 0 : i32
    return %arg0, %c0_i32, %c0_i32_0 : i32, i32, i32
  }
}

module attributes {stable_mosaic.version = 11 : i64} {
  func.func @encoder_kernel(%arg0: i32, %arg1: memref<1x16x128xf32, #tpu.memory_space<vmem>>, %arg2: memref<16x128xf32, #tpu.memory_space<vmem>>, %arg3: memref<2x3x128xf32, #tpu.memory_space<vmem>>, %arg4: memref<2x128x128xf32, #tpu.memory_space<vmem>>, %arg5: memref<128x384xf32, #tpu.memory_space<vmem>>, %arg6: memref<128x128xf32, #tpu.memory_space<vmem>>, %arg7: memref<1x128xf32, #tpu.memory_space<vmem>>, %arg8: memref<128x128xf32, #tpu.memory_space<vmem>>, %arg9: memref<1x128xf32, #tpu.memory_space<vmem>>, %arg10: memref<1x16x128xf32, #tpu.memory_space<vmem>>) attributes {dimension_semantics = [#tpu.dimension_semantics<parallel>], iteration_bounds = array<i64: 2>, scalar_prefetch = 0 : i64, scratch_operands = 0 : i64, tpu.core_type = #tpu.core_type<tc>, window_params = [{transform_indices = @transform_0, window_bounds = array<i64: 1, 16, 128>}, {pipeline_mode = #tpu.pipeline_mode<synchronous>, transform_indices = @transform_1, window_bounds = array<i64: 16, 128>}, {pipeline_mode = #tpu.pipeline_mode<synchronous>, transform_indices = @transform_2, window_bounds = array<i64: 2, 3, 128>}, {pipeline_mode = #tpu.pipeline_mode<synchronous>, transform_indices = @transform_3, window_bounds = array<i64: 2, 128, 128>}, {pipeline_mode = #tpu.pipeline_mode<synchronous>, transform_indices = @transform_4, window_bounds = array<i64: 128, 384>}, {pipeline_mode = #tpu.pipeline_mode<synchronous>, transform_indices = @transform_5, window_bounds = array<i64: 128, 128>}, {pipeline_mode = #tpu.pipeline_mode<synchronous>, transform_indices = @transform_6, window_bounds = array<i64: 1, 128>}, {pipeline_mode = #tpu.pipeline_mode<synchronous>, transform_indices = @transform_7, window_bounds = array<i64: 128, 128>}, {pipeline_mode = #tpu.pipeline_mode<synchronous>, transform_indices = @transform_8, window_bounds = array<i64: 1, 128>}, {transform_indices = @transform_9, window_bounds = array<i64: 1, 16, 128>}]} {
    %0 = tpu.iota {dimensions = array<i32: 0>} : vector<16x1xi32>
    %c0 = arith.constant 0 : index
    %c0_0 = arith.constant 0 : index
    %c0_1 = arith.constant 0 : index
    %1 = vector.load %arg1[%c0, %c0_0, %c0_1] : memref<1x16x128xf32, #tpu.memory_space<vmem>>, vector<1x16x128xf32>
    %2 = vector.shape_cast %1 : vector<1x16x128xf32> to vector<16x128xf32>
    %c0_2 = arith.constant 0 : index
    %c0_3 = arith.constant 0 : index
    %3 = vector.load %arg2[%c0_2, %c0_3] : memref<16x128xf32, #tpu.memory_space<vmem>>, vector<16x128xf32>
    %4 = arith.addf %2, %3 : vector<16x128xf32>
    %cst = arith.constant dense<0.000000e+00> : vector<128xf32>
    %5 = vector.multi_reduction <add>, %4, %cst [0] : vector<16x128xf32> to vector<128xf32>
    %6 = vector.shape_cast %5 : vector<128xf32> to vector<1x128xf32>
    %cst_4 = arith.constant 1.600000e+01 : f32
    %7 = vector.broadcast %cst_4 : f32 to vector<1x128xf32>
    %8 = arith.divf %6, %7 : vector<1x128xf32>
    %9 = vector.broadcast %8 : vector<1x128xf32> to vector<16x128xf32>
    %10 = arith.subf %4, %9 : vector<16x128xf32>
    %11 = arith.mulf %10, %10 : vector<16x128xf32>
    %cst_5 = arith.constant dense<0.000000e+00> : vector<128xf32>
    %12 = vector.multi_reduction <add>, %11, %cst_5 [0] : vector<16x128xf32> to vector<128xf32>
    %13 = vector.shape_cast %12 : vector<128xf32> to vector<1x128xf32>
    %cst_6 = arith.constant 1.500000e+01 : f32
    %14 = vector.broadcast %cst_6 : f32 to vector<1x128xf32>
    %15 = arith.divf %13, %14 : vector<1x128xf32>
    %16 = math.sqrt %15 : vector<1x128xf32>
    %cst_7 = arith.constant 9.99999997E-7 : f32
    %17 = vector.broadcast %cst_7 : f32 to vector<1x128xf32>
    %18 = arith.addf %16, %17 : vector<1x128xf32>
    %19 = vector.broadcast %18 : vector<1x128xf32> to vector<16x128xf32>
    %20 = arith.divf %10, %19 : vector<16x128xf32>
    %c0_8 = arith.constant 0 : index
    %c0_9 = arith.constant 0 : index
    %c0_10 = arith.constant 0 : index
    %21 = vector.load %arg3[%c0_8, %c0_9, %c0_10] : memref<2x3x128xf32, #tpu.memory_space<vmem>>, vector<1x3x128xf32>
    %22 = vector.shape_cast %21 : vector<1x3x128xf32> to vector<3x128xf32>
    %cst_11 = arith.constant 0.000000e+00 : f32
    %23 = vector.broadcast %cst_11 : f32 to vector<16x128xf32>
    %c1_i32 = arith.constant 1 : i32
    %24 = tpu.dynamic_rotate %20 by %c1_i32 dim 0 : vector<16x128xf32>, i32 -> vector<16x128xf32>
    %c1_i32_12 = arith.constant 1 : i32
    %25 = vector.broadcast %c1_i32_12 : i32 to vector<16x1xi32>
    %26 = arith.cmpi sge, %0, %25 : vector<16x1xi32>
    %cst_13 = arith.constant 0.000000e+00 : f32
    %27 = vector.shape_cast %26 : vector<16x1xi1> to vector<16x1xi1>
    %28 = vector.broadcast %27 : vector<16x1xi1> to vector<16x128xi1>
    %29 = vector.broadcast %cst_13 : f32 to vector<16x128xf32>
    %30 = arith.select %28, %24, %29 : vector<16x128xi1>, vector<16x128xf32>
    %31 = vector.extract_strided_slice %22 {offsets = [0, 0], sizes = [1, 128], strides = [1, 1]} : vector<3x128xf32> to vector<1x128xf32>
    %32 = vector.broadcast %31 : vector<1x128xf32> to vector<16x128xf32>
    %33 = arith.mulf %30, %32 : vector<16x128xf32>
    %34 = arith.addf %23, %33 : vector<16x128xf32>
    %35 = vector.extract_strided_slice %22 {offsets = [1, 0], sizes = [1, 128], strides = [1, 1]} : vector<3x128xf32> to vector<1x128xf32>
    %36 = vector.broadcast %35 : vector<1x128xf32> to vector<16x128xf32>
    %37 = arith.mulf %20, %36 : vector<16x128xf32>
    %38 = arith.addf %34, %37 : vector<16x128xf32>
    %c15_i32 = arith.constant 15 : i32
    %39 = tpu.dynamic_rotate %20 by %c15_i32 dim 0 : vector<16x128xf32>, i32 -> vector<16x128xf32>
    %c15_i32_14 = arith.constant 15 : i32
    %40 = vector.broadcast %c15_i32_14 : i32 to vector<16x1xi32>
    %41 = arith.cmpi slt, %0, %40 : vector<16x1xi32>
    %cst_15 = arith.constant 0.000000e+00 : f32
    %42 = vector.shape_cast %41 : vector<16x1xi1> to vector<16x1xi1>
    %43 = vector.broadcast %42 : vector<16x1xi1> to vector<16x128xi1>
    %44 = vector.broadcast %cst_15 : f32 to vector<16x128xf32>
    %45 = arith.select %43, %39, %44 : vector<16x128xi1>, vector<16x128xf32>
    %46 = vector.extract_strided_slice %22 {offsets = [2, 0], sizes = [1, 128], strides = [1, 1]} : vector<3x128xf32> to vector<1x128xf32>
    %47 = vector.broadcast %46 : vector<1x128xf32> to vector<16x128xf32>
    %48 = arith.mulf %45, %47 : vector<16x128xf32>
    %49 = arith.addf %38, %48 : vector<16x128xf32>
    %50 = arith.truncf %49 : vector<16x128xf32> to vector<16x128xbf16>
    %c0_16 = arith.constant 0 : index
    %c0_17 = arith.constant 0 : index
    %c0_18 = arith.constant 0 : index
    %51 = vector.load %arg4[%c0_16, %c0_17, %c0_18] : memref<2x128x128xf32, #tpu.memory_space<vmem>>, vector<1x128x128xf32>
    %52 = vector.shape_cast %51 : vector<1x128x128xf32> to vector<128x128xf32>
    %53 = arith.truncf %52 : vector<128x128xf32> to vector<128x128xbf16>
    %cst_19 = arith.constant dense<0.000000e+00> : vector<16x128xf32>
    %54 = tpu.matmul %50, %53, %cst_19 {dimension_numbers = #tpu.dot_dimension_numbers<[1], [0], [0], [1], [0, 0, 1, 1], [], []>} : vector<16x128xbf16>, vector<128x128xbf16>, vector<16x128xf32> -> vector<16x128xf32>
    %cst_20 = arith.constant 0.000000e+00 : f32
    %55 = vector.broadcast %cst_20 : f32 to vector<16x128xf32>
    %56 = arith.maximumf %54, %55 : vector<16x128xf32>
    %57 = arith.addf %4, %56 : vector<16x128xf32>
    %cst_21 = arith.constant dense<0.000000e+00> : vector<128xf32>
    %58 = vector.multi_reduction <add>, %57, %cst_21 [0] : vector<16x128xf32> to vector<128xf32>
    %59 = vector.shape_cast %58 : vector<128xf32> to vector<1x128xf32>
    %cst_22 = arith.constant 1.600000e+01 : f32
    %60 = vector.broadcast %cst_22 : f32 to vector<1x128xf32>
    %61 = arith.divf %59, %60 : vector<1x128xf32>
    %62 = vector.broadcast %61 : vector<1x128xf32> to vector<16x128xf32>
    %63 = arith.subf %57, %62 : vector<16x128xf32>
    %64 = arith.mulf %63, %63 : vector<16x128xf32>
    %cst_23 = arith.constant dense<0.000000e+00> : vector<128xf32>
    %65 = vector.multi_reduction <add>, %64, %cst_23 [0] : vector<16x128xf32> to vector<128xf32>
    %66 = vector.shape_cast %65 : vector<128xf32> to vector<1x128xf32>
    %cst_24 = arith.constant 1.500000e+01 : f32
    %67 = vector.broadcast %cst_24 : f32 to vector<1x128xf32>
    %68 = arith.divf %66, %67 : vector<1x128xf32>
    %69 = math.sqrt %68 : vector<1x128xf32>
    %cst_25 = arith.constant 9.99999997E-7 : f32
    %70 = vector.broadcast %cst_25 : f32 to vector<1x128xf32>
    %71 = arith.addf %69, %70 : vector<1x128xf32>
    %72 = vector.broadcast %71 : vector<1x128xf32> to vector<16x128xf32>
    %73 = arith.divf %63, %72 : vector<16x128xf32>
    %c1 = arith.constant 1 : index
    %c0_26 = arith.constant 0 : index
    %c0_27 = arith.constant 0 : index
    %74 = vector.load %arg3[%c1, %c0_26, %c0_27] : memref<2x3x128xf32, #tpu.memory_space<vmem>>, vector<1x3x128xf32>
    %75 = vector.shape_cast %74 : vector<1x3x128xf32> to vector<3x128xf32>
    %cst_28 = arith.constant 0.000000e+00 : f32
    %76 = vector.broadcast %cst_28 : f32 to vector<16x128xf32>
    %c1_i32_29 = arith.constant 1 : i32
    %77 = tpu.dynamic_rotate %73 by %c1_i32_29 dim 0 : vector<16x128xf32>, i32 -> vector<16x128xf32>
    %c1_i32_30 = arith.constant 1 : i32
    %78 = vector.broadcast %c1_i32_30 : i32 to vector<16x1xi32>
    %79 = arith.cmpi sge, %0, %78 : vector<16x1xi32>
    %cst_31 = arith.constant 0.000000e+00 : f32
    %80 = vector.shape_cast %79 : vector<16x1xi1> to vector<16x1xi1>
    %81 = vector.broadcast %80 : vector<16x1xi1> to vector<16x128xi1>
    %82 = vector.broadcast %cst_31 : f32 to vector<16x128xf32>
    %83 = arith.select %81, %77, %82 : vector<16x128xi1>, vector<16x128xf32>
    %84 = vector.extract_strided_slice %75 {offsets = [0, 0], sizes = [1, 128], strides = [1, 1]} : vector<3x128xf32> to vector<1x128xf32>
    %85 = vector.broadcast %84 : vector<1x128xf32> to vector<16x128xf32>
    %86 = arith.mulf %83, %85 : vector<16x128xf32>
    %87 = arith.addf %76, %86 : vector<16x128xf32>
    %88 = vector.extract_strided_slice %75 {offsets = [1, 0], sizes = [1, 128], strides = [1, 1]} : vector<3x128xf32> to vector<1x128xf32>
    %89 = vector.broadcast %88 : vector<1x128xf32> to vector<16x128xf32>
    %90 = arith.mulf %73, %89 : vector<16x128xf32>
    %91 = arith.addf %87, %90 : vector<16x128xf32>
    %c15_i32_32 = arith.constant 15 : i32
    %92 = tpu.dynamic_rotate %73 by %c15_i32_32 dim 0 : vector<16x128xf32>, i32 -> vector<16x128xf32>
    %c15_i32_33 = arith.constant 15 : i32
    %93 = vector.broadcast %c15_i32_33 : i32 to vector<16x1xi32>
    %94 = arith.cmpi slt, %0, %93 : vector<16x1xi32>
    %cst_34 = arith.constant 0.000000e+00 : f32
    %95 = vector.shape_cast %94 : vector<16x1xi1> to vector<16x1xi1>
    %96 = vector.broadcast %95 : vector<16x1xi1> to vector<16x128xi1>
    %97 = vector.broadcast %cst_34 : f32 to vector<16x128xf32>
    %98 = arith.select %96, %92, %97 : vector<16x128xi1>, vector<16x128xf32>
    %99 = vector.extract_strided_slice %75 {offsets = [2, 0], sizes = [1, 128], strides = [1, 1]} : vector<3x128xf32> to vector<1x128xf32>
    %100 = vector.broadcast %99 : vector<1x128xf32> to vector<16x128xf32>
    %101 = arith.mulf %98, %100 : vector<16x128xf32>
    %102 = arith.addf %91, %101 : vector<16x128xf32>
    %103 = arith.truncf %102 : vector<16x128xf32> to vector<16x128xbf16>
    %c1_35 = arith.constant 1 : index
    %c0_36 = arith.constant 0 : index
    %c0_37 = arith.constant 0 : index
    %104 = vector.load %arg4[%c1_35, %c0_36, %c0_37] : memref<2x128x128xf32, #tpu.memory_space<vmem>>, vector<1x128x128xf32>
    %105 = vector.shape_cast %104 : vector<1x128x128xf32> to vector<128x128xf32>
    %106 = arith.truncf %105 : vector<128x128xf32> to vector<128x128xbf16>
    %cst_38 = arith.constant dense<0.000000e+00> : vector<16x128xf32>
    %107 = tpu.matmul %103, %106, %cst_38 {dimension_numbers = #tpu.dot_dimension_numbers<[1], [0], [0], [1], [0, 0, 1, 1], [], []>} : vector<16x128xbf16>, vector<128x128xbf16>, vector<16x128xf32> -> vector<16x128xf32>
    %cst_39 = arith.constant 0.000000e+00 : f32
    %108 = vector.broadcast %cst_39 : f32 to vector<16x128xf32>
    %109 = arith.maximumf %107, %108 : vector<16x128xf32>
    %110 = arith.addf %57, %109 : vector<16x128xf32>
    %cst_40 = arith.constant dense<0.000000e+00> : vector<128xf32>
    %111 = vector.multi_reduction <add>, %110, %cst_40 [0] : vector<16x128xf32> to vector<128xf32>
    %112 = vector.shape_cast %111 : vector<128xf32> to vector<1x128xf32>
    %cst_41 = arith.constant 1.600000e+01 : f32
    %113 = vector.broadcast %cst_41 : f32 to vector<1x128xf32>
    %114 = arith.divf %112, %113 : vector<1x128xf32>
    %115 = vector.broadcast %114 : vector<1x128xf32> to vector<16x128xf32>
    %116 = arith.subf %110, %115 : vector<16x128xf32>
    %117 = arith.mulf %116, %116 : vector<16x128xf32>
    %cst_42 = arith.constant dense<0.000000e+00> : vector<128xf32>
    %118 = vector.multi_reduction <add>, %117, %cst_42 [0] : vector<16x128xf32> to vector<128xf32>
    %119 = vector.shape_cast %118 : vector<128xf32> to vector<1x128xf32>
    %cst_43 = arith.constant 1.500000e+01 : f32
    %120 = vector.broadcast %cst_43 : f32 to vector<1x128xf32>
    %121 = arith.divf %119, %120 : vector<1x128xf32>
    %122 = math.sqrt %121 : vector<1x128xf32>
    %cst_44 = arith.constant 9.99999997E-7 : f32
    %123 = vector.broadcast %cst_44 : f32 to vector<1x128xf32>
    %124 = arith.addf %122, %123 : vector<1x128xf32>
    %125 = vector.broadcast %124 : vector<1x128xf32> to vector<16x128xf32>
    %126 = arith.divf %116, %125 : vector<16x128xf32>
    %127 = arith.truncf %126 : vector<16x128xf32> to vector<16x128xbf16>
    %c0_45 = arith.constant 0 : index
    %c0_46 = arith.constant 0 : index
    %128 = vector.load %arg5[%c0_45, %c0_46] : memref<128x384xf32, #tpu.memory_space<vmem>>, vector<128x384xf32>
    %129 = arith.truncf %128 : vector<128x384xf32> to vector<128x384xbf16>
    %cst_47 = arith.constant dense<0.000000e+00> : vector<16x384xf32>
    %130 = tpu.matmul %127, %129, %cst_47 {dimension_numbers = #tpu.dot_dimension_numbers<[1], [0], [0], [1], [0, 0, 1, 1], [], []>} : vector<16x128xbf16>, vector<128x384xbf16>, vector<16x384xf32> -> vector<16x384xf32>
    %131 = vector.extract_strided_slice %130 {offsets = [0, 0], sizes = [16, 16], strides = [1, 1]} : vector<16x384xf32> to vector<16x16xf32>
    %132 = vector.extract_strided_slice %130 {offsets = [0, 128], sizes = [16, 16], strides = [1, 1]} : vector<16x384xf32> to vector<16x16xf32>
    %133 = vector.extract_strided_slice %130 {offsets = [0, 256], sizes = [16, 16], strides = [1, 1]} : vector<16x384xf32> to vector<16x16xf32>
    %134 = arith.truncf %131 : vector<16x16xf32> to vector<16x16xbf16>
    %135 = arith.truncf %132 : vector<16x16xf32> to vector<16x16xbf16>
    "tpu.trace_start"() <{level = 10 : i32, message = "qd,kd->qk"}> : () -> ()
    %cst_48 = arith.constant dense<0.000000e+00> : vector<16x16xf32>
    %136 = tpu.matmul %134, %135, %cst_48 {dimension_numbers = #tpu.dot_dimension_numbers<[1], [1], [0], [0], [0, 0, 1, 0], [], []>} : vector<16x16xbf16>, vector<16x16xbf16>, vector<16x16xf32> -> vector<16x16xf32>
    "tpu.trace_stop"() : () -> ()
    %cst_49 = arith.constant 2.500000e-01 : f32
    %137 = vector.broadcast %cst_49 : f32 to vector<16x16xf32>
    %138 = arith.mulf %136, %137 : vector<16x16xf32>
    %cst_50 = arith.constant dense<0xFF800000> : vector<16xf32>
    %139 = vector.multi_reduction <maximumf>, %138, %cst_50 [1] : vector<16x16xf32> to vector<16xf32>
    %140 = vector.shape_cast %139 : vector<16xf32> to vector<16x1xf32>
    %141 = vector.broadcast %140 : vector<16x1xf32> to vector<16x16xf32>
    %142 = arith.subf %138, %141 : vector<16x16xf32>
    %143 = math.exp %142 : vector<16x16xf32>
    %cst_51 = arith.constant dense<0.000000e+00> : vector<16xf32>
    %144 = vector.multi_reduction <add>, %143, %cst_51 [1] : vector<16x16xf32> to vector<16xf32>
    %145 = vector.shape_cast %144 : vector<16xf32> to vector<16x1xf32>
    %146 = vector.broadcast %145 : vector<16x1xf32> to vector<16x16xf32>
    %147 = arith.divf %143, %146 : vector<16x16xf32>
    %148 = arith.truncf %147 : vector<16x16xf32> to vector<16x16xbf16>
    %149 = arith.truncf %133 : vector<16x16xf32> to vector<16x16xbf16>
    %cst_52 = arith.constant dense<0.000000e+00> : vector<16x16xf32>
    %150 = tpu.matmul %148, %149, %cst_52 {dimension_numbers = #tpu.dot_dimension_numbers<[1], [0], [0], [1], [0, 0, 1, 1], [], []>} : vector<16x16xbf16>, vector<16x16xbf16>, vector<16x16xf32> -> vector<16x16xf32>
    %151 = vector.extract_strided_slice %130 {offsets = [0, 16], sizes = [16, 16], strides = [1, 1]} : vector<16x384xf32> to vector<16x16xf32>
    %152 = vector.extract_strided_slice %130 {offsets = [0, 144], sizes = [16, 16], strides = [1, 1]} : vector<16x384xf32> to vector<16x16xf32>
    %153 = vector.extract_strided_slice %130 {offsets = [0, 272], sizes = [16, 16], strides = [1, 1]} : vector<16x384xf32> to vector<16x16xf32>
    %154 = arith.truncf %151 : vector<16x16xf32> to vector<16x16xbf16>
    %155 = arith.truncf %152 : vector<16x16xf32> to vector<16x16xbf16>
    "tpu.trace_start"() <{level = 10 : i32, message = "qd,kd->qk"}> : () -> ()
    %cst_53 = arith.constant dense<0.000000e+00> : vector<16x16xf32>
    %156 = tpu.matmul %154, %155, %cst_53 {dimension_numbers = #tpu.dot_dimension_numbers<[1], [1], [0], [0], [0, 0, 1, 0], [], []>} : vector<16x16xbf16>, vector<16x16xbf16>, vector<16x16xf32> -> vector<16x16xf32>
    "tpu.trace_stop"() : () -> ()
    %cst_54 = arith.constant 2.500000e-01 : f32
    %157 = vector.broadcast %cst_54 : f32 to vector<16x16xf32>
    %158 = arith.mulf %156, %157 : vector<16x16xf32>
    %cst_55 = arith.constant dense<0xFF800000> : vector<16xf32>
    %159 = vector.multi_reduction <maximumf>, %158, %cst_55 [1] : vector<16x16xf32> to vector<16xf32>
    %160 = vector.shape_cast %159 : vector<16xf32> to vector<16x1xf32>
    %161 = vector.broadcast %160 : vector<16x1xf32> to vector<16x16xf32>
    %162 = arith.subf %158, %161 : vector<16x16xf32>
    %163 = math.exp %162 : vector<16x16xf32>
    %cst_56 = arith.constant dense<0.000000e+00> : vector<16xf32>
    %164 = vector.multi_reduction <add>, %163, %cst_56 [1] : vector<16x16xf32> to vector<16xf32>
    %165 = vector.shape_cast %164 : vector<16xf32> to vector<16x1xf32>
    %166 = vector.broadcast %165 : vector<16x1xf32> to vector<16x16xf32>
    %167 = arith.divf %163, %166 : vector<16x16xf32>
    %168 = arith.truncf %167 : vector<16x16xf32> to vector<16x16xbf16>
    %169 = arith.truncf %153 : vector<16x16xf32> to vector<16x16xbf16>
    %cst_57 = arith.constant dense<0.000000e+00> : vector<16x16xf32>
    %170 = tpu.matmul %168, %169, %cst_57 {dimension_numbers = #tpu.dot_dimension_numbers<[1], [0], [0], [1], [0, 0, 1, 1], [], []>} : vector<16x16xbf16>, vector<16x16xbf16>, vector<16x16xf32> -> vector<16x16xf32>
    %171 = vector.extract_strided_slice %130 {offsets = [0, 32], sizes = [16, 16], strides = [1, 1]} : vector<16x384xf32> to vector<16x16xf32>
    %172 = vector.extract_strided_slice %130 {offsets = [0, 160], sizes = [16, 16], strides = [1, 1]} : vector<16x384xf32> to vector<16x16xf32>
    %173 = vector.extract_strided_slice %130 {offsets = [0, 288], sizes = [16, 16], strides = [1, 1]} : vector<16x384xf32> to vector<16x16xf32>
    %174 = arith.truncf %171 : vector<16x16xf32> to vector<16x16xbf16>
    %175 = arith.truncf %172 : vector<16x16xf32> to vector<16x16xbf16>
    "tpu.trace_start"() <{level = 10 : i32, message = "qd,kd->qk"}> : () -> ()
    %cst_58 = arith.constant dense<0.000000e+00> : vector<16x16xf32>
    %176 = tpu.matmul %174, %175, %cst_58 {dimension_numbers = #tpu.dot_dimension_numbers<[1], [1], [0], [0], [0, 0, 1, 0], [], []>} : vector<16x16xbf16>, vector<16x16xbf16>, vector<16x16xf32> -> vector<16x16xf32>
    "tpu.trace_stop"() : () -> ()
    %cst_59 = arith.constant 2.500000e-01 : f32
    %177 = vector.broadcast %cst_59 : f32 to vector<16x16xf32>
    %178 = arith.mulf %176, %177 : vector<16x16xf32>
    %cst_60 = arith.constant dense<0xFF800000> : vector<16xf32>
    %179 = vector.multi_reduction <maximumf>, %178, %cst_60 [1] : vector<16x16xf32> to vector<16xf32>
    %180 = vector.shape_cast %179 : vector<16xf32> to vector<16x1xf32>
    %181 = vector.broadcast %180 : vector<16x1xf32> to vector<16x16xf32>
    %182 = arith.subf %178, %181 : vector<16x16xf32>
    %183 = math.exp %182 : vector<16x16xf32>
    %cst_61 = arith.constant dense<0.000000e+00> : vector<16xf32>
    %184 = vector.multi_reduction <add>, %183, %cst_61 [1] : vector<16x16xf32> to vector<16xf32>
    %185 = vector.shape_cast %184 : vector<16xf32> to vector<16x1xf32>
    %186 = vector.broadcast %185 : vector<16x1xf32> to vector<16x16xf32>
    %187 = arith.divf %183, %186 : vector<16x16xf32>
    %188 = arith.truncf %187 : vector<16x16xf32> to vector<16x16xbf16>
    %189 = arith.truncf %173 : vector<16x16xf32> to vector<16x16xbf16>
    %cst_62 = arith.constant dense<0.000000e+00> : vector<16x16xf32>
    %190 = tpu.matmul %188, %189, %cst_62 {dimension_numbers = #tpu.dot_dimension_numbers<[1], [0], [0], [1], [0, 0, 1, 1], [], []>} : vector<16x16xbf16>, vector<16x16xbf16>, vector<16x16xf32> -> vector<16x16xf32>
    %191 = vector.extract_strided_slice %130 {offsets = [0, 48], sizes = [16, 16], strides = [1, 1]} : vector<16x384xf32> to vector<16x16xf32>
    %192 = vector.extract_strided_slice %130 {offsets = [0, 176], sizes = [16, 16], strides = [1, 1]} : vector<16x384xf32> to vector<16x16xf32>
    %193 = vector.extract_strided_slice %130 {offsets = [0, 304], sizes = [16, 16], strides = [1, 1]} : vector<16x384xf32> to vector<16x16xf32>
    %194 = arith.truncf %191 : vector<16x16xf32> to vector<16x16xbf16>
    %195 = arith.truncf %192 : vector<16x16xf32> to vector<16x16xbf16>
    "tpu.trace_start"() <{level = 10 : i32, message = "qd,kd->qk"}> : () -> ()
    %cst_63 = arith.constant dense<0.000000e+00> : vector<16x16xf32>
    %196 = tpu.matmul %194, %195, %cst_63 {dimension_numbers = #tpu.dot_dimension_numbers<[1], [1], [0], [0], [0, 0, 1, 0], [], []>} : vector<16x16xbf16>, vector<16x16xbf16>, vector<16x16xf32> -> vector<16x16xf32>
    "tpu.trace_stop"() : () -> ()
    %cst_64 = arith.constant 2.500000e-01 : f32
    %197 = vector.broadcast %cst_64 : f32 to vector<16x16xf32>
    %198 = arith.mulf %196, %197 : vector<16x16xf32>
    %cst_65 = arith.constant dense<0xFF800000> : vector<16xf32>
    %199 = vector.multi_reduction <maximumf>, %198, %cst_65 [1] : vector<16x16xf32> to vector<16xf32>
    %200 = vector.shape_cast %199 : vector<16xf32> to vector<16x1xf32>
    %201 = vector.broadcast %200 : vector<16x1xf32> to vector<16x16xf32>
    %202 = arith.subf %198, %201 : vector<16x16xf32>
    %203 = math.exp %202 : vector<16x16xf32>
    %cst_66 = arith.constant dense<0.000000e+00> : vector<16xf32>
    %204 = vector.multi_reduction <add>, %203, %cst_66 [1] : vector<16x16xf32> to vector<16xf32>
    %205 = vector.shape_cast %204 : vector<16xf32> to vector<16x1xf32>
    %206 = vector.broadcast %205 : vector<16x1xf32> to vector<16x16xf32>
    %207 = arith.divf %203, %206 : vector<16x16xf32>
    %208 = arith.truncf %207 : vector<16x16xf32> to vector<16x16xbf16>
    %209 = arith.truncf %193 : vector<16x16xf32> to vector<16x16xbf16>
    %cst_67 = arith.constant dense<0.000000e+00> : vector<16x16xf32>
    %210 = tpu.matmul %208, %209, %cst_67 {dimension_numbers = #tpu.dot_dimension_numbers<[1], [0], [0], [1], [0, 0, 1, 1], [], []>} : vector<16x16xbf16>, vector<16x16xbf16>, vector<16x16xf32> -> vector<16x16xf32>
    %211 = vector.extract_strided_slice %130 {offsets = [0, 64], sizes = [16, 16], strides = [1, 1]} : vector<16x384xf32> to vector<16x16xf32>
    %212 = vector.extract_strided_slice %130 {offsets = [0, 192], sizes = [16, 16], strides = [1, 1]} : vector<16x384xf32> to vector<16x16xf32>
    %213 = vector.extract_strided_slice %130 {offsets = [0, 320], sizes = [16, 16], strides = [1, 1]} : vector<16x384xf32> to vector<16x16xf32>
    %214 = arith.truncf %211 : vector<16x16xf32> to vector<16x16xbf16>
    %215 = arith.truncf %212 : vector<16x16xf32> to vector<16x16xbf16>
    "tpu.trace_start"() <{level = 10 : i32, message = "qd,kd->qk"}> : () -> ()
    %cst_68 = arith.constant dense<0.000000e+00> : vector<16x16xf32>
    %216 = tpu.matmul %214, %215, %cst_68 {dimension_numbers = #tpu.dot_dimension_numbers<[1], [1], [0], [0], [0, 0, 1, 0], [], []>} : vector<16x16xbf16>, vector<16x16xbf16>, vector<16x16xf32> -> vector<16x16xf32>
    "tpu.trace_stop"() : () -> ()
    %cst_69 = arith.constant 2.500000e-01 : f32
    %217 = vector.broadcast %cst_69 : f32 to vector<16x16xf32>
    %218 = arith.mulf %216, %217 : vector<16x16xf32>
    %cst_70 = arith.constant dense<0xFF800000> : vector<16xf32>
    %219 = vector.multi_reduction <maximumf>, %218, %cst_70 [1] : vector<16x16xf32> to vector<16xf32>
    %220 = vector.shape_cast %219 : vector<16xf32> to vector<16x1xf32>
    %221 = vector.broadcast %220 : vector<16x1xf32> to vector<16x16xf32>
    %222 = arith.subf %218, %221 : vector<16x16xf32>
    %223 = math.exp %222 : vector<16x16xf32>
    %cst_71 = arith.constant dense<0.000000e+00> : vector<16xf32>
    %224 = vector.multi_reduction <add>, %223, %cst_71 [1] : vector<16x16xf32> to vector<16xf32>
    %225 = vector.shape_cast %224 : vector<16xf32> to vector<16x1xf32>
    %226 = vector.broadcast %225 : vector<16x1xf32> to vector<16x16xf32>
    %227 = arith.divf %223, %226 : vector<16x16xf32>
    %228 = arith.truncf %227 : vector<16x16xf32> to vector<16x16xbf16>
    %229 = arith.truncf %213 : vector<16x16xf32> to vector<16x16xbf16>
    %cst_72 = arith.constant dense<0.000000e+00> : vector<16x16xf32>
    %230 = tpu.matmul %228, %229, %cst_72 {dimension_numbers = #tpu.dot_dimension_numbers<[1], [0], [0], [1], [0, 0, 1, 1], [], []>} : vector<16x16xbf16>, vector<16x16xbf16>, vector<16x16xf32> -> vector<16x16xf32>
    %231 = vector.extract_strided_slice %130 {offsets = [0, 80], sizes = [16, 16], strides = [1, 1]} : vector<16x384xf32> to vector<16x16xf32>
    %232 = vector.extract_strided_slice %130 {offsets = [0, 208], sizes = [16, 16], strides = [1, 1]} : vector<16x384xf32> to vector<16x16xf32>
    %233 = vector.extract_strided_slice %130 {offsets = [0, 336], sizes = [16, 16], strides = [1, 1]} : vector<16x384xf32> to vector<16x16xf32>
    %234 = arith.truncf %231 : vector<16x16xf32> to vector<16x16xbf16>
    %235 = arith.truncf %232 : vector<16x16xf32> to vector<16x16xbf16>
    "tpu.trace_start"() <{level = 10 : i32, message = "qd,kd->qk"}> : () -> ()
    %cst_73 = arith.constant dense<0.000000e+00> : vector<16x16xf32>
    %236 = tpu.matmul %234, %235, %cst_73 {dimension_numbers = #tpu.dot_dimension_numbers<[1], [1], [0], [0], [0, 0, 1, 0], [], []>} : vector<16x16xbf16>, vector<16x16xbf16>, vector<16x16xf32> -> vector<16x16xf32>
    "tpu.trace_stop"() : () -> ()
    %cst_74 = arith.constant 2.500000e-01 : f32
    %237 = vector.broadcast %cst_74 : f32 to vector<16x16xf32>
    %238 = arith.mulf %236, %237 : vector<16x16xf32>
    %cst_75 = arith.constant dense<0xFF800000> : vector<16xf32>
    %239 = vector.multi_reduction <maximumf>, %238, %cst_75 [1] : vector<16x16xf32> to vector<16xf32>
    %240 = vector.shape_cast %239 : vector<16xf32> to vector<16x1xf32>
    %241 = vector.broadcast %240 : vector<16x1xf32> to vector<16x16xf32>
    %242 = arith.subf %238, %241 : vector<16x16xf32>
    %243 = math.exp %242 : vector<16x16xf32>
    %cst_76 = arith.constant dense<0.000000e+00> : vector<16xf32>
    %244 = vector.multi_reduction <add>, %243, %cst_76 [1] : vector<16x16xf32> to vector<16xf32>
    %245 = vector.shape_cast %244 : vector<16xf32> to vector<16x1xf32>
    %246 = vector.broadcast %245 : vector<16x1xf32> to vector<16x16xf32>
    %247 = arith.divf %243, %246 : vector<16x16xf32>
    %248 = arith.truncf %247 : vector<16x16xf32> to vector<16x16xbf16>
    %249 = arith.truncf %233 : vector<16x16xf32> to vector<16x16xbf16>
    %cst_77 = arith.constant dense<0.000000e+00> : vector<16x16xf32>
    %250 = tpu.matmul %248, %249, %cst_77 {dimension_numbers = #tpu.dot_dimension_numbers<[1], [0], [0], [1], [0, 0, 1, 1], [], []>} : vector<16x16xbf16>, vector<16x16xbf16>, vector<16x16xf32> -> vector<16x16xf32>
    %251 = vector.extract_strided_slice %130 {offsets = [0, 96], sizes = [16, 16], strides = [1, 1]} : vector<16x384xf32> to vector<16x16xf32>
    %252 = vector.extract_strided_slice %130 {offsets = [0, 224], sizes = [16, 16], strides = [1, 1]} : vector<16x384xf32> to vector<16x16xf32>
    %253 = vector.extract_strided_slice %130 {offsets = [0, 352], sizes = [16, 16], strides = [1, 1]} : vector<16x384xf32> to vector<16x16xf32>
    %254 = arith.truncf %251 : vector<16x16xf32> to vector<16x16xbf16>
    %255 = arith.truncf %252 : vector<16x16xf32> to vector<16x16xbf16>
    "tpu.trace_start"() <{level = 10 : i32, message = "qd,kd->qk"}> : () -> ()
    %cst_78 = arith.constant dense<0.000000e+00> : vector<16x16xf32>
    %256 = tpu.matmul %254, %255, %cst_78 {dimension_numbers = #tpu.dot_dimension_numbers<[1], [1], [0], [0], [0, 0, 1, 0], [], []>} : vector<16x16xbf16>, vector<16x16xbf16>, vector<16x16xf32> -> vector<16x16xf32>
    "tpu.trace_stop"() : () -> ()
    %cst_79 = arith.constant 2.500000e-01 : f32
    %257 = vector.broadcast %cst_79 : f32 to vector<16x16xf32>
    %258 = arith.mulf %256, %257 : vector<16x16xf32>
    %cst_80 = arith.constant dense<0xFF800000> : vector<16xf32>
    %259 = vector.multi_reduction <maximumf>, %258, %cst_80 [1] : vector<16x16xf32> to vector<16xf32>
    %260 = vector.shape_cast %259 : vector<16xf32> to vector<16x1xf32>
    %261 = vector.broadcast %260 : vector<16x1xf32> to vector<16x16xf32>
    %262 = arith.subf %258, %261 : vector<16x16xf32>
    %263 = math.exp %262 : vector<16x16xf32>
    %cst_81 = arith.constant dense<0.000000e+00> : vector<16xf32>
    %264 = vector.multi_reduction <add>, %263, %cst_81 [1] : vector<16x16xf32> to vector<16xf32>
    %265 = vector.shape_cast %264 : vector<16xf32> to vector<16x1xf32>
    %266 = vector.broadcast %265 : vector<16x1xf32> to vector<16x16xf32>
    %267 = arith.divf %263, %266 : vector<16x16xf32>
    %268 = arith.truncf %267 : vector<16x16xf32> to vector<16x16xbf16>
    %269 = arith.truncf %253 : vector<16x16xf32> to vector<16x16xbf16>
    %cst_82 = arith.constant dense<0.000000e+00> : vector<16x16xf32>
    %270 = tpu.matmul %268, %269, %cst_82 {dimension_numbers = #tpu.dot_dimension_numbers<[1], [0], [0], [1], [0, 0, 1, 1], [], []>} : vector<16x16xbf16>, vector<16x16xbf16>, vector<16x16xf32> -> vector<16x16xf32>
    %271 = vector.extract_strided_slice %130 {offsets = [0, 112], sizes = [16, 16], strides = [1, 1]} : vector<16x384xf32> to vector<16x16xf32>
    %272 = vector.extract_strided_slice %130 {offsets = [0, 240], sizes = [16, 16], strides = [1, 1]} : vector<16x384xf32> to vector<16x16xf32>
    %273 = vector.extract_strided_slice %130 {offsets = [0, 368], sizes = [16, 16], strides = [1, 1]} : vector<16x384xf32> to vector<16x16xf32>
    %274 = arith.truncf %271 : vector<16x16xf32> to vector<16x16xbf16>
    %275 = arith.truncf %272 : vector<16x16xf32> to vector<16x16xbf16>
    "tpu.trace_start"() <{level = 10 : i32, message = "qd,kd->qk"}> : () -> ()
    %cst_83 = arith.constant dense<0.000000e+00> : vector<16x16xf32>
    %276 = tpu.matmul %274, %275, %cst_83 {dimension_numbers = #tpu.dot_dimension_numbers<[1], [1], [0], [0], [0, 0, 1, 0], [], []>} : vector<16x16xbf16>, vector<16x16xbf16>, vector<16x16xf32> -> vector<16x16xf32>
    "tpu.trace_stop"() : () -> ()
    %cst_84 = arith.constant 2.500000e-01 : f32
    %277 = vector.broadcast %cst_84 : f32 to vector<16x16xf32>
    %278 = arith.mulf %276, %277 : vector<16x16xf32>
    %cst_85 = arith.constant dense<0xFF800000> : vector<16xf32>
    %279 = vector.multi_reduction <maximumf>, %278, %cst_85 [1] : vector<16x16xf32> to vector<16xf32>
    %280 = vector.shape_cast %279 : vector<16xf32> to vector<16x1xf32>
    %281 = vector.broadcast %280 : vector<16x1xf32> to vector<16x16xf32>
    %282 = arith.subf %278, %281 : vector<16x16xf32>
    %283 = math.exp %282 : vector<16x16xf32>
    %cst_86 = arith.constant dense<0.000000e+00> : vector<16xf32>
    %284 = vector.multi_reduction <add>, %283, %cst_86 [1] : vector<16x16xf32> to vector<16xf32>
    %285 = vector.shape_cast %284 : vector<16xf32> to vector<16x1xf32>
    %286 = vector.broadcast %285 : vector<16x1xf32> to vector<16x16xf32>
    %287 = arith.divf %283, %286 : vector<16x16xf32>
    %288 = arith.truncf %287 : vector<16x16xf32> to vector<16x16xbf16>
    %289 = arith.truncf %273 : vector<16x16xf32> to vector<16x16xbf16>
    %cst_87 = arith.constant dense<0.000000e+00> : vector<16x16xf32>
    %290 = tpu.matmul %288, %289, %cst_87 {dimension_numbers = #tpu.dot_dimension_numbers<[1], [0], [0], [1], [0, 0, 1, 1], [], []>} : vector<16x16xbf16>, vector<16x16xbf16>, vector<16x16xf32> -> vector<16x16xf32>
    %291 = tpu.concatenate %150, %170, %190, %210, %230, %250, %270, %290 in 1 : vector<16x16xf32>, vector<16x16xf32>, vector<16x16xf32>, vector<16x16xf32>, vector<16x16xf32>, vector<16x16xf32>, vector<16x16xf32>, vector<16x16xf32> -> vector<16x128xf32>
    %292 = arith.truncf %291 : vector<16x128xf32> to vector<16x128xbf16>
    %c0_88 = arith.constant 0 : index
    %c0_89 = arith.constant 0 : index
    %293 = vector.load %arg6[%c0_88, %c0_89] : memref<128x128xf32, #tpu.memory_space<vmem>>, vector<128x128xf32>
    %294 = arith.truncf %293 : vector<128x128xf32> to vector<128x128xbf16>
    %cst_90 = arith.constant dense<0.000000e+00> : vector<16x128xf32>
    %295 = tpu.matmul %292, %294, %cst_90 {dimension_numbers = #tpu.dot_dimension_numbers<[1], [0], [0], [1], [0, 0, 1, 1], [], []>} : vector<16x128xbf16>, vector<128x128xbf16>, vector<16x128xf32> -> vector<16x128xf32>
    %c0_91 = arith.constant 0 : index
    %c0_92 = arith.constant 0 : index
    %296 = vector.load %arg7[%c0_91, %c0_92] : memref<1x128xf32, #tpu.memory_space<vmem>>, vector<1x128xf32>
    %297 = vector.broadcast %296 : vector<1x128xf32> to vector<16x128xf32>
    %298 = arith.addf %295, %297 : vector<16x128xf32>
    %299 = arith.addf %298, %126 : vector<16x128xf32>
    %cst_93 = arith.constant dense<0.000000e+00> : vector<16xf32>
    %300 = vector.multi_reduction <add>, %299, %cst_93 [1] : vector<16x128xf32> to vector<16xf32>
    %301 = vector.shape_cast %300 : vector<16xf32> to vector<16x1xf32>
    %cst_94 = arith.constant 1.280000e+02 : f32
    %302 = vector.broadcast %cst_94 : f32 to vector<16x1xf32>
    %303 = arith.divf %301, %302 : vector<16x1xf32>
    %304 = vector.broadcast %303 : vector<16x1xf32> to vector<16x128xf32>
    %305 = arith.subf %299, %304 : vector<16x128xf32>
    %306 = arith.mulf %305, %305 : vector<16x128xf32>
    %cst_95 = arith.constant dense<0.000000e+00> : vector<16xf32>
    %307 = vector.multi_reduction <add>, %306, %cst_95 [1] : vector<16x128xf32> to vector<16xf32>
    %308 = vector.shape_cast %307 : vector<16xf32> to vector<16x1xf32>
    %cst_96 = arith.constant 1.280000e+02 : f32
    %309 = vector.broadcast %cst_96 : f32 to vector<16x1xf32>
    %310 = arith.divf %308, %309 : vector<16x1xf32>
    %311 = vector.broadcast %303 : vector<16x1xf32> to vector<16x128xf32>
    %312 = arith.subf %299, %311 : vector<16x128xf32>
    %cst_97 = arith.constant 9.99999974E-6 : f32
    %313 = vector.broadcast %cst_97 : f32 to vector<16x1xf32>
    %314 = arith.addf %310, %313 : vector<16x1xf32>
    %315 = math.rsqrt %314 : vector<16x1xf32>
    %316 = vector.broadcast %315 : vector<16x1xf32> to vector<16x128xf32>
    %317 = arith.mulf %312, %316 : vector<16x128xf32>
    %318 = arith.addf %126, %317 : vector<16x128xf32>
    %cst_98 = arith.constant dense<0.000000e+00> : vector<16xf32>
    %319 = vector.multi_reduction <add>, %318, %cst_98 [1] : vector<16x128xf32> to vector<16xf32>
    %320 = vector.shape_cast %319 : vector<16xf32> to vector<16x1xf32>
    %cst_99 = arith.constant 1.280000e+02 : f32
    %321 = vector.broadcast %cst_99 : f32 to vector<16x1xf32>
    %322 = arith.divf %320, %321 : vector<16x1xf32>
    %323 = vector.broadcast %322 : vector<16x1xf32> to vector<16x128xf32>
    %324 = arith.subf %318, %323 : vector<16x128xf32>
    %325 = arith.mulf %324, %324 : vector<16x128xf32>
    %cst_100 = arith.constant dense<0.000000e+00> : vector<16xf32>
    %326 = vector.multi_reduction <add>, %325, %cst_100 [1] : vector<16x128xf32> to vector<16xf32>
    %327 = vector.shape_cast %326 : vector<16xf32> to vector<16x1xf32>
    %cst_101 = arith.constant 1.270000e+02 : f32
    %328 = vector.broadcast %cst_101 : f32 to vector<16x1xf32>
    %329 = arith.divf %327, %328 : vector<16x1xf32>
    %330 = math.sqrt %329 : vector<16x1xf32>
    %cst_102 = arith.constant 9.99999997E-7 : f32
    %331 = vector.broadcast %cst_102 : f32 to vector<16x1xf32>
    %332 = arith.addf %330, %331 : vector<16x1xf32>
    %333 = vector.broadcast %332 : vector<16x1xf32> to vector<16x128xf32>
    %334 = arith.divf %324, %333 : vector<16x128xf32>
    %335 = arith.truncf %334 : vector<16x128xf32> to vector<16x128xbf16>
    %c0_103 = arith.constant 0 : index
    %c0_104 = arith.constant 0 : index
    %336 = vector.load %arg8[%c0_103, %c0_104] : memref<128x128xf32, #tpu.memory_space<vmem>>, vector<128x128xf32>
    %337 = arith.truncf %336 : vector<128x128xf32> to vector<128x128xbf16>
    %cst_105 = arith.constant dense<0.000000e+00> : vector<16x128xf32>
    %338 = tpu.matmul %335, %337, %cst_105 {dimension_numbers = #tpu.dot_dimension_numbers<[1], [0], [0], [1], [0, 0, 1, 1], [], []>} : vector<16x128xbf16>, vector<128x128xbf16>, vector<16x128xf32> -> vector<16x128xf32>
    %c0_106 = arith.constant 0 : index
    %c0_107 = arith.constant 0 : index
    %339 = vector.load %arg9[%c0_106, %c0_107] : memref<1x128xf32, #tpu.memory_space<vmem>>, vector<1x128xf32>
    %340 = vector.broadcast %339 : vector<1x128xf32> to vector<16x128xf32>
    %341 = arith.addf %338, %340 : vector<16x128xf32>
    %cst_108 = arith.constant 0.000000e+00 : f32
    %342 = vector.broadcast %cst_108 : f32 to vector<16x128xf32>
    %343 = arith.maximumf %341, %342 : vector<16x128xf32>
    %344 = arith.addf %318, %343 : vector<16x128xf32>
    %c0_109 = arith.constant 0 : index
    %c0_110 = arith.constant 0 : index
    %c0_111 = arith.constant 0 : index
    %345 = vector.load %arg10[%c0_109, %c0_110, %c0_111] : memref<1x16x128xf32, #tpu.memory_space<vmem>>, vector<1x16x128xf32>
    %346 = vector.shape_cast %345 : vector<1x16x128xf32> to vector<16x128xf32>
    %347 = vector.shape_cast %344 : vector<16x128xf32> to vector<1x16x128xf32>
    tpu.vector_store %arg10[%c0_109, %c0_110, %c0_111], %347 {strides = array<i32>} : memref<1x16x128xf32, #tpu.memory_space<vmem>>, vector<1x16x128xf32>,
    return
  }
  func.func @transform_0(%arg0: i32) -> (i32, i32, i32) {
    %c0_i32 = arith.constant 0 : i32
    %c0_i32_0 = arith.constant 0 : i32
    %c0_i32_1 = arith.constant 0 : i32
    return %arg0, %c0_i32, %c0_i32_0 : i32, i32, i32
  }
  func.func @transform_1(%arg0: i32) -> (i32, i32) {
    %c0_i32 = arith.constant 0 : i32
    %c0_i32_0 = arith.constant 0 : i32
    %c0_i32_1 = arith.constant 0 : i32
    return %c0_i32, %c0_i32_0 : i32, i32
  }
  func.func @transform_2(%arg0: i32) -> (i32, i32, i32) {
    %c0_i32 = arith.constant 0 : i32
    %c0_i32_0 = arith.constant 0 : i32
    %c0_i32_1 = arith.constant 0 : i32
    %c0_i32_2 = arith.constant 0 : i32
    return %c0_i32, %c0_i32_0, %c0_i32_1 : i32, i32, i32
  }
  func.func @transform_3(%arg0: i32) -> (i32, i32, i32) {
    %c0_i32 = arith.constant 0 : i32
    %c0_i32_0 = arith.constant 0 : i32
    %c0_i32_1 = arith.constant 0 : i32
    %c0_i32_2 = arith.constant 0 : i32
    return %c0_i32, %c0_i32_0, %c0_i32_1 : i32, i32, i32
  }
  func.func @transform_4(%arg0: i32) -> (i32, i32) {
    %c0_i32 = arith.constant 0 : i32
    %c0_i32_0 = arith.constant 0 : i32
    %c0_i32_1 = arith.constant 0 : i32
    return %c0_i32, %c0_i32_0 : i32, i32
  }
  func.func @transform_5(%arg0: i32) -> (i32, i32) {
    %c0_i32 = arith.constant 0 : i32
    %c0_i32_0 = arith.constant 0 : i32
    %c0_i32_1 = arith.constant 0 : i32
    return %c0_i32, %c0_i32_0 : i32, i32
  }
  func.func @transform_6(%arg0: i32) -> (i32, i32) {
    %c0_i32 = arith.constant 0 : i32
    %c0_i32_0 = arith.constant 0 : i32
    %c0_i32_1 = arith.constant 0 : i32
    return %c0_i32, %c0_i32_0 : i32, i32
  }
  func.func @transform_7(%arg0: i32) -> (i32, i32) {
    %c0_i32 = arith.constant 0 : i32
    %c0_i32_0 = arith.constant 0 : i32
    %c0_i32_1 = arith.constant 0 : i32
    return %c0_i32, %c0_i32_0 : i32, i32
  }
  func.func @transform_8(%arg0: i32) -> (i32, i32) {
    %c0_i32 = arith.constant 0 : i32
    %c0_i32_0 = arith.constant 0 : i32
    %c0_i32_1 = arith.constant 0 : i32
    return %c0_i32, %c0_i32_0 : i32, i32
  }
  func.func @transform_9(%arg0: i32) -> (i32, i32, i32) {
    %c0_i32 = arith.constant 0 : i32
    %c0_i32_0 = arith.constant 0 : i32
    %c0_i32_1 = arith.constant 0 : i32
    return %arg0, %c0_i32, %c0_i32_0 : i32, i32, i32
  }
}

module attributes {stable_mosaic.version = 11 : i64} {
  func.func @encoder_kernel(%arg0: i32, %arg1: memref<1x8x128xf32, #tpu.memory_space<vmem>>, %arg2: memref<8x128xf32, #tpu.memory_space<vmem>>, %arg3: memref<2x3x128xf32, #tpu.memory_space<vmem>>, %arg4: memref<2x128x128xf32, #tpu.memory_space<vmem>>, %arg5: memref<128x384xf32, #tpu.memory_space<vmem>>, %arg6: memref<128x128xf32, #tpu.memory_space<vmem>>, %arg7: memref<1x128xf32, #tpu.memory_space<vmem>>, %arg8: memref<128x128xf32, #tpu.memory_space<vmem>>, %arg9: memref<1x128xf32, #tpu.memory_space<vmem>>, %arg10: memref<1x8x128xf32, #tpu.memory_space<vmem>>) attributes {dimension_semantics = [#tpu.dimension_semantics<parallel>], iteration_bounds = array<i64: 2>, scalar_prefetch = 0 : i64, scratch_operands = 0 : i64, tpu.core_type = #tpu.core_type<tc>, window_params = [{transform_indices = @transform_0, window_bounds = array<i64: 1, 8, 128>}, {pipeline_mode = #tpu.pipeline_mode<synchronous>, transform_indices = @transform_1, window_bounds = array<i64: 8, 128>}, {pipeline_mode = #tpu.pipeline_mode<synchronous>, transform_indices = @transform_2, window_bounds = array<i64: 2, 3, 128>}, {pipeline_mode = #tpu.pipeline_mode<synchronous>, transform_indices = @transform_3, window_bounds = array<i64: 2, 128, 128>}, {pipeline_mode = #tpu.pipeline_mode<synchronous>, transform_indices = @transform_4, window_bounds = array<i64: 128, 384>}, {pipeline_mode = #tpu.pipeline_mode<synchronous>, transform_indices = @transform_5, window_bounds = array<i64: 128, 128>}, {pipeline_mode = #tpu.pipeline_mode<synchronous>, transform_indices = @transform_6, window_bounds = array<i64: 1, 128>}, {pipeline_mode = #tpu.pipeline_mode<synchronous>, transform_indices = @transform_7, window_bounds = array<i64: 128, 128>}, {pipeline_mode = #tpu.pipeline_mode<synchronous>, transform_indices = @transform_8, window_bounds = array<i64: 1, 128>}, {transform_indices = @transform_9, window_bounds = array<i64: 1, 8, 128>}]} {
    %0 = tpu.iota {dimensions = array<i32: 0>} : vector<8x1xi32>
    %c0 = arith.constant 0 : index
    %c0_0 = arith.constant 0 : index
    %c0_1 = arith.constant 0 : index
    %1 = vector.load %arg1[%c0, %c0_0, %c0_1] : memref<1x8x128xf32, #tpu.memory_space<vmem>>, vector<1x8x128xf32>
    %2 = vector.shape_cast %1 : vector<1x8x128xf32> to vector<8x128xf32>
    %c0_2 = arith.constant 0 : index
    %c0_3 = arith.constant 0 : index
    %3 = vector.load %arg2[%c0_2, %c0_3] : memref<8x128xf32, #tpu.memory_space<vmem>>, vector<8x128xf32>
    %4 = arith.addf %2, %3 : vector<8x128xf32>
    %cst = arith.constant dense<0.000000e+00> : vector<128xf32>
    %5 = vector.multi_reduction <add>, %4, %cst [0] : vector<8x128xf32> to vector<128xf32>
    %6 = vector.shape_cast %5 : vector<128xf32> to vector<1x128xf32>
    %cst_4 = arith.constant 8.000000e+00 : f32
    %7 = vector.broadcast %cst_4 : f32 to vector<1x128xf32>
    %8 = arith.divf %6, %7 : vector<1x128xf32>
    %9 = vector.broadcast %8 : vector<1x128xf32> to vector<8x128xf32>
    %10 = arith.subf %4, %9 : vector<8x128xf32>
    %11 = arith.mulf %10, %10 : vector<8x128xf32>
    %cst_5 = arith.constant dense<0.000000e+00> : vector<128xf32>
    %12 = vector.multi_reduction <add>, %11, %cst_5 [0] : vector<8x128xf32> to vector<128xf32>
    %13 = vector.shape_cast %12 : vector<128xf32> to vector<1x128xf32>
    %cst_6 = arith.constant 7.000000e+00 : f32
    %14 = vector.broadcast %cst_6 : f32 to vector<1x128xf32>
    %15 = arith.divf %13, %14 : vector<1x128xf32>
    %16 = math.sqrt %15 : vector<1x128xf32>
    %cst_7 = arith.constant 9.99999997E-7 : f32
    %17 = vector.broadcast %cst_7 : f32 to vector<1x128xf32>
    %18 = arith.addf %16, %17 : vector<1x128xf32>
    %19 = vector.broadcast %18 : vector<1x128xf32> to vector<8x128xf32>
    %20 = arith.divf %10, %19 : vector<8x128xf32>
    %c0_8 = arith.constant 0 : index
    %c0_9 = arith.constant 0 : index
    %c0_10 = arith.constant 0 : index
    %21 = vector.load %arg3[%c0_8, %c0_9, %c0_10] : memref<2x3x128xf32, #tpu.memory_space<vmem>>, vector<1x3x128xf32>
    %22 = vector.shape_cast %21 : vector<1x3x128xf32> to vector<3x128xf32>
    %cst_11 = arith.constant 0.000000e+00 : f32
    %23 = vector.broadcast %cst_11 : f32 to vector<8x128xf32>
    %c1_i32 = arith.constant 1 : i32
    %24 = tpu.dynamic_rotate %20 by %c1_i32 dim 0 : vector<8x128xf32>, i32 -> vector<8x128xf32>
    %c1_i32_12 = arith.constant 1 : i32
    %25 = vector.broadcast %c1_i32_12 : i32 to vector<8x1xi32>
    %26 = arith.cmpi sge, %0, %25 : vector<8x1xi32>
    %cst_13 = arith.constant 0.000000e+00 : f32
    %27 = vector.shape_cast %26 : vector<8x1xi1> to vector<8x1xi1>
    %28 = vector.broadcast %27 : vector<8x1xi1> to vector<8x128xi1>
    %29 = vector.broadcast %cst_13 : f32 to vector<8x128xf32>
    %30 = arith.select %28, %24, %29 : vector<8x128xi1>, vector<8x128xf32>
    %31 = vector.extract_strided_slice %22 {offsets = [0, 0], sizes = [1, 128], strides = [1, 1]} : vector<3x128xf32> to vector<1x128xf32>
    %32 = vector.broadcast %31 : vector<1x128xf32> to vector<8x128xf32>
    %33 = arith.mulf %30, %32 : vector<8x128xf32>
    %34 = arith.addf %23, %33 : vector<8x128xf32>
    %35 = vector.extract_strided_slice %22 {offsets = [1, 0], sizes = [1, 128], strides = [1, 1]} : vector<3x128xf32> to vector<1x128xf32>
    %36 = vector.broadcast %35 : vector<1x128xf32> to vector<8x128xf32>
    %37 = arith.mulf %20, %36 : vector<8x128xf32>
    %38 = arith.addf %34, %37 : vector<8x128xf32>
    %c7_i32 = arith.constant 7 : i32
    %39 = tpu.dynamic_rotate %20 by %c7_i32 dim 0 : vector<8x128xf32>, i32 -> vector<8x128xf32>
    %c7_i32_14 = arith.constant 7 : i32
    %40 = vector.broadcast %c7_i32_14 : i32 to vector<8x1xi32>
    %41 = arith.cmpi slt, %0, %40 : vector<8x1xi32>
    %cst_15 = arith.constant 0.000000e+00 : f32
    %42 = vector.shape_cast %41 : vector<8x1xi1> to vector<8x1xi1>
    %43 = vector.broadcast %42 : vector<8x1xi1> to vector<8x128xi1>
    %44 = vector.broadcast %cst_15 : f32 to vector<8x128xf32>
    %45 = arith.select %43, %39, %44 : vector<8x128xi1>, vector<8x128xf32>
    %46 = vector.extract_strided_slice %22 {offsets = [2, 0], sizes = [1, 128], strides = [1, 1]} : vector<3x128xf32> to vector<1x128xf32>
    %47 = vector.broadcast %46 : vector<1x128xf32> to vector<8x128xf32>
    %48 = arith.mulf %45, %47 : vector<8x128xf32>
    %49 = arith.addf %38, %48 : vector<8x128xf32>
    %50 = arith.truncf %49 : vector<8x128xf32> to vector<8x128xbf16>
    %c0_16 = arith.constant 0 : index
    %c0_17 = arith.constant 0 : index
    %c0_18 = arith.constant 0 : index
    %51 = vector.load %arg4[%c0_16, %c0_17, %c0_18] : memref<2x128x128xf32, #tpu.memory_space<vmem>>, vector<1x128x128xf32>
    %52 = vector.shape_cast %51 : vector<1x128x128xf32> to vector<128x128xf32>
    %53 = arith.truncf %52 : vector<128x128xf32> to vector<128x128xbf16>
    %cst_19 = arith.constant dense<0.000000e+00> : vector<8x128xf32>
    %54 = tpu.matmul %50, %53, %cst_19 {dimension_numbers = #tpu.dot_dimension_numbers<[1], [0], [0], [1], [0, 0, 1, 1], [], []>} : vector<8x128xbf16>, vector<128x128xbf16>, vector<8x128xf32> -> vector<8x128xf32>
    %cst_20 = arith.constant 0.000000e+00 : f32
    %55 = vector.broadcast %cst_20 : f32 to vector<8x128xf32>
    %56 = arith.maximumf %54, %55 : vector<8x128xf32>
    %57 = arith.addf %4, %56 : vector<8x128xf32>
    %cst_21 = arith.constant dense<0.000000e+00> : vector<128xf32>
    %58 = vector.multi_reduction <add>, %57, %cst_21 [0] : vector<8x128xf32> to vector<128xf32>
    %59 = vector.shape_cast %58 : vector<128xf32> to vector<1x128xf32>
    %cst_22 = arith.constant 8.000000e+00 : f32
    %60 = vector.broadcast %cst_22 : f32 to vector<1x128xf32>
    %61 = arith.divf %59, %60 : vector<1x128xf32>
    %62 = vector.broadcast %61 : vector<1x128xf32> to vector<8x128xf32>
    %63 = arith.subf %57, %62 : vector<8x128xf32>
    %64 = arith.mulf %63, %63 : vector<8x128xf32>
    %cst_23 = arith.constant dense<0.000000e+00> : vector<128xf32>
    %65 = vector.multi_reduction <add>, %64, %cst_23 [0] : vector<8x128xf32> to vector<128xf32>
    %66 = vector.shape_cast %65 : vector<128xf32> to vector<1x128xf32>
    %cst_24 = arith.constant 7.000000e+00 : f32
    %67 = vector.broadcast %cst_24 : f32 to vector<1x128xf32>
    %68 = arith.divf %66, %67 : vector<1x128xf32>
    %69 = math.sqrt %68 : vector<1x128xf32>
    %cst_25 = arith.constant 9.99999997E-7 : f32
    %70 = vector.broadcast %cst_25 : f32 to vector<1x128xf32>
    %71 = arith.addf %69, %70 : vector<1x128xf32>
    %72 = vector.broadcast %71 : vector<1x128xf32> to vector<8x128xf32>
    %73 = arith.divf %63, %72 : vector<8x128xf32>
    %c1 = arith.constant 1 : index
    %c0_26 = arith.constant 0 : index
    %c0_27 = arith.constant 0 : index
    %74 = vector.load %arg3[%c1, %c0_26, %c0_27] : memref<2x3x128xf32, #tpu.memory_space<vmem>>, vector<1x3x128xf32>
    %75 = vector.shape_cast %74 : vector<1x3x128xf32> to vector<3x128xf32>
    %cst_28 = arith.constant 0.000000e+00 : f32
    %76 = vector.broadcast %cst_28 : f32 to vector<8x128xf32>
    %c1_i32_29 = arith.constant 1 : i32
    %77 = tpu.dynamic_rotate %73 by %c1_i32_29 dim 0 : vector<8x128xf32>, i32 -> vector<8x128xf32>
    %c1_i32_30 = arith.constant 1 : i32
    %78 = vector.broadcast %c1_i32_30 : i32 to vector<8x1xi32>
    %79 = arith.cmpi sge, %0, %78 : vector<8x1xi32>
    %cst_31 = arith.constant 0.000000e+00 : f32
    %80 = vector.shape_cast %79 : vector<8x1xi1> to vector<8x1xi1>
    %81 = vector.broadcast %80 : vector<8x1xi1> to vector<8x128xi1>
    %82 = vector.broadcast %cst_31 : f32 to vector<8x128xf32>
    %83 = arith.select %81, %77, %82 : vector<8x128xi1>, vector<8x128xf32>
    %84 = vector.extract_strided_slice %75 {offsets = [0, 0], sizes = [1, 128], strides = [1, 1]} : vector<3x128xf32> to vector<1x128xf32>
    %85 = vector.broadcast %84 : vector<1x128xf32> to vector<8x128xf32>
    %86 = arith.mulf %83, %85 : vector<8x128xf32>
    %87 = arith.addf %76, %86 : vector<8x128xf32>
    %88 = vector.extract_strided_slice %75 {offsets = [1, 0], sizes = [1, 128], strides = [1, 1]} : vector<3x128xf32> to vector<1x128xf32>
    %89 = vector.broadcast %88 : vector<1x128xf32> to vector<8x128xf32>
    %90 = arith.mulf %73, %89 : vector<8x128xf32>
    %91 = arith.addf %87, %90 : vector<8x128xf32>
    %c7_i32_32 = arith.constant 7 : i32
    %92 = tpu.dynamic_rotate %73 by %c7_i32_32 dim 0 : vector<8x128xf32>, i32 -> vector<8x128xf32>
    %c7_i32_33 = arith.constant 7 : i32
    %93 = vector.broadcast %c7_i32_33 : i32 to vector<8x1xi32>
    %94 = arith.cmpi slt, %0, %93 : vector<8x1xi32>
    %cst_34 = arith.constant 0.000000e+00 : f32
    %95 = vector.shape_cast %94 : vector<8x1xi1> to vector<8x1xi1>
    %96 = vector.broadcast %95 : vector<8x1xi1> to vector<8x128xi1>
    %97 = vector.broadcast %cst_34 : f32 to vector<8x128xf32>
    %98 = arith.select %96, %92, %97 : vector<8x128xi1>, vector<8x128xf32>
    %99 = vector.extract_strided_slice %75 {offsets = [2, 0], sizes = [1, 128], strides = [1, 1]} : vector<3x128xf32> to vector<1x128xf32>
    %100 = vector.broadcast %99 : vector<1x128xf32> to vector<8x128xf32>
    %101 = arith.mulf %98, %100 : vector<8x128xf32>
    %102 = arith.addf %91, %101 : vector<8x128xf32>
    %103 = arith.truncf %102 : vector<8x128xf32> to vector<8x128xbf16>
    %c1_35 = arith.constant 1 : index
    %c0_36 = arith.constant 0 : index
    %c0_37 = arith.constant 0 : index
    %104 = vector.load %arg4[%c1_35, %c0_36, %c0_37] : memref<2x128x128xf32, #tpu.memory_space<vmem>>, vector<1x128x128xf32>
    %105 = vector.shape_cast %104 : vector<1x128x128xf32> to vector<128x128xf32>
    %106 = arith.truncf %105 : vector<128x128xf32> to vector<128x128xbf16>
    %cst_38 = arith.constant dense<0.000000e+00> : vector<8x128xf32>
    %107 = tpu.matmul %103, %106, %cst_38 {dimension_numbers = #tpu.dot_dimension_numbers<[1], [0], [0], [1], [0, 0, 1, 1], [], []>} : vector<8x128xbf16>, vector<128x128xbf16>, vector<8x128xf32> -> vector<8x128xf32>
    %cst_39 = arith.constant 0.000000e+00 : f32
    %108 = vector.broadcast %cst_39 : f32 to vector<8x128xf32>
    %109 = arith.maximumf %107, %108 : vector<8x128xf32>
    %110 = arith.addf %57, %109 : vector<8x128xf32>
    %cst_40 = arith.constant dense<0.000000e+00> : vector<128xf32>
    %111 = vector.multi_reduction <add>, %110, %cst_40 [0] : vector<8x128xf32> to vector<128xf32>
    %112 = vector.shape_cast %111 : vector<128xf32> to vector<1x128xf32>
    %cst_41 = arith.constant 8.000000e+00 : f32
    %113 = vector.broadcast %cst_41 : f32 to vector<1x128xf32>
    %114 = arith.divf %112, %113 : vector<1x128xf32>
    %115 = vector.broadcast %114 : vector<1x128xf32> to vector<8x128xf32>
    %116 = arith.subf %110, %115 : vector<8x128xf32>
    %117 = arith.mulf %116, %116 : vector<8x128xf32>
    %cst_42 = arith.constant dense<0.000000e+00> : vector<128xf32>
    %118 = vector.multi_reduction <add>, %117, %cst_42 [0] : vector<8x128xf32> to vector<128xf32>
    %119 = vector.shape_cast %118 : vector<128xf32> to vector<1x128xf32>
    %cst_43 = arith.constant 7.000000e+00 : f32
    %120 = vector.broadcast %cst_43 : f32 to vector<1x128xf32>
    %121 = arith.divf %119, %120 : vector<1x128xf32>
    %122 = math.sqrt %121 : vector<1x128xf32>
    %cst_44 = arith.constant 9.99999997E-7 : f32
    %123 = vector.broadcast %cst_44 : f32 to vector<1x128xf32>
    %124 = arith.addf %122, %123 : vector<1x128xf32>
    %125 = vector.broadcast %124 : vector<1x128xf32> to vector<8x128xf32>
    %126 = arith.divf %116, %125 : vector<8x128xf32>
    %127 = arith.truncf %126 : vector<8x128xf32> to vector<8x128xbf16>
    %c0_45 = arith.constant 0 : index
    %c0_46 = arith.constant 0 : index
    %128 = vector.load %arg5[%c0_45, %c0_46] : memref<128x384xf32, #tpu.memory_space<vmem>>, vector<128x384xf32>
    %129 = arith.truncf %128 : vector<128x384xf32> to vector<128x384xbf16>
    %cst_47 = arith.constant dense<0.000000e+00> : vector<8x384xf32>
    %130 = tpu.matmul %127, %129, %cst_47 {dimension_numbers = #tpu.dot_dimension_numbers<[1], [0], [0], [1], [0, 0, 1, 1], [], []>} : vector<8x128xbf16>, vector<128x384xbf16>, vector<8x384xf32> -> vector<8x384xf32>
    %131 = vector.extract_strided_slice %130 {offsets = [0, 0], sizes = [8, 16], strides = [1, 1]} : vector<8x384xf32> to vector<8x16xf32>
    %132 = vector.extract_strided_slice %130 {offsets = [0, 128], sizes = [8, 16], strides = [1, 1]} : vector<8x384xf32> to vector<8x16xf32>
    %133 = vector.extract_strided_slice %130 {offsets = [0, 256], sizes = [8, 16], strides = [1, 1]} : vector<8x384xf32> to vector<8x16xf32>
    %134 = arith.truncf %131 : vector<8x16xf32> to vector<8x16xbf16>
    %135 = arith.truncf %132 : vector<8x16xf32> to vector<8x16xbf16>
    "tpu.trace_start"() <{level = 10 : i32, message = "qd,kd->qk"}> : () -> ()
    %cst_48 = arith.constant dense<0.000000e+00> : vector<8x8xf32>
    %136 = tpu.matmul %134, %135, %cst_48 {dimension_numbers = #tpu.dot_dimension_numbers<[1], [1], [0], [0], [0, 0, 1, 0], [], []>} : vector<8x16xbf16>, vector<8x16xbf16>, vector<8x8xf32> -> vector<8x8xf32>
    "tpu.trace_stop"() : () -> ()
    %cst_49 = arith.constant 2.500000e-01 : f32
    %137 = vector.broadcast %cst_49 : f32 to vector<8x8xf32>
    %138 = arith.mulf %136, %137 : vector<8x8xf32>
    %cst_50 = arith.constant dense<0xFF800000> : vector<8xf32>
    %139 = vector.multi_reduction <maximumf>, %138, %cst_50 [1] : vector<8x8xf32> to vector<8xf32>
    %140 = vector.shape_cast %139 : vector<8xf32> to vector<8x1xf32>
    %141 = vector.broadcast %140 : vector<8x1xf32> to vector<8x8xf32>
    %142 = arith.subf %138, %141 : vector<8x8xf32>
    %143 = math.exp %142 : vector<8x8xf32>
    %cst_51 = arith.constant dense<0.000000e+00> : vector<8xf32>
    %144 = vector.multi_reduction <add>, %143, %cst_51 [1] : vector<8x8xf32> to vector<8xf32>
    %145 = vector.shape_cast %144 : vector<8xf32> to vector<8x1xf32>
    %146 = vector.broadcast %145 : vector<8x1xf32> to vector<8x8xf32>
    %147 = arith.divf %143, %146 : vector<8x8xf32>
    %148 = arith.truncf %147 : vector<8x8xf32> to vector<8x8xbf16>
    %149 = arith.truncf %133 : vector<8x16xf32> to vector<8x16xbf16>
    %cst_52 = arith.constant dense<0.000000e+00> : vector<8x16xf32>
    %150 = tpu.matmul %148, %149, %cst_52 {dimension_numbers = #tpu.dot_dimension_numbers<[1], [0], [0], [1], [0, 0, 1, 1], [], []>} : vector<8x8xbf16>, vector<8x16xbf16>, vector<8x16xf32> -> vector<8x16xf32>
    %151 = vector.extract_strided_slice %130 {offsets = [0, 16], sizes = [8, 16], strides = [1, 1]} : vector<8x384xf32> to vector<8x16xf32>
    %152 = vector.extract_strided_slice %130 {offsets = [0, 144], sizes = [8, 16], strides = [1, 1]} : vector<8x384xf32> to vector<8x16xf32>
    %153 = vector.extract_strided_slice %130 {offsets = [0, 272], sizes = [8, 16], strides = [1, 1]} : vector<8x384xf32> to vector<8x16xf32>
    %154 = arith.truncf %151 : vector<8x16xf32> to vector<8x16xbf16>
    %155 = arith.truncf %152 : vector<8x16xf32> to vector<8x16xbf16>
    "tpu.trace_start"() <{level = 10 : i32, message = "qd,kd->qk"}> : () -> ()
    %cst_53 = arith.constant dense<0.000000e+00> : vector<8x8xf32>
    %156 = tpu.matmul %154, %155, %cst_53 {dimension_numbers = #tpu.dot_dimension_numbers<[1], [1], [0], [0], [0, 0, 1, 0], [], []>} : vector<8x16xbf16>, vector<8x16xbf16>, vector<8x8xf32> -> vector<8x8xf32>
    "tpu.trace_stop"() : () -> ()
    %cst_54 = arith.constant 2.500000e-01 : f32
    %157 = vector.broadcast %cst_54 : f32 to vector<8x8xf32>
    %158 = arith.mulf %156, %157 : vector<8x8xf32>
    %cst_55 = arith.constant dense<0xFF800000> : vector<8xf32>
    %159 = vector.multi_reduction <maximumf>, %158, %cst_55 [1] : vector<8x8xf32> to vector<8xf32>
    %160 = vector.shape_cast %159 : vector<8xf32> to vector<8x1xf32>
    %161 = vector.broadcast %160 : vector<8x1xf32> to vector<8x8xf32>
    %162 = arith.subf %158, %161 : vector<8x8xf32>
    %163 = math.exp %162 : vector<8x8xf32>
    %cst_56 = arith.constant dense<0.000000e+00> : vector<8xf32>
    %164 = vector.multi_reduction <add>, %163, %cst_56 [1] : vector<8x8xf32> to vector<8xf32>
    %165 = vector.shape_cast %164 : vector<8xf32> to vector<8x1xf32>
    %166 = vector.broadcast %165 : vector<8x1xf32> to vector<8x8xf32>
    %167 = arith.divf %163, %166 : vector<8x8xf32>
    %168 = arith.truncf %167 : vector<8x8xf32> to vector<8x8xbf16>
    %169 = arith.truncf %153 : vector<8x16xf32> to vector<8x16xbf16>
    %cst_57 = arith.constant dense<0.000000e+00> : vector<8x16xf32>
    %170 = tpu.matmul %168, %169, %cst_57 {dimension_numbers = #tpu.dot_dimension_numbers<[1], [0], [0], [1], [0, 0, 1, 1], [], []>} : vector<8x8xbf16>, vector<8x16xbf16>, vector<8x16xf32> -> vector<8x16xf32>
    %171 = vector.extract_strided_slice %130 {offsets = [0, 32], sizes = [8, 16], strides = [1, 1]} : vector<8x384xf32> to vector<8x16xf32>
    %172 = vector.extract_strided_slice %130 {offsets = [0, 160], sizes = [8, 16], strides = [1, 1]} : vector<8x384xf32> to vector<8x16xf32>
    %173 = vector.extract_strided_slice %130 {offsets = [0, 288], sizes = [8, 16], strides = [1, 1]} : vector<8x384xf32> to vector<8x16xf32>
    %174 = arith.truncf %171 : vector<8x16xf32> to vector<8x16xbf16>
    %175 = arith.truncf %172 : vector<8x16xf32> to vector<8x16xbf16>
    "tpu.trace_start"() <{level = 10 : i32, message = "qd,kd->qk"}> : () -> ()
    %cst_58 = arith.constant dense<0.000000e+00> : vector<8x8xf32>
    %176 = tpu.matmul %174, %175, %cst_58 {dimension_numbers = #tpu.dot_dimension_numbers<[1], [1], [0], [0], [0, 0, 1, 0], [], []>} : vector<8x16xbf16>, vector<8x16xbf16>, vector<8x8xf32> -> vector<8x8xf32>
    "tpu.trace_stop"() : () -> ()
    %cst_59 = arith.constant 2.500000e-01 : f32
    %177 = vector.broadcast %cst_59 : f32 to vector<8x8xf32>
    %178 = arith.mulf %176, %177 : vector<8x8xf32>
    %cst_60 = arith.constant dense<0xFF800000> : vector<8xf32>
    %179 = vector.multi_reduction <maximumf>, %178, %cst_60 [1] : vector<8x8xf32> to vector<8xf32>
    %180 = vector.shape_cast %179 : vector<8xf32> to vector<8x1xf32>
    %181 = vector.broadcast %180 : vector<8x1xf32> to vector<8x8xf32>
    %182 = arith.subf %178, %181 : vector<8x8xf32>
    %183 = math.exp %182 : vector<8x8xf32>
    %cst_61 = arith.constant dense<0.000000e+00> : vector<8xf32>
    %184 = vector.multi_reduction <add>, %183, %cst_61 [1] : vector<8x8xf32> to vector<8xf32>
    %185 = vector.shape_cast %184 : vector<8xf32> to vector<8x1xf32>
    %186 = vector.broadcast %185 : vector<8x1xf32> to vector<8x8xf32>
    %187 = arith.divf %183, %186 : vector<8x8xf32>
    %188 = arith.truncf %187 : vector<8x8xf32> to vector<8x8xbf16>
    %189 = arith.truncf %173 : vector<8x16xf32> to vector<8x16xbf16>
    %cst_62 = arith.constant dense<0.000000e+00> : vector<8x16xf32>
    %190 = tpu.matmul %188, %189, %cst_62 {dimension_numbers = #tpu.dot_dimension_numbers<[1], [0], [0], [1], [0, 0, 1, 1], [], []>} : vector<8x8xbf16>, vector<8x16xbf16>, vector<8x16xf32> -> vector<8x16xf32>
    %191 = vector.extract_strided_slice %130 {offsets = [0, 48], sizes = [8, 16], strides = [1, 1]} : vector<8x384xf32> to vector<8x16xf32>
    %192 = vector.extract_strided_slice %130 {offsets = [0, 176], sizes = [8, 16], strides = [1, 1]} : vector<8x384xf32> to vector<8x16xf32>
    %193 = vector.extract_strided_slice %130 {offsets = [0, 304], sizes = [8, 16], strides = [1, 1]} : vector<8x384xf32> to vector<8x16xf32>
    %194 = arith.truncf %191 : vector<8x16xf32> to vector<8x16xbf16>
    %195 = arith.truncf %192 : vector<8x16xf32> to vector<8x16xbf16>
    "tpu.trace_start"() <{level = 10 : i32, message = "qd,kd->qk"}> : () -> ()
    %cst_63 = arith.constant dense<0.000000e+00> : vector<8x8xf32>
    %196 = tpu.matmul %194, %195, %cst_63 {dimension_numbers = #tpu.dot_dimension_numbers<[1], [1], [0], [0], [0, 0, 1, 0], [], []>} : vector<8x16xbf16>, vector<8x16xbf16>, vector<8x8xf32> -> vector<8x8xf32>
    "tpu.trace_stop"() : () -> ()
    %cst_64 = arith.constant 2.500000e-01 : f32
    %197 = vector.broadcast %cst_64 : f32 to vector<8x8xf32>
    %198 = arith.mulf %196, %197 : vector<8x8xf32>
    %cst_65 = arith.constant dense<0xFF800000> : vector<8xf32>
    %199 = vector.multi_reduction <maximumf>, %198, %cst_65 [1] : vector<8x8xf32> to vector<8xf32>
    %200 = vector.shape_cast %199 : vector<8xf32> to vector<8x1xf32>
    %201 = vector.broadcast %200 : vector<8x1xf32> to vector<8x8xf32>
    %202 = arith.subf %198, %201 : vector<8x8xf32>
    %203 = math.exp %202 : vector<8x8xf32>
    %cst_66 = arith.constant dense<0.000000e+00> : vector<8xf32>
    %204 = vector.multi_reduction <add>, %203, %cst_66 [1] : vector<8x8xf32> to vector<8xf32>
    %205 = vector.shape_cast %204 : vector<8xf32> to vector<8x1xf32>
    %206 = vector.broadcast %205 : vector<8x1xf32> to vector<8x8xf32>
    %207 = arith.divf %203, %206 : vector<8x8xf32>
    %208 = arith.truncf %207 : vector<8x8xf32> to vector<8x8xbf16>
    %209 = arith.truncf %193 : vector<8x16xf32> to vector<8x16xbf16>
    %cst_67 = arith.constant dense<0.000000e+00> : vector<8x16xf32>
    %210 = tpu.matmul %208, %209, %cst_67 {dimension_numbers = #tpu.dot_dimension_numbers<[1], [0], [0], [1], [0, 0, 1, 1], [], []>} : vector<8x8xbf16>, vector<8x16xbf16>, vector<8x16xf32> -> vector<8x16xf32>
    %211 = vector.extract_strided_slice %130 {offsets = [0, 64], sizes = [8, 16], strides = [1, 1]} : vector<8x384xf32> to vector<8x16xf32>
    %212 = vector.extract_strided_slice %130 {offsets = [0, 192], sizes = [8, 16], strides = [1, 1]} : vector<8x384xf32> to vector<8x16xf32>
    %213 = vector.extract_strided_slice %130 {offsets = [0, 320], sizes = [8, 16], strides = [1, 1]} : vector<8x384xf32> to vector<8x16xf32>
    %214 = arith.truncf %211 : vector<8x16xf32> to vector<8x16xbf16>
    %215 = arith.truncf %212 : vector<8x16xf32> to vector<8x16xbf16>
    "tpu.trace_start"() <{level = 10 : i32, message = "qd,kd->qk"}> : () -> ()
    %cst_68 = arith.constant dense<0.000000e+00> : vector<8x8xf32>
    %216 = tpu.matmul %214, %215, %cst_68 {dimension_numbers = #tpu.dot_dimension_numbers<[1], [1], [0], [0], [0, 0, 1, 0], [], []>} : vector<8x16xbf16>, vector<8x16xbf16>, vector<8x8xf32> -> vector<8x8xf32>
    "tpu.trace_stop"() : () -> ()
    %cst_69 = arith.constant 2.500000e-01 : f32
    %217 = vector.broadcast %cst_69 : f32 to vector<8x8xf32>
    %218 = arith.mulf %216, %217 : vector<8x8xf32>
    %cst_70 = arith.constant dense<0xFF800000> : vector<8xf32>
    %219 = vector.multi_reduction <maximumf>, %218, %cst_70 [1] : vector<8x8xf32> to vector<8xf32>
    %220 = vector.shape_cast %219 : vector<8xf32> to vector<8x1xf32>
    %221 = vector.broadcast %220 : vector<8x1xf32> to vector<8x8xf32>
    %222 = arith.subf %218, %221 : vector<8x8xf32>
    %223 = math.exp %222 : vector<8x8xf32>
    %cst_71 = arith.constant dense<0.000000e+00> : vector<8xf32>
    %224 = vector.multi_reduction <add>, %223, %cst_71 [1] : vector<8x8xf32> to vector<8xf32>
    %225 = vector.shape_cast %224 : vector<8xf32> to vector<8x1xf32>
    %226 = vector.broadcast %225 : vector<8x1xf32> to vector<8x8xf32>
    %227 = arith.divf %223, %226 : vector<8x8xf32>
    %228 = arith.truncf %227 : vector<8x8xf32> to vector<8x8xbf16>
    %229 = arith.truncf %213 : vector<8x16xf32> to vector<8x16xbf16>
    %cst_72 = arith.constant dense<0.000000e+00> : vector<8x16xf32>
    %230 = tpu.matmul %228, %229, %cst_72 {dimension_numbers = #tpu.dot_dimension_numbers<[1], [0], [0], [1], [0, 0, 1, 1], [], []>} : vector<8x8xbf16>, vector<8x16xbf16>, vector<8x16xf32> -> vector<8x16xf32>
    %231 = vector.extract_strided_slice %130 {offsets = [0, 80], sizes = [8, 16], strides = [1, 1]} : vector<8x384xf32> to vector<8x16xf32>
    %232 = vector.extract_strided_slice %130 {offsets = [0, 208], sizes = [8, 16], strides = [1, 1]} : vector<8x384xf32> to vector<8x16xf32>
    %233 = vector.extract_strided_slice %130 {offsets = [0, 336], sizes = [8, 16], strides = [1, 1]} : vector<8x384xf32> to vector<8x16xf32>
    %234 = arith.truncf %231 : vector<8x16xf32> to vector<8x16xbf16>
    %235 = arith.truncf %232 : vector<8x16xf32> to vector<8x16xbf16>
    "tpu.trace_start"() <{level = 10 : i32, message = "qd,kd->qk"}> : () -> ()
    %cst_73 = arith.constant dense<0.000000e+00> : vector<8x8xf32>
    %236 = tpu.matmul %234, %235, %cst_73 {dimension_numbers = #tpu.dot_dimension_numbers<[1], [1], [0], [0], [0, 0, 1, 0], [], []>} : vector<8x16xbf16>, vector<8x16xbf16>, vector<8x8xf32> -> vector<8x8xf32>
    "tpu.trace_stop"() : () -> ()
    %cst_74 = arith.constant 2.500000e-01 : f32
    %237 = vector.broadcast %cst_74 : f32 to vector<8x8xf32>
    %238 = arith.mulf %236, %237 : vector<8x8xf32>
    %cst_75 = arith.constant dense<0xFF800000> : vector<8xf32>
    %239 = vector.multi_reduction <maximumf>, %238, %cst_75 [1] : vector<8x8xf32> to vector<8xf32>
    %240 = vector.shape_cast %239 : vector<8xf32> to vector<8x1xf32>
    %241 = vector.broadcast %240 : vector<8x1xf32> to vector<8x8xf32>
    %242 = arith.subf %238, %241 : vector<8x8xf32>
    %243 = math.exp %242 : vector<8x8xf32>
    %cst_76 = arith.constant dense<0.000000e+00> : vector<8xf32>
    %244 = vector.multi_reduction <add>, %243, %cst_76 [1] : vector<8x8xf32> to vector<8xf32>
    %245 = vector.shape_cast %244 : vector<8xf32> to vector<8x1xf32>
    %246 = vector.broadcast %245 : vector<8x1xf32> to vector<8x8xf32>
    %247 = arith.divf %243, %246 : vector<8x8xf32>
    %248 = arith.truncf %247 : vector<8x8xf32> to vector<8x8xbf16>
    %249 = arith.truncf %233 : vector<8x16xf32> to vector<8x16xbf16>
    %cst_77 = arith.constant dense<0.000000e+00> : vector<8x16xf32>
    %250 = tpu.matmul %248, %249, %cst_77 {dimension_numbers = #tpu.dot_dimension_numbers<[1], [0], [0], [1], [0, 0, 1, 1], [], []>} : vector<8x8xbf16>, vector<8x16xbf16>, vector<8x16xf32> -> vector<8x16xf32>
    %251 = vector.extract_strided_slice %130 {offsets = [0, 96], sizes = [8, 16], strides = [1, 1]} : vector<8x384xf32> to vector<8x16xf32>
    %252 = vector.extract_strided_slice %130 {offsets = [0, 224], sizes = [8, 16], strides = [1, 1]} : vector<8x384xf32> to vector<8x16xf32>
    %253 = vector.extract_strided_slice %130 {offsets = [0, 352], sizes = [8, 16], strides = [1, 1]} : vector<8x384xf32> to vector<8x16xf32>
    %254 = arith.truncf %251 : vector<8x16xf32> to vector<8x16xbf16>
    %255 = arith.truncf %252 : vector<8x16xf32> to vector<8x16xbf16>
    "tpu.trace_start"() <{level = 10 : i32, message = "qd,kd->qk"}> : () -> ()
    %cst_78 = arith.constant dense<0.000000e+00> : vector<8x8xf32>
    %256 = tpu.matmul %254, %255, %cst_78 {dimension_numbers = #tpu.dot_dimension_numbers<[1], [1], [0], [0], [0, 0, 1, 0], [], []>} : vector<8x16xbf16>, vector<8x16xbf16>, vector<8x8xf32> -> vector<8x8xf32>
    "tpu.trace_stop"() : () -> ()
    %cst_79 = arith.constant 2.500000e-01 : f32
    %257 = vector.broadcast %cst_79 : f32 to vector<8x8xf32>
    %258 = arith.mulf %256, %257 : vector<8x8xf32>
    %cst_80 = arith.constant dense<0xFF800000> : vector<8xf32>
    %259 = vector.multi_reduction <maximumf>, %258, %cst_80 [1] : vector<8x8xf32> to vector<8xf32>
    %260 = vector.shape_cast %259 : vector<8xf32> to vector<8x1xf32>
    %261 = vector.broadcast %260 : vector<8x1xf32> to vector<8x8xf32>
    %262 = arith.subf %258, %261 : vector<8x8xf32>
    %263 = math.exp %262 : vector<8x8xf32>
    %cst_81 = arith.constant dense<0.000000e+00> : vector<8xf32>
    %264 = vector.multi_reduction <add>, %263, %cst_81 [1] : vector<8x8xf32> to vector<8xf32>
    %265 = vector.shape_cast %264 : vector<8xf32> to vector<8x1xf32>
    %266 = vector.broadcast %265 : vector<8x1xf32> to vector<8x8xf32>
    %267 = arith.divf %263, %266 : vector<8x8xf32>
    %268 = arith.truncf %267 : vector<8x8xf32> to vector<8x8xbf16>
    %269 = arith.truncf %253 : vector<8x16xf32> to vector<8x16xbf16>
    %cst_82 = arith.constant dense<0.000000e+00> : vector<8x16xf32>
    %270 = tpu.matmul %268, %269, %cst_82 {dimension_numbers = #tpu.dot_dimension_numbers<[1], [0], [0], [1], [0, 0, 1, 1], [], []>} : vector<8x8xbf16>, vector<8x16xbf16>, vector<8x16xf32> -> vector<8x16xf32>
    %271 = vector.extract_strided_slice %130 {offsets = [0, 112], sizes = [8, 16], strides = [1, 1]} : vector<8x384xf32> to vector<8x16xf32>
    %272 = vector.extract_strided_slice %130 {offsets = [0, 240], sizes = [8, 16], strides = [1, 1]} : vector<8x384xf32> to vector<8x16xf32>
    %273 = vector.extract_strided_slice %130 {offsets = [0, 368], sizes = [8, 16], strides = [1, 1]} : vector<8x384xf32> to vector<8x16xf32>
    %274 = arith.truncf %271 : vector<8x16xf32> to vector<8x16xbf16>
    %275 = arith.truncf %272 : vector<8x16xf32> to vector<8x16xbf16>
    "tpu.trace_start"() <{level = 10 : i32, message = "qd,kd->qk"}> : () -> ()
    %cst_83 = arith.constant dense<0.000000e+00> : vector<8x8xf32>
    %276 = tpu.matmul %274, %275, %cst_83 {dimension_numbers = #tpu.dot_dimension_numbers<[1], [1], [0], [0], [0, 0, 1, 0], [], []>} : vector<8x16xbf16>, vector<8x16xbf16>, vector<8x8xf32> -> vector<8x8xf32>
    "tpu.trace_stop"() : () -> ()
    %cst_84 = arith.constant 2.500000e-01 : f32
    %277 = vector.broadcast %cst_84 : f32 to vector<8x8xf32>
    %278 = arith.mulf %276, %277 : vector<8x8xf32>
    %cst_85 = arith.constant dense<0xFF800000> : vector<8xf32>
    %279 = vector.multi_reduction <maximumf>, %278, %cst_85 [1] : vector<8x8xf32> to vector<8xf32>
    %280 = vector.shape_cast %279 : vector<8xf32> to vector<8x1xf32>
    %281 = vector.broadcast %280 : vector<8x1xf32> to vector<8x8xf32>
    %282 = arith.subf %278, %281 : vector<8x8xf32>
    %283 = math.exp %282 : vector<8x8xf32>
    %cst_86 = arith.constant dense<0.000000e+00> : vector<8xf32>
    %284 = vector.multi_reduction <add>, %283, %cst_86 [1] : vector<8x8xf32> to vector<8xf32>
    %285 = vector.shape_cast %284 : vector<8xf32> to vector<8x1xf32>
    %286 = vector.broadcast %285 : vector<8x1xf32> to vector<8x8xf32>
    %287 = arith.divf %283, %286 : vector<8x8xf32>
    %288 = arith.truncf %287 : vector<8x8xf32> to vector<8x8xbf16>
    %289 = arith.truncf %273 : vector<8x16xf32> to vector<8x16xbf16>
    %cst_87 = arith.constant dense<0.000000e+00> : vector<8x16xf32>
    %290 = tpu.matmul %288, %289, %cst_87 {dimension_numbers = #tpu.dot_dimension_numbers<[1], [0], [0], [1], [0, 0, 1, 1], [], []>} : vector<8x8xbf16>, vector<8x16xbf16>, vector<8x16xf32> -> vector<8x16xf32>
    %291 = tpu.concatenate %150, %170, %190, %210, %230, %250, %270, %290 in 1 : vector<8x16xf32>, vector<8x16xf32>, vector<8x16xf32>, vector<8x16xf32>, vector<8x16xf32>, vector<8x16xf32>, vector<8x16xf32>, vector<8x16xf32> -> vector<8x128xf32>
    %292 = arith.truncf %291 : vector<8x128xf32> to vector<8x128xbf16>
    %c0_88 = arith.constant 0 : index
    %c0_89 = arith.constant 0 : index
    %293 = vector.load %arg6[%c0_88, %c0_89] : memref<128x128xf32, #tpu.memory_space<vmem>>, vector<128x128xf32>
    %294 = arith.truncf %293 : vector<128x128xf32> to vector<128x128xbf16>
    %cst_90 = arith.constant dense<0.000000e+00> : vector<8x128xf32>
    %295 = tpu.matmul %292, %294, %cst_90 {dimension_numbers = #tpu.dot_dimension_numbers<[1], [0], [0], [1], [0, 0, 1, 1], [], []>} : vector<8x128xbf16>, vector<128x128xbf16>, vector<8x128xf32> -> vector<8x128xf32>
    %c0_91 = arith.constant 0 : index
    %c0_92 = arith.constant 0 : index
    %296 = vector.load %arg7[%c0_91, %c0_92] : memref<1x128xf32, #tpu.memory_space<vmem>>, vector<1x128xf32>
    %297 = vector.broadcast %296 : vector<1x128xf32> to vector<8x128xf32>
    %298 = arith.addf %295, %297 : vector<8x128xf32>
    %299 = arith.addf %298, %126 : vector<8x128xf32>
    %cst_93 = arith.constant dense<0.000000e+00> : vector<8xf32>
    %300 = vector.multi_reduction <add>, %299, %cst_93 [1] : vector<8x128xf32> to vector<8xf32>
    %301 = vector.shape_cast %300 : vector<8xf32> to vector<8x1xf32>
    %cst_94 = arith.constant 1.280000e+02 : f32
    %302 = vector.broadcast %cst_94 : f32 to vector<8x1xf32>
    %303 = arith.divf %301, %302 : vector<8x1xf32>
    %304 = vector.broadcast %303 : vector<8x1xf32> to vector<8x128xf32>
    %305 = arith.subf %299, %304 : vector<8x128xf32>
    %306 = arith.mulf %305, %305 : vector<8x128xf32>
    %cst_95 = arith.constant dense<0.000000e+00> : vector<8xf32>
    %307 = vector.multi_reduction <add>, %306, %cst_95 [1] : vector<8x128xf32> to vector<8xf32>
    %308 = vector.shape_cast %307 : vector<8xf32> to vector<8x1xf32>
    %cst_96 = arith.constant 1.280000e+02 : f32
    %309 = vector.broadcast %cst_96 : f32 to vector<8x1xf32>
    %310 = arith.divf %308, %309 : vector<8x1xf32>
    %311 = vector.broadcast %303 : vector<8x1xf32> to vector<8x128xf32>
    %312 = arith.subf %299, %311 : vector<8x128xf32>
    %cst_97 = arith.constant 9.99999974E-6 : f32
    %313 = vector.broadcast %cst_97 : f32 to vector<8x1xf32>
    %314 = arith.addf %310, %313 : vector<8x1xf32>
    %315 = math.rsqrt %314 : vector<8x1xf32>
    %316 = vector.broadcast %315 : vector<8x1xf32> to vector<8x128xf32>
    %317 = arith.mulf %312, %316 : vector<8x128xf32>
    %318 = arith.addf %126, %317 : vector<8x128xf32>
    %cst_98 = arith.constant dense<0.000000e+00> : vector<8xf32>
    %319 = vector.multi_reduction <add>, %318, %cst_98 [1] : vector<8x128xf32> to vector<8xf32>
    %320 = vector.shape_cast %319 : vector<8xf32> to vector<8x1xf32>
    %cst_99 = arith.constant 1.280000e+02 : f32
    %321 = vector.broadcast %cst_99 : f32 to vector<8x1xf32>
    %322 = arith.divf %320, %321 : vector<8x1xf32>
    %323 = vector.broadcast %322 : vector<8x1xf32> to vector<8x128xf32>
    %324 = arith.subf %318, %323 : vector<8x128xf32>
    %325 = arith.mulf %324, %324 : vector<8x128xf32>
    %cst_100 = arith.constant dense<0.000000e+00> : vector<8xf32>
    %326 = vector.multi_reduction <add>, %325, %cst_100 [1] : vector<8x128xf32> to vector<8xf32>
    %327 = vector.shape_cast %326 : vector<8xf32> to vector<8x1xf32>
    %cst_101 = arith.constant 1.270000e+02 : f32
    %328 = vector.broadcast %cst_101 : f32 to vector<8x1xf32>
    %329 = arith.divf %327, %328 : vector<8x1xf32>
    %330 = math.sqrt %329 : vector<8x1xf32>
    %cst_102 = arith.constant 9.99999997E-7 : f32
    %331 = vector.broadcast %cst_102 : f32 to vector<8x1xf32>
    %332 = arith.addf %330, %331 : vector<8x1xf32>
    %333 = vector.broadcast %332 : vector<8x1xf32> to vector<8x128xf32>
    %334 = arith.divf %324, %333 : vector<8x128xf32>
    %335 = arith.truncf %334 : vector<8x128xf32> to vector<8x128xbf16>
    %c0_103 = arith.constant 0 : index
    %c0_104 = arith.constant 0 : index
    %336 = vector.load %arg8[%c0_103, %c0_104] : memref<128x128xf32, #tpu.memory_space<vmem>>, vector<128x128xf32>
    %337 = arith.truncf %336 : vector<128x128xf32> to vector<128x128xbf16>
    %cst_105 = arith.constant dense<0.000000e+00> : vector<8x128xf32>
    %338 = tpu.matmul %335, %337, %cst_105 {dimension_numbers = #tpu.dot_dimension_numbers<[1], [0], [0], [1], [0, 0, 1, 1], [], []>} : vector<8x128xbf16>, vector<128x128xbf16>, vector<8x128xf32> -> vector<8x128xf32>
    %c0_106 = arith.constant 0 : index
    %c0_107 = arith.constant 0 : index
    %339 = vector.load %arg9[%c0_106, %c0_107] : memref<1x128xf32, #tpu.memory_space<vmem>>, vector<1x128xf32>
    %340 = vector.broadcast %339 : vector<1x128xf32> to vector<8x128xf32>
    %341 = arith.addf %338, %340 : vector<8x128xf32>
    %cst_108 = arith.constant 0.000000e+00 : f32
    %342 = vector.broadcast %cst_108 : f32 to vector<8x128xf32>
    %343 = arith.maximumf %341, %342 : vector<8x128xf32>
    %344 = arith.addf %318, %343 : vector<8x128xf32>
    %c0_109 = arith.constant 0 : index
    %c0_110 = arith.constant 0 : index
    %c0_111 = arith.constant 0 : index
    %345 = vector.load %arg10[%c0_109, %c0_110, %c0_111] : memref<1x8x128xf32, #tpu.memory_space<vmem>>, vector<1x8x128xf32>
    %346 = vector.shape_cast %345 : vector<1x8x128xf32> to vector<8x128xf32>
    %347 = vector.shape_cast %344 : vector<8x128xf32> to vector<1x8x128xf32>
    tpu.vector_store %arg10[%c0_109, %c0_110, %c0_111], %347 {strides = array<i32>} : memref<1x8x128xf32, #tpu.memory_space<vmem>>, vector<1x8x128xf32>,
    return
  }
  func.func @transform_0(%arg0: i32) -> (i32, i32, i32) {
    %c0_i32 = arith.constant 0 : i32
    %c0_i32_0 = arith.constant 0 : i32
    %c0_i32_1 = arith.constant 0 : i32
    return %arg0, %c0_i32, %c0_i32_0 : i32, i32, i32
  }
  func.func @transform_1(%arg0: i32) -> (i32, i32) {
    %c0_i32 = arith.constant 0 : i32
    %c0_i32_0 = arith.constant 0 : i32
    %c0_i32_1 = arith.constant 0 : i32
    return %c0_i32, %c0_i32_0 : i32, i32
  }
  func.func @transform_2(%arg0: i32) -> (i32, i32, i32) {
    %c0_i32 = arith.constant 0 : i32
    %c0_i32_0 = arith.constant 0 : i32
    %c0_i32_1 = arith.constant 0 : i32
    %c0_i32_2 = arith.constant 0 : i32
    return %c0_i32, %c0_i32_0, %c0_i32_1 : i32, i32, i32
  }
  func.func @transform_3(%arg0: i32) -> (i32, i32, i32) {
    %c0_i32 = arith.constant 0 : i32
    %c0_i32_0 = arith.constant 0 : i32
    %c0_i32_1 = arith.constant 0 : i32
    %c0_i32_2 = arith.constant 0 : i32
    return %c0_i32, %c0_i32_0, %c0_i32_1 : i32, i32, i32
  }
  func.func @transform_4(%arg0: i32) -> (i32, i32) {
    %c0_i32 = arith.constant 0 : i32
    %c0_i32_0 = arith.constant 0 : i32
    %c0_i32_1 = arith.constant 0 : i32
    return %c0_i32, %c0_i32_0 : i32, i32
  }
  func.func @transform_5(%arg0: i32) -> (i32, i32) {
    %c0_i32 = arith.constant 0 : i32
    %c0_i32_0 = arith.constant 0 : i32
    %c0_i32_1 = arith.constant 0 : i32
    return %c0_i32, %c0_i32_0 : i32, i32
  }
  func.func @transform_6(%arg0: i32) -> (i32, i32) {
    %c0_i32 = arith.constant 0 : i32
    %c0_i32_0 = arith.constant 0 : i32
    %c0_i32_1 = arith.constant 0 : i32
    return %c0_i32, %c0_i32_0 : i32, i32
  }
  func.func @transform_7(%arg0: i32) -> (i32, i32) {
    %c0_i32 = arith.constant 0 : i32
    %c0_i32_0 = arith.constant 0 : i32
    %c0_i32_1 = arith.constant 0 : i32
    return %c0_i32, %c0_i32_0 : i32, i32
  }
  func.func @transform_8(%arg0: i32) -> (i32, i32) {
    %c0_i32 = arith.constant 0 : i32
    %c0_i32_0 = arith.constant 0 : i32
    %c0_i32_1 = arith.constant 0 : i32
    return %c0_i32, %c0_i32_0 : i32, i32
  }
  func.func @transform_9(%arg0: i32) -> (i32, i32, i32) {
    %c0_i32 = arith.constant 0 : i32
    %c0_i32_0 = arith.constant 0 : i32
    %c0_i32_1 = arith.constant 0 : i32
    return %arg0, %c0_i32, %c0_i32_0 : i32, i32, i32
  }
}

module attributes {stable_mosaic.version = 11 : i64} {
  func.func @dsconv_kernel(%arg0: i32, %arg1: memref<1x16x512xf32, #tpu.memory_space<vmem>>, %arg2: memref<3x512xf32, #tpu.memory_space<vmem>>, %arg3: memref<512x128xf32, #tpu.memory_space<vmem>>, %arg4: memref<1x16x128xf32, #tpu.memory_space<vmem>>) attributes {dimension_semantics = [#tpu.dimension_semantics<parallel>], iteration_bounds = array<i64: 2>, scalar_prefetch = 0 : i64, scratch_operands = 0 : i64, tpu.core_type = #tpu.core_type<tc>, window_params = [{transform_indices = @transform_0, window_bounds = array<i64: 1, 16, 512>}, {pipeline_mode = #tpu.pipeline_mode<synchronous>, transform_indices = @transform_1, window_bounds = array<i64: 3, 512>}, {pipeline_mode = #tpu.pipeline_mode<synchronous>, transform_indices = @transform_2, window_bounds = array<i64: 512, 128>}, {transform_indices = @transform_3, window_bounds = array<i64: 1, 16, 128>}]} {
    %c0 = arith.constant 0 : index
    %c0_0 = arith.constant 0 : index
    %c0_1 = arith.constant 0 : index
    %0 = vector.load %arg1[%c0, %c0_0, %c0_1] : memref<1x16x512xf32, #tpu.memory_space<vmem>>, vector<1x16x512xf32>
    %1 = vector.shape_cast %0 : vector<1x16x512xf32> to vector<16x512xf32>
    %2 = tpu.iota {dimensions = array<i32: 0>} : vector<16x1xi32>
    %c0_2 = arith.constant 0 : index
    %c0_3 = arith.constant 0 : index
    %3 = vector.load %arg2[%c0_2, %c0_3] : memref<3x512xf32, #tpu.memory_space<vmem>>, vector<3x512xf32>
    %cst = arith.constant 0.000000e+00 : f32
    %4 = vector.broadcast %cst : f32 to vector<16x512xf32>
    %c1_i32 = arith.constant 1 : i32
    %5 = tpu.dynamic_rotate %1 by %c1_i32 dim 0 : vector<16x512xf32>, i32 -> vector<16x512xf32>
    %c1_i32_4 = arith.constant 1 : i32
    %6 = vector.broadcast %c1_i32_4 : i32 to vector<16x1xi32>
    %7 = arith.cmpi sge, %2, %6 : vector<16x1xi32>
    %cst_5 = arith.constant 0.000000e+00 : f32
    %8 = vector.shape_cast %7 : vector<16x1xi1> to vector<16x1xi1>
    %9 = vector.broadcast %8 : vector<16x1xi1> to vector<16x512xi1>
    %10 = vector.broadcast %cst_5 : f32 to vector<16x512xf32>
    %11 = arith.select %9, %5, %10 : vector<16x512xi1>, vector<16x512xf32>
    %12 = vector.extract_strided_slice %3 {offsets = [0, 0], sizes = [1, 512], strides = [1, 1]} : vector<3x512xf32> to vector<1x512xf32>
    %13 = vector.broadcast %12 : vector<1x512xf32> to vector<16x512xf32>
    %14 = arith.mulf %11, %13 : vector<16x512xf32>
    %15 = arith.addf %4, %14 : vector<16x512xf32>
    %16 = vector.extract_strided_slice %3 {offsets = [1, 0], sizes = [1, 512], strides = [1, 1]} : vector<3x512xf32> to vector<1x512xf32>
    %17 = vector.broadcast %16 : vector<1x512xf32> to vector<16x512xf32>
    %18 = arith.mulf %1, %17 : vector<16x512xf32>
    %19 = arith.addf %15, %18 : vector<16x512xf32>
    %c15_i32 = arith.constant 15 : i32
    %20 = tpu.dynamic_rotate %1 by %c15_i32 dim 0 : vector<16x512xf32>, i32 -> vector<16x512xf32>
    %c15_i32_6 = arith.constant 15 : i32
    %21 = vector.broadcast %c15_i32_6 : i32 to vector<16x1xi32>
    %22 = arith.cmpi slt, %2, %21 : vector<16x1xi32>
    %cst_7 = arith.constant 0.000000e+00 : f32
    %23 = vector.shape_cast %22 : vector<16x1xi1> to vector<16x1xi1>
    %24 = vector.broadcast %23 : vector<16x1xi1> to vector<16x512xi1>
    %25 = vector.broadcast %cst_7 : f32 to vector<16x512xf32>
    %26 = arith.select %24, %20, %25 : vector<16x512xi1>, vector<16x512xf32>
    %27 = vector.extract_strided_slice %3 {offsets = [2, 0], sizes = [1, 512], strides = [1, 1]} : vector<3x512xf32> to vector<1x512xf32>
    %28 = vector.broadcast %27 : vector<1x512xf32> to vector<16x512xf32>
    %29 = arith.mulf %26, %28 : vector<16x512xf32>
    %30 = arith.addf %19, %29 : vector<16x512xf32>
    %31 = arith.truncf %30 : vector<16x512xf32> to vector<16x512xbf16>
    %c0_8 = arith.constant 0 : index
    %c0_9 = arith.constant 0 : index
    %32 = vector.load %arg3[%c0_8, %c0_9] : memref<512x128xf32, #tpu.memory_space<vmem>>, vector<512x128xf32>
    %33 = arith.truncf %32 : vector<512x128xf32> to vector<512x128xbf16>
    %cst_10 = arith.constant dense<0.000000e+00> : vector<16x128xf32>
    %34 = tpu.matmul %31, %33, %cst_10 {dimension_numbers = #tpu.dot_dimension_numbers<[1], [0], [0], [1], [0, 0, 1, 1], [], []>} : vector<16x512xbf16>, vector<512x128xbf16>, vector<16x128xf32> -> vector<16x128xf32>
    %c0_11 = arith.constant 0 : index
    %c0_12 = arith.constant 0 : index
    %c0_13 = arith.constant 0 : index
    %35 = vector.load %arg4[%c0_11, %c0_12, %c0_13] : memref<1x16x128xf32, #tpu.memory_space<vmem>>, vector<1x16x128xf32>
    %36 = vector.shape_cast %35 : vector<1x16x128xf32> to vector<16x128xf32>
    %37 = vector.shape_cast %34 : vector<16x128xf32> to vector<1x16x128xf32>
    tpu.vector_store %arg4[%c0_11, %c0_12, %c0_13], %37 {strides = array<i32>} : memref<1x16x128xf32, #tpu.memory_space<vmem>>, vector<1x16x128xf32>,
    return
  }
  func.func @transform_0(%arg0: i32) -> (i32, i32, i32) {
    %c0_i32 = arith.constant 0 : i32
    %c0_i32_0 = arith.constant 0 : i32
    %c0_i32_1 = arith.constant 0 : i32
    return %arg0, %c0_i32, %c0_i32_0 : i32, i32, i32
  }
  func.func @transform_1(%arg0: i32) -> (i32, i32) {
    %c0_i32 = arith.constant 0 : i32
    %c0_i32_0 = arith.constant 0 : i32
    %c0_i32_1 = arith.constant 0 : i32
    return %c0_i32, %c0_i32_0 : i32, i32
  }
  func.func @transform_2(%arg0: i32) -> (i32, i32) {
    %c0_i32 = arith.constant 0 : i32
    %c0_i32_0 = arith.constant 0 : i32
    %c0_i32_1 = arith.constant 0 : i32
    return %c0_i32, %c0_i32_0 : i32, i32
  }
  func.func @transform_3(%arg0: i32) -> (i32, i32, i32) {
    %c0_i32 = arith.constant 0 : i32
    %c0_i32_0 = arith.constant 0 : i32
    %c0_i32_1 = arith.constant 0 : i32
    return %arg0, %c0_i32, %c0_i32_0 : i32, i32, i32
  }
}

module attributes {stable_mosaic.version = 11 : i64} {
  func.func @cqa_kernel(%arg0: i32, %arg1: memref<1x16x128xf32, #tpu.memory_space<vmem>>, %arg2: memref<1x8x128xf32, #tpu.memory_space<vmem>>, %arg3: memref<3x128xf32, #tpu.memory_space<vmem>>, %arg4: memref<1x16x512xf32, #tpu.memory_space<vmem>>) attributes {dimension_semantics = [#tpu.dimension_semantics<parallel>], iteration_bounds = array<i64: 2>, scalar_prefetch = 0 : i64, scratch_operands = 0 : i64, tpu.core_type = #tpu.core_type<tc>, window_params = [{transform_indices = @transform_0, window_bounds = array<i64: 1, 16, 128>}, {transform_indices = @transform_1, window_bounds = array<i64: 1, 8, 128>}, {pipeline_mode = #tpu.pipeline_mode<synchronous>, transform_indices = @transform_2, window_bounds = array<i64: 3, 128>}, {transform_indices = @transform_3, window_bounds = array<i64: 1, 16, 512>}]} {
    %c0 = arith.constant 0 : index
    %c0_0 = arith.constant 0 : index
    %c0_1 = arith.constant 0 : index
    %0 = vector.load %arg1[%c0, %c0_0, %c0_1] : memref<1x16x128xf32, #tpu.memory_space<vmem>>, vector<1x16x128xf32>
    %1 = vector.shape_cast %0 : vector<1x16x128xf32> to vector<16x128xf32>
    %c0_2 = arith.constant 0 : index
    %c0_3 = arith.constant 0 : index
    %c0_4 = arith.constant 0 : index
    %2 = vector.load %arg2[%c0_2, %c0_3, %c0_4] : memref<1x8x128xf32, #tpu.memory_space<vmem>>, vector<1x8x128xf32>
    %3 = vector.shape_cast %2 : vector<1x8x128xf32> to vector<8x128xf32>
    %c0_5 = arith.constant 0 : index
    %c0_6 = arith.constant 0 : index
    %4 = vector.load %arg3[%c0_5, %c0_6] : memref<3x128xf32, #tpu.memory_space<vmem>>, vector<1x128xf32>
    %5 = vector.broadcast %4 : vector<1x128xf32> to vector<16x128xf32>
    %6 = arith.mulf %1, %5 : vector<16x128xf32>
    %cst = arith.constant dense<0.000000e+00> : vector<16xf32>
    %7 = vector.multi_reduction <add>, %6, %cst [1] : vector<16x128xf32> to vector<16xf32>
    %8 = vector.shape_cast %7 : vector<16xf32> to vector<16x1xf32>
    %c2 = arith.constant 2 : index
    %c0_7 = arith.constant 0 : index
    %9 = vector.load %arg3[%c2, %c0_7] : memref<3x128xf32, #tpu.memory_space<vmem>>, vector<1x128xf32>
    %10 = vector.broadcast %9 : vector<1x128xf32> to vector<16x128xf32>
    %11 = arith.mulf %1, %10 : vector<16x128xf32>
    %c1 = arith.constant 1 : index
    %c0_8 = arith.constant 0 : index
    %12 = vector.load %arg3[%c1, %c0_8] : memref<3x128xf32, #tpu.memory_space<vmem>>, vector<1x128xf32>
    %13 = vector.broadcast %12 : vector<1x128xf32> to vector<16x128xf32>
    %14 = arith.addf %11, %13 : vector<16x128xf32>
    %15 = arith.truncf %14 : vector<16x128xf32> to vector<16x128xbf16>
    %16 = arith.truncf %3 : vector<8x128xf32> to vector<8x128xbf16>
    "tpu.trace_start"() <{level = 10 : i32, message = "nd,md->nm"}> : () -> ()
    %cst_9 = arith.constant dense<0.000000e+00> : vector<16x8xf32>
    %17 = tpu.matmul %15, %16, %cst_9 {dimension_numbers = #tpu.dot_dimension_numbers<[1], [1], [0], [0], [0, 0, 1, 0], [], []>} : vector<16x128xbf16>, vector<8x128xbf16>, vector<16x8xf32> -> vector<16x8xf32>
    "tpu.trace_stop"() : () -> ()
    %18 = vector.broadcast %8 : vector<16x1xf32> to vector<16x8xf32>
    %19 = arith.addf %17, %18 : vector<16x8xf32>
    %cst_10 = arith.constant dense<0xFF800000> : vector<16xf32>
    %20 = vector.multi_reduction <maximumf>, %19, %cst_10 [1] : vector<16x8xf32> to vector<16xf32>
    %21 = vector.shape_cast %20 : vector<16xf32> to vector<16x1xf32>
    %22 = vector.broadcast %21 : vector<16x1xf32> to vector<16x8xf32>
    %23 = arith.subf %19, %22 : vector<16x8xf32>
    %24 = math.exp %23 : vector<16x8xf32>
    %cst_11 = arith.constant dense<0.000000e+00> : vector<16xf32>
    %25 = vector.multi_reduction <add>, %24, %cst_11 [1] : vector<16x8xf32> to vector<16xf32>
    %26 = vector.shape_cast %25 : vector<16xf32> to vector<16x1xf32>
    %27 = vector.broadcast %26 : vector<16x1xf32> to vector<16x8xf32>
    %28 = arith.divf %24, %27 : vector<16x8xf32>
    %cst_12 = arith.constant dense<0xFF800000> : vector<8xf32>
    %29 = vector.multi_reduction <maximumf>, %19, %cst_12 [0] : vector<16x8xf32> to vector<8xf32>
    %30 = vector.shape_cast %29 : vector<8xf32> to vector<1x8xf32>
    %31 = vector.broadcast %30 : vector<1x8xf32> to vector<16x8xf32>
    %32 = arith.subf %19, %31 : vector<16x8xf32>
    %33 = math.exp %32 : vector<16x8xf32>
    %cst_13 = arith.constant dense<0.000000e+00> : vector<8xf32>
    %34 = vector.multi_reduction <add>, %33, %cst_13 [0] : vector<16x8xf32> to vector<8xf32>
    %35 = vector.shape_cast %34 : vector<8xf32> to vector<1x8xf32>
    %36 = vector.broadcast %35 : vector<1x8xf32> to vector<16x8xf32>
    %37 = arith.divf %33, %36 : vector<16x8xf32>
    %38 = arith.truncf %28 : vector<16x8xf32> to vector<16x8xbf16>
    %39 = arith.truncf %3 : vector<8x128xf32> to vector<8x128xbf16>
    %cst_14 = arith.constant dense<0.000000e+00> : vector<16x128xf32>
    %40 = tpu.matmul %38, %39, %cst_14 {dimension_numbers = #tpu.dot_dimension_numbers<[1], [0], [0], [1], [0, 0, 1, 1], [], []>} : vector<16x8xbf16>, vector<8x128xbf16>, vector<16x128xf32> -> vector<16x128xf32>
    %41 = arith.truncf %28 : vector<16x8xf32> to vector<16x8xbf16>
    %42 = arith.truncf %37 : vector<16x8xf32> to vector<16x8xbf16>
    "tpu.trace_start"() <{level = 10 : i32, message = "nm,km->nk"}> : () -> ()
    %cst_15 = arith.constant dense<0.000000e+00> : vector<16x16xf32>
    %43 = tpu.matmul %41, %42, %cst_15 {dimension_numbers = #tpu.dot_dimension_numbers<[1], [1], [0], [0], [0, 0, 1, 0], [], []>} : vector<16x8xbf16>, vector<16x8xbf16>, vector<16x16xf32> -> vector<16x16xf32>
    "tpu.trace_stop"() : () -> ()
    %44 = arith.truncf %43 : vector<16x16xf32> to vector<16x16xbf16>
    %45 = arith.truncf %1 : vector<16x128xf32> to vector<16x128xbf16>
    %cst_16 = arith.constant dense<0.000000e+00> : vector<16x128xf32>
    %46 = tpu.matmul %44, %45, %cst_16 {dimension_numbers = #tpu.dot_dimension_numbers<[1], [0], [0], [1], [0, 0, 1, 1], [], []>} : vector<16x16xbf16>, vector<16x128xbf16>, vector<16x128xf32> -> vector<16x128xf32>
    %c0_17 = arith.constant 0 : index
    %c0_18 = arith.constant 0 : index
    %c0_19 = arith.constant 0 : index
    %47 = vector.load %arg4[%c0_17, %c0_18, %c0_19] : memref<1x16x512xf32, #tpu.memory_space<vmem>>, vector<1x16x128xf32>
    %48 = vector.shape_cast %47 : vector<1x16x128xf32> to vector<16x128xf32>
    %49 = vector.shape_cast %1 : vector<16x128xf32> to vector<1x16x128xf32>
    tpu.vector_store %arg4[%c0_17, %c0_18, %c0_19], %49 {strides = array<i32>} : memref<1x16x512xf32, #tpu.memory_space<vmem>>, vector<1x16x128xf32>,
    %c0_20 = arith.constant 0 : index
    %c0_21 = arith.constant 0 : index
    %c128 = arith.constant 128 : index
    %50 = vector.load %arg4[%c0_20, %c0_21, %c128] : memref<1x16x512xf32, #tpu.memory_space<vmem>>, vector<1x16x128xf32>
    %51 = vector.shape_cast %50 : vector<1x16x128xf32> to vector<16x128xf32>
    %52 = vector.shape_cast %40 : vector<16x128xf32> to vector<1x16x128xf32>
    tpu.vector_store %arg4[%c0_20, %c0_21, %c128], %52 {strides = array<i32>} : memref<1x16x512xf32, #tpu.memory_space<vmem>>, vector<1x16x128xf32>,
    %53 = arith.mulf %1, %40 : vector<16x128xf32>
    %c0_22 = arith.constant 0 : index
    %c0_23 = arith.constant 0 : index
    %c256 = arith.constant 256 : index
    %54 = vector.load %arg4[%c0_22, %c0_23, %c256] : memref<1x16x512xf32, #tpu.memory_space<vmem>>, vector<1x16x128xf32>
    %55 = vector.shape_cast %54 : vector<1x16x128xf32> to vector<16x128xf32>
    %56 = vector.shape_cast %53 : vector<16x128xf32> to vector<1x16x128xf32>
    tpu.vector_store %arg4[%c0_22, %c0_23, %c256], %56 {strides = array<i32>} : memref<1x16x512xf32, #tpu.memory_space<vmem>>, vector<1x16x128xf32>,
    %57 = arith.mulf %1, %46 : vector<16x128xf32>
    %c0_24 = arith.constant 0 : index
    %c0_25 = arith.constant 0 : index
    %c384 = arith.constant 384 : index
    %58 = vector.load %arg4[%c0_24, %c0_25, %c384] : memref<1x16x512xf32, #tpu.memory_space<vmem>>, vector<1x16x128xf32>
    %59 = vector.shape_cast %58 : vector<1x16x128xf32> to vector<16x128xf32>
    %60 = vector.shape_cast %57 : vector<16x128xf32> to vector<1x16x128xf32>
    tpu.vector_store %arg4[%c0_24, %c0_25, %c384], %60 {strides = array<i32>} : memref<1x16x512xf32, #tpu.memory_space<vmem>>, vector<1x16x128xf32>,
    return
  }
  func.func @transform_0(%arg0: i32) -> (i32, i32, i32) {
    %c0_i32 = arith.constant 0 : i32
    %c0_i32_0 = arith.constant 0 : i32
    %c0_i32_1 = arith.constant 0 : i32
    return %arg0, %c0_i32, %c0_i32_0 : i32, i32, i32
  }
  func.func @transform_1(%arg0: i32) -> (i32, i32, i32) {
    %c0_i32 = arith.constant 0 : i32
    %c0_i32_0 = arith.constant 0 : i32
    %c0_i32_1 = arith.constant 0 : i32
    return %arg0, %c0_i32, %c0_i32_0 : i32, i32, i32
  }
  func.func @transform_2(%arg0: i32) -> (i32, i32) {
    %c0_i32 = arith.constant 0 : i32
    %c0_i32_0 = arith.constant 0 : i32
    %c0_i32_1 = arith.constant 0 : i32
    return %c0_i32, %c0_i32_0 : i32, i32
  }
  func.func @transform_3(%arg0: i32) -> (i32, i32, i32) {
    %c0_i32 = arith.constant 0 : i32
    %c0_i32_0 = arith.constant 0 : i32
    %c0_i32_1 = arith.constant 0 : i32
    return %arg0, %c0_i32, %c0_i32_0 : i32, i32, i32
  }
}

module attributes {stable_mosaic.version = 11 : i64} {
  func.func @answer_kernel(%arg0: memref<2x16x128xf32, #tpu.memory_space<vmem>>, %arg1: memref<2x128xf32, #tpu.memory_space<vmem>>, %arg2: memref<1x1xf32, #tpu.memory_space<vmem>>, %arg3: memref<2x128xf32, #tpu.memory_space<vmem>>, %arg4: memref<1x1xf32, #tpu.memory_space<vmem>>, %arg5: memref<2x16xf32, #tpu.memory_space<vmem>>, %arg6: memref<2x16xf32, #tpu.memory_space<vmem>>) attributes {dimension_semantics = [], scalar_prefetch = 0 : i64, scratch_operands = 0 : i64, tpu.core_type = #tpu.core_type<tc>} {
    %c0 = arith.constant 0 : index
    %c0_0 = arith.constant 0 : index
    %c0_1 = arith.constant 0 : index
    %0 = vector.load %arg0[%c0, %c0_0, %c0_1] : memref<2x16x128xf32, #tpu.memory_space<vmem>>, vector<2x16x128xf32>
    %c0_2 = arith.constant 0 : index
    %c0_3 = arith.constant 0 : index
    %1 = vector.load %arg1[%c0_2, %c0_3] : memref<2x128xf32, #tpu.memory_space<vmem>>, vector<1x128xf32>
    %c1 = arith.constant 1 : index
    %c0_4 = arith.constant 0 : index
    %2 = vector.load %arg1[%c1, %c0_4] : memref<2x128xf32, #tpu.memory_space<vmem>>, vector<1x128xf32>
    %3 = arith.addf %1, %2 : vector<1x128xf32>
    %c0_5 = arith.constant 0 : index
    %c0_6 = arith.constant 0 : index
    %4 = vector.load %arg3[%c0_5, %c0_6] : memref<2x128xf32, #tpu.memory_space<vmem>>, vector<1x128xf32>
    %c1_7 = arith.constant 1 : index
    %c0_8 = arith.constant 0 : index
    %5 = vector.load %arg3[%c1_7, %c0_8] : memref<2x128xf32, #tpu.memory_space<vmem>>, vector<1x128xf32>
    %6 = arith.addf %4, %5 : vector<1x128xf32>
    %7 = vector.shape_cast %3 : vector<1x128xf32> to vector<1x1x128xf32>
    %8 = vector.broadcast %7 : vector<1x1x128xf32> to vector<2x16x128xf32>
    %9 = arith.mulf %0, %8 : vector<2x16x128xf32>
    %cst = arith.constant dense<0.000000e+00> : vector<2x16xf32>
    %10 = vector.multi_reduction <add>, %9, %cst [2] : vector<2x16x128xf32> to vector<2x16xf32>
    %c0_9 = arith.constant 0 : index
    %c0_10 = arith.constant 0 : index
    %11 = vector.load %arg2[%c0_9, %c0_10] : memref<1x1xf32, #tpu.memory_space<vmem>>, vector<1x1xf32>
    %12 = vector.broadcast %11 : vector<1x1xf32> to vector<2x16xf32>
    %13 = arith.addf %10, %12 : vector<2x16xf32>
    %14 = vector.shape_cast %6 : vector<1x128xf32> to vector<1x1x128xf32>
    %15 = vector.broadcast %14 : vector<1x1x128xf32> to vector<2x16x128xf32>
    %16 = arith.mulf %0, %15 : vector<2x16x128xf32>
    %cst_11 = arith.constant dense<0.000000e+00> : vector<2x16xf32>
    %17 = vector.multi_reduction <add>, %16, %cst_11 [2] : vector<2x16x128xf32> to vector<2x16xf32>
    %c0_12 = arith.constant 0 : index
    %c0_13 = arith.constant 0 : index
    %18 = vector.load %arg4[%c0_12, %c0_13] : memref<1x1xf32, #tpu.memory_space<vmem>>, vector<1x1xf32>
    %19 = vector.broadcast %18 : vector<1x1xf32> to vector<2x16xf32>
    %20 = arith.addf %17, %19 : vector<2x16xf32>
    %cst_14 = arith.constant dense<0xFF800000> : vector<2xf32>
    %21 = vector.multi_reduction <maximumf>, %13, %cst_14 [1] : vector<2x16xf32> to vector<2xf32>
    %22 = vector.shape_cast %21 : vector<2xf32> to vector<2x1xf32>
    %23 = vector.broadcast %22 : vector<2x1xf32> to vector<2x16xf32>
    %24 = arith.subf %13, %23 : vector<2x16xf32>
    %25 = math.exp %24 : vector<2x16xf32>
    %cst_15 = arith.constant dense<0.000000e+00> : vector<2xf32>
    %26 = vector.multi_reduction <add>, %25, %cst_15 [1] : vector<2x16xf32> to vector<2xf32>
    %27 = vector.shape_cast %26 : vector<2xf32> to vector<2x1xf32>
    %28 = vector.broadcast %27 : vector<2x1xf32> to vector<2x16xf32>
    %29 = arith.divf %25, %28 : vector<2x16xf32>
    %c0_16 = arith.constant 0 : index
    %c0_17 = arith.constant 0 : index
    %30 = vector.load %arg5[%c0_16, %c0_17] : memref<2x16xf32, #tpu.memory_space<vmem>>, vector<2x16xf32>
    tpu.vector_store %arg5[%c0_16, %c0_17], %29 {strides = array<i32>} : memref<2x16xf32, #tpu.memory_space<vmem>>, vector<2x16xf32>,
    %cst_18 = arith.constant dense<0xFF800000> : vector<2xf32>
    %31 = vector.multi_reduction <maximumf>, %20, %cst_18 [1] : vector<2x16xf32> to vector<2xf32>
    %32 = vector.shape_cast %31 : vector<2xf32> to vector<2x1xf32>
    %33 = vector.broadcast %32 : vector<2x1xf32> to vector<2x16xf32>
    %34 = arith.subf %20, %33 : vector<2x16xf32>
    %35 = math.exp %34 : vector<2x16xf32>
    %cst_19 = arith.constant dense<0.000000e+00> : vector<2xf32>
    %36 = vector.multi_reduction <add>, %35, %cst_19 [1] : vector<2x16xf32> to vector<2xf32>
    %37 = vector.shape_cast %36 : vector<2xf32> to vector<2x1xf32>
    %38 = vector.broadcast %37 : vector<2x1xf32> to vector<2x16xf32>
    %39 = arith.divf %35, %38 : vector<2x16xf32>
    %c0_20 = arith.constant 0 : index
    %c0_21 = arith.constant 0 : index
    %40 = vector.load %arg6[%c0_20, %c0_21] : memref<2x16xf32, #tpu.memory_space<vmem>>, vector<2x16xf32>
    tpu.vector_store %arg6[%c0_20, %c0_21], %39 {strides = array<i32>} : memref<2x16xf32, #tpu.memory_space<vmem>>, vector<2x16xf32>,
    return
  }
}

</mosaic_0001>

<llo_original>
// kernel: qanet_tail_forward.8
$region0: #{qanet_tail_forward.8}
  #allocation0 [shape = 'u32[]', space=smem, size = 0x4, offset = 0x4, fixed_abs, tag = 'smem constant byte address 0x4 - core index']
  #allocation1 [shape = 'u32[144,128]{1,0:T(1,128)}', space=vmem, size = 0x12000, scoped, tag = 'internal scratch']
  %s0 = inlined_call_operand.vmem [shape: f32[2,8,256], index: 0, kind: input, shape index: {}]
  %s1 = inlined_call_operand.vmem [shape: f32[3,256], index: 1, kind: input, shape index: {}]
  %s2 = inlined_call_operand.vmem [shape: f32[256,128], index: 2, kind: input, shape index: {}]
  %s3 = inlined_call_operand.vmem [shape: f32[2,8,128], index: 3, kind: output, shape index: {}]
  %s4 = sld [smem:[#allocation0]]
  $region45: #{qanet_tail_forward.8} parent=0
    _
  %s6 = ssub.s32 1, %s4
  %s7 = scalar_select 0, %s6, %s4
  loop: start=0, step=1, limit=4
  $region2: #{qanet_tail_forward.8} parent=0 // loop_pre_header
    _
  $region3: #{qanet_tail_forward.8} parent=0 // loop_header
    %s9 = sphi 0, %s13
    %p10 = scmp.ge.s32.totalorder %s9, 4
    %s19 = sphi 0, %s21
    %s22 = sphi 0, %s19
    %s23 = sphi 0, %s22
    %s39 = sphi 0, %s23
    %s43 = sphi 0, %s43
    %s45 = sphi 0, %s43
    %s46 = sphi 0, %s45
    %s60 = sphi 0, %s46
    %s64 = sphi 0, %s64
    %s66 = sphi 0, %s64
    %s67 = sphi 0, %s66
    %s81 = sphi 0, %s67
    %s87 = sphi 0, %s89
    %s90 = sphi 0, %s87
    %s91 = sphi 0, %s90
    %s107 = sphi 0, %s91
  $region4: #{qanet_tail_forward.8} parent=0 // loop_header_branch
    %12 = sbr.rel (%p10) target = $region8
  $region5: #{qanet_tail_forward.8} parent=0 // loop_body
    %s14 = ssub.s32 %s9, 1
    %s15 = ssub.s32 %s9, 2
    %s16 = sadd.s32 %s9, 1
    %s17 = ssub.s32 %s9, %s16
    %p18 = scmp.eq.s32.totalorder %s17, 0
    %s20 = sadd.s32 %s19, 1
    %s21 = scalar_select %p18, %s19, %s20
    %p24 = pneg %p18
    %p25 = scmp.eq.s32.totalorder %s9, 1
    %p26 = por %p24, %p25
    %p27 = scmp.ne.s32.totalorder %s19, %s22
    %p28 = scmp.eq.s32.totalorder %s9, 0
    %p29 = por %p27, %p28
    %p30 = scmp.ne.s32.totalorder %s19, %s22
    %p31 = scmp.eq.s32.totalorder %s14, 1
    %p32 = por %p30, %p31
    %p33 = scmp.ne.s32.totalorder %s22, %s23
    %p34 = scmp.eq.s32.totalorder %s14, 0
    %p35 = por %p33, %p34
    %p36 = scmp.ne.s32.totalorder %s22, %s23
    %p37 = scmp.eq.s32.totalorder %s15, 1
    %p38 = por %p36, %p37
    %p40 = scmp.ne.s32.totalorder %s23, %s39
    %p41 = scmp.eq.s32.totalorder %s15, 0
    %p42 = por %p40, %p41
    %s44 = sadd.s32 %s43, 1
    %p47 = scmp.eq.s32.totalorder %s9, 1
    %p48 = scmp.ne.s32.totalorder %s43, %s45
    %p49 = scmp.eq.s32.totalorder %s9, 0
    %p50 = por %p48, %p49
    %p51 = scmp.ne.s32.totalorder %s43, %s45
    %p52 = scmp.eq.s32.totalorder %s14, 1
    %p53 = por %p51, %p52
    %p54 = scmp.ne.s32.totalorder %s45, %s46
    %p55 = scmp.eq.s32.totalorder %s14, 0
    %p56 = por %p54, %p55
    %p57 = scmp.ne.s32.totalorder %s45, %s46
    %p58 = scmp.eq.s32.totalorder %s15, 1
    %p59 = por %p57, %p58
    %p61 = scmp.ne.s32.totalorder %s46, %s60
    %p62 = scmp.eq.s32.totalorder %s15, 0
    %p63 = por %p61, %p62
    %s65 = sadd.s32 %s64, 1
    %p68 = scmp.eq.s32.totalorder %s9, 1
    %p69 = scmp.ne.s32.totalorder %s64, %s66
    %p70 = scmp.eq.s32.totalorder %s9, 0
    %p71 = por %p69, %p70
    %p72 = scmp.ne.s32.totalorder %s64, %s66
    %p73 = scmp.eq.s32.totalorder %s14, 1
    %p74 = por %p72, %p73
    %p75 = scmp.ne.s32.totalorder %s66, %s67
    %p76 = scmp.eq.s32.totalorder %s14, 0
    %p77 = por %p75, %p76
    %p78 = scmp.ne.s32.totalorder %s66, %s67
    %p79 = scmp.eq.s32.totalorder %s15, 1
    %p80 = por %p78, %p79
    %p82 = scmp.ne.s32.totalorder %s67, %s81
    %p83 = scmp.eq.s32.totalorder %s15, 0
    %p84 = por %p82, %p83
    %s85 = ssub.s32 %s9, %s16
    %p86 = scmp.eq.s32.totalorder %s85, 0
    %s88 = sadd.s32 %s87, 1
    %s89 = scalar_select %p86, %s87, %s88
    %p92 = pneg %p86
    %p93 = scmp.eq.s32.totalorder %s9, 1
    %p94 = por %p92, %p93
    %p95 = scmp.ne.s32.totalorder %s87, %s90
    %p96 = scmp.eq.s32.totalorder %s9, 0
    %p97 = por %p95, %p96
    %p98 = scmp.ne.s32.totalorder %s87, %s90
    %p99 = scmp.eq.s32.totalorder %s14, 1
    %p100 = por %p98, %p99
    %p101 = scmp.ne.s32.totalorder %s90, %s91
    %p102 = scmp.eq.s32.totalorder %s14, 0
    %p103 = por %p101, %p102
    %p104 = scmp.ne.s32.totalorder %s90, %s91
    %p105 = scmp.eq.s32.totalorder %s15, 1
    %p106 = por %p104, %p105
    %p108 = scmp.ne.s32.totalorder %s91, %s107
    %p109 = scmp.eq.s32.totalorder %s15, 0
    %p110 = por %p108, %p109
    %p111 = scmp.le.s32.totalorder 1, %s9
    %p112 = scmp.lt.s32.totalorder %s9, 3
    %p113 = pnand %p111, %p112
    %p114 = pneg %p113
    // Predicated region
    $region9: #{qanet_tail_forward.8} parent=5 // pred_check
      _
    $region10: #{qanet_tail_forward.8} parent=5 // pred_check_branch
      %116 = sbr.rel (%p113) target = $region12
    $region11: #{qanet_tail_forward.8} parent=5 // pred_region
      %s117 = ssub.s32 %s9, 1
      // Predicated region
      $region13: #{qanet_tail_forward.8} parent=11 // pred_check
        %p118 = pneg %p56
      $region14: #{qanet_tail_forward.8} parent=11 // pred_check_branch
        %120 = sbr.rel (%p118) target = $region16
      $region15: #{qanet_tail_forward.8} parent=11 // pred_region
        _
      $region16: #{qanet_tail_forward.8} parent=11 // pred_fallthru
        _
      // Predicated region
      $region17: #{qanet_tail_forward.8} parent=11 // pred_check
        %p121 = pneg %p77
      $region18: #{qanet_tail_forward.8} parent=11 // pred_check_branch
        %123 = sbr.rel (%p121) target = $region20
      $region19: #{qanet_tail_forward.8} parent=11 // pred_region
        _
      $region20: #{qanet_tail_forward.8} parent=11 // pred_fallthru
        _
    $region12: #{qanet_tail_forward.8} parent=5 // pred_fallthru
      _
    %p124 = scmp.lt.s32.totalorder %s9, 2
    // Predicated region
    $region21: #{qanet_tail_forward.8} parent=5 // pred_check
      %p125 = pneg %p124
    $region22: #{qanet_tail_forward.8} parent=5 // pred_check_branch
      %127 = sbr.rel (%p125) target = $region24
    $region23: #{qanet_tail_forward.8} parent=5 // pred_region
      // Predicated region
      $region25: #{qanet_tail_forward.8} parent=23 // pred_check
        %p128 = pneg %p29
      $region26: #{qanet_tail_forward.8} parent=23 // pred_check_branch
        %130 = sbr.rel (%p128) target = $region28
      $region27: #{qanet_tail_forward.8} parent=23 // pred_region
        %p131 = scmp.lt.s32.totalorder %s9, 1
        %s132 = scalar_select %p131, %s9, 1
        %s133 = smul.addr %s132, 2
        %s134 = smul.addr %s133, 8
        %s135 = scalar_lea.vmem %s0, %s134
      $region28: #{qanet_tail_forward.8} parent=23 // pred_fallthru
        _
    $region24: #{qanet_tail_forward.8} parent=5 // pred_fallthru
      _
    %p136 = scmp.le.s32.totalorder 1, %s9
    %p137 = scmp.lt.s32.totalorder %s9, 3
    %p138 = pnand %p136, %p137
    %p139 = pneg %p138
    // Predicated region
    $region29: #{qanet_tail_forward.8} parent=5 // pred_check
      _
    $region30: #{qanet_tail_forward.8} parent=5 // pred_check_branch
      %141 = sbr.rel (%p138) target = $region32
    $region31: #{qanet_tail_forward.8} parent=5 // pred_region
      %s142 = ssub.s32 %s9, 1
      %p143 = scmp.lt.s32.totalorder %s14, 1
      %s144 = scalar_select %p143, %s14, 1
      %s145 = smul.addr %s144, 2
      %s146 = smul.addr %s145, 8
      %s147 = scalar_lea.vmem %s0, %s146
      %p148 = pneg %p35
      %p149 = pneg %p32
      %p150 = pneg %p56
      %p151 = pneg %p53
      %p152 = pneg %p77
      %p153 = pneg %p74
      %p154 = pneg %p103
      %p155 = pneg %p100
      %p156 = scmp.lt.s32.totalorder %s14, 1
      %s157 = scalar_select %p156, %s14, 1
      %s158 = smul.addr %s157, 8
      %s159 = scalar_lea.vmem %s3, %s158
      %p160 = scmp.lt.s32.totalorder %s14, 1
      %s161 = scalar_select %p160, %s14, 1
      %s162 = smul.addr %s161, 2
      %s163 = smul.addr %s162, 8
      %s164 = scalar_lea.vmem %s0, %s163
      %p165 = scmp.lt.s32.totalorder %s14, 1
      %s166 = scalar_select %p165, %s14, 1
      %s167 = smul.addr %s166, 8
      %s168 = scalar_lea.vmem %s3, %s167
      %v170 = vld [vmem:[%s164] sm:$0xff]
      %v171 = vld [vmem:[%s164 + $0x8] sm:$0xff]
      %v172 = vlaneseq
      %v173 = vshrl.u32 %v172, 7
      %v174 = vld [vmem:[%s1] sm:$0x77]
      %v175 = vrot.slane %v170, 7
      %v176 = vrot.slane %v171, 7
      %vm177 = vcmp.ge.s32.totalorder %v173, 1
      %v178 = vsel %vm177, 1, 0
      %vm179 = vcmp.eq.s32.totalorder %v178, 1
      %v180 = vsel %vm179, %v175, 0.0
      %v181 = vsel %vm179, %v176, 0.0
      %v183 = vlaneseq
      %v184 = vshrl.u32 %v183, 7
      %v185 = vsub.s32 0, %v184
      %v186 = vrot.slane %v174, %v185
      %v187 = vlaneseq
      %v188 = vshrl.u32 %v187, 7
      %v189 = vsub.s32 4, %v188
      %v190 = vrot.slane %v174, %v189
      %v193 = vlaneseq
      %v194 = vshrl.u32 %v193, 7
      %v195 = vsub.s32 0, %v194
      %v196 = vrot.slane %v186, %v195
      %v197 = vlaneseq
      %v198 = vshrl.u32 %v197, 7
      %v199 = vsub.s32 0, %v198
      %v200 = vrot.slane %v190, %v199
      %v201 = vmul.f32 %v180, %v196
      %v202 = vmul.f32 %v181, %v200
      %v203 = vadd.f32 %v201, 0.0
      %v204 = vadd.f32 %v202, 0.0
      %v205 = vlaneseq
      %v206 = vshrl.u32 %v205, 7
      %v207 = vsub.s32 1, %v206
      %v208 = vrot.slane %v174, %v207
      %v209 = vlaneseq
      %v210 = vshrl.u32 %v209, 7
      %v211 = vsub.s32 5, %v210
      %v212 = vrot.slane %v174, %v211
      %v215 = vlaneseq
      %v216 = vshrl.u32 %v215, 7
      %v217 = vsub.s32 1, %v216
      %v218 = vrot.slane %v208, %v217
      %v219 = vlaneseq
      %v220 = vshrl.u32 %v219, 7
      %v221 = vsub.s32 1, %v220
      %v222 = vrot.slane %v212, %v221
      %v223 = vmul.f32 %v170, %v218
      %v224 = vmul.f32 %v171, %v222
      %v225 = vadd.f32 %v203, %v223
      %v226 = vadd.f32 %v204, %v224
      %v227 = vrot.slane %v170, 1
      %v228 = vrot.slane %v171, 1
      %vm229 = vcmp.lt.s32.totalorder %v173, 7
      %v230 = vsel %vm229, 1, 0
      %vm231 = vcmp.eq.s32.totalorder %v230, 1
      %v232 = vsel %vm231, %v227, 0.0
      %v233 = vsel %vm231, %v228, 0.0
      %v234 = vlaneseq
      %v235 = vshrl.u32 %v234, 7
      %v236 = vsub.s32 2, %v235
      %v237 = vrot.slane %v174, %v236
      %v238 = vlaneseq
      %v239 = vshrl.u32 %v238, 7
      %v240 = vsub.s32 6, %v239
      %v241 = vrot.slane %v174, %v240
      %v244 = vlaneseq
      %v245 = vshrl.u32 %v244, 7
      %v246 = vsub.s32 2, %v245
      %v247 = vrot.slane %v237, %v246
      %v248 = vlaneseq
      %v249 = vshrl.u32 %v248, 7
      %v250 = vsub.s32 2, %v249
      %v251 = vrot.slane %v241, %v250
      %v252 = vmul.f32 %v232, %v247
      %v253 = vmul.f32 %v233, %v251
      %v254 = vadd.f32 %v225, %v252
      %v255 = vadd.f32 %v226, %v253
      %v256 = vpack.c.bf16 %v254, %v254
      %v257 = vpack.c.bf16 %v255, %v255
      %v258 = vld [vmem:[%s2] sm:$0xff]
      %v259 = vld [vmem:[%s2 + $0x8] sm:$0xff]
      %v260 = vld [vmem:[%s2 + $0x10] sm:$0xff]
      %v261 = vld [vmem:[%s2 + $0x18] sm:$0xff]
      %v262 = vld [vmem:[%s2 + $0x20] sm:$0xff]
      %v263 = vld [vmem:[%s2 + $0x28] sm:$0xff]
      %v264 = vld [vmem:[%s2 + $0x30] sm:$0xff]
      %v265 = vld [vmem:[%s2 + $0x38] sm:$0xff]
      %v266 = vld [vmem:[%s2 + $0x40] sm:$0xff]
      %v267 = vld [vmem:[%s2 + $0x48] sm:$0xff]
      %v268 = vld [vmem:[%s2 + $0x50] sm:$0xff]
      %v269 = vld [vmem:[%s2 + $0x58] sm:$0xff]
      %v270 = vld [vmem:[%s2 + $0x60] sm:$0xff]
      %v271 = vld [vmem:[%s2 + $0x68] sm:$0xff]
      %v272 = vld [vmem:[%s2 + $0x70] sm:$0xff]
      %v273 = vld [vmem:[%s2 + $0x78] sm:$0xff]
      %v274 = vld [vmem:[%s2 + $0x80] sm:$0xff]
      %v275 = vld [vmem:[%s2 + $0x88] sm:$0xff]
      %v276 = vld [vmem:[%s2 + $0x90] sm:$0xff]
      %v277 = vld [vmem:[%s2 + $0x98] sm:$0xff]
      %v278 = vld [vmem:[%s2 + $0xa0] sm:$0xff]
      %v279 = vld [vmem:[%s2 + $0xa8] sm:$0xff]
      %v280 = vld [vmem:[%s2 + $0xb0] sm:$0xff]
      %v281 = vld [vmem:[%s2 + $0xb8] sm:$0xff]
      %v282 = vld [vmem:[%s2 + $0xc0] sm:$0xff]
      %v283 = vld [vmem:[%s2 + $0xc8] sm:$0xff]
      %v284 = vld [vmem:[%s2 + $0xd0] sm:$0xff]
      %v285 = vld [vmem:[%s2 + $0xd8] sm:$0xff]
      %v286 = vld [vmem:[%s2 + $0xe0] sm:$0xff]
      %v287 = vld [vmem:[%s2 + $0xe8] sm:$0xff]
      %v288 = vld [vmem:[%s2 + $0xf0] sm:$0xff]
      %v289 = vld [vmem:[%s2 + $0xf8] sm:$0xff]
      %v290 = vpack.c.bf16 %v259, %v258
      %v291 = vpack.c.bf16 %v261, %v260
      %v292 = vpack.c.bf16 %v263, %v262
      %v293 = vpack.c.bf16 %v265, %v264
      %v294 = vpack.c.bf16 %v267, %v266
      %v295 = vpack.c.bf16 %v269, %v268
      %v296 = vpack.c.bf16 %v271, %v270
      %v297 = vpack.c.bf16 %v273, %v272
      %v298 = vpack.c.bf16 %v275, %v274
      %v299 = vpack.c.bf16 %v277, %v276
      %v300 = vpack.c.bf16 %v279, %v278
      %v301 = vpack.c.bf16 %v281, %v280
      %v302 = vpack.c.bf16 %v283, %v282
      %v303 = vpack.c.bf16 %v285, %v284
      %v304 = vpack.c.bf16 %v287, %v286
      %v305 = vpack.c.bf16 %v289, %v288
      %306 = vmatprep.subr.bf16.mxu0 0
      %307 = vmatpush1.bf16.msra.mxu0 %v290
      %308 = vmatprep.subr.bf16.mxu0 0
      %309 = vmatpush1.bf16.msra.mxu0 %v291
      %310 = vmatprep.subr.bf16.mxu0 0
      %311 = vmatpush1.bf16.msra.mxu0 %v292
      %312 = vmatprep.subr.bf16.mxu0 0
      %313 = vmatpush1.bf16.msra.mxu0 %v293
      %314 = vmatprep.subr.bf16.mxu0 0
      %315 = vmatpush1.bf16.msra.mxu0 %v294
      %316 = vmatprep.subr.bf16.mxu0 0
      %317 = vmatpush1.bf16.msra.mxu0 %v295
      %318 = vmatprep.subr.bf16.mxu0 0
      %319 = vmatpush1.bf16.msra.mxu0 %v296
      %320 = vmatprep.subr.bf16.mxu0 0
      %321 = vmatpush1.bf16.msra.mxu0 %v297
      %322 = vmatprep.subr.bf16.mxu0 0
      %323 = vmatpush1.bf16.msra.mxu0 %v298
      %324 = vmatprep.subr.bf16.mxu0 0
      %325 = vmatpush1.bf16.msra.mxu0 %v299
      %326 = vmatprep.subr.bf16.mxu0 0
      %327 = vmatpush1.bf16.msra.mxu0 %v300
      %328 = vmatprep.subr.bf16.mxu0 0
      %329 = vmatpush1.bf16.msra.mxu0 %v301
      %330 = vmatprep.subr.bf16.mxu0 0
      %331 = vmatpush1.bf16.msra.mxu0 %v302
      %332 = vmatprep.subr.bf16.mxu0 0
      %333 = vmatpush1.bf16.msra.mxu0 %v303
      %334 = vmatprep.subr.bf16.mxu0 0
      %335 = vmatpush1.bf16.msra.mxu0 %v304
      %336 = vmatprep.subr.bf16.mxu0 0
      %337 = vmatpush1.bf16.msra.mxu0 %v305
      %338 = vmatprep.mubr.bf16.mxu0 %v257
      %339 = vmatmul.mubr.bf16.gmra.mrb[0].mxu0 %v256
      %v340 = vpop.f32.mrb[0].mxu0
      %v341 = vadd.f32 0.0, %v340
      %v342 = vpop.f32.mrb[0].mxu0
      %v343 = vpop.f32.mrb[0].mxu0
      %v344 = vpop.f32.mrb[0].mxu0
      %345 = vdwg.mxu0
      %346 = vst [vmem:[%s168] sm:$0xff] %v341
      %p347 = scmp.lt.s32.totalorder %s14, 1
      %s348 = scalar_select %p347, %s14, 1
      %s349 = smul.addr %s348, 8
      %s350 = scalar_lea.vmem %s3, %s349
      // Predicated region
      $region33: #{qanet_tail_forward.8} parent=31 // pred_check
        %p351 = pneg %p100
      $region34: #{qanet_tail_forward.8} parent=31 // pred_check_branch
        %353 = sbr.rel (%p351) target = $region36
      $region35: #{qanet_tail_forward.8} parent=31 // pred_region
        _
      $region36: #{qanet_tail_forward.8} parent=31 // pred_fallthru
        _
    $region32: #{qanet_tail_forward.8} parent=5 // pred_fallthru
      _
    %p354 = scmp.le.s32.totalorder 2, %s9
    // Predicated region
    $region37: #{qanet_tail_forward.8} parent=5 // pred_check
      %p355 = pneg %p354
    $region38: #{qanet_tail_forward.8} parent=5 // pred_check_branch
      %357 = sbr.rel (%p355) target = $region40
    $region39: #{qanet_tail_forward.8} parent=5 // pred_region
      %s358 = ssub.s32 %s9, 2
      // Predicated region
      $region41: #{qanet_tail_forward.8} parent=39 // pred_check
        %p359 = pneg %p106
      $region42: #{qanet_tail_forward.8} parent=39 // pred_check_branch
        %361 = sbr.rel (%p359) target = $region44
      $region43: #{qanet_tail_forward.8} parent=39 // pred_region
        %p362 = scmp.lt.s32.totalorder %s15, 1
        %s363 = scalar_select %p362, %s15, 1
        %s364 = smul.addr %s363, 8
        %s365 = scalar_lea.vmem %s3, %s364
      $region44: #{qanet_tail_forward.8} parent=39 // pred_fallthru
        _
    $region40: #{qanet_tail_forward.8} parent=5 // pred_fallthru
      _
  $region6: #{qanet_tail_forward.8} parent=0 // loop_footer
    %s13 = sadd.s32 1, %s9
  $region7: #{qanet_tail_forward.8} parent=0 // loop_footer_branch
    %8 = sbr.rel target = $region3
  $region8: #{qanet_tail_forward.8} parent=0 // loop_exit
    _

// kernel: qanet_tail_forward.7
$region0: #{qanet_tail_forward.7}
  #allocation0 [shape = 'u32[]', space=smem, size = 0x4, offset = 0x4, fixed_abs, tag = 'smem constant byte address 0x4 - core index']
  #allocation1 [shape = 'u32[144,128]{1,0:T(1,128)}', space=vmem, size = 0x12000, scoped, tag = 'internal scratch']
  %s0 = inlined_call_operand.vmem [shape: f32[2,16,256], index: 0, kind: input, shape index: {}]
  %s1 = inlined_call_operand.vmem [shape: f32[3,256], index: 1, kind: input, shape index: {}]
  %s2 = inlined_call_operand.hbm [shape: f32[256,128], index: 2, kind: input, shape index: {}]
  %s3 = inlined_call_operand.vmem [shape: f32[2,16,128], index: 3, kind: output, shape index: {}]
  %s4 = sld [smem:[#allocation0]]
  $region49: #{qanet_tail_forward.7} parent=0
    _
  %s6 = ssub.s32 1, %s4
  %s7 = scalar_select 0, %s6, %s4
  $region1: #{qanet_tail_forward.7} parent=0
    #allocation2 [shape = 'u8[131072]{0}', space=vmem, size = 0x20000, scoped, tag = 'input window, operand 2, single buffered']
    #allocation3 [shape = 's32[2]{0}', space=sflag, size = 0x8, scoped, tag = 'scoped memory for qanet_tail_forward.7']
    %8 = vsyncpa [#allocation3], 0
    loop: start=0, step=1, limit=4
    $region2: #{qanet_tail_forward.7} parent=1 // loop_pre_header
      _
    $region3: #{qanet_tail_forward.7} parent=1 // loop_header
      %s10 = sphi 0, %s14
      %p11 = scmp.ge.s32.totalorder %s10, 4
      %s20 = sphi 0, %s22
      %s23 = sphi 0, %s20
      %s24 = sphi 0, %s23
      %s40 = sphi 0, %s24
      %s44 = sphi 0, %s44
      %s46 = sphi 0, %s44
      %s47 = sphi 0, %s46
      %s61 = sphi 0, %s47
      %s65 = sphi 0, %s65
      %s67 = sphi 0, %s65
      %s68 = sphi 0, %s67
      %s82 = sphi 0, %s68
      %s88 = sphi 0, %s90
      %s91 = sphi 0, %s88
      %s92 = sphi 0, %s91
      %s108 = sphi 0, %s92
    $region4: #{qanet_tail_forward.7} parent=1 // loop_header_branch
      %13 = sbr.rel (%p11) target = $region8
    $region5: #{qanet_tail_forward.7} parent=1 // loop_body
      %s15 = ssub.s32 %s10, 1
      %s16 = ssub.s32 %s10, 2
      %s17 = sadd.s32 %s10, 1
      %s18 = ssub.s32 %s10, %s17
      %p19 = scmp.eq.s32.totalorder %s18, 0
      %s21 = sadd.s32 %s20, 1
      %s22 = scalar_select %p19, %s20, %s21
      %p25 = pneg %p19
      %p26 = scmp.eq.s32.totalorder %s10, 1
      %p27 = por %p25, %p26
      %p28 = scmp.ne.s32.totalorder %s20, %s23
      %p29 = scmp.eq.s32.totalorder %s10, 0
      %p30 = por %p28, %p29
      %p31 = scmp.ne.s32.totalorder %s20, %s23
      %p32 = scmp.eq.s32.totalorder %s15, 1
      %p33 = por %p31, %p32
      %p34 = scmp.ne.s32.totalorder %s23, %s24
      %p35 = scmp.eq.s32.totalorder %s15, 0
      %p36 = por %p34, %p35
      %p37 = scmp.ne.s32.totalorder %s23, %s24
      %p38 = scmp.eq.s32.totalorder %s16, 1
      %p39 = por %p37, %p38
      %p41 = scmp.ne.s32.totalorder %s24, %s40
      %p42 = scmp.eq.s32.totalorder %s16, 0
      %p43 = por %p41, %p42
      %s45 = sadd.s32 %s44, 1
      %p48 = scmp.eq.s32.totalorder %s10, 1
      %p49 = scmp.ne.s32.totalorder %s44, %s46
      %p50 = scmp.eq.s32.totalorder %s10, 0
      %p51 = por %p49, %p50
      %p52 = scmp.ne.s32.totalorder %s44, %s46
      %p53 = scmp.eq.s32.totalorder %s15, 1
      %p54 = por %p52, %p53
      %p55 = scmp.ne.s32.totalorder %s46, %s47
      %p56 = scmp.eq.s32.totalorder %s15, 0
      %p57 = por %p55, %p56
      %p58 = scmp.ne.s32.totalorder %s46, %s47
      %p59 = scmp.eq.s32.totalorder %s16, 1
      %p60 = por %p58, %p59
      %p62 = scmp.ne.s32.totalorder %s47, %s61
      %p63 = scmp.eq.s32.totalorder %s16, 0
      %p64 = por %p62, %p63
      %s66 = sadd.s32 %s65, 1
      %p69 = scmp.eq.s32.totalorder %s10, 1
      %p70 = scmp.ne.s32.totalorder %s65, %s67
      %p71 = scmp.eq.s32.totalorder %s10, 0
      %p72 = por %p70, %p71
      %p73 = scmp.ne.s32.totalorder %s65, %s67
      %p74 = scmp.eq.s32.totalorder %s15, 1
      %p75 = por %p73, %p74
      %p76 = scmp.ne.s32.totalorder %s67, %s68
      %p77 = scmp.eq.s32.totalorder %s15, 0
      %p78 = por %p76, %p77
      %p79 = scmp.ne.s32.totalorder %s67, %s68
      %p80 = scmp.eq.s32.totalorder %s16, 1
      %p81 = por %p79, %p80
      %p83 = scmp.ne.s32.totalorder %s68, %s82
      %p84 = scmp.eq.s32.totalorder %s16, 0
      %p85 = por %p83, %p84
      %s86 = ssub.s32 %s10, %s17
      %p87 = scmp.eq.s32.totalorder %s86, 0
      %s89 = sadd.s32 %s88, 1
      %s90 = scalar_select %p87, %s88, %s89
      %p93 = pneg %p87
      %p94 = scmp.eq.s32.totalorder %s10, 1
      %p95 = por %p93, %p94
      %p96 = scmp.ne.s32.totalorder %s88, %s91
      %p97 = scmp.eq.s32.totalorder %s10, 0
      %p98 = por %p96, %p97
      %p99 = scmp.ne.s32.totalorder %s88, %s91
      %p100 = scmp.eq.s32.totalorder %s15, 1
      %p101 = por %p99, %p100
      %p102 = scmp.ne.s32.totalorder %s91, %s92
      %p103 = scmp.eq.s32.totalorder %s15, 0
      %p104 = por %p102, %p103
      %p105 = scmp.ne.s32.totalorder %s91, %s92
      %p106 = scmp.eq.s32.totalorder %s16, 1
      %p107 = por %p105, %p106
      %p109 = scmp.ne.s32.totalorder %s92, %s108
      %p110 = scmp.eq.s32.totalorder %s16, 0
      %p111 = por %p109, %p110
      %p112 = scmp.le.s32.totalorder 1, %s10
      %p113 = scmp.lt.s32.totalorder %s10, 3
      %p114 = pnand %p112, %p113
      %p115 = pneg %p114
      // Predicated region
      $region9: #{qanet_tail_forward.7} parent=5 // pred_check
        _
      $region10: #{qanet_tail_forward.7} parent=5 // pred_check_branch
        %117 = sbr.rel (%p114) target = $region12
      $region11: #{qanet_tail_forward.7} parent=5 // pred_region
        %s118 = ssub.s32 %s10, 1
        // Predicated region
        $region13: #{qanet_tail_forward.7} parent=11 // pred_check
          %p119 = pneg %p57
        $region14: #{qanet_tail_forward.7} parent=11 // pred_check_branch
          %121 = sbr.rel (%p119) target = $region16
        $region15: #{qanet_tail_forward.7} parent=11 // pred_region
          _
        $region16: #{qanet_tail_forward.7} parent=11 // pred_fallthru
          _
        // Predicated region
        $region17: #{qanet_tail_forward.7} parent=11 // pred_check
          %p122 = pneg %p78
        $region18: #{qanet_tail_forward.7} parent=11 // pred_check_branch
          %124 = sbr.rel (%p122) target = $region20
        $region19: #{qanet_tail_forward.7} parent=11 // pred_region
          %s126 = ssub.s32 4096, 4096
          %127 = vsyncadd [#allocation3], %s126
          %s128 = sshll.u32 [#allocation2], 4
          %s129 = int_to_ptr.vmem [resolvable:$true] %s128
          %134 = dma.hbm_to_vmem [thread:$0]  %s2, 4096, %s129, [#allocation3], 128, 128, 8
        $region20: #{qanet_tail_forward.7} parent=11 // pred_fallthru
          _
      $region12: #{qanet_tail_forward.7} parent=5 // pred_fallthru
        _
      %p135 = scmp.lt.s32.totalorder %s10, 2
      // Predicated region
      $region21: #{qanet_tail_forward.7} parent=5 // pred_check
        %p136 = pneg %p135
      $region22: #{qanet_tail_forward.7} parent=5 // pred_check_branch
        %138 = sbr.rel (%p136) target = $region24
      $region23: #{qanet_tail_forward.7} parent=5 // pred_region
        // Predicated region
        $region25: #{qanet_tail_forward.7} parent=23 // pred_check
          %p139 = pneg %p30
        $region26: #{qanet_tail_forward.7} parent=23 // pred_check_branch
          %141 = sbr.rel (%p139) target = $region28
        $region27: #{qanet_tail_forward.7} parent=23 // pred_region
          %p142 = scmp.lt.s32.totalorder %s10, 1
          %s143 = scalar_select %p142, %s10, 1
          %s144 = smul.addr %s143, 4
          %s145 = smul.addr %s144, 8
          %s146 = scalar_lea.vmem %s0, %s145
        $region28: #{qanet_tail_forward.7} parent=23 // pred_fallthru
          _
      $region24: #{qanet_tail_forward.7} parent=5 // pred_fallthru
        _
      %p147 = scmp.le.s32.totalorder 1, %s10
      %p148 = scmp.lt.s32.totalorder %s10, 3
      %p149 = pnand %p147, %p148
      %p150 = pneg %p149
      // Predicated region
      $region29: #{qanet_tail_forward.7} parent=5 // pred_check
        _
      $region30: #{qanet_tail_forward.7} parent=5 // pred_check_branch
        %152 = sbr.rel (%p149) target = $region32
      $region31: #{qanet_tail_forward.7} parent=5 // pred_region
        %s153 = ssub.s32 %s10, 1
        // Predicated region
        $region33: #{qanet_tail_forward.7} parent=31 // pred_check
          %p154 = pneg %p78
        $region34: #{qanet_tail_forward.7} parent=31 // pred_check_branch
          %156 = sbr.rel (%p154) target = $region36
        $region35: #{qanet_tail_forward.7} parent=31 // pred_region
          %157 = dma.done [#allocation3], 4096
        $region36: #{qanet_tail_forward.7} parent=31 // pred_fallthru
          _
        %p158 = scmp.lt.s32.totalorder %s15, 1
        %s159 = scalar_select %p158, %s15, 1
        %s160 = smul.addr %s159, 4
        %s161 = smul.addr %s160, 8
        %s162 = scalar_lea.vmem %s0, %s161
        %p163 = pneg %p36
        %p164 = pneg %p33
        %p165 = pneg %p57
        %p166 = pneg %p54
        %p167 = pneg %p78
        %p168 = pneg %p75
        %p169 = pneg %p104
        %p170 = pneg %p101
        %p171 = scmp.lt.s32.totalorder %s15, 1
        %s172 = scalar_select %p171, %s15, 1
        %s173 = smul.addr %s172, 2
        %s174 = smul.addr %s173, 8
        %s175 = scalar_lea.vmem %s3, %s174
        %p176 = scmp.lt.s32.totalorder %s15, 1
        %s177 = scalar_select %p176, %s15, 1
        %s178 = smul.addr %s177, 4
        %s179 = smul.addr %s178, 8
        %s180 = scalar_lea.vmem %s0, %s179
        %p181 = scmp.lt.s32.totalorder %s15, 1
        %s182 = scalar_select %p181, %s15, 1
        %s183 = smul.addr %s182, 2
        %s184 = smul.addr %s183, 8
        %s185 = scalar_lea.vmem %s3, %s184
        %v187 = vld [vmem:[%s180] sm:$0xff]
        %v188 = vld [vmem:[%s180 + $0x8] sm:$0xff]
        %v189 = vld [vmem:[%s180 + $0x10] sm:$0xff]
        %v190 = vld [vmem:[%s180 + $0x18] sm:$0xff]
        %v191 = vlaneseq
        %v192 = vshrl.u32 %v191, 7
        %v193 = vadd.s32 %v192, 8
        %v194 = vld [vmem:[%s1] sm:$0x77]
        %v195 = vrot.slane %v187, 7
        %v196 = vrot.slane %v188, 7
        %v197 = vrot.slane %v189, 7
        %v198 = vrot.slane %v190, 7
        %vm199 = vcmp.lt.s32.totalorder %v192, 1
        %v200 = vsel %vm199, %v195, %v197
        %v201 = vsel %vm199, %v196, %v198
        %v202 = vsel %vm199, %v197, %v195
        %v203 = vsel %vm199, %v198, %v196
        %vm204 = vcmp.ge.s32.totalorder %v192, 1
        %vm205 = vcmp.ge.s32.totalorder %v193, 1
        %v206 = vsel %vm204, 1, 0
        %v207 = vsel %vm205, 1, 0
        %vm208 = vcmp.eq.s32.totalorder %v206, 1
        %vm209 = vcmp.eq.s32.totalorder %v207, 1
        %v210 = vsel %vm208, %v202, 0.0
        %v211 = vsel %vm208, %v203, 0.0
        %v212 = vsel %vm209, %v200, 0.0
        %v213 = vsel %vm209, %v201, 0.0
        %v215 = vlaneseq
        %v216 = vshrl.u32 %v215, 7
        %v217 = vsub.s32 0, %v216
        %v218 = vrot.slane %v194, %v217
        %v219 = vlaneseq
        %v220 = vshrl.u32 %v219, 7
        %v221 = vsub.s32 4, %v220
        %v222 = vrot.slane %v194, %v221
        %v225 = vlaneseq
        %v226 = vshrl.u32 %v225, 7
        %v227 = vsub.s32 0, %v226
        %v228 = vrot.slane %v218, %v227
        %v229 = vlaneseq
        %v230 = vshrl.u32 %v229, 7
        %v231 = vsub.s32 0, %v230
        %v232 = vrot.slane %v222, %v231
        %v233 = vmul.f32 %v210, %v228
        %v234 = vmul.f32 %v211, %v232
        %v235 = vmul.f32 %v212, %v228
        %v236 = vmul.f32 %v213, %v232
        %v237 = vadd.f32 %v233, 0.0
        %v238 = vadd.f32 %v234, 0.0
        %v239 = vadd.f32 %v235, 0.0
        %v240 = vadd.f32 %v236, 0.0
        %v241 = vlaneseq
        %v242 = vshrl.u32 %v241, 7
        %v243 = vsub.s32 1, %v242
        %v244 = vrot.slane %v194, %v243
        %v245 = vlaneseq
        %v246 = vshrl.u32 %v245, 7
        %v247 = vsub.s32 5, %v246
        %v248 = vrot.slane %v194, %v247
        %v251 = vlaneseq
        %v252 = vshrl.u32 %v251, 7
        %v253 = vsub.s32 1, %v252
        %v254 = vrot.slane %v244, %v253
        %v255 = vlaneseq
        %v256 = vshrl.u32 %v255, 7
        %v257 = vsub.s32 1, %v256
        %v258 = vrot.slane %v248, %v257
        %v259 = vmul.f32 %v187, %v254
        %v260 = vmul.f32 %v188, %v258
        %v261 = vmul.f32 %v189, %v254
        %v262 = vmul.f32 %v190, %v258
        %v263 = vadd.f32 %v237, %v259
        %v264 = vadd.f32 %v238, %v260
        %v265 = vadd.f32 %v239, %v261
        %v266 = vadd.f32 %v240, %v262
        %v267 = vrot.slane %v187, 1
        %v268 = vrot.slane %v188, 1
        %v269 = vrot.slane %v189, 1
        %v270 = vrot.slane %v190, 1
        %vm271 = vcmp.lt.s32.totalorder %v192, 7
        %v272 = vsel %vm271, %v267, %v269
        %v273 = vsel %vm271, %v268, %v270
        %v274 = vsel %vm271, %v269, %v267
        %v275 = vsel %vm271, %v270, %v268
        %vm276 = vcmp.lt.s32.totalorder %v192, 15
        %vm277 = vcmp.lt.s32.totalorder %v193, 15
        %v278 = vsel %vm276, 1, 0
        %v279 = vsel %vm277, 1, 0
        %vm280 = vcmp.eq.s32.totalorder %v278, 1
        %vm281 = vcmp.eq.s32.totalorder %v279, 1
        %v282 = vsel %vm280, %v272, 0.0
        %v283 = vsel %vm280, %v273, 0.0
        %v284 = vsel %vm281, %v274, 0.0
        %v285 = vsel %vm281, %v275, 0.0
        %v286 = vlaneseq
        %v287 = vshrl.u32 %v286, 7
        %v288 = vsub.s32 2, %v287
        %v289 = vrot.slane %v194, %v288
        %v290 = vlaneseq
        %v291 = vshrl.u32 %v290, 7
        %v292 = vsub.s32 6, %v291
        %v293 = vrot.slane %v194, %v292
        %v296 = vlaneseq
        %v297 = vshrl.u32 %v296, 7
        %v298 = vsub.s32 2, %v297
        %v299 = vrot.slane %v289, %v298
        %v300 = vlaneseq
        %v301 = vshrl.u32 %v300, 7
        %v302 = vsub.s32 2, %v301
        %v303 = vrot.slane %v293, %v302
        %v304 = vmul.f32 %v282, %v299
        %v305 = vmul.f32 %v283, %v303
        %v306 = vmul.f32 %v284, %v299
        %v307 = vmul.f32 %v285, %v303
        %v308 = vadd.f32 %v263, %v304
        %v309 = vadd.f32 %v264, %v305
        %v310 = vadd.f32 %v265, %v306
        %v311 = vadd.f32 %v266, %v307
        %v312 = vpack.c.bf16 %v310, %v308
        %v313 = vpack.c.bf16 %v311, %v309
        %v314 = vld [vmem:[#allocation2] sm:$0xff]
        %v315 = vld [vmem:[#allocation2 + $0x8] sm:$0xff]
        %v316 = vld [vmem:[#allocation2 + $0x10] sm:$0xff]
        %v317 = vld [vmem:[#allocation2 + $0x18] sm:$0xff]
        %v318 = vld [vmem:[#allocation2 + $0x20] sm:$0xff]
        %v319 = vld [vmem:[#allocation2 + $0x28] sm:$0xff]
        %v320 = vld [vmem:[#allocation2 + $0x30] sm:$0xff]
        %v321 = vld [vmem:[#allocation2 + $0x38] sm:$0xff]
        %v322 = vld [vmem:[#allocation2 + $0x40] sm:$0xff]
        %v323 = vld [vmem:[#allocation2 + $0x48] sm:$0xff]
        %v324 = vld [vmem:[#allocation2 + $0x50] sm:$0xff]
        %v325 = vld [vmem:[#allocation2 + $0x58] sm:$0xff]
        %v326 = vld [vmem:[#allocation2 + $0x60] sm:$0xff]
        %v327 = vld [vmem:[#allocation2 + $0x68] sm:$0xff]
        %v328 = vld [vmem:[#allocation2 + $0x70] sm:$0xff]
        %v329 = vld [vmem:[#allocation2 + $0x78] sm:$0xff]
        %v330 = vld [vmem:[#allocation2 + $0x80] sm:$0xff]
        %v331 = vld [vmem:[#allocation2 + $0x88] sm:$0xff]
        %v332 = vld [vmem:[#allocation2 + $0x90] sm:$0xff]
        %v333 = vld [vmem:[#allocation2 + $0x98] sm:$0xff]
        %v334 = vld [vmem:[#allocation2 + $0xa0] sm:$0xff]
        %v335 = vld [vmem:[#allocation2 + $0xa8] sm:$0xff]
        %v336 = vld [vmem:[#allocation2 + $0xb0] sm:$0xff]
        %v337 = vld [vmem:[#allocation2 + $0xb8] sm:$0xff]
        %v338 = vld [vmem:[#allocation2 + $0xc0] sm:$0xff]
        %v339 = vld [vmem:[#allocation2 + $0xc8] sm:$0xff]
        %v340 = vld [vmem:[#allocation2 + $0xd0] sm:$0xff]
        %v341 = vld [vmem:[#allocation2 + $0xd8] sm:$0xff]
        %v342 = vld [vmem:[#allocation2 + $0xe0] sm:$0xff]
        %v343 = vld [vmem:[#allocation2 + $0xe8] sm:$0xff]
        %v344 = vld [vmem:[#allocation2 + $0xf0] sm:$0xff]
        %v345 = vld [vmem:[#allocation2 + $0xf8] sm:$0xff]
        %v346 = vpack.c.bf16 %v315, %v314
        %v347 = vpack.c.bf16 %v317, %v316
        %v348 = vpack.c.bf16 %v319, %v318
        %v349 = vpack.c.bf16 %v321, %v320
        %v350 = vpack.c.bf16 %v323, %v322
        %v351 = vpack.c.bf16 %v325, %v324
        %v352 = vpack.c.bf16 %v327, %v326
        %v353 = vpack.c.bf16 %v329, %v328
        %v354 = vpack.c.bf16 %v331, %v330
        %v355 = vpack.c.bf16 %v333, %v332
        %v356 = vpack.c.bf16 %v335, %v334
        %v357 = vpack.c.bf16 %v337, %v336
        %v358 = vpack.c.bf16 %v339, %v338
        %v359 = vpack.c.bf16 %v341, %v340
        %v360 = vpack.c.bf16 %v343, %v342
        %v361 = vpack.c.bf16 %v345, %v344
        %362 = vmatprep.subr.bf16.mxu0 0
        %363 = vmatpush1.bf16.msra.mxu0 %v346
        %364 = vmatprep.subr.bf16.mxu0 0
        %365 = vmatpush1.bf16.msra.mxu0 %v347
        %366 = vmatprep.subr.bf16.mxu0 0
        %367 = vmatpush1.bf16.msra.mxu0 %v348
        %368 = vmatprep.subr.bf16.mxu0 0
        %369 = vmatpush1.bf16.msra.mxu0 %v349
        %370 = vmatprep.subr.bf16.mxu0 0
        %371 = vmatpush1.bf16.msra.mxu0 %v350
        %372 = vmatprep.subr.bf16.mxu0 0
        %373 = vmatpush1.bf16.msra.mxu0 %v351
        %374 = vmatprep.subr.bf16.mxu0 0
        %375 = vmatpush1.bf16.msra.mxu0 %v352
        %376 = vmatprep.subr.bf16.mxu0 0
        %377 = vmatpush1.bf16.msra.mxu0 %v353
        %378 = vmatprep.subr.bf16.mxu0 0
        %379 = vmatpush1.bf16.msra.mxu0 %v354
        %380 = vmatprep.subr.bf16.mxu0 0
        %381 = vmatpush1.bf16.msra.mxu0 %v355
        %382 = vmatprep.subr.bf16.mxu0 0
        %383 = vmatpush1.bf16.msra.mxu0 %v356
        %384 = vmatprep.subr.bf16.mxu0 0
        %385 = vmatpush1.bf16.msra.mxu0 %v357
        %386 = vmatprep.subr.bf16.mxu0 0
        %387 = vmatpush1.bf16.msra.mxu0 %v358
        %388 = vmatprep.subr.bf16.mxu0 0
        %389 = vmatpush1.bf16.msra.mxu0 %v359
        %390 = vmatprep.subr.bf16.mxu0 0
        %391 = vmatpush1.bf16.msra.mxu0 %v360
        %392 = vmatprep.subr.bf16.mxu0 0
        %393 = vmatpush1.bf16.msra.mxu0 %v361
        %394 = vmatprep.mubr.bf16.mxu0 %v313
        %395 = vmatmul.mubr.bf16.gmra.mrb[0].mxu0 %v312
        %v396 = vpop.f32.mrb[0].mxu0
        %v397 = vadd.f32 0.0, %v396
        %v398 = vpop.f32.mrb[0].mxu0
        %v399 = vpop.f32.mrb[0].mxu0
        %v400 = vadd.f32 0.0, %v399
        %v401 = vpop.f32.mrb[0].mxu0
        %402 = vdwg.mxu0
        %403 = vst [vmem:[%s185] sm:$0xff] %v397
        %404 = vst [vmem:[%s185 + $0x8] sm:$0xff] %v400
        %p405 = scmp.lt.s32.totalorder %s15, 1
        %s406 = scalar_select %p405, %s15, 1
        %s407 = smul.addr %s406, 2
        %s408 = smul.addr %s407, 8
        %s409 = scalar_lea.vmem %s3, %s408
        // Predicated region
        $region37: #{qanet_tail_forward.7} parent=31 // pred_check
          %p410 = pneg %p101
        $region38: #{qanet_tail_forward.7} parent=31 // pred_check_branch
          %412 = sbr.rel (%p410) target = $region40
        $region39: #{qanet_tail_forward.7} parent=31 // pred_region
          _
        $region40: #{qanet_tail_forward.7} parent=31 // pred_fallthru
          _
      $region32: #{qanet_tail_forward.7} parent=5 // pred_fallthru
        _
      %p413 = scmp.le.s32.totalorder 2, %s10
      // Predicated region
      $region41: #{qanet_tail_forward.7} parent=5 // pred_check
        %p414 = pneg %p413
      $region42: #{qanet_tail_forward.7} parent=5 // pred_check_branch
        %416 = sbr.rel (%p414) target = $region44
      $region43: #{qanet_tail_forward.7} parent=5 // pred_region
        %s417 = ssub.s32 %s10, 2
        // Predicated region
        $region45: #{qanet_tail_forward.7} parent=43 // pred_check
          %p418 = pneg %p107
        $region46: #{qanet_tail_forward.7} parent=43 // pred_check_branch
          %420 = sbr.rel (%p418) target = $region48
        $region47: #{qanet_tail_forward.7} parent=43 // pred_region
          %p421 = scmp.lt.s32.totalorder %s16, 1
          %s422 = scalar_select %p421, %s16, 1
          %s423 = smul.addr %s422, 2
          %s424 = smul.addr %s423, 8
          %s425 = scalar_lea.vmem %s3, %s424
        $region48: #{qanet_tail_forward.7} parent=43 // pred_fallthru
          _
      $region44: #{qanet_tail_forward.7} parent=5 // pred_fallthru
        _
    $region6: #{qanet_tail_forward.7} parent=1 // loop_footer
      %s14 = sadd.s32 1, %s10
    $region7: #{qanet_tail_forward.7} parent=1 // loop_footer_branch
      %9 = sbr.rel target = $region3
    $region8: #{qanet_tail_forward.7} parent=1 // loop_exit
      _
    %426 = vsyncpa [#allocation3], 1
    %s427 = scalar_lea.sflag [#allocation3], 1
    %428 = vsyncpa %s427, 1

// kernel: qanet_tail_forward.9
$region0: #{qanet_tail_forward.9}
  #allocation0 [shape = 'u32[]', space=smem, size = 0x4, offset = 0x4, fixed_abs, tag = 'smem constant byte address 0x4 - core index']
  #allocation1 [shape = 'u32[144,128]{1,0:T(1,128)}', space=vmem, size = 0x12000, scoped, tag = 'internal scratch']
  %s0 = inlined_call_operand.vmem [shape: f32[2,16,128], index: 0, kind: input, shape index: {}]
  %s1 = inlined_call_operand.vmem [shape: f32[16,128], index: 1, kind: input, shape index: {}]
  %s2 = inlined_call_operand.vmem [shape: f32[2,3,128], index: 2, kind: input, shape index: {}]
  %s3 = inlined_call_operand.hbm [shape: f32[2,128,128], index: 3, kind: input, shape index: {}]
  %s4 = inlined_call_operand.vmem [shape: f32[128,384], index: 4, kind: input, shape index: {}]
  %s5 = inlined_call_operand.hbm [shape: f32[128,128], index: 5, kind: input, shape index: {}]
  %s6 = inlined_call_operand.hbm [shape: f32[1,128], index: 6, kind: input, shape index: {}]
  %s7 = inlined_call_operand.hbm [shape: f32[128,128], index: 7, kind: input, shape index: {}]
  %s8 = inlined_call_operand.hbm [shape: f32[1,128], index: 8, kind: input, shape index: {}]
  %s9 = inlined_call_operand.vmem [shape: f32[2,16,128], index: 9, kind: output, shape index: {}]
  %s10 = sld [smem:[#allocation0]]
  $region89: #{qanet_tail_forward.9} parent=0
    _
  %s12 = ssub.s32 1, %s10
  %s13 = scalar_select 0, %s12, %s10
  $region1: #{qanet_tail_forward.9} parent=0
    #allocation2 [shape = 'u8[131072]{0}', space=vmem, size = 0x20000, scoped, tag = 'input window, operand 3, single buffered']
    #allocation3 [shape = 's32[2]{0}', space=sflag, size = 0x8, scoped, tag = 'scoped memory for qanet_tail_forward.9']
    #allocation4 [shape = 'u8[65536]{0}', space=vmem, size = 0x10000, scoped, tag = 'input window, operand 5, single buffered']
    #allocation5 [shape = 's32[1]{0}', space=sflag, size = 0x4, scoped, tag = 'scoped memory for qanet_tail_forward.9']
    #allocation6 [shape = 'u8[512]{0}', space=vmem, size = 0x400, scoped, tag = 'input window, operand 6, single buffered']
    #allocation7 [shape = 'u8[65536]{0}', space=vmem, size = 0x10000, scoped, tag = 'input window, operand 7, single buffered']
    #allocation8 [shape = 's32[1]{0}', space=sflag, size = 0x4, scoped, tag = 'scoped memory for qanet_tail_forward.9']
    #allocation9 [shape = 'u8[512]{0}', space=vmem, size = 0x400, scoped, tag = 'input window, operand 8, single buffered']
    %14 = vsyncpa [#allocation3], 0
    %15 = vsyncpa [#allocation5], 0
    %16 = vsyncpa [#allocation8], 0
    loop: start=0, step=1, limit=4
    $region2: #{qanet_tail_forward.9} parent=1 // loop_pre_header
      _
    $region3: #{qanet_tail_forward.9} parent=1 // loop_header
      %s18 = sphi 0, %s22
      %p19 = scmp.ge.s32.totalorder %s18, 4
      %s28 = sphi 0, %s30
      %s31 = sphi 0, %s28
      %s32 = sphi 0, %s31
      %s48 = sphi 0, %s32
      %s52 = sphi 0, %s52
      %s54 = sphi 0, %s52
      %s55 = sphi 0, %s54
      %s69 = sphi 0, %s55
      %s73 = sphi 0, %s73
      %s75 = sphi 0, %s73
      %s76 = sphi 0, %s75
      %s90 = sphi 0, %s76
      %s94 = sphi 0, %s94
      %s96 = sphi 0, %s94
      %s97 = sphi 0, %s96
      %s111 = sphi 0, %s97
      %s115 = sphi 0, %s115
      %s117 = sphi 0, %s115
      %s118 = sphi 0, %s117
      %s132 = sphi 0, %s118
      %s136 = sphi 0, %s136
      %s138 = sphi 0, %s136
      %s139 = sphi 0, %s138
      %s153 = sphi 0, %s139
      %s157 = sphi 0, %s157
      %s159 = sphi 0, %s157
      %s160 = sphi 0, %s159
      %s174 = sphi 0, %s160
      %s178 = sphi 0, %s178
      %s180 = sphi 0, %s178
      %s181 = sphi 0, %s180
      %s195 = sphi 0, %s181
      %s199 = sphi 0, %s199
      %s201 = sphi 0, %s199
      %s202 = sphi 0, %s201
      %s216 = sphi 0, %s202
      %s222 = sphi 0, %s224
      %s225 = sphi 0, %s222
      %s226 = sphi 0, %s225
      %s242 = sphi 0, %s226
    $region4: #{qanet_tail_forward.9} parent=1 // loop_header_branch
      %21 = sbr.rel (%p19) target = $region8
    $region5: #{qanet_tail_forward.9} parent=1 // loop_body
      %s23 = ssub.s32 %s18, 1
      %s24 = ssub.s32 %s18, 2
      %s25 = sadd.s32 %s18, 1
      %s26 = ssub.s32 %s18, %s25
      %p27 = scmp.eq.s32.totalorder %s26, 0
      %s29 = sadd.s32 %s28, 1
      %s30 = scalar_select %p27, %s28, %s29
      %p33 = pneg %p27
      %p34 = scmp.eq.s32.totalorder %s18, 1
      %p35 = por %p33, %p34
      %p36 = scmp.ne.s32.totalorder %s28, %s31
      %p37 = scmp.eq.s32.totalorder %s18, 0
      %p38 = por %p36, %p37
      %p39 = scmp.ne.s32.totalorder %s28, %s31
      %p40 = scmp.eq.s32.totalorder %s23, 1
      %p41 = por %p39, %p40
      %p42 = scmp.ne.s32.totalorder %s31, %s32
      %p43 = scmp.eq.s32.totalorder %s23, 0
      %p44 = por %p42, %p43
      %p45 = scmp.ne.s32.totalorder %s31, %s32
      %p46 = scmp.eq.s32.totalorder %s24, 1
      %p47 = por %p45, %p46
      %p49 = scmp.ne.s32.totalorder %s32, %s48
      %p50 = scmp.eq.s32.totalorder %s24, 0
      %p51 = por %p49, %p50
      %s53 = sadd.s32 %s52, 1
      %p56 = scmp.eq.s32.totalorder %s18, 1
      %p57 = scmp.ne.s32.totalorder %s52, %s54
      %p58 = scmp.eq.s32.totalorder %s18, 0
      %p59 = por %p57, %p58
      %p60 = scmp.ne.s32.totalorder %s52, %s54
      %p61 = scmp.eq.s32.totalorder %s23, 1
      %p62 = por %p60, %p61
      %p63 = scmp.ne.s32.totalorder %s54, %s55
      %p64 = scmp.eq.s32.totalorder %s23, 0
      %p65 = por %p63, %p64
      %p66 = scmp.ne.s32.totalorder %s54, %s55
      %p67 = scmp.eq.s32.totalorder %s24, 1
      %p68 = por %p66, %p67
      %p70 = scmp.ne.s32.totalorder %s55, %s69
      %p71 = scmp.eq.s32.totalorder %s24, 0
      %p72 = por %p70, %p71
      %s74 = sadd.s32 %s73, 1
      %p77 = scmp.eq.s32.totalorder %s18, 1
      %p78 = scmp.ne.s32.totalorder %s73, %s75
      %p79 = scmp.eq.s32.totalorder %s18, 0
      %p80 = por %p78, %p79
      %p81 = scmp.ne.s32.totalorder %s73, %s75
      %p82 = scmp.eq.s32.totalorder %s23, 1
      %p83 = por %p81, %p82
      %p84 = scmp.ne.s32.totalorder %s75, %s76
      %p85 = scmp.eq.s32.totalorder %s23, 0
      %p86 = por %p84, %p85
      %p87 = scmp.ne.s32.totalorder %s75, %s76
      %p88 = scmp.eq.s32.totalorder %s24, 1
      %p89 = por %p87, %p88
      %p91 = scmp.ne.s32.totalorder %s76, %s90
      %p92 = scmp.eq.s32.totalorder %s24, 0
      %p93 = por %p91, %p92
      %s95 = sadd.s32 %s94, 1
      %p98 = scmp.eq.s32.totalorder %s18, 1
      %p99 = scmp.ne.s32.totalorder %s94, %s96
      %p100 = scmp.eq.s32.totalorder %s18, 0
      %p101 = por %p99, %p100
      %p102 = scmp.ne.s32.totalorder %s94, %s96
      %p103 = scmp.eq.s32.totalorder %s23, 1
      %p104 = por %p102, %p103
      %p105 = scmp.ne.s32.totalorder %s96, %s97
      %p106 = scmp.eq.s32.totalorder %s23, 0
      %p107 = por %p105, %p106
      %p108 = scmp.ne.s32.totalorder %s96, %s97
      %p109 = scmp.eq.s32.totalorder %s24, 1
      %p110 = por %p108, %p109
      %p112 = scmp.ne.s32.totalorder %s97, %s111
      %p113 = scmp.eq.s32.totalorder %s24, 0
      %p114 = por %p112, %p113
      %s116 = sadd.s32 %s115, 1
      %p119 = scmp.eq.s32.totalorder %s18, 1
      %p120 = scmp.ne.s32.totalorder %s115, %s117
      %p121 = scmp.eq.s32.totalorder %s18, 0
      %p122 = por %p120, %p121
      %p123 = scmp.ne.s32.totalorder %s115, %s117
      %p124 = scmp.eq.s32.totalorder %s23, 1
      %p125 = por %p123, %p124
      %p126 = scmp.ne.s32.totalorder %s117, %s118
      %p127 = scmp.eq.s32.totalorder %s23, 0
      %p128 = por %p126, %p127
      %p129 = scmp.ne.s32.totalorder %s117, %s118
      %p130 = scmp.eq.s32.totalorder %s24, 1
      %p131 = por %p129, %p130
      %p133 = scmp.ne.s32.totalorder %s118, %s132
      %p134 = scmp.eq.s32.totalorder %s24, 0
      %p135 = por %p133, %p134
      %s137 = sadd.s32 %s136, 1
      %p140 = scmp.eq.s32.totalorder %s18, 1
      %p141 = scmp.ne.s32.totalorder %s136, %s138
      %p142 = scmp.eq.s32.totalorder %s18, 0
      %p143 = por %p141, %p142
      %p144 = scmp.ne.s32.totalorder %s136, %s138
      %p145 = scmp.eq.s32.totalorder %s23, 1
      %p146 = por %p144, %p145
      %p147 = scmp.ne.s32.totalorder %s138, %s139
      %p148 = scmp.eq.s32.totalorder %s23, 0
      %p149 = por %p147, %p148
      %p150 = scmp.ne.s32.totalorder %s138, %s139
      %p151 = scmp.eq.s32.totalorder %s24, 1
      %p152 = por %p150, %p151
      %p154 = scmp.ne.s32.totalorder %s139, %s153
      %p155 = scmp.eq.s32.totalorder %s24, 0
      %p156 = por %p154, %p155
      %s158 = sadd.s32 %s157, 1
      %p161 = scmp.eq.s32.totalorder %s18, 1
      %p162 = scmp.ne.s32.totalorder %s157, %s159
      %p163 = scmp.eq.s32.totalorder %s18, 0
      %p164 = por %p162, %p163
      %p165 = scmp.ne.s32.totalorder %s157, %s159
      %p166 = scmp.eq.s32.totalorder %s23, 1
      %p167 = por %p165, %p166
      %p168 = scmp.ne.s32.totalorder %s159, %s160
      %p169 = scmp.eq.s32.totalorder %s23, 0
      %p170 = por %p168, %p169
      %p171 = scmp.ne.s32.totalorder %s159, %s160
      %p172 = scmp.eq.s32.totalorder %s24, 1
      %p173 = por %p171, %p172
      %p175 = scmp.ne.s32.totalorder %s160, %s174
      %p176 = scmp.eq.s32.totalorder %s24, 0
      %p177 = por %p175, %p176
      %s179 = sadd.s32 %s178, 1
      %p182 = scmp.eq.s32.totalorder %s18, 1
      %p183 = scmp.ne.s32.totalorder %s178, %s180
      %p184 = scmp.eq.s32.totalorder %s18, 0
      %p185 = por %p183, %p184
      %p186 = scmp.ne.s32.totalorder %s178, %s180
      %p187 = scmp.eq.s32.totalorder %s23, 1
      %p188 = por %p186, %p187
      %p189 = scmp.ne.s32.totalorder %s180, %s181
      %p190 = scmp.eq.s32.totalorder %s23, 0
      %p191 = por %p189, %p190
      %p192 = scmp.ne.s32.totalorder %s180, %s181
      %p193 = scmp.eq.s32.totalorder %s24, 1
      %p194 = por %p192, %p193
      %p196 = scmp.ne.s32.totalorder %s181, %s195
      %p197 = scmp.eq.s32.totalorder %s24, 0
      %p198 = por %p196, %p197
      %s200 = sadd.s32 %s199, 1
      %p203 = scmp.eq.s32.totalorder %s18, 1
      %p204 = scmp.ne.s32.totalorder %s199, %s201
      %p205 = scmp.eq.s32.totalorder %s18, 0
      %p206 = por %p204, %p205
      %p207 = scmp.ne.s32.totalorder %s199, %s201
      %p208 = scmp.eq.s32.totalorder %s23, 1
      %p209 = por %p207, %p208
      %p210 = scmp.ne.s32.totalorder %s201, %s202
      %p211 = scmp.eq.s32.totalorder %s23, 0
      %p212 = por %p210, %p211
      %p213 = scmp.ne.s32.totalorder %s201, %s202
      %p214 = scmp.eq.s32.totalorder %s24, 1
      %p215 = por %p213, %p214
      %p217 = scmp.ne.s32.totalorder %s202, %s216
      %p218 = scmp.eq.s32.totalorder %s24, 0
      %p219 = por %p217, %p218
      %s220 = ssub.s32 %s18, %s25
      %p221 = scmp.eq.s32.totalorder %s220, 0
      %s223 = sadd.s32 %s222, 1
      %s224 = scalar_select %p221, %s222, %s223
      %p227 = pneg %p221
      %p228 = scmp.eq.s32.totalorder %s18, 1
      %p229 = por %p227, %p228
      %p230 = scmp.ne.s32.totalorder %s222, %s225
      %p231 = scmp.eq.s32.totalorder %s18, 0
      %p232 = por %p230, %p231
      %p233 = scmp.ne.s32.totalorder %s222, %s225
      %p234 = scmp.eq.s32.totalorder %s23, 1
      %p235 = por %p233, %p234
      %p236 = scmp.ne.s32.totalorder %s225, %s226
      %p237 = scmp.eq.s32.totalorder %s23, 0
      %p238 = por %p236, %p237
      %p239 = scmp.ne.s32.totalorder %s225, %s226
      %p240 = scmp.eq.s32.totalorder %s24, 1
      %p241 = por %p239, %p240
      %p243 = scmp.ne.s32.totalorder %s226, %s242
      %p244 = scmp.eq.s32.totalorder %s24, 0
      %p245 = por %p243, %p244
      %p246 = scmp.le.s32.totalorder 1, %s18
      %p247 = scmp.lt.s32.totalorder %s18, 3
      %p248 = pnand %p246, %p247
      %p249 = pneg %p248
      // Predicated region
      $region9: #{qanet_tail_forward.9} parent=5 // pred_check
        _
      $region10: #{qanet_tail_forward.9} parent=5 // pred_check_branch
        %251 = sbr.rel (%p248) target = $region12
      $region11: #{qanet_tail_forward.9} parent=5 // pred_region
        %s252 = ssub.s32 %s18, 1
        // Predicated region
        $region13: #{qanet_tail_forward.9} parent=11 // pred_check
          %p253 = pneg %p65
        $region14: #{qanet_tail_forward.9} parent=11 // pred_check_branch
          %255 = sbr.rel (%p253) target = $region16
        $region15: #{qanet_tail_forward.9} parent=11 // pred_region
          _
        $region16: #{qanet_tail_forward.9} parent=11 // pred_fallthru
          _
        // Predicated region
        $region17: #{qanet_tail_forward.9} parent=11 // pred_check
          %p256 = pneg %p86
        $region18: #{qanet_tail_forward.9} parent=11 // pred_check_branch
          %258 = sbr.rel (%p256) target = $region20
        $region19: #{qanet_tail_forward.9} parent=11 // pred_region
          _
        $region20: #{qanet_tail_forward.9} parent=11 // pred_fallthru
          _
        // Predicated region
        $region21: #{qanet_tail_forward.9} parent=11 // pred_check
          %p259 = pneg %p107
        $region22: #{qanet_tail_forward.9} parent=11 // pred_check_branch
          %261 = sbr.rel (%p259) target = $region24
        $region23: #{qanet_tail_forward.9} parent=11 // pred_region
          %s263 = ssub.s32 4096, 4096
          %264 = vsyncadd [#allocation3], %s263
          %s265 = sshll.u32 [#allocation2], 4
          %s266 = int_to_ptr.vmem [resolvable:$true] %s265
          %271 = dma.hbm_to_vmem [thread:$0]  %s3, 4096, %s266, [#allocation3], 128, 128, 8
        $region24: #{qanet_tail_forward.9} parent=11 // pred_fallthru
          _
        // Predicated region
        $region25: #{qanet_tail_forward.9} parent=11 // pred_check
          %p272 = pneg %p128
        $region26: #{qanet_tail_forward.9} parent=11 // pred_check_branch
          %274 = sbr.rel (%p272) target = $region28
        $region27: #{qanet_tail_forward.9} parent=11 // pred_region
          _
        $region28: #{qanet_tail_forward.9} parent=11 // pred_fallthru
          _
        // Predicated region
        $region29: #{qanet_tail_forward.9} parent=11 // pred_check
          %p275 = pneg %p149
        $region30: #{qanet_tail_forward.9} parent=11 // pred_check_branch
          %277 = sbr.rel (%p275) target = $region32
        $region31: #{qanet_tail_forward.9} parent=11 // pred_region
          %s279 = ssub.s32 2048, 2048
          %280 = vsyncadd [#allocation5], %s279
          %s281 = sshll.u32 [#allocation4], 4
          %s282 = int_to_ptr.vmem [resolvable:$true] %s281
          %287 = dma.hbm_to_vmem [thread:$0]  %s5, 2048, %s282, [#allocation5], 128, 128, 8
        $region32: #{qanet_tail_forward.9} parent=11 // pred_fallthru
          _
        // Predicated region
        $region33: #{qanet_tail_forward.9} parent=11 // pred_check
          %p288 = pneg %p170
        $region34: #{qanet_tail_forward.9} parent=11 // pred_check_branch
          %290 = sbr.rel (%p288) target = $region36
        $region35: #{qanet_tail_forward.9} parent=11 // pred_region
          %s292 = ssub.s32 16, 16
          %293 = vsyncadd [#allocation5], %s292
          %s295 = sshll.u32 [#allocation6], 4
          %s296 = int_to_ptr.vmem [resolvable:$true] %s295
          %298 = dma.hbm_to_vmem [thread:$0]  %s6, 16, %s296, [#allocation5]
        $region36: #{qanet_tail_forward.9} parent=11 // pred_fallthru
          _
        // Predicated region
        $region37: #{qanet_tail_forward.9} parent=11 // pred_check
          %p299 = pneg %p191
        $region38: #{qanet_tail_forward.9} parent=11 // pred_check_branch
          %301 = sbr.rel (%p299) target = $region40
        $region39: #{qanet_tail_forward.9} parent=11 // pred_region
          %s303 = ssub.s32 2048, 2048
          %304 = vsyncadd [#allocation8], %s303
          %s305 = sshll.u32 [#allocation7], 4
          %s306 = int_to_ptr.vmem [resolvable:$true] %s305
          %311 = dma.hbm_to_vmem [thread:$0]  %s7, 2048, %s306, [#allocation8], 128, 128, 8
        $region40: #{qanet_tail_forward.9} parent=11 // pred_fallthru
          _
        // Predicated region
        $region41: #{qanet_tail_forward.9} parent=11 // pred_check
          %p312 = pneg %p212
        $region42: #{qanet_tail_forward.9} parent=11 // pred_check_branch
          %314 = sbr.rel (%p312) target = $region44
        $region43: #{qanet_tail_forward.9} parent=11 // pred_region
          %s316 = ssub.s32 16, 16
          %317 = vsyncadd [#allocation8], %s316
          %s319 = sshll.u32 [#allocation9], 4
          %s320 = int_to_ptr.vmem [resolvable:$true] %s319
          %322 = dma.hbm_to_vmem [thread:$0]  %s8, 16, %s320, [#allocation8]
        $region44: #{qanet_tail_forward.9} parent=11 // pred_fallthru
          _
      $region12: #{qanet_tail_forward.9} parent=5 // pred_fallthru
        _
      %p323 = scmp.lt.s32.totalorder %s18, 2
      // Predicated region
      $region45: #{qanet_tail_forward.9} parent=5 // pred_check
        %p324 = pneg %p323
      $region46: #{qanet_tail_forward.9} parent=5 // pred_check_branch
        %326 = sbr.rel (%p324) target = $region48
      $region47: #{qanet_tail_forward.9} parent=5 // pred_region
        // Predicated region
        $region49: #{qanet_tail_forward.9} parent=47 // pred_check
          %p327 = pneg %p38
        $region50: #{qanet_tail_forward.9} parent=47 // pred_check_branch
          %329 = sbr.rel (%p327) target = $region52
        $region51: #{qanet_tail_forward.9} parent=47 // pred_region
          %p330 = scmp.lt.s32.totalorder %s18, 1
          %s331 = scalar_select %p330, %s18, 1
          %s332 = smul.addr %s331, 2
          %s333 = smul.addr %s332, 8
          %s334 = scalar_lea.vmem %s0, %s333
        $region52: #{qanet_tail_forward.9} parent=47 // pred_fallthru
          _
      $region48: #{qanet_tail_forward.9} parent=5 // pred_fallthru
        _
      %p335 = scmp.le.s32.totalorder 1, %s18
      %p336 = scmp.lt.s32.totalorder %s18, 3
      %p337 = pnand %p335, %p336
      %p338 = pneg %p337
      // Predicated region
      $region53: #{qanet_tail_forward.9} parent=5 // pred_check
        _
      $region54: #{qanet_tail_forward.9} parent=5 // pred_check_branch
        %340 = sbr.rel (%p337) target = $region56
      $region55: #{qanet_tail_forward.9} parent=5 // pred_region
        %s341 = ssub.s32 %s18, 1
        // Predicated region
        $region57: #{qanet_tail_forward.9} parent=55 // pred_check
          %p342 = pneg %p107
        $region58: #{qanet_tail_forward.9} parent=55 // pred_check_branch
          %344 = sbr.rel (%p342) target = $region60
        $region59: #{qanet_tail_forward.9} parent=55 // pred_region
          %345 = dma.done [#allocation3], 4096
        $region60: #{qanet_tail_forward.9} parent=55 // pred_fallthru
          _
        // Predicated region
        $region61: #{qanet_tail_forward.9} parent=55 // pred_check
          %p346 = pneg %p149
        $region62: #{qanet_tail_forward.9} parent=55 // pred_check_branch
          %348 = sbr.rel (%p346) target = $region64
        $region63: #{qanet_tail_forward.9} parent=55 // pred_region
          %349 = dma.done [#allocation5], 2048
        $region64: #{qanet_tail_forward.9} parent=55 // pred_fallthru
          _
        // Predicated region
        $region65: #{qanet_tail_forward.9} parent=55 // pred_check
          %p350 = pneg %p170
        $region66: #{qanet_tail_forward.9} parent=55 // pred_check_branch
          %352 = sbr.rel (%p350) target = $region68
        $region67: #{qanet_tail_forward.9} parent=55 // pred_region
          %353 = dma.done [#allocation5], 16
        $region68: #{qanet_tail_forward.9} parent=55 // pred_fallthru
          _
        // Predicated region
        $region69: #{qanet_tail_forward.9} parent=55 // pred_check
          %p354 = pneg %p191
        $region70: #{qanet_tail_forward.9} parent=55 // pred_check_branch
          %356 = sbr.rel (%p354) target = $region72
        $region71: #{qanet_tail_forward.9} parent=55 // pred_region
          %357 = dma.done [#allocation8], 2048
        $region72: #{qanet_tail_forward.9} parent=55 // pred_fallthru
          _
        // Predicated region
        $region73: #{qanet_tail_forward.9} parent=55 // pred_check
          %p358 = pneg %p212
        $region74: #{qanet_tail_forward.9} parent=55 // pred_check_branch
          %360 = sbr.rel (%p358) target = $region76
        $region75: #{qanet_tail_forward.9} parent=55 // pred_region
          %361 = dma.done [#allocation8], 16
        $region76: #{qanet_tail_forward.9} parent=55 // pred_fallthru
          _
        %p362 = scmp.lt.s32.totalorder %s23, 1
        %s363 = scalar_select %p362, %s23, 1
        %s364 = smul.addr %s363, 2
        %s365 = smul.addr %s364, 8
        %s366 = scalar_lea.vmem %s0, %s365
        %p367 = pneg %p44
        %p368 = pneg %p41
        %p369 = pneg %p65
        %p370 = pneg %p62
        %p371 = pneg %p86
        %p372 = pneg %p83
        %p373 = pneg %p107
        %p374 = pneg %p104
        %p375 = pneg %p128
        %p376 = pneg %p125
        %p377 = pneg %p149
        %p378 = pneg %p146
        %p379 = pneg %p170
        %p380 = pneg %p167
        %p381 = pneg %p191
        %p382 = pneg %p188
        %p383 = pneg %p212
        %p384 = pneg %p209
        %p385 = pneg %p238
        %p386 = pneg %p235
        %p387 = scmp.lt.s32.totalorder %s23, 1
        %s388 = scalar_select %p387, %s23, 1
        %s389 = smul.addr %s388, 2
        %s390 = smul.addr %s389, 8
        %s391 = scalar_lea.vmem %s9, %s390
        %p392 = scmp.lt.s32.totalorder %s23, 1
        %s393 = scalar_select %p392, %s23, 1
        %s394 = smul.addr %s393, 2
        %s395 = smul.addr %s394, 8
        %s396 = scalar_lea.vmem %s0, %s395
        %p397 = scmp.lt.s32.totalorder %s23, 1
        %s398 = scalar_select %p397, %s23, 1
        %s399 = smul.addr %s398, 2
        %s400 = smul.addr %s399, 8
        %s401 = scalar_lea.vmem %s9, %s400
        %v403 = vlaneseq
        %v404 = vshrl.u32 %v403, 7
        %v405 = vadd.s32 %v404, 8
        %v406 = vld [vmem:[%s396] sm:$0xff]
        %v407 = vld [vmem:[%s396 + $0x8] sm:$0xff]
        %v408 = vld [vmem:[%s1] sm:$0xff]
        %v409 = vld [vmem:[%s1 + $0x8] sm:$0xff]
        %v410 = vadd.f32 %v406, %v408
        %v411 = vadd.f32 %v407, %v409
        %v412 = vadd.f32 %v410, %v411
        %v413 = vrot.slane %v412, 4
        %v414 = vadd.f32 %v412, %v413
        %v415 = vrot.slane %v414, 2
        %v416 = vadd.f32 %v414, %v415
        %v417 = vrot.slane %v416, 1
        %v418 = vadd.f32 %v416, %v417
        %v419 = vrcp.pop 16.0
        %v420 = vmul.f32 %v418, %v419
        %v421 = vsub.f32 %v410, %v420
        %v422 = vsub.f32 %v411, %v420
        %v423 = vmul.f32 %v421, %v421
        %v424 = vmul.f32 %v422, %v422
        %v425 = vadd.f32 %v423, %v424
        %v426 = vrot.slane %v425, 4
        %v427 = vadd.f32 %v425, %v426
        %v428 = vrot.slane %v427, 2
        %v429 = vadd.f32 %v427, %v428
        %v430 = vrot.slane %v429, 1
        %v431 = vadd.f32 %v429, %v430
        %v432 = vrcp.pop 15.0
        %v433 = vmul.f32 %v431, %v432
        %v434 = vrsqrt.pop %v433
        %v435 = vmul.f32 %v433, %v434
        %vm436 = vcmp.eq.f32.partialorder %v433, inf
        %v437 = vsel %vm436, %v433, %v435
        %vm438 = vcmp.eq.f32.partialorder %v433, 0.0
        %v439 = vand.u32 %v433, 2147483648
        %v440 = vsel %vm438, %v439, %v437
        %v441 = vadd.f32 %v440, 1e-06
        %v442 = vrcp.pop %v441
        %v443 = vmul.f32 %v421, %v442
        %v444 = vmul.f32 %v422, %v442
        %v445 = vld [vmem:[%s2] sm:$0x7]
        %v446 = vrot.slane %v443, 7
        %v447 = vrot.slane %v444, 7
        %vm448 = vcmp.lt.s32.totalorder %v404, 1
        %v449 = vsel %vm448, %v446, %v447
        %v450 = vsel %vm448, %v447, %v446
        %vm451 = vcmp.ge.s32.totalorder %v404, 1
        %vm452 = vcmp.ge.s32.totalorder %v405, 1
        %v453 = vsel %vm451, 1, 0
        %v454 = vsel %vm452, 1, 0
        %vm455 = vcmp.eq.s32.totalorder %v453, 1
        %vm456 = vcmp.eq.s32.totalorder %v454, 1
        %v457 = vsel %vm455, %v450, 0.0
        %v458 = vsel %vm456, %v449, 0.0
        %v459 = vlaneseq
        %v460 = vshrl.u32 %v459, 7
        %v461 = vsub.s32 0, %v460
        %v462 = vrot.slane %v445, %v461
        %v463 = vmul.f32 %v457, %v462
        %v464 = vmul.f32 %v458, %v462
        %v465 = vadd.f32 %v463, 0.0
        %v466 = vadd.f32 %v464, 0.0
        %v467 = vlaneseq
        %v468 = vshrl.u32 %v467, 7
        %v469 = vsub.s32 1, %v468
        %v470 = vrot.slane %v445, %v469
        %v471 = vmul.f32 %v443, %v470
        %v472 = vmul.f32 %v444, %v470
        %v473 = vadd.f32 %v465, %v471
        %v474 = vadd.f32 %v466, %v472
        %v475 = vrot.slane %v443, 1
        %v476 = vrot.slane %v444, 1
        %vm477 = vcmp.lt.s32.totalorder %v404, 7
        %v478 = vsel %vm477, %v475, %v476
        %v479 = vsel %vm477, %v476, %v475
        %vm480 = vcmp.lt.s32.totalorder %v404, 15
        %vm481 = vcmp.lt.s32.totalorder %v405, 15
        %v482 = vsel %vm480, 1, 0
        %v483 = vsel %vm481, 1, 0
        %vm484 = vcmp.eq.s32.totalorder %v482, 1
        %vm485 = vcmp.eq.s32.totalorder %v483, 1
        %v486 = vsel %vm484, %v478, 0.0
        %v487 = vsel %vm485, %v479, 0.0
        %v488 = vlaneseq
        %v489 = vshrl.u32 %v488, 7
        %v490 = vsub.s32 2, %v489
        %v491 = vrot.slane %v445, %v490
        %v492 = vmul.f32 %v486, %v491
        %v493 = vmul.f32 %v487, %v491
        %v494 = vadd.f32 %v473, %v492
        %v495 = vadd.f32 %v474, %v493
        %v496 = vpack.c.bf16 %v495, %v494
        %v497 = vld [vmem:[#allocation2] sm:$0xff]
        %v498 = vld [vmem:[#allocation2 + $0x8] sm:$0xff]
        %v499 = vld [vmem:[#allocation2 + $0x10] sm:$0xff]
        %v500 = vld [vmem:[#allocation2 + $0x18] sm:$0xff]
        %v501 = vld [vmem:[#allocation2 + $0x20] sm:$0xff]
        %v502 = vld [vmem:[#allocation2 + $0x28] sm:$0xff]
        %v503 = vld [vmem:[#allocation2 + $0x30] sm:$0xff]
        %v504 = vld [vmem:[#allocation2 + $0x38] sm:$0xff]
        %v505 = vld [vmem:[#allocation2 + $0x40] sm:$0xff]
        %v506 = vld [vmem:[#allocation2 + $0x48] sm:$0xff]
        %v507 = vld [vmem:[#allocation2 + $0x50] sm:$0xff]
        %v508 = vld [vmem:[#allocation2 + $0x58] sm:$0xff]
        %v509 = vld [vmem:[#allocation2 + $0x60] sm:$0xff]
        %v510 = vld [vmem:[#allocation2 + $0x68] sm:$0xff]
        %v511 = vld [vmem:[#allocation2 + $0x70] sm:$0xff]
        %v512 = vld [vmem:[#allocation2 + $0x78] sm:$0xff]
        %v513 = vpack.c.bf16 %v498, %v497
        %v514 = vpack.c.bf16 %v500, %v499
        %v515 = vpack.c.bf16 %v502, %v501
        %v516 = vpack.c.bf16 %v504, %v503
        %v517 = vpack.c.bf16 %v506, %v505
        %v518 = vpack.c.bf16 %v508, %v507
        %v519 = vpack.c.bf16 %v510, %v509
        %v520 = vpack.c.bf16 %v512, %v511
        %521 = vmatprep.subr.bf16.mxu0 0
        %522 = vmatpush1.bf16.msra.mxu0 %v513
        %523 = vmatprep.subr.bf16.mxu0 0
        %524 = vmatpush1.bf16.msra.mxu0 %v514
        %525 = vmatprep.subr.bf16.mxu0 0
        %526 = vmatpush1.bf16.msra.mxu0 %v515
        %527 = vmatprep.subr.bf16.mxu0 0
        %528 = vmatpush1.bf16.msra.mxu0 %v516
        %529 = vmatprep.subr.bf16.mxu0 0
        %530 = vmatpush1.bf16.msra.mxu0 %v517
        %531 = vmatprep.subr.bf16.mxu0 0
        %532 = vmatpush1.bf16.msra.mxu0 %v518
        %533 = vmatprep.subr.bf16.mxu0 0
        %534 = vmatpush1.bf16.msra.mxu0 %v519
        %535 = vmatprep.subr.bf16.mxu0 0
        %536 = vmatpush1.bf16.msra.mxu0 %v520
        %537 = vmatprep.subr.bf16.mxu0 0
        %538 = vmatpush1.bf16.msra.mxu0 0
        %539 = vmatprep.subr.bf16.mxu0 0
        %540 = vmatpush1.bf16.msra.mxu0 0
        %541 = vmatprep.subr.bf16.mxu0 0
        %542 = vmatpush1.bf16.msra.mxu0 0
        %543 = vmatprep.subr.bf16.mxu0 0
        %544 = vmatpush1.bf16.msra.mxu0 0
        %545 = vmatprep.subr.bf16.mxu0 0
        %546 = vmatpush1.bf16.msra.mxu0 0
        %547 = vmatprep.subr.bf16.mxu0 0
        %548 = vmatpush1.bf16.msra.mxu0 0
        %549 = vmatprep.subr.bf16.mxu0 0
        %550 = vmatpush1.bf16.msra.mxu0 0
        %551 = vmatprep.subr.bf16.mxu0 0
        %552 = vmatpush1.bf16.msra.mxu0 0
        %553 = vmatprep.mubr.bf16.mxu0 0
        %554 = vmatmul.mubr.bf16.gmra.mrb[0].mxu0 %v496
        %v555 = vpop.f32.mrb[0].mxu0
        %v556 = vadd.f32 0.0, %v555
        %v557 = vpop.f32.mrb[0].mxu0
        %v558 = vpop.f32.mrb[0].mxu0
        %v559 = vadd.f32 0.0, %v558
        %v560 = vpop.f32.mrb[0].mxu0
        %561 = vdwg.mxu0
        %v562 = vmax.f32 %v556, 0.0
        %v563 = vmax.f32 %v559, 0.0
        %v564 = vadd.f32 %v410, %v562
        %v565 = vadd.f32 %v411, %v563
        %v566 = vadd.f32 %v564, %v565
        %v567 = vrot.slane %v566, 4
        %v568 = vadd.f32 %v566, %v567
        %v569 = vrot.slane %v568, 2
        %v570 = vadd.f32 %v568, %v569
        %v571 = vrot.slane %v570, 1
        %v572 = vadd.f32 %v570, %v571
        %v573 = vmul.f32 %v572, %v419
        %v574 = vsub.f32 %v564, %v573
        %v575 = vsub.f32 %v565, %v573
        %v576 = vmul.f32 %v574, %v574
        %v577 = vmul.f32 %v575, %v575
        %v578 = vadd.f32 %v576, %v577
        %v579 = vrot.slane %v578, 4
        %v580 = vadd.f32 %v578, %v579
        %v581 = vrot.slane %v580, 2
        %v582 = vadd.f32 %v580, %v581
        %v583 = vrot.slane %v582, 1
        %v584 = vadd.f32 %v582, %v583
        %v585 = vmul.f32 %v584, %v432
        %v586 = vrsqrt.pop %v585
        %v587 = vmul.f32 %v585, %v586
        %vm588 = vcmp.eq.f32.partialorder %v585, inf
        %v589 = vsel %vm588, %v585, %v587
        %vm590 = vcmp.eq.f32.partialorder %v585, 0.0
        %v591 = vand.u32 %v585, 2147483648
        %v592 = vsel %vm590, %v591, %v589
        %v593 = vadd.f32 %v592, 1e-06
        %v594 = vrcp.pop %v593
        %v595 = vmul.f32 %v574, %v594
        %v596 = vmul.f32 %v575, %v594
        %s597 = scalar_lea.vmem %s2, 4
        %v598 = vld [vmem:[%s597] sm:$0x7]
        %v599 = vrot.slane %v595, 7
        %v600 = vrot.slane %v596, 7
        %v601 = vsel %vm448, %v599, %v600
        %v602 = vsel %vm448, %v600, %v599
        %v603 = vsel %vm455, %v602, 0.0
        %v604 = vsel %vm456, %v601, 0.0
        %v605 = vlaneseq
        %v606 = vshrl.u32 %v605, 7
        %v607 = vsub.s32 0, %v606
        %v608 = vrot.slane %v598, %v607
        %v609 = vmul.f32 %v603, %v608
        %v610 = vmul.f32 %v604, %v608
        %v611 = vadd.f32 %v609, 0.0
        %v612 = vadd.f32 %v610, 0.0
        %v613 = vlaneseq
        %v614 = vshrl.u32 %v613, 7
        %v615 = vsub.s32 1, %v614
        %v616 = vrot.slane %v598, %v615
        %v617 = vmul.f32 %v595, %v616
        %v618 = vmul.f32 %v596, %v616
        %v619 = vadd.f32 %v611, %v617
        %v620 = vadd.f32 %v612, %v618
        %v621 = vrot.slane %v595, 1
        %v622 = vrot.slane %v596, 1
        %v623 = vsel %vm477, %v621, %v622
        %v624 = vsel %vm477, %v622, %v621
        %v625 = vsel %vm484, %v623, 0.0
        %v626 = vsel %vm485, %v624, 0.0
        %v627 = vlaneseq
        %v628 = vshrl.u32 %v627, 7
        %v629 = vsub.s32 2, %v628
        %v630 = vrot.slane %v598, %v629
        %v631 = vmul.f32 %v625, %v630
        %v632 = vmul.f32 %v626, %v630
        %v633 = vadd.f32 %v619, %v631
        %v634 = vadd.f32 %v620, %v632
        %v635 = vpack.c.bf16 %v634, %v633
        %s636 = scalar_lea.vmem [#allocation2], 128
        %v637 = vld [vmem:[%s636] sm:$0xff]
        %v638 = vld [vmem:[%s636 + $0x8] sm:$0xff]
        %v639 = vld [vmem:[%s636 + $0x10] sm:$0xff]
        %v640 = vld [vmem:[%s636 + $0x18] sm:$0xff]
        %v641 = vld [vmem:[%s636 + $0x20] sm:$0xff]
        %v642 = vld [vmem:[%s636 + $0x28] sm:$0xff]
        %v643 = vld [vmem:[%s636 + $0x30] sm:$0xff]
        %v644 = vld [vmem:[%s636 + $0x38] sm:$0xff]
        %v645 = vld [vmem:[%s636 + $0x40] sm:$0xff]
        %v646 = vld [vmem:[%s636 + $0x48] sm:$0xff]
        %v647 = vld [vmem:[%s636 + $0x50] sm:$0xff]
        %v648 = vld [vmem:[%s636 + $0x58] sm:$0xff]
        %v649 = vld [vmem:[%s636 + $0x60] sm:$0xff]
        %v650 = vld [vmem:[%s636 + $0x68] sm:$0xff]
        %v651 = vld [vmem:[%s636 + $0x70] sm:$0xff]
        %v652 = vld [vmem:[%s636 + $0x78] sm:$0xff]
        %v653 = vpack.c.bf16 %v638, %v637
        %v654 = vpack.c.bf16 %v640, %v639
        %v655 = vpack.c.bf16 %v642, %v641
        %v656 = vpack.c.bf16 %v644, %v643
        %v657 = vpack.c.bf16 %v646, %v645
        %v658 = vpack.c.bf16 %v648, %v647
        %v659 = vpack.c.bf16 %v650, %v649
        %v660 = vpack.c.bf16 %v652, %v651
        %661 = vmatprep.subr.bf16.mxu0 0
        %662 = vmatpush1.bf16.msra.mxu0 %v653
        %663 = vmatprep.subr.bf16.mxu0 0
        %664 = vmatpush1.bf16.msra.mxu0 %v654
        %665 = vmatprep.subr.bf16.mxu0 0
        %666 = vmatpush1.bf16.msra.mxu0 %v655
        %667 = vmatprep.subr.bf16.mxu0 0
        %668 = vmatpush1.bf16.msra.mxu0 %v656
        %669 = vmatprep.subr.bf16.mxu0 0
        %670 = vmatpush1.bf16.msra.mxu0 %v657
        %671 = vmatprep.subr.bf16.mxu0 0
        %672 = vmatpush1.bf16.msra.mxu0 %v658
        %673 = vmatprep.subr.bf16.mxu0 0
        %674 = vmatpush1.bf16.msra.mxu0 %v659
        %675 = vmatprep.subr.bf16.mxu0 0
        %676 = vmatpush1.bf16.msra.mxu0 %v660
        %677 = vmatprep.subr.bf16.mxu0 0
        %678 = vmatpush1.bf16.msra.mxu0 0
        %679 = vmatprep.subr.bf16.mxu0 0
        %680 = vmatpush1.bf16.msra.mxu0 0
        %681 = vmatprep.subr.bf16.mxu0 0
        %682 = vmatpush1.bf16.msra.mxu0 0
        %683 = vmatprep.subr.bf16.mxu0 0
        %684 = vmatpush1.bf16.msra.mxu0 0
        %685 = vmatprep.subr.bf16.mxu0 0
        %686 = vmatpush1.bf16.msra.mxu0 0
        %687 = vmatprep.subr.bf16.mxu0 0
        %688 = vmatpush1.bf16.msra.mxu0 0
        %689 = vmatprep.subr.bf16.mxu0 0
        %690 = vmatpush1.bf16.msra.mxu0 0
        %691 = vmatprep.subr.bf16.mxu0 0
        %692 = vmatpush1.bf16.msra.mxu0 0
        %693 = vmatprep.mubr.bf16.mxu0 0
        %694 = vmatmul.mubr.bf16.gmra.mrb[0].mxu0 %v635
        %v695 = vpop.f32.mrb[0].mxu0
        %v696 = vadd.f32 0.0, %v695
        %v697 = vpop.f32.mrb[0].mxu0
        %v698 = vpop.f32.mrb[0].mxu0
        %v699 = vadd.f32 0.0, %v698
        %v700 = vpop.f32.mrb[0].mxu0
        %701 = vdwg.mxu0
        %v702 = vmax.f32 %v696, 0.0
        %v703 = vmax.f32 %v699, 0.0
        %v704 = vadd.f32 %v564, %v702
        %v705 = vadd.f32 %v565, %v703
        %v706 = vadd.f32 %v704, %v705
        %v707 = vrot.slane %v706, 4
        %v708 = vadd.f32 %v706, %v707
        %v709 = vrot.slane %v708, 2
        %v710 = vadd.f32 %v708, %v709
        %v711 = vrot.slane %v710, 1
        %v712 = vadd.f32 %v710, %v711
        %v713 = vmul.f32 %v712, %v419
        %v714 = vsub.f32 %v704, %v713
        %v715 = vsub.f32 %v705, %v713
        %v716 = vmul.f32 %v714, %v714
        %v717 = vmul.f32 %v715, %v715
        %v718 = vadd.f32 %v716, %v717
        %v719 = vrot.slane %v718, 4
        %v720 = vadd.f32 %v718, %v719
        %v721 = vrot.slane %v720, 2
        %v722 = vadd.f32 %v720, %v721
        %v723 = vrot.slane %v722, 1
        %v724 = vadd.f32 %v722, %v723
        %v725 = vmul.f32 %v724, %v432
        %v726 = vrsqrt.pop %v725
        %v727 = vmul.f32 %v725, %v726
        %vm728 = vcmp.eq.f32.partialorder %v725, inf
        %v729 = vsel %vm728, %v725, %v727
        %vm730 = vcmp.eq.f32.partialorder %v725, 0.0
        %v731 = vand.u32 %v725, 2147483648
        %v732 = vsel %vm730, %v731, %v729
        %v733 = vadd.f32 %v732, 1e-06
        %v734 = vrcp.pop %v733
        %v735 = vmul.f32 %v714, %v734
        %v736 = vmul.f32 %v715, %v734
        %v737 = vpack.c.bf16 %v736, %v735
        %v738 = vld [vmem:[%s4] sm:$0xff]
        %v739 = vld [vmem:[%s4 + $0x8] sm:$0xff]
        %v740 = vld [vmem:[%s4 + $0x10] sm:$0xff]
        %v741 = vld [vmem:[%s4 + $0x18] sm:$0xff]
        %v742 = vld [vmem:[%s4 + $0x20] sm:$0xff]
        %v743 = vld [vmem:[%s4 + $0x28] sm:$0xff]
        %v744 = vld [vmem:[%s4 + $0x30] sm:$0xff]
        %v745 = vld [vmem:[%s4 + $0x38] sm:$0xff]
        %v746 = vld [vmem:[%s4 + $0x40] sm:$0xff]
        %v747 = vld [vmem:[%s4 + $0x48] sm:$0xff]
        %v748 = vld [vmem:[%s4 + $0x50] sm:$0xff]
        %v749 = vld [vmem:[%s4 + $0x58] sm:$0xff]
        %v750 = vld [vmem:[%s4 + $0x60] sm:$0xff]
        %v751 = vld [vmem:[%s4 + $0x68] sm:$0xff]
        %v752 = vld [vmem:[%s4 + $0x70] sm:$0xff]
        %v753 = vld [vmem:[%s4 + $0x78] sm:$0xff]
        %v754 = vld [vmem:[%s4 + $0x80] sm:$0xff]
        %v755 = vld [vmem:[%s4 + $0x88] sm:$0xff]
        %v756 = vld [vmem:[%s4 + $0x90] sm:$0xff]
        %v757 = vld [vmem:[%s4 + $0x98] sm:$0xff]
        %v758 = vld [vmem:[%s4 + $0xa0] sm:$0xff]
        %v759 = vld [vmem:[%s4 + $0xa8] sm:$0xff]
        %v760 = vld [vmem:[%s4 + $0xb0] sm:$0xff]
        %v761 = vld [vmem:[%s4 + $0xb8] sm:$0xff]
        %v762 = vld [vmem:[%s4 + $0xc0] sm:$0xff]
        %v763 = vld [vmem:[%s4 + $0xc8] sm:$0xff]
        %v764 = vld [vmem:[%s4 + $0xd0] sm:$0xff]
        %v765 = vld [vmem:[%s4 + $0xd8] sm:$0xff]
        %v766 = vld [vmem:[%s4 + $0xe0] sm:$0xff]
        %v767 = vld [vmem:[%s4 + $0xe8] sm:$0xff]
        %v768 = vld [vmem:[%s4 + $0xf0] sm:$0xff]
        %v769 = vld [vmem:[%s4 + $0xf8] sm:$0xff]
        %v770 = vld [vmem:[%s4 + $0x100] sm:$0xff]
        %v771 = vld [vmem:[%s4 + $0x108] sm:$0xff]
        %v772 = vld [vmem:[%s4 + $0x110] sm:$0xff]
        %v773 = vld [vmem:[%s4 + $0x118] sm:$0xff]
        %v774 = vld [vmem:[%s4 + $0x120] sm:$0xff]
        %v775 = vld [vmem:[%s4 + $0x128] sm:$0xff]
        %v776 = vld [vmem:[%s4 + $0x130] sm:$0xff]
        %v777 = vld [vmem:[%s4 + $0x138] sm:$0xff]
        %v778 = vld [vmem:[%s4 + $0x140] sm:$0xff]
        %v779 = vld [vmem:[%s4 + $0x148] sm:$0xff]
        %v780 = vld [vmem:[%s4 + $0x150] sm:$0xff]
        %v781 = vld [vmem:[%s4 + $0x158] sm:$0xff]
        %v782 = vld [vmem:[%s4 + $0x160] sm:$0xff]
        %v783 = vld [vmem:[%s4 + $0x168] sm:$0xff]
        %v784 = vld [vmem:[%s4 + $0x170] sm:$0xff]
        %v785 = vld [vmem:[%s4 + $0x178] sm:$0xff]
        %v786 = vpack.c.bf16 %v741, %v738
        %v787 = vpack.c.bf16 %v742, %v739
        %v788 = vpack.c.bf16 %v743, %v740
        %v789 = vpack.c.bf16 %v747, %v744
        %v790 = vpack.c.bf16 %v748, %v745
        %v791 = vpack.c.bf16 %v749, %v746
        %v792 = vpack.c.bf16 %v753, %v750
        %v793 = vpack.c.bf16 %v754, %v751
        %v794 = vpack.c.bf16 %v755, %v752
        %v795 = vpack.c.bf16 %v759, %v756
        %v796 = vpack.c.bf16 %v760, %v757
        %v797 = vpack.c.bf16 %v761, %v758
        %v798 = vpack.c.bf16 %v765, %v762
        %v799 = vpack.c.bf16 %v766, %v763
        %v800 = vpack.c.bf16 %v767, %v764
        %v801 = vpack.c.bf16 %v771, %v768
        %v802 = vpack.c.bf16 %v772, %v769
        %v803 = vpack.c.bf16 %v773, %v770
        %v804 = vpack.c.bf16 %v777, %v774
        %v805 = vpack.c.bf16 %v778, %v775
        %v806 = vpack.c.bf16 %v779, %v776
        %v807 = vpack.c.bf16 %v783, %v780
        %v808 = vpack.c.bf16 %v784, %v781
        %v809 = vpack.c.bf16 %v785, %v782
        %810 = vmatprep.subr.bf16.mxu0 %v787
        %811 = vmatpush1.bf16.msra.mxu0 %v786
        %812 = vmatprep.subr.bf16.mxu0 %v790
        %813 = vmatpush1.bf16.msra.mxu0 %v789
        %814 = vmatprep.subr.bf16.mxu0 %v793
        %815 = vmatpush1.bf16.msra.mxu0 %v792
        %816 = vmatprep.subr.bf16.mxu0 %v796
        %817 = vmatpush1.bf16.msra.mxu0 %v795
        %818 = vmatprep.subr.bf16.mxu0 %v799
        %819 = vmatpush1.bf16.msra.mxu0 %v798
        %820 = vmatprep.subr.bf16.mxu0 %v802
        %821 = vmatpush1.bf16.msra.mxu0 %v801
        %822 = vmatprep.subr.bf16.mxu0 %v805
        %823 = vmatpush1.bf16.msra.mxu0 %v804
        %824 = vmatprep.subr.bf16.mxu0 %v808
        %825 = vmatpush1.bf16.msra.mxu0 %v807
        %826 = vmatprep.subr.bf16.mxu0 0
        %827 = vmatpush1.bf16.msra.mxu0 0
        %828 = vmatprep.subr.bf16.mxu0 0
        %829 = vmatpush1.bf16.msra.mxu0 0
        %830 = vmatprep.subr.bf16.mxu0 0
        %831 = vmatpush1.bf16.msra.mxu0 0
        %832 = vmatprep.subr.bf16.mxu0 0
        %833 = vmatpush1.bf16.msra.mxu0 0
        %834 = vmatprep.subr.bf16.mxu0 0
        %835 = vmatpush1.bf16.msra.mxu0 0
        %836 = vmatprep.subr.bf16.mxu0 0
        %837 = vmatpush1.bf16.msra.mxu0 0
        %838 = vmatprep.subr.bf16.mxu0 0
        %839 = vmatpush1.bf16.msra.mxu0 0
        %840 = vmatprep.subr.bf16.mxu0 0
        %841 = vmatpush1.bf16.msra.mxu0 0
        %842 = vmatprep.mubr.bf16.mxu0 0
        %843 = vmatmul.mubr.bf16.gmra.mrb[0].mxu0 %v737
        %v844 = vpop.f32.mrb[0].mxu0
        %v845 = vadd.f32 0.0, %v844
        %v846 = vpop.f32.mrb[0].mxu0
        %v847 = vadd.f32 0.0, %v846
        %v848 = vpop.f32.mrb[0].mxu0
        %v849 = vadd.f32 0.0, %v848
        %v850 = vpop.f32.mrb[0].mxu0
        %v851 = vadd.f32 0.0, %v850
        %852 = vdwg.mxu0
        %853 = vmatprep.subr.bf16.mxu0 0
        %854 = vmatpush1.bf16.msra.mxu0 %v788
        %855 = vmatprep.subr.bf16.mxu0 0
        %856 = vmatpush1.bf16.msra.mxu0 %v791
        %857 = vmatprep.subr.bf16.mxu0 0
        %858 = vmatpush1.bf16.msra.mxu0 %v794
        %859 = vmatprep.subr.bf16.mxu0 0
        %860 = vmatpush1.bf16.msra.mxu0 %v797
        %861 = vmatprep.subr.bf16.mxu0 0
        %862 = vmatpush1.bf16.msra.mxu0 %v800
        %863 = vmatprep.subr.bf16.mxu0 0
        %864 = vmatpush1.bf16.msra.mxu0 %v803
        %865 = vmatprep.subr.bf16.mxu0 0
        %866 = vmatpush1.bf16.msra.mxu0 %v806
        %867 = vmatprep.subr.bf16.mxu0 0
        %868 = vmatpush1.bf16.msra.mxu0 %v809
        %869 = vmatprep.subr.bf16.mxu0 0
        %870 = vmatpush1.bf16.msra.mxu0 0
        %871 = vmatprep.subr.bf16.mxu0 0
        %872 = vmatpush1.bf16.msra.mxu0 0
        %873 = vmatprep.subr.bf16.mxu0 0
        %874 = vmatpush1.bf16.msra.mxu0 0
        %875 = vmatprep.subr.bf16.mxu0 0
        %876 = vmatpush1.bf16.msra.mxu0 0
        %877 = vmatprep.subr.bf16.mxu0 0
        %878 = vmatpush1.bf16.msra.mxu0 0
        %879 = vmatprep.subr.bf16.mxu0 0
        %880 = vmatpush1.bf16.msra.mxu0 0
        %881 = vmatprep.subr.bf16.mxu0 0
        %882 = vmatpush1.bf16.msra.mxu0 0
        %883 = vmatprep.subr.bf16.mxu0 0
        %884 = vmatpush1.bf16.msra.mxu0 0
        %885 = vmatprep.mubr.bf16.mxu0 0
        %886 = vmatmul.mubr.bf16.gmra.mrb[0].mxu0 %v737
        %v887 = vpop.f32.mrb[0].mxu0
        %v888 = vadd.f32 0.0, %v887
        %v889 = vpop.f32.mrb[0].mxu0
        %v890 = vpop.f32.mrb[0].mxu0
        %v891 = vadd.f32 0.0, %v890
        %v892 = vpop.f32.mrb[0].mxu0
        %893 = vdwg.mxu0
        %v894 = vpack.c.bf16 %v849, %v845
        %v895 = vpack.c.bf16 %v851, %v847
        %vm896 = vcmask 130048
        %v898 = vsel %vm896, %v894, 0
        %v901 = vsel %vm896, %v895, 0
        %903 = vmatprep.subr.bf16.mxu0 0
        %904 = vmatpush1.bf16.xpose.msra.mxu0 %v901
        %905 = vmatprep.subr.bf16.mxu0 0
        %906 = vmatpush1.bf16.xpose.msra.mxu0 0
        %907 = vmatprep.subr.bf16.mxu0 0
        %908 = vmatpush1.bf16.xpose.msra.mxu0 0
        %909 = vmatprep.subr.bf16.mxu0 0
        %910 = vmatpush1.bf16.xpose.msra.mxu0 0
        %911 = vmatprep.subr.bf16.mxu0 0
        %912 = vmatpush1.bf16.xpose.msra.mxu0 0
        %913 = vmatprep.subr.bf16.mxu0 0
        %914 = vmatpush1.bf16.xpose.msra.mxu0 0
        %915 = vmatprep.subr.bf16.mxu0 0
        %916 = vmatpush1.bf16.xpose.msra.mxu0 0
        %917 = vmatprep.subr.bf16.mxu0 0
        %918 = vmatpush1.bf16.xpose.msra.mxu0 0
        %919 = vmatprep.subr.bf16.mxu0 0
        %920 = vmatpush1.bf16.xpose.msra.mxu0 0
        %921 = vmatprep.subr.bf16.mxu0 0
        %922 = vmatpush1.bf16.xpose.msra.mxu0 0
        %923 = vmatprep.subr.bf16.mxu0 0
        %924 = vmatpush1.bf16.xpose.msra.mxu0 0
        %925 = vmatprep.subr.bf16.mxu0 0
        %926 = vmatpush1.bf16.xpose.msra.mxu0 0
        %927 = vmatprep.subr.bf16.mxu0 0
        %928 = vmatpush1.bf16.xpose.msra.mxu0 0
        %929 = vmatprep.subr.bf16.mxu0 0
        %930 = vmatpush1.bf16.xpose.msra.mxu0 0
        %931 = vmatprep.subr.bf16.mxu0 0
        %932 = vmatpush1.bf16.xpose.msra.mxu0 0
        %933 = vmatprep.subr.bf16.mxu0 0
        %934 = vmatpush1.bf16.xpose.msra.mxu0 0
        %935 = vmatprep.mubr.bf16.mxu0 0
        %936 = vmatmul.mubr.bf16.gmra.mrb[0].mxu0 %v898
        %v937 = vpop.f32.mrb[0].mxu0
        %v938 = vadd.f32 0.0, %v937
        %v939 = vpop.f32.mrb[0].mxu0
        %v940 = vpop.f32.mrb[0].mxu0
        %v941 = vadd.f32 0.0, %v940
        %v942 = vpop.f32.mrb[0].mxu0
        %943 = vdwg.mxu0
        %v944 = vmul.f32 %v938, 0.25
        %v945 = vmul.f32 %v941, 0.25
        %v946 = vsel %vm896, %v944, -inf
        %947 = vmax.xlane.f32.xlu0 %v946
        %v948 = vpop.xlane.xlu0 %947
        %v949 = vsel %vm896, %v945, -inf
        %950 = vmax.xlane.f32.xlu0 %v949
        %v951 = vpop.xlane.xlu0 %950
        %v952 = vsub.f32 %v944, %v948
        %v953 = vsub.f32 %v945, %v951
        %v954 = vmul.f32 %v952, 1.442695
        %v955 = vpow.pop %v954
        %v956 = vmul.f32 %v953, 1.442695
        %v957 = vpow.pop %v956
        %v958 = vsel %vm896, %v955, 0.0
        %959 = vadd.xlane.f32.xlu0 %v958
        %v960 = vpop.xlane.xlu0 %959
        %v961 = vsel %vm896, %v957, 0.0
        %962 = vadd.xlane.f32.xlu0 %v961
        %v963 = vpop.xlane.xlu0 %962
        %v964 = vrcp.pop %v960
        %v965 = vmul.f32 %v955, %v964
        %v966 = vrcp.pop %v963
        %v967 = vmul.f32 %v957, %v966
        %v968 = vpack.c.bf16 %v967, %v965
        %v969 = vpack.c.bf16 %v891, %v888
        %v971 = vsel %vm896, %v968, 0
        %973 = vmatprep.subr.bf16.mxu0 0
        %974 = vmatpush1.bf16.msra.mxu0 %v969
        %975 = vmatprep.subr.bf16.mxu0 0
        %976 = vmatpush1.bf16.msra.mxu0 0
        %977 = vmatprep.subr.bf16.mxu0 0
        %978 = vmatpush1.bf16.msra.mxu0 0
        %979 = vmatprep.subr.bf16.mxu0 0
        %980 = vmatpush1.bf16.msra.mxu0 0
        %981 = vmatprep.subr.bf16.mxu0 0
        %982 = vmatpush1.bf16.msra.mxu0 0
        %983 = vmatprep.subr.bf16.mxu0 0
        %984 = vmatpush1.bf16.msra.mxu0 0
        %985 = vmatprep.subr.bf16.mxu0 0
        %986 = vmatpush1.bf16.msra.mxu0 0
        %987 = vmatprep.subr.bf16.mxu0 0
        %988 = vmatpush1.bf16.msra.mxu0 0
        %989 = vmatprep.subr.bf16.mxu0 0
        %990 = vmatpush1.bf16.msra.mxu0 0
        %991 = vmatprep.subr.bf16.mxu0 0
        %992 = vmatpush1.bf16.msra.mxu0 0
        %993 = vmatprep.subr.bf16.mxu0 0
        %994 = vmatpush1.bf16.msra.mxu0 0
        %995 = vmatprep.subr.bf16.mxu0 0
        %996 = vmatpush1.bf16.msra.mxu0 0
        %997 = vmatprep.subr.bf16.mxu0 0
        %998 = vmatpush1.bf16.msra.mxu0 0
        %999 = vmatprep.subr.bf16.mxu0 0
        %1000 = vmatpush1.bf16.msra.mxu0 0
        %1001 = vmatprep.subr.bf16.mxu0 0
        %1002 = vmatpush1.bf16.msra.mxu0 0
        %1003 = vmatprep.subr.bf16.mxu0 0
        %1004 = vmatpush1.bf16.msra.mxu0 0
        %1005 = vmatprep.mubr.bf16.mxu0 0
        %1006 = vmatmul.mubr.bf16.gmra.mrb[0].mxu0 %v971
        %v1007 = vpop.f32.mrb[0].mxu0
        %v1008 = vadd.f32 0.0, %v1007
        %v1009 = vpop.f32.mrb[0].mxu0
        %v1010 = vpop.f32.mrb[0].mxu0
        %v1011 = vadd.f32 0.0, %v1010
        %v1012 = vpop.f32.mrb[0].mxu0
        %1013 = vdwg.mxu0
        %1015 = vrot.lane.b32.xlu0 %v894, 112
        %v1016 = vpop.permute.xlu0 %1015
        %1018 = vrot.lane.b32.xlu0 %v895, 112
        %v1019 = vpop.permute.xlu0 %1018
        %v1021 = vsel %vm896, %v1016, 0
        %v1024 = vsel %vm896, %v1019, 0
        %1026 = vmatprep.subr.bf16.mxu0 0
        %1027 = vmatpush1.bf16.xpose.msra.mxu0 %v1024
        %1028 = vmatprep.subr.bf16.mxu0 0
        %1029 = vmatpush1.bf16.xpose.msra.mxu0 0
        %1030 = vmatprep.subr.bf16.mxu0 0
        %1031 = vmatpush1.bf16.xpose.msra.mxu0 0
        %1032 = vmatprep.subr.bf16.mxu0 0
        %1033 = vmatpush1.bf16.xpose.msra.mxu0 0
        %1034 = vmatprep.subr.bf16.mxu0 0
        %1035 = vmatpush1.bf16.xpose.msra.mxu0 0
        %1036 = vmatprep.subr.bf16.mxu0 0
        %1037 = vmatpush1.bf16.xpose.msra.mxu0 0
        %1038 = vmatprep.subr.bf16.mxu0 0
        %1039 = vmatpush1.bf16.xpose.msra.mxu0 0
        %1040 = vmatprep.subr.bf16.mxu0 0
        %1041 = vmatpush1.bf16.xpose.msra.mxu0 0
        %1042 = vmatprep.subr.bf16.mxu0 0
        %1043 = vmatpush1.bf16.xpose.msra.mxu0 0
        %1044 = vmatprep.subr.bf16.mxu0 0
        %1045 = vmatpush1.bf16.xpose.msra.mxu0 0
        %1046 = vmatprep.subr.bf16.mxu0 0
        %1047 = vmatpush1.bf16.xpose.msra.mxu0 0
        %1048 = vmatprep.subr.bf16.mxu0 0
        %1049 = vmatpush1.bf16.xpose.msra.mxu0 0
        %1050 = vmatprep.subr.bf16.mxu0 0
        %1051 = vmatpush1.bf16.xpose.msra.mxu0 0
        %1052 = vmatprep.subr.bf16.mxu0 0
        %1053 = vmatpush1.bf16.xpose.msra.mxu0 0
        %1054 = vmatprep.subr.bf16.mxu0 0
        %1055 = vmatpush1.bf16.xpose.msra.mxu0 0
        %1056 = vmatprep.subr.bf16.mxu0 0
        %1057 = vmatpush1.bf16.xpose.msra.mxu0 0
        %1058 = vmatprep.mubr.bf16.mxu0 0
        %1059 = vmatmul.mubr.bf16.gmra.mrb[0].mxu0 %v1021
        %v1060 = vpop.f32.mrb[0].mxu0
        %v1061 = vadd.f32 0.0, %v1060
        %v1062 = vpop.f32.mrb[0].mxu0
        %v1063 = vpop.f32.mrb[0].mxu0
        %v1064 = vadd.f32 0.0, %v1063
        %v1065 = vpop.f32.mrb[0].mxu0
        %1066 = vdwg.mxu0
        %v1067 = vmul.f32 %v1061, 0.25
        %v1068 = vmul.f32 %v1064, 0.25
        %v1069 = vsel %vm896, %v1067, -inf
        %1070 = vmax.xlane.f32.xlu0 %v1069
        %v1071 = vpop.xlane.xlu0 %1070
        %v1072 = vsel %vm896, %v1068, -inf
        %1073 = vmax.xlane.f32.xlu0 %v1072
        %v1074 = vpop.xlane.xlu0 %1073
        %v1075 = vsub.f32 %v1067, %v1071
        %v1076 = vsub.f32 %v1068, %v1074
        %v1077 = vmul.f32 %v1075, 1.442695
        %v1078 = vpow.pop %v1077
        %v1079 = vmul.f32 %v1076, 1.442695
        %v1080 = vpow.pop %v1079
        %v1081 = vsel %vm896, %v1078, 0.0
        %1082 = vadd.xlane.f32.xlu0 %v1081
        %v1083 = vpop.xlane.xlu0 %1082
        %v1084 = vsel %vm896, %v1080, 0.0
        %1085 = vadd.xlane.f32.xlu0 %v1084
        %v1086 = vpop.xlane.xlu0 %1085
        %v1087 = vrcp.pop %v1083
        %v1088 = vmul.f32 %v1078, %v1087
        %v1089 = vrcp.pop %v1086
        %v1090 = vmul.f32 %v1080, %v1089
        %v1091 = vpack.c.bf16 %v1090, %v1088
        %1093 = vrot.lane.b32.xlu0 %v969, 112
        %v1094 = vpop.permute.xlu0 %1093
        %v1097 = vsel %vm896, %v1091, 0
        %1099 = vmatprep.subr.bf16.mxu0 0
        %1100 = vmatpush1.bf16.msra.mxu0 %v1094
        %1101 = vmatprep.subr.bf16.mxu0 0
        %1102 = vmatpush1.bf16.msra.mxu0 0
        %1103 = vmatprep.subr.bf16.mxu0 0
        %1104 = vmatpush1.bf16.msra.mxu0 0
        %1105 = vmatprep.subr.bf16.mxu0 0
        %1106 = vmatpush1.bf16.msra.mxu0 0
        %1107 = vmatprep.subr.bf16.mxu0 0
        %1108 = vmatpush1.bf16.msra.mxu0 0
        %1109 = vmatprep.subr.bf16.mxu0 0
        %1110 = vmatpush1.bf16.msra.mxu0 0
        %1111 = vmatprep.subr.bf16.mxu0 0
        %1112 = vmatpush1.bf16.msra.mxu0 0
        %1113 = vmatprep.subr.bf16.mxu0 0
        %1114 = vmatpush1.bf16.msra.mxu0 0
        %1115 = vmatprep.subr.bf16.mxu0 0
        %1116 = vmatpush1.bf16.msra.mxu0 0
        %1117 = vmatprep.subr.bf16.mxu0 0
        %1118 = vmatpush1.bf16.msra.mxu0 0
        %1119 = vmatprep.subr.bf16.mxu0 0
        %1120 = vmatpush1.bf16.msra.mxu0 0
        %1121 = vmatprep.subr.bf16.mxu0 0
        %1122 = vmatpush1.bf16.msra.mxu0 0
        %1123 = vmatprep.subr.bf16.mxu0 0
        %1124 = vmatpush1.bf16.msra.mxu0 0
        %1125 = vmatprep.subr.bf16.mxu0 0
        %1126 = vmatpush1.bf16.msra.mxu0 0
        %1127 = vmatprep.subr.bf16.mxu0 0
        %1128 = vmatpush1.bf16.msra.mxu0 0
        %1129 = vmatprep.subr.bf16.mxu0 0
        %1130 = vmatpush1.bf16.msra.mxu0 0
        %1131 = vmatprep.mubr.bf16.mxu0 0
        %1132 = vmatmul.mubr.bf16.gmra.mrb[0].mxu0 %v1097
        %v1133 = vpop.f32.mrb[0].mxu0
        %v1134 = vadd.f32 0.0, %v1133
        %v1135 = vpop.f32.mrb[0].mxu0
        %v1136 = vpop.f32.mrb[0].mxu0
        %v1137 = vadd.f32 0.0, %v1136
        %v1138 = vpop.f32.mrb[0].mxu0
        %1139 = vdwg.mxu0
        %1140 = vrot.lane.b32.xlu0 %v894, 96
        %v1141 = vpop.permute.xlu0 %1140
        %1142 = vrot.lane.b32.xlu0 %v895, 96
        %v1143 = vpop.permute.xlu0 %1142
        %v1145 = vsel %vm896, %v1141, 0
        %v1148 = vsel %vm896, %v1143, 0
        %1150 = vmatprep.subr.bf16.mxu0 0
        %1151 = vmatpush1.bf16.xpose.msra.mxu0 %v1148
        %1152 = vmatprep.subr.bf16.mxu0 0
        %1153 = vmatpush1.bf16.xpose.msra.mxu0 0
        %1154 = vmatprep.subr.bf16.mxu0 0
        %1155 = vmatpush1.bf16.xpose.msra.mxu0 0
        %1156 = vmatprep.subr.bf16.mxu0 0
        %1157 = vmatpush1.bf16.xpose.msra.mxu0 0
        %1158 = vmatprep.subr.bf16.mxu0 0
        %1159 = vmatpush1.bf16.xpose.msra.mxu0 0
        %1160 = vmatprep.subr.bf16.mxu0 0
        %1161 = vmatpush1.bf16.xpose.msra.mxu0 0
        %1162 = vmatprep.subr.bf16.mxu0 0
        %1163 = vmatpush1.bf16.xpose.msra.mxu0 0
        %1164 = vmatprep.subr.bf16.mxu0 0
        %1165 = vmatpush1.bf16.xpose.msra.mxu0 0
        %1166 = vmatprep.subr.bf16.mxu0 0
        %1167 = vmatpush1.bf16.xpose.msra.mxu0 0
        %1168 = vmatprep.subr.bf16.mxu0 0
        %1169 = vmatpush1.bf16.xpose.msra.mxu0 0
        %1170 = vmatprep.subr.bf16.mxu0 0
        %1171 = vmatpush1.bf16.xpose.msra.mxu0 0
        %1172 = vmatprep.subr.bf16.mxu0 0
        %1173 = vmatpush1.bf16.xpose.msra.mxu0 0
        %1174 = vmatprep.subr.bf16.mxu0 0
        %1175 = vmatpush1.bf16.xpose.msra.mxu0 0
        %1176 = vmatprep.subr.bf16.mxu0 0
        %1177 = vmatpush1.bf16.xpose.msra.mxu0 0
        %1178 = vmatprep.subr.bf16.mxu0 0
        %1179 = vmatpush1.bf16.xpose.msra.mxu0 0
        %1180 = vmatprep.subr.bf16.mxu0 0
        %1181 = vmatpush1.bf16.xpose.msra.mxu0 0
        %1182 = vmatprep.mubr.bf16.mxu0 0
        %1183 = vmatmul.mubr.bf16.gmra.mrb[0].mxu0 %v1145
        %v1184 = vpop.f32.mrb[0].mxu0
        %v1185 = vadd.f32 0.0, %v1184
        %v1186 = vpop.f32.mrb[0].mxu0
        %v1187 = vpop.f32.mrb[0].mxu0
        %v1188 = vadd.f32 0.0, %v1187
        %v1189 = vpop.f32.mrb[0].mxu0
        %1190 = vdwg.mxu0
        %v1191 = vmul.f32 %v1185, 0.25
        %v1192 = vmul.f32 %v1188, 0.25
        %v1193 = vsel %vm896, %v1191, -inf
        %1194 = vmax.xlane.f32.xlu0 %v1193
        %v1195 = vpop.xlane.xlu0 %1194
        %v1196 = vsel %vm896, %v1192, -inf
        %1197 = vmax.xlane.f32.xlu0 %v1196
        %v1198 = vpop.xlane.xlu0 %1197
        %v1199 = vsub.f32 %v1191, %v1195
        %v1200 = vsub.f32 %v1192, %v1198
        %v1201 = vmul.f32 %v1199, 1.442695
        %v1202 = vpow.pop %v1201
        %v1203 = vmul.f32 %v1200, 1.442695
        %v1204 = vpow.pop %v1203
        %v1205 = vsel %vm896, %v1202, 0.0
        %1206 = vadd.xlane.f32.xlu0 %v1205
        %v1207 = vpop.xlane.xlu0 %1206
        %v1208 = vsel %vm896, %v1204, 0.0
        %1209 = vadd.xlane.f32.xlu0 %v1208
        %v1210 = vpop.xlane.xlu0 %1209
        %v1211 = vrcp.pop %v1207
        %v1212 = vmul.f32 %v1202, %v1211
        %v1213 = vrcp.pop %v1210
        %v1214 = vmul.f32 %v1204, %v1213
        %v1215 = vpack.c.bf16 %v1214, %v1212
        %1216 = vrot.lane.b32.xlu0 %v969, 96
        %v1217 = vpop.permute.xlu0 %1216
        %v1220 = vsel %vm896, %v1215, 0
        %1222 = vmatprep.subr.bf16.mxu0 0
        %1223 = vmatpush1.bf16.msra.mxu0 %v1217
        %1224 = vmatprep.subr.bf16.mxu0 0
        %1225 = vmatpush1.bf16.msra.mxu0 0
        %1226 = vmatprep.subr.bf16.mxu0 0
        %1227 = vmatpush1.bf16.msra.mxu0 0
        %1228 = vmatprep.subr.bf16.mxu0 0
        %1229 = vmatpush1.bf16.msra.mxu0 0
        %1230 = vmatprep.subr.bf16.mxu0 0
        %1231 = vmatpush1.bf16.msra.mxu0 0
        %1232 = vmatprep.subr.bf16.mxu0 0
        %1233 = vmatpush1.bf16.msra.mxu0 0
        %1234 = vmatprep.subr.bf16.mxu0 0
        %1235 = vmatpush1.bf16.msra.mxu0 0
        %1236 = vmatprep.subr.bf16.mxu0 0
        %1237 = vmatpush1.bf16.msra.mxu0 0
        %1238 = vmatprep.subr.bf16.mxu0 0
        %1239 = vmatpush1.bf16.msra.mxu0 0
        %1240 = vmatprep.subr.bf16.mxu0 0
        %1241 = vmatpush1.bf16.msra.mxu0 0
        %1242 = vmatprep.subr.bf16.mxu0 0
        %1243 = vmatpush1.bf16.msra.mxu0 0
        %1244 = vmatprep.subr.bf16.mxu0 0
        %1245 = vmatpush1.bf16.msra.mxu0 0
        %1246 = vmatprep.subr.bf16.mxu0 0
        %1247 = vmatpush1.bf16.msra.mxu0 0
        %1248 = vmatprep.subr.bf16.mxu0 0
        %1249 = vmatpush1.bf16.msra.mxu0 0
        %1250 = vmatprep.subr.bf16.mxu0 0
        %1251 = vmatpush1.bf16.msra.mxu0 0
        %1252 = vmatprep.subr.bf16.mxu0 0
        %1253 = vmatpush1.bf16.msra.mxu0 0
        %1254 = vmatprep.mubr.bf16.mxu0 0
        %1255 = vmatmul.mubr.bf16.gmra.mrb[0].mxu0 %v1220
        %v1256 = vpop.f32.mrb[0].mxu0
        %v1257 = vadd.f32 0.0, %v1256
        %v1258 = vpop.f32.mrb[0].mxu0
        %v1259 = vpop.f32.mrb[0].mxu0
        %v1260 = vadd.f32 0.0, %v1259
        %v1261 = vpop.f32.mrb[0].mxu0
        %1262 = vdwg.mxu0
        %1263 = vrot.lane.b32.xlu0 %v894, 80
        %v1264 = vpop.permute.xlu0 %1263
        %1265 = vrot.lane.b32.xlu0 %v895, 80
        %v1266 = vpop.permute.xlu0 %1265
        %v1268 = vsel %vm896, %v1264, 0
        %v1271 = vsel %vm896, %v1266, 0
        %1273 = vmatprep.subr.bf16.mxu0 0
        %1274 = vmatpush1.bf16.xpose.msra.mxu0 %v1271
        %1275 = vmatprep.subr.bf16.mxu0 0
        %1276 = vmatpush1.bf16.xpose.msra.mxu0 0
        %1277 = vmatprep.subr.bf16.mxu0 0
        %1278 = vmatpush1.bf16.xpose.msra.mxu0 0
        %1279 = vmatprep.subr.bf16.mxu0 0
        %1280 = vmatpush1.bf16.xpose.msra.mxu0 0
        %1281 = vmatprep.subr.bf16.mxu0 0
        %1282 = vmatpush1.bf16.xpose.msra.mxu0 0
        %1283 = vmatprep.subr.bf16.mxu0 0
        %1284 = vmatpush1.bf16.xpose.msra.mxu0 0
        %1285 = vmatprep.subr.bf16.mxu0 0
        %1286 = vmatpush1.bf16.xpose.msra.mxu0 0
        %1287 = vmatprep.subr.bf16.mxu0 0
        %1288 = vmatpush1.bf16.xpose.msra.mxu0 0
        %1289 = vmatprep.subr.bf16.mxu0 0
        %1290 = vmatpush1.bf16.xpose.msra.mxu0 0
        %1291 = vmatprep.subr.bf16.mxu0 0
        %1292 = vmatpush1.bf16.xpose.msra.mxu0 0
        %1293 = vmatprep.subr.bf16.mxu0 0
        %1294 = vmatpush1.bf16.xpose.msra.mxu0 0
        %1295 = vmatprep.subr.bf16.mxu0 0
        %1296 = vmatpush1.bf16.xpose.msra.mxu0 0
        %1297 = vmatprep.subr.bf16.mxu0 0
        %1298 = vmatpush1.bf16.xpose.msra.mxu0 0
        %1299 = vmatprep.subr.bf16.mxu0 0
        %1300 = vmatpush1.bf16.xpose.msra.mxu0 0
        %1301 = vmatprep.subr.bf16.mxu0 0
        %1302 = vmatpush1.bf16.xpose.msra.mxu0 0
        %1303 = vmatprep.subr.bf16.mxu0 0
        %1304 = vmatpush1.bf16.xpose.msra.mxu0 0
        %1305 = vmatprep.mubr.bf16.mxu0 0
        %1306 = vmatmul.mubr.bf16.gmra.mrb[0].mxu0 %v1268
        %v1307 = vpop.f32.mrb[0].mxu0
        %v1308 = vadd.f32 0.0, %v1307
        %v1309 = vpop.f32.mrb[0].mxu0
        %v1310 = vpop.f32.mrb[0].mxu0
        %v1311 = vadd.f32 0.0, %v1310
        %v1312 = vpop.f32.mrb[0].mxu0
        %1313 = vdwg.mxu0
        %v1314 = vmul.f32 %v1308, 0.25
        %v1315 = vmul.f32 %v1311, 0.25
        %v1316 = vsel %vm896, %v1314, -inf
        %1317 = vmax.xlane.f32.xlu0 %v1316
        %v1318 = vpop.xlane.xlu0 %1317
        %v1319 = vsel %vm896, %v1315, -inf
        %1320 = vmax.xlane.f32.xlu0 %v1319
        %v1321 = vpop.xlane.xlu0 %1320
        %v1322 = vsub.f32 %v1314, %v1318
        %v1323 = vsub.f32 %v1315, %v1321
        %v1324 = vmul.f32 %v1322, 1.442695
        %v1325 = vpow.pop %v1324
        %v1326 = vmul.f32 %v1323, 1.442695
        %v1327 = vpow.pop %v1326
        %v1328 = vsel %vm896, %v1325, 0.0
        %1329 = vadd.xlane.f32.xlu0 %v1328
        %v1330 = vpop.xlane.xlu0 %1329
        %v1331 = vsel %vm896, %v1327, 0.0
        %1332 = vadd.xlane.f32.xlu0 %v1331
        %v1333 = vpop.xlane.xlu0 %1332
        %v1334 = vrcp.pop %v1330
        %v1335 = vmul.f32 %v1325, %v1334
        %v1336 = vrcp.pop %v1333
        %v1337 = vmul.f32 %v1327, %v1336
        %v1338 = vpack.c.bf16 %v1337, %v1335
        %1339 = vrot.lane.b32.xlu0 %v969, 80
        %v1340 = vpop.permute.xlu0 %1339
        %v1343 = vsel %vm896, %v1338, 0
        %1345 = vmatprep.subr.bf16.mxu0 0
        %1346 = vmatpush1.bf16.msra.mxu0 %v1340
        %1347 = vmatprep.subr.bf16.mxu0 0
        %1348 = vmatpush1.bf16.msra.mxu0 0
        %1349 = vmatprep.subr.bf16.mxu0 0
        %1350 = vmatpush1.bf16.msra.mxu0 0
        %1351 = vmatprep.subr.bf16.mxu0 0
        %1352 = vmatpush1.bf16.msra.mxu0 0
        %1353 = vmatprep.subr.bf16.mxu0 0
        %1354 = vmatpush1.bf16.msra.mxu0 0
        %1355 = vmatprep.subr.bf16.mxu0 0
        %1356 = vmatpush1.bf16.msra.mxu0 0
        %1357 = vmatprep.subr.bf16.mxu0 0
        %1358 = vmatpush1.bf16.msra.mxu0 0
        %1359 = vmatprep.subr.bf16.mxu0 0
        %1360 = vmatpush1.bf16.msra.mxu0 0
        %1361 = vmatprep.subr.bf16.mxu0 0
        %1362 = vmatpush1.bf16.msra.mxu0 0
        %1363 = vmatprep.subr.bf16.mxu0 0
        %1364 = vmatpush1.bf16.msra.mxu0 0
        %1365 = vmatprep.subr.bf16.mxu0 0
        %1366 = vmatpush1.bf16.msra.mxu0 0
        %1367 = vmatprep.subr.bf16.mxu0 0
        %1368 = vmatpush1.bf16.msra.mxu0 0
        %1369 = vmatprep.subr.bf16.mxu0 0
        %1370 = vmatpush1.bf16.msra.mxu0 0
        %1371 = vmatprep.subr.bf16.mxu0 0
        %1372 = vmatpush1.bf16.msra.mxu0 0
        %1373 = vmatprep.subr.bf16.mxu0 0
        %1374 = vmatpush1.bf16.msra.mxu0 0
        %1375 = vmatprep.subr.bf16.mxu0 0
        %1376 = vmatpush1.bf16.msra.mxu0 0
        %1377 = vmatprep.mubr.bf16.mxu0 0
        %1378 = vmatmul.mubr.bf16.gmra.mrb[0].mxu0 %v1343
        %v1379 = vpop.f32.mrb[0].mxu0
        %v1380 = vadd.f32 0.0, %v1379
        %v1381 = vpop.f32.mrb[0].mxu0
        %v1382 = vpop.f32.mrb[0].mxu0
        %v1383 = vadd.f32 0.0, %v1382
        %v1384 = vpop.f32.mrb[0].mxu0
        %1385 = vdwg.mxu0
        %1386 = vrot.lane.b32.xlu0 %v894, 64
        %v1387 = vpop.permute.xlu0 %1386
        %1388 = vrot.lane.b32.xlu0 %v895, 64
        %v1389 = vpop.permute.xlu0 %1388
        %v1391 = vsel %vm896, %v1387, 0
        %v1394 = vsel %vm896, %v1389, 0
        %1396 = vmatprep.subr.bf16.mxu0 0
        %1397 = vmatpush1.bf16.xpose.msra.mxu0 %v1394
        %1398 = vmatprep.subr.bf16.mxu0 0
        %1399 = vmatpush1.bf16.xpose.msra.mxu0 0
        %1400 = vmatprep.subr.bf16.mxu0 0
        %1401 = vmatpush1.bf16.xpose.msra.mxu0 0
        %1402 = vmatprep.subr.bf16.mxu0 0
        %1403 = vmatpush1.bf16.xpose.msra.mxu0 0
        %1404 = vmatprep.subr.bf16.mxu0 0
        %1405 = vmatpush1.bf16.xpose.msra.mxu0 0
        %1406 = vmatprep.subr.bf16.mxu0 0
        %1407 = vmatpush1.bf16.xpose.msra.mxu0 0
        %1408 = vmatprep.subr.bf16.mxu0 0
        %1409 = vmatpush1.bf16.xpose.msra.mxu0 0
        %1410 = vmatprep.subr.bf16.mxu0 0
        %1411 = vmatpush1.bf16.xpose.msra.mxu0 0
        %1412 = vmatprep.subr.bf16.mxu0 0
        %1413 = vmatpush1.bf16.xpose.msra.mxu0 0
        %1414 = vmatprep.subr.bf16.mxu0 0
        %1415 = vmatpush1.bf16.xpose.msra.mxu0 0
        %1416 = vmatprep.subr.bf16.mxu0 0
        %1417 = vmatpush1.bf16.xpose.msra.mxu0 0
        %1418 = vmatprep.subr.bf16.mxu0 0
        %1419 = vmatpush1.bf16.xpose.msra.mxu0 0
        %1420 = vmatprep.subr.bf16.mxu0 0
        %1421 = vmatpush1.bf16.xpose.msra.mxu0 0
        %1422 = vmatprep.subr.bf16.mxu0 0
        %1423 = vmatpush1.bf16.xpose.msra.mxu0 0
        %1424 = vmatprep.subr.bf16.mxu0 0
        %1425 = vmatpush1.bf16.xpose.msra.mxu0 0
        %1426 = vmatprep.subr.bf16.mxu0 0
        %1427 = vmatpush1.bf16.xpose.msra.mxu0 0
        %1428 = vmatprep.mubr.bf16.mxu0 0
        %1429 = vmatmul.mubr.bf16.gmra.mrb[0].mxu0 %v1391
        %v1430 = vpop.f32.mrb[0].mxu0
        %v1431 = vadd.f32 0.0, %v1430
        %v1432 = vpop.f32.mrb[0].mxu0
        %v1433 = vpop.f32.mrb[0].mxu0
        %v1434 = vadd.f32 0.0, %v1433
        %v1435 = vpop.f32.mrb[0].mxu0
        %1436 = vdwg.mxu0
        %v1437 = vmul.f32 %v1431, 0.25
        %v1438 = vmul.f32 %v1434, 0.25
        %v1439 = vsel %vm896, %v1437, -inf
        %1440 = vmax.xlane.f32.xlu0 %v1439
        %v1441 = vpop.xlane.xlu0 %1440
        %v1442 = vsel %vm896, %v1438, -inf
        %1443 = vmax.xlane.f32.xlu0 %v1442
        %v1444 = vpop.xlane.xlu0 %1443
        %v1445 = vsub.f32 %v1437, %v1441
        %v1446 = vsub.f32 %v1438, %v1444
        %v1447 = vmul.f32 %v1445, 1.442695
        %v1448 = vpow.pop %v1447
        %v1449 = vmul.f32 %v1446, 1.442695
        %v1450 = vpow.pop %v1449
        %v1451 = vsel %vm896, %v1448, 0.0
        %1452 = vadd.xlane.f32.xlu0 %v1451
        %v1453 = vpop.xlane.xlu0 %1452
        %v1454 = vsel %vm896, %v1450, 0.0
        %1455 = vadd.xlane.f32.xlu0 %v1454
        %v1456 = vpop.xlane.xlu0 %1455
        %v1457 = vrcp.pop %v1453
        %v1458 = vmul.f32 %v1448, %v1457
        %v1459 = vrcp.pop %v1456
        %v1460 = vmul.f32 %v1450, %v1459
        %v1461 = vpack.c.bf16 %v1460, %v1458
        %1462 = vrot.lane.b32.xlu0 %v969, 64
        %v1463 = vpop.permute.xlu0 %1462
        %v1466 = vsel %vm896, %v1461, 0
        %1468 = vmatprep.subr.bf16.mxu0 0
        %1469 = vmatpush1.bf16.msra.mxu0 %v1463
        %1470 = vmatprep.subr.bf16.mxu0 0
        %1471 = vmatpush1.bf16.msra.mxu0 0
        %1472 = vmatprep.subr.bf16.mxu0 0
        %1473 = vmatpush1.bf16.msra.mxu0 0
        %1474 = vmatprep.subr.bf16.mxu0 0
        %1475 = vmatpush1.bf16.msra.mxu0 0
        %1476 = vmatprep.subr.bf16.mxu0 0
        %1477 = vmatpush1.bf16.msra.mxu0 0
        %1478 = vmatprep.subr.bf16.mxu0 0
        %1479 = vmatpush1.bf16.msra.mxu0 0
        %1480 = vmatprep.subr.bf16.mxu0 0
        %1481 = vmatpush1.bf16.msra.mxu0 0
        %1482 = vmatprep.subr.bf16.mxu0 0
        %1483 = vmatpush1.bf16.msra.mxu0 0
        %1484 = vmatprep.subr.bf16.mxu0 0
        %1485 = vmatpush1.bf16.msra.mxu0 0
        %1486 = vmatprep.subr.bf16.mxu0 0
        %1487 = vmatpush1.bf16.msra.mxu0 0
        %1488 = vmatprep.subr.bf16.mxu0 0
        %1489 = vmatpush1.bf16.msra.mxu0 0
        %1490 = vmatprep.subr.bf16.mxu0 0
        %1491 = vmatpush1.bf16.msra.mxu0 0
        %1492 = vmatprep.subr.bf16.mxu0 0
        %1493 = vmatpush1.bf16.msra.mxu0 0
        %1494 = vmatprep.subr.bf16.mxu0 0
        %1495 = vmatpush1.bf16.msra.mxu0 0
        %1496 = vmatprep.subr.bf16.mxu0 0
        %1497 = vmatpush1.bf16.msra.mxu0 0
        %1498 = vmatprep.subr.bf16.mxu0 0
        %1499 = vmatpush1.bf16.msra.mxu0 0
        %1500 = vmatprep.mubr.bf16.mxu0 0
        %1501 = vmatmul.mubr.bf16.gmra.mrb[0].mxu0 %v1466
        %v1502 = vpop.f32.mrb[0].mxu0
        %v1503 = vadd.f32 0.0, %v1502
        %v1504 = vpop.f32.mrb[0].mxu0
        %v1505 = vpop.f32.mrb[0].mxu0
        %v1506 = vadd.f32 0.0, %v1505
        %v1507 = vpop.f32.mrb[0].mxu0
        %1508 = vdwg.mxu0
        %1509 = vrot.lane.b32.xlu0 %v894, 48
        %v1510 = vpop.permute.xlu0 %1509
        %1511 = vrot.lane.b32.xlu0 %v895, 48
        %v1512 = vpop.permute.xlu0 %1511
        %v1514 = vsel %vm896, %v1510, 0
        %v1517 = vsel %vm896, %v1512, 0
        %1519 = vmatprep.subr.bf16.mxu0 0
        %1520 = vmatpush1.bf16.xpose.msra.mxu0 %v1517
        %1521 = vmatprep.subr.bf16.mxu0 0
        %1522 = vmatpush1.bf16.xpose.msra.mxu0 0
        %1523 = vmatprep.subr.bf16.mxu0 0
        %1524 = vmatpush1.bf16.xpose.msra.mxu0 0
        %1525 = vmatprep.subr.bf16.mxu0 0
        %1526 = vmatpush1.bf16.xpose.msra.mxu0 0
        %1527 = vmatprep.subr.bf16.mxu0 0
        %1528 = vmatpush1.bf16.xpose.msra.mxu0 0
        %1529 = vmatprep.subr.bf16.mxu0 0
        %1530 = vmatpush1.bf16.xpose.msra.mxu0 0
        %1531 = vmatprep.subr.bf16.mxu0 0
        %1532 = vmatpush1.bf16.xpose.msra.mxu0 0
        %1533 = vmatprep.subr.bf16.mxu0 0
        %1534 = vmatpush1.bf16.xpose.msra.mxu0 0
        %1535 = vmatprep.subr.bf16.mxu0 0
        %1536 = vmatpush1.bf16.xpose.msra.mxu0 0
        %1537 = vmatprep.subr.bf16.mxu0 0
        %1538 = vmatpush1.bf16.xpose.msra.mxu0 0
        %1539 = vmatprep.subr.bf16.mxu0 0
        %1540 = vmatpush1.bf16.xpose.msra.mxu0 0
        %1541 = vmatprep.subr.bf16.mxu0 0
        %1542 = vmatpush1.bf16.xpose.msra.mxu0 0
        %1543 = vmatprep.subr.bf16.mxu0 0
        %1544 = vmatpush1.bf16.xpose.msra.mxu0 0
        %1545 = vmatprep.subr.bf16.mxu0 0
        %1546 = vmatpush1.bf16.xpose.msra.mxu0 0
        %1547 = vmatprep.subr.bf16.mxu0 0
        %1548 = vmatpush1.bf16.xpose.msra.mxu0 0
        %1549 = vmatprep.subr.bf16.mxu0 0
        %1550 = vmatpush1.bf16.xpose.msra.mxu0 0
        %1551 = vmatprep.mubr.bf16.mxu0 0
        %1552 = vmatmul.mubr.bf16.gmra.mrb[0].mxu0 %v1514
        %v1553 = vpop.f32.mrb[0].mxu0
        %v1554 = vadd.f32 0.0, %v1553
        %v1555 = vpop.f32.mrb[0].mxu0
        %v1556 = vpop.f32.mrb[0].mxu0
        %v1557 = vadd.f32 0.0, %v1556
        %v1558 = vpop.f32.mrb[0].mxu0
        %1559 = vdwg.mxu0
        %v1560 = vmul.f32 %v1554, 0.25
        %v1561 = vmul.f32 %v1557, 0.25
        %v1562 = vsel %vm896, %v1560, -inf
        %1563 = vmax.xlane.f32.xlu0 %v1562
        %v1564 = vpop.xlane.xlu0 %1563
        %v1565 = vsel %vm896, %v1561, -inf
        %1566 = vmax.xlane.f32.xlu0 %v1565
        %v1567 = vpop.xlane.xlu0 %1566
        %v1568 = vsub.f32 %v1560, %v1564
        %v1569 = vsub.f32 %v1561, %v1567
        %v1570 = vmul.f32 %v1568, 1.442695
        %v1571 = vpow.pop %v1570
        %v1572 = vmul.f32 %v1569, 1.442695
        %v1573 = vpow.pop %v1572
        %v1574 = vsel %vm896, %v1571, 0.0
        %1575 = vadd.xlane.f32.xlu0 %v1574
        %v1576 = vpop.xlane.xlu0 %1575
        %v1577 = vsel %vm896, %v1573, 0.0
        %1578 = vadd.xlane.f32.xlu0 %v1577
        %v1579 = vpop.xlane.xlu0 %1578
        %v1580 = vrcp.pop %v1576
        %v1581 = vmul.f32 %v1571, %v1580
        %v1582 = vrcp.pop %v1579
        %v1583 = vmul.f32 %v1573, %v1582
        %v1584 = vpack.c.bf16 %v1583, %v1581
        %1585 = vrot.lane.b32.xlu0 %v969, 48
        %v1586 = vpop.permute.xlu0 %1585
        %v1589 = vsel %vm896, %v1584, 0
        %1591 = vmatprep.subr.bf16.mxu0 0
        %1592 = vmatpush1.bf16.msra.mxu0 %v1586
        %1593 = vmatprep.subr.bf16.mxu0 0
        %1594 = vmatpush1.bf16.msra.mxu0 0
        %1595 = vmatprep.subr.bf16.mxu0 0
        %1596 = vmatpush1.bf16.msra.mxu0 0
        %1597 = vmatprep.subr.bf16.mxu0 0
        %1598 = vmatpush1.bf16.msra.mxu0 0
        %1599 = vmatprep.subr.bf16.mxu0 0
        %1600 = vmatpush1.bf16.msra.mxu0 0
        %1601 = vmatprep.subr.bf16.mxu0 0
        %1602 = vmatpush1.bf16.msra.mxu0 0
        %1603 = vmatprep.subr.bf16.mxu0 0
        %1604 = vmatpush1.bf16.msra.mxu0 0
        %1605 = vmatprep.subr.bf16.mxu0 0
        %1606 = vmatpush1.bf16.msra.mxu0 0
        %1607 = vmatprep.subr.bf16.mxu0 0
        %1608 = vmatpush1.bf16.msra.mxu0 0
        %1609 = vmatprep.subr.bf16.mxu0 0
        %1610 = vmatpush1.bf16.msra.mxu0 0
        %1611 = vmatprep.subr.bf16.mxu0 0
        %1612 = vmatpush1.bf16.msra.mxu0 0
        %1613 = vmatprep.subr.bf16.mxu0 0
        %1614 = vmatpush1.bf16.msra.mxu0 0
        %1615 = vmatprep.subr.bf16.mxu0 0
        %1616 = vmatpush1.bf16.msra.mxu0 0
        %1617 = vmatprep.subr.bf16.mxu0 0
        %1618 = vmatpush1.bf16.msra.mxu0 0
        %1619 = vmatprep.subr.bf16.mxu0 0
        %1620 = vmatpush1.bf16.msra.mxu0 0
        %1621 = vmatprep.subr.bf16.mxu0 0
        %1622 = vmatpush1.bf16.msra.mxu0 0
        %1623 = vmatprep.mubr.bf16.mxu0 0
        %1624 = vmatmul.mubr.bf16.gmra.mrb[0].mxu0 %v1589
        %v1625 = vpop.f32.mrb[0].mxu0
        %v1626 = vadd.f32 0.0, %v1625
        %v1627 = vpop.f32.mrb[0].mxu0
        %v1628 = vpop.f32.mrb[0].mxu0
        %v1629 = vadd.f32 0.0, %v1628
        %v1630 = vpop.f32.mrb[0].mxu0
        %1631 = vdwg.mxu0
        %1632 = vrot.lane.b32.xlu0 %v894, 32
        %v1633 = vpop.permute.xlu0 %1632
        %1634 = vrot.lane.b32.xlu0 %v895, 32
        %v1635 = vpop.permute.xlu0 %1634
        %v1637 = vsel %vm896, %v1633, 0
        %v1640 = vsel %vm896, %v1635, 0
        %1642 = vmatprep.subr.bf16.mxu0 0
        %1643 = vmatpush1.bf16.xpose.msra.mxu0 %v1640
        %1644 = vmatprep.subr.bf16.mxu0 0
        %1645 = vmatpush1.bf16.xpose.msra.mxu0 0
        %1646 = vmatprep.subr.bf16.mxu0 0
        %1647 = vmatpush1.bf16.xpose.msra.mxu0 0
        %1648 = vmatprep.subr.bf16.mxu0 0
        %1649 = vmatpush1.bf16.xpose.msra.mxu0 0
        %1650 = vmatprep.subr.bf16.mxu0 0
        %1651 = vmatpush1.bf16.xpose.msra.mxu0 0
        %1652 = vmatprep.subr.bf16.mxu0 0
        %1653 = vmatpush1.bf16.xpose.msra.mxu0 0
        %1654 = vmatprep.subr.bf16.mxu0 0
        %1655 = vmatpush1.bf16.xpose.msra.mxu0 0
        %1656 = vmatprep.subr.bf16.mxu0 0
        %1657 = vmatpush1.bf16.xpose.msra.mxu0 0
        %1658 = vmatprep.subr.bf16.mxu0 0
        %1659 = vmatpush1.bf16.xpose.msra.mxu0 0
        %1660 = vmatprep.subr.bf16.mxu0 0
        %1661 = vmatpush1.bf16.xpose.msra.mxu0 0
        %1662 = vmatprep.subr.bf16.mxu0 0
        %1663 = vmatpush1.bf16.xpose.msra.mxu0 0
        %1664 = vmatprep.subr.bf16.mxu0 0
        %1665 = vmatpush1.bf16.xpose.msra.mxu0 0
        %1666 = vmatprep.subr.bf16.mxu0 0
        %1667 = vmatpush1.bf16.xpose.msra.mxu0 0
        %1668 = vmatprep.subr.bf16.mxu0 0
        %1669 = vmatpush1.bf16.xpose.msra.mxu0 0
        %1670 = vmatprep.subr.bf16.mxu0 0
        %1671 = vmatpush1.bf16.xpose.msra.mxu0 0
        %1672 = vmatprep.subr.bf16.mxu0 0
        %1673 = vmatpush1.bf16.xpose.msra.mxu0 0
        %1674 = vmatprep.mubr.bf16.mxu0 0
        %1675 = vmatmul.mubr.bf16.gmra.mrb[0].mxu0 %v1637
        %v1676 = vpop.f32.mrb[0].mxu0
        %v1677 = vadd.f32 0.0, %v1676
        %v1678 = vpop.f32.mrb[0].mxu0
        %v1679 = vpop.f32.mrb[0].mxu0
        %v1680 = vadd.f32 0.0, %v1679
        %v1681 = vpop.f32.mrb[0].mxu0
        %1682 = vdwg.mxu0
        %v1683 = vmul.f32 %v1677, 0.25
        %v1684 = vmul.f32 %v1680, 0.25
        %v1685 = vsel %vm896, %v1683, -inf
        %1686 = vmax.xlane.f32.xlu0 %v1685
        %v1687 = vpop.xlane.xlu0 %1686
        %v1688 = vsel %vm896, %v1684, -inf
        %1689 = vmax.xlane.f32.xlu0 %v1688
        %v1690 = vpop.xlane.xlu0 %1689
        %v1691 = vsub.f32 %v1683, %v1687
        %v1692 = vsub.f32 %v1684, %v1690
        %v1693 = vmul.f32 %v1691, 1.442695
        %v1694 = vpow.pop %v1693
        %v1695 = vmul.f32 %v1692, 1.442695
        %v1696 = vpow.pop %v1695
        %v1697 = vsel %vm896, %v1694, 0.0
        %1698 = vadd.xlane.f32.xlu0 %v1697
        %v1699 = vpop.xlane.xlu0 %1698
        %v1700 = vsel %vm896, %v1696, 0.0
        %1701 = vadd.xlane.f32.xlu0 %v1700
        %v1702 = vpop.xlane.xlu0 %1701
        %v1703 = vrcp.pop %v1699
        %v1704 = vmul.f32 %v1694, %v1703
        %v1705 = vrcp.pop %v1702
        %v1706 = vmul.f32 %v1696, %v1705
        %v1707 = vpack.c.bf16 %v1706, %v1704
        %1708 = vrot.lane.b32.xlu0 %v969, 32
        %v1709 = vpop.permute.xlu0 %1708
        %v1712 = vsel %vm896, %v1707, 0
        %1714 = vmatprep.subr.bf16.mxu0 0
        %1715 = vmatpush1.bf16.msra.mxu0 %v1709
        %1716 = vmatprep.subr.bf16.mxu0 0
        %1717 = vmatpush1.bf16.msra.mxu0 0
        %1718 = vmatprep.subr.bf16.mxu0 0
        %1719 = vmatpush1.bf16.msra.mxu0 0
        %1720 = vmatprep.subr.bf16.mxu0 0
        %1721 = vmatpush1.bf16.msra.mxu0 0
        %1722 = vmatprep.subr.bf16.mxu0 0
        %1723 = vmatpush1.bf16.msra.mxu0 0
        %1724 = vmatprep.subr.bf16.mxu0 0
        %1725 = vmatpush1.bf16.msra.mxu0 0
        %1726 = vmatprep.subr.bf16.mxu0 0
        %1727 = vmatpush1.bf16.msra.mxu0 0
        %1728 = vmatprep.subr.bf16.mxu0 0
        %1729 = vmatpush1.bf16.msra.mxu0 0
        %1730 = vmatprep.subr.bf16.mxu0 0
        %1731 = vmatpush1.bf16.msra.mxu0 0
        %1732 = vmatprep.subr.bf16.mxu0 0
        %1733 = vmatpush1.bf16.msra.mxu0 0
        %1734 = vmatprep.subr.bf16.mxu0 0
        %1735 = vmatpush1.bf16.msra.mxu0 0
        %1736 = vmatprep.subr.bf16.mxu0 0
        %1737 = vmatpush1.bf16.msra.mxu0 0
        %1738 = vmatprep.subr.bf16.mxu0 0
        %1739 = vmatpush1.bf16.msra.mxu0 0
        %1740 = vmatprep.subr.bf16.mxu0 0
        %1741 = vmatpush1.bf16.msra.mxu0 0
        %1742 = vmatprep.subr.bf16.mxu0 0
        %1743 = vmatpush1.bf16.msra.mxu0 0
        %1744 = vmatprep.subr.bf16.mxu0 0
        %1745 = vmatpush1.bf16.msra.mxu0 0
        %1746 = vmatprep.mubr.bf16.mxu0 0
        %1747 = vmatmul.mubr.bf16.gmra.mrb[0].mxu0 %v1712
        %v1748 = vpop.f32.mrb[0].mxu0
        %v1749 = vadd.f32 0.0, %v1748
        %v1750 = vpop.f32.mrb[0].mxu0
        %v1751 = vpop.f32.mrb[0].mxu0
        %v1752 = vadd.f32 0.0, %v1751
        %v1753 = vpop.f32.mrb[0].mxu0
        %1754 = vdwg.mxu0
        %1755 = vrot.lane.b32.xlu0 %v894, 16
        %v1756 = vpop.permute.xlu0 %1755
        %1757 = vrot.lane.b32.xlu0 %v895, 16
        %v1758 = vpop.permute.xlu0 %1757
        %v1760 = vsel %vm896, %v1756, 0
        %v1763 = vsel %vm896, %v1758, 0
        %1765 = vmatprep.subr.bf16.mxu0 0
        %1766 = vmatpush1.bf16.xpose.msra.mxu0 %v1763
        %1767 = vmatprep.subr.bf16.mxu0 0
        %1768 = vmatpush1.bf16.xpose.msra.mxu0 0
        %1769 = vmatprep.subr.bf16.mxu0 0
        %1770 = vmatpush1.bf16.xpose.msra.mxu0 0
        %1771 = vmatprep.subr.bf16.mxu0 0
        %1772 = vmatpush1.bf16.xpose.msra.mxu0 0
        %1773 = vmatprep.subr.bf16.mxu0 0
        %1774 = vmatpush1.bf16.xpose.msra.mxu0 0
        %1775 = vmatprep.subr.bf16.mxu0 0
        %1776 = vmatpush1.bf16.xpose.msra.mxu0 0
        %1777 = vmatprep.subr.bf16.mxu0 0
        %1778 = vmatpush1.bf16.xpose.msra.mxu0 0
        %1779 = vmatprep.subr.bf16.mxu0 0
        %1780 = vmatpush1.bf16.xpose.msra.mxu0 0
        %1781 = vmatprep.subr.bf16.mxu0 0
        %1782 = vmatpush1.bf16.xpose.msra.mxu0 0
        %1783 = vmatprep.subr.bf16.mxu0 0
        %1784 = vmatpush1.bf16.xpose.msra.mxu0 0
        %1785 = vmatprep.subr.bf16.mxu0 0
        %1786 = vmatpush1.bf16.xpose.msra.mxu0 0
        %1787 = vmatprep.subr.bf16.mxu0 0
        %1788 = vmatpush1.bf16.xpose.msra.mxu0 0
        %1789 = vmatprep.subr.bf16.mxu0 0
        %1790 = vmatpush1.bf16.xpose.msra.mxu0 0
        %1791 = vmatprep.subr.bf16.mxu0 0
        %1792 = vmatpush1.bf16.xpose.msra.mxu0 0
        %1793 = vmatprep.subr.bf16.mxu0 0
        %1794 = vmatpush1.bf16.xpose.msra.mxu0 0
        %1795 = vmatprep.subr.bf16.mxu0 0
        %1796 = vmatpush1.bf16.xpose.msra.mxu0 0
        %1797 = vmatprep.mubr.bf16.mxu0 0
        %1798 = vmatmul.mubr.bf16.gmra.mrb[0].mxu0 %v1760
        %v1799 = vpop.f32.mrb[0].mxu0
        %v1800 = vadd.f32 0.0, %v1799
        %v1801 = vpop.f32.mrb[0].mxu0
        %v1802 = vpop.f32.mrb[0].mxu0
        %v1803 = vadd.f32 0.0, %v1802
        %v1804 = vpop.f32.mrb[0].mxu0
        %1805 = vdwg.mxu0
        %v1806 = vmul.f32 %v1800, 0.25
        %v1807 = vmul.f32 %v1803, 0.25
        %v1808 = vsel %vm896, %v1806, -inf
        %1809 = vmax.xlane.f32.xlu0 %v1808
        %v1810 = vpop.xlane.xlu0 %1809
        %v1811 = vsel %vm896, %v1807, -inf
        %1812 = vmax.xlane.f32.xlu0 %v1811
        %v1813 = vpop.xlane.xlu0 %1812
        %v1814 = vsub.f32 %v1806, %v1810
        %v1815 = vsub.f32 %v1807, %v1813
        %v1816 = vmul.f32 %v1814, 1.442695
        %v1817 = vpow.pop %v1816
        %v1818 = vmul.f32 %v1815, 1.442695
        %v1819 = vpow.pop %v1818
        %v1820 = vsel %vm896, %v1817, 0.0
        %1821 = vadd.xlane.f32.xlu0 %v1820
        %v1822 = vpop.xlane.xlu0 %1821
        %v1823 = vsel %vm896, %v1819, 0.0
        %1824 = vadd.xlane.f32.xlu0 %v1823
        %v1825 = vpop.xlane.xlu0 %1824
        %v1826 = vrcp.pop %v1822
        %v1827 = vmul.f32 %v1817, %v1826
        %v1828 = vrcp.pop %v1825
        %v1829 = vmul.f32 %v1819, %v1828
        %v1830 = vpack.c.bf16 %v1829, %v1827
        %1831 = vrot.lane.b32.xlu0 %v969, 16
        %v1832 = vpop.permute.xlu0 %1831
        %v1835 = vsel %vm896, %v1830, 0
        %1837 = vmatprep.subr.bf16.mxu0 0
        %1838 = vmatpush1.bf16.msra.mxu0 %v1832
        %1839 = vmatprep.subr.bf16.mxu0 0
        %1840 = vmatpush1.bf16.msra.mxu0 0
        %1841 = vmatprep.subr.bf16.mxu0 0
        %1842 = vmatpush1.bf16.msra.mxu0 0
        %1843 = vmatprep.subr.bf16.mxu0 0
        %1844 = vmatpush1.bf16.msra.mxu0 0
        %1845 = vmatprep.subr.bf16.mxu0 0
        %1846 = vmatpush1.bf16.msra.mxu0 0
        %1847 = vmatprep.subr.bf16.mxu0 0
        %1848 = vmatpush1.bf16.msra.mxu0 0
        %1849 = vmatprep.subr.bf16.mxu0 0
        %1850 = vmatpush1.bf16.msra.mxu0 0
        %1851 = vmatprep.subr.bf16.mxu0 0
        %1852 = vmatpush1.bf16.msra.mxu0 0
        %1853 = vmatprep.subr.bf16.mxu0 0
        %1854 = vmatpush1.bf16.msra.mxu0 0
        %1855 = vmatprep.subr.bf16.mxu0 0
        %1856 = vmatpush1.bf16.msra.mxu0 0
        %1857 = vmatprep.subr.bf16.mxu0 0
        %1858 = vmatpush1.bf16.msra.mxu0 0
        %1859 = vmatprep.subr.bf16.mxu0 0
        %1860 = vmatpush1.bf16.msra.mxu0 0
        %1861 = vmatprep.subr.bf16.mxu0 0
        %1862 = vmatpush1.bf16.msra.mxu0 0
        %1863 = vmatprep.subr.bf16.mxu0 0
        %1864 = vmatpush1.bf16.msra.mxu0 0
        %1865 = vmatprep.subr.bf16.mxu0 0
        %1866 = vmatpush1.bf16.msra.mxu0 0
        %1867 = vmatprep.subr.bf16.mxu0 0
        %1868 = vmatpush1.bf16.msra.mxu0 0
        %1869 = vmatprep.mubr.bf16.mxu0 0
        %1870 = vmatmul.mubr.bf16.gmra.mrb[0].mxu0 %v1835
        %v1871 = vpop.f32.mrb[0].mxu0
        %v1872 = vadd.f32 0.0, %v1871
        %v1873 = vpop.f32.mrb[0].mxu0
        %v1874 = vpop.f32.mrb[0].mxu0
        %v1875 = vadd.f32 0.0, %v1874
        %v1876 = vpop.f32.mrb[0].mxu0
        %1877 = vdwg.mxu0
        %1880 = vrot.lane.b32.xlu0 %v1134, 16
        %v1881 = vpop.permute.xlu0 %1880
        %1882 = vrot.lane.b32.xlu0 %v1137, 16
        %v1883 = vpop.permute.xlu0 %1882
        %1888 = vrot.lane.b32.xlu0 %v1257, 32
        %v1889 = vpop.permute.xlu0 %1888
        %1890 = vrot.lane.b32.xlu0 %v1260, 32
        %v1891 = vpop.permute.xlu0 %1890
        %1896 = vrot.lane.b32.xlu0 %v1380, 48
        %v1897 = vpop.permute.xlu0 %1896
        %1898 = vrot.lane.b32.xlu0 %v1383, 48
        %v1899 = vpop.permute.xlu0 %1898
        %1904 = vrot.lane.b32.xlu0 %v1503, 64
        %v1905 = vpop.permute.xlu0 %1904
        %1906 = vrot.lane.b32.xlu0 %v1506, 64
        %v1907 = vpop.permute.xlu0 %1906
        %1912 = vrot.lane.b32.xlu0 %v1626, 80
        %v1913 = vpop.permute.xlu0 %1912
        %1914 = vrot.lane.b32.xlu0 %v1629, 80
        %v1915 = vpop.permute.xlu0 %1914
        %1920 = vrot.lane.b32.xlu0 %v1749, 96
        %v1921 = vpop.permute.xlu0 %1920
        %1922 = vrot.lane.b32.xlu0 %v1752, 96
        %v1923 = vpop.permute.xlu0 %1922
        %1928 = vrot.lane.b32.xlu0 %v1872, 112
        %v1929 = vpop.permute.xlu0 %1928
        %1930 = vrot.lane.b32.xlu0 %v1875, 112
        %v1931 = vpop.permute.xlu0 %1930
        %v1934 = vsel %vm896, %v1008, %v1881
        %v1935 = vsel %vm896, %v1011, %v1883
        %vm1936 = vcmask 261120
        %v1937 = vsel %vm1936, %v1934, %v1889
        %v1938 = vsel %vm1936, %v1935, %v1891
        %vm1939 = vcmask 392192
        %v1940 = vsel %vm1939, %v1937, %v1897
        %v1941 = vsel %vm1939, %v1938, %v1899
        %vm1942 = vcmask 523264
        %v1943 = vsel %vm1942, %v1940, %v1905
        %v1944 = vsel %vm1942, %v1941, %v1907
        %vm1945 = vcmask 654336
        %v1946 = vsel %vm1945, %v1943, %v1913
        %v1947 = vsel %vm1945, %v1944, %v1915
        %vm1948 = vcmask 785408
        %v1949 = vsel %vm1948, %v1946, %v1921
        %v1950 = vsel %vm1948, %v1947, %v1923
        %vm1951 = vcmask 916480
        %v1952 = vsel %vm1951, %v1949, %v1929
        %v1953 = vsel %vm1951, %v1950, %v1931
        %v1954 = vpack.c.bf16 %v1953, %v1952
        %v1955 = vld [vmem:[#allocation4] sm:$0xff]
        %v1956 = vld [vmem:[#allocation4 + $0x8] sm:$0xff]
        %v1957 = vld [vmem:[#allocation4 + $0x10] sm:$0xff]
        %v1958 = vld [vmem:[#allocation4 + $0x18] sm:$0xff]
        %v1959 = vld [vmem:[#allocation4 + $0x20] sm:$0xff]
        %v1960 = vld [vmem:[#allocation4 + $0x28] sm:$0xff]
        %v1961 = vld [vmem:[#allocation4 + $0x30] sm:$0xff]
        %v1962 = vld [vmem:[#allocation4 + $0x38] sm:$0xff]
        %v1963 = vld [vmem:[#allocation4 + $0x40] sm:$0xff]
        %v1964 = vld [vmem:[#allocation4 + $0x48] sm:$0xff]
        %v1965 = vld [vmem:[#allocation4 + $0x50] sm:$0xff]
        %v1966 = vld [vmem:[#allocation4 + $0x58] sm:$0xff]
        %v1967 = vld [vmem:[#allocation4 + $0x60] sm:$0xff]
        %v1968 = vld [vmem:[#allocation4 + $0x68] sm:$0xff]
        %v1969 = vld [vmem:[#allocation4 + $0x70] sm:$0xff]
        %v1970 = vld [vmem:[#allocation4 + $0x78] sm:$0xff]
        %v1971 = vpack.c.bf16 %v1956, %v1955
        %v1972 = vpack.c.bf16 %v1958, %v1957
        %v1973 = vpack.c.bf16 %v1960, %v1959
        %v1974 = vpack.c.bf16 %v1962, %v1961
        %v1975 = vpack.c.bf16 %v1964, %v1963
        %v1976 = vpack.c.bf16 %v1966, %v1965
        %v1977 = vpack.c.bf16 %v1968, %v1967
        %v1978 = vpack.c.bf16 %v1970, %v1969
        %v1979 = vld [vmem:[#allocation6] sm:$0x1]
        %v1981 = vlaneseq
        %v1982 = vshrl.u32 %v1981, 7
        %v1983 = vsub.s32 0, %v1982
        %v1984 = vrot.slane %v1979, %v1983
        %1986 = vmatprep.subr.bf16.mxu0 0
        %1987 = vmatpush1.bf16.msra.mxu0 %v1971
        %1988 = vmatprep.subr.bf16.mxu0 0
        %1989 = vmatpush1.bf16.msra.mxu0 %v1972
        %1990 = vmatprep.subr.bf16.mxu0 0
        %1991 = vmatpush1.bf16.msra.mxu0 %v1973
        %1992 = vmatprep.subr.bf16.mxu0 0
        %1993 = vmatpush1.bf16.msra.mxu0 %v1974
        %1994 = vmatprep.subr.bf16.mxu0 0
        %1995 = vmatpush1.bf16.msra.mxu0 %v1975
        %1996 = vmatprep.subr.bf16.mxu0 0
        %1997 = vmatpush1.bf16.msra.mxu0 %v1976
        %1998 = vmatprep.subr.bf16.mxu0 0
        %1999 = vmatpush1.bf16.msra.mxu0 %v1977
        %2000 = vmatprep.subr.bf16.mxu0 0
        %2001 = vmatpush1.bf16.msra.mxu0 %v1978
        %2002 = vmatprep.subr.bf16.mxu0 0
        %2003 = vmatpush1.bf16.msra.mxu0 0
        %2004 = vmatprep.subr.bf16.mxu0 0
        %2005 = vmatpush1.bf16.msra.mxu0 0
        %2006 = vmatprep.subr.bf16.mxu0 0
        %2007 = vmatpush1.bf16.msra.mxu0 0
        %2008 = vmatprep.subr.bf16.mxu0 0
        %2009 = vmatpush1.bf16.msra.mxu0 0
        %2010 = vmatprep.subr.bf16.mxu0 0
        %2011 = vmatpush1.bf16.msra.mxu0 0
        %2012 = vmatprep.subr.bf16.mxu0 0
        %2013 = vmatpush1.bf16.msra.mxu0 0
        %2014 = vmatprep.subr.bf16.mxu0 0
        %2015 = vmatpush1.bf16.msra.mxu0 0
        %2016 = vmatprep.subr.bf16.mxu0 0
        %2017 = vmatpush1.bf16.msra.mxu0 0
        %2018 = vmatprep.mubr.bf16.mxu0 0
        %2019 = vmatmul.mubr.bf16.gmra.mrb[0].mxu0 %v1954
        %v2020 = vpop.f32.mrb[0].mxu0
        %v2021 = vadd.f32 %v1984, %v2020
        %v2022 = vpop.f32.mrb[0].mxu0
        %v2023 = vpop.f32.mrb[0].mxu0
        %v2024 = vadd.f32 %v1984, %v2023
        %v2025 = vpop.f32.mrb[0].mxu0
        %2026 = vdwg.mxu0
        %v2027 = vadd.f32 %v2021, %v735
        %v2028 = vadd.f32 %v2024, %v736
        %2029 = vadd.xlane.f32.xlu0 %v2027
        %v2030 = vpop.xlane.xlu0 %2029
        %2031 = vadd.xlane.f32.xlu0 %v2028
        %v2032 = vpop.xlane.xlu0 %2031
        %v2033 = vrcp.pop 128.0
        %v2034 = vmul.f32 %v2030, %v2033
        %v2035 = vmul.f32 %v2032, %v2033
        %v2036 = vsub.f32 %v2027, %v2034
        %v2037 = vsub.f32 %v2028, %v2035
        %v2038 = vmul.f32 %v2036, %v2036
        %v2039 = vmul.f32 %v2037, %v2037
        %2040 = vadd.xlane.f32.xlu0 %v2038
        %v2041 = vpop.xlane.xlu0 %2040
        %2042 = vadd.xlane.f32.xlu0 %v2039
        %v2043 = vpop.xlane.xlu0 %2042
        %v2044 = vmul.f32 %v2041, %v2033
        %v2045 = vmul.f32 %v2043, %v2033
        %v2046 = vadd.f32 %v2044, 1e-05
        %v2047 = vadd.f32 %v2045, 1e-05
        %v2048 = vrsqrt.pop %v2046
        %v2049 = vrsqrt.pop %v2047
        %v2050 = vmul.f32 %v2036, %v2048
        %v2051 = vmul.f32 %v2037, %v2049
        %v2052 = vadd.f32 %v735, %v2050
        %v2053 = vadd.f32 %v736, %v2051
        %2054 = vadd.xlane.f32.xlu0 %v2052
        %v2055 = vpop.xlane.xlu0 %2054
        %2056 = vadd.xlane.f32.xlu0 %v2053
        %v2057 = vpop.xlane.xlu0 %2056
        %v2058 = vmul.f32 %v2055, %v2033
        %v2059 = vmul.f32 %v2057, %v2033
        %v2060 = vsub.f32 %v2052, %v2058
        %v2061 = vsub.f32 %v2053, %v2059
        %v2062 = vmul.f32 %v2060, %v2060
        %v2063 = vmul.f32 %v2061, %v2061
        %2064 = vadd.xlane.f32.xlu0 %v2062
        %v2065 = vpop.xlane.xlu0 %2064
        %2066 = vadd.xlane.f32.xlu0 %v2063
        %v2067 = vpop.xlane.xlu0 %2066
        %v2068 = vrcp.pop 127.0
        %v2069 = vmul.f32 %v2065, %v2068
        %v2070 = vmul.f32 %v2067, %v2068
        %v2071 = vrsqrt.pop %v2069
        %v2072 = vmul.f32 %v2069, %v2071
        %vm2073 = vcmp.eq.f32.partialorder %v2069, inf
        %v2074 = vsel %vm2073, %v2069, %v2072
        %vm2075 = vcmp.eq.f32.partialorder %v2069, 0.0
        %v2076 = vand.u32 %v2069, 2147483648
        %v2077 = vsel %vm2075, %v2076, %v2074
        %v2078 = vrsqrt.pop %v2070
        %v2079 = vmul.f32 %v2070, %v2078
        %vm2080 = vcmp.eq.f32.partialorder %v2070, inf
        %v2081 = vsel %vm2080, %v2070, %v2079
        %vm2082 = vcmp.eq.f32.partialorder %v2070, 0.0
        %v2083 = vand.u32 %v2070, 2147483648
        %v2084 = vsel %vm2082, %v2083, %v2081
        %v2085 = vadd.f32 %v2077, 1e-06
        %v2086 = vadd.f32 %v2084, 1e-06
        %v2087 = vrcp.pop %v2085
        %v2088 = vmul.f32 %v2060, %v2087
        %v2089 = vrcp.pop %v2086
        %v2090 = vmul.f32 %v2061, %v2089
        %v2091 = vpack.c.bf16 %v2090, %v2088
        %v2092 = vld [vmem:[#allocation7] sm:$0xff]
        %v2093 = vld [vmem:[#allocation7 + $0x8] sm:$0xff]
        %v2094 = vld [vmem:[#allocation7 + $0x10] sm:$0xff]
        %v2095 = vld [vmem:[#allocation7 + $0x18] sm:$0xff]
        %v2096 = vld [vmem:[#allocation7 + $0x20] sm:$0xff]
        %v2097 = vld [vmem:[#allocation7 + $0x28] sm:$0xff]
        %v2098 = vld [vmem:[#allocation7 + $0x30] sm:$0xff]
        %v2099 = vld [vmem:[#allocation7 + $0x38] sm:$0xff]
        %v2100 = vld [vmem:[#allocation7 + $0x40] sm:$0xff]
        %v2101 = vld [vmem:[#allocation7 + $0x48] sm:$0xff]
        %v2102 = vld [vmem:[#allocation7 + $0x50] sm:$0xff]
        %v2103 = vld [vmem:[#allocation7 + $0x58] sm:$0xff]
        %v2104 = vld [vmem:[#allocation7 + $0x60] sm:$0xff]
        %v2105 = vld [vmem:[#allocation7 + $0x68] sm:$0xff]
        %v2106 = vld [vmem:[#allocation7 + $0x70] sm:$0xff]
        %v2107 = vld [vmem:[#allocation7 + $0x78] sm:$0xff]
        %v2108 = vpack.c.bf16 %v2093, %v2092
        %v2109 = vpack.c.bf16 %v2095, %v2094
        %v2110 = vpack.c.bf16 %v2097, %v2096
        %v2111 = vpack.c.bf16 %v2099, %v2098
        %v2112 = vpack.c.bf16 %v2101, %v2100
        %v2113 = vpack.c.bf16 %v2103, %v2102
        %v2114 = vpack.c.bf16 %v2105, %v2104
        %v2115 = vpack.c.bf16 %v2107, %v2106
        %v2116 = vld [vmem:[#allocation9] sm:$0x1]
        %v2118 = vlaneseq
        %v2119 = vshrl.u32 %v2118, 7
        %v2120 = vsub.s32 0, %v2119
        %v2121 = vrot.slane %v2116, %v2120
        %2123 = vmatprep.subr.bf16.mxu0 0
        %2124 = vmatpush1.bf16.msra.mxu0 %v2108
        %2125 = vmatprep.subr.bf16.mxu0 0
        %2126 = vmatpush1.bf16.msra.mxu0 %v2109
        %2127 = vmatprep.subr.bf16.mxu0 0
        %2128 = vmatpush1.bf16.msra.mxu0 %v2110
        %2129 = vmatprep.subr.bf16.mxu0 0
        %2130 = vmatpush1.bf16.msra.mxu0 %v2111
        %2131 = vmatprep.subr.bf16.mxu0 0
        %2132 = vmatpush1.bf16.msra.mxu0 %v2112
        %2133 = vmatprep.subr.bf16.mxu0 0
        %2134 = vmatpush1.bf16.msra.mxu0 %v2113
        %2135 = vmatprep.subr.bf16.mxu0 0
        %2136 = vmatpush1.bf16.msra.mxu0 %v2114
        %2137 = vmatprep.subr.bf16.mxu0 0
        %2138 = vmatpush1.bf16.msra.mxu0 %v2115
        %2139 = vmatprep.subr.bf16.mxu0 0
        %2140 = vmatpush1.bf16.msra.mxu0 0
        %2141 = vmatprep.subr.bf16.mxu0 0
        %2142 = vmatpush1.bf16.msra.mxu0 0
        %2143 = vmatprep.subr.bf16.mxu0 0
        %2144 = vmatpush1.bf16.msra.mxu0 0
        %2145 = vmatprep.subr.bf16.mxu0 0
        %2146 = vmatpush1.bf16.msra.mxu0 0
        %2147 = vmatprep.subr.bf16.mxu0 0
        %2148 = vmatpush1.bf16.msra.mxu0 0
        %2149 = vmatprep.subr.bf16.mxu0 0
        %2150 = vmatpush1.bf16.msra.mxu0 0
        %2151 = vmatprep.subr.bf16.mxu0 0
        %2152 = vmatpush1.bf16.msra.mxu0 0
        %2153 = vmatprep.subr.bf16.mxu0 0
        %2154 = vmatpush1.bf16.msra.mxu0 0
        %2155 = vmatprep.mubr.bf16.mxu0 0
        %2156 = vmatmul.mubr.bf16.gmra.mrb[0].mxu0 %v2091
        %v2157 = vpop.f32.mrb[0].mxu0
        %v2158 = vadd.f32 %v2121, %v2157
        %v2159 = vpop.f32.mrb[0].mxu0
        %v2160 = vpop.f32.mrb[0].mxu0
        %v2161 = vadd.f32 %v2121, %v2160
        %v2162 = vpop.f32.mrb[0].mxu0
        %2163 = vdwg.mxu0
        %v2164 = vmax.f32 %v2158, 0.0
        %v2165 = vmax.f32 %v2161, 0.0
        %v2166 = vadd.f32 %v2052, %v2164
        %v2167 = vadd.f32 %v2053, %v2165
        %2168 = vst [vmem:[%s401] sm:$0xff] %v2166
        %2169 = vst [vmem:[%s401 + $0x8] sm:$0xff] %v2167
        %p2170 = scmp.lt.s32.totalorder %s23, 1
        %s2171 = scalar_select %p2170, %s23, 1
        %s2172 = smul.addr %s2171, 2
        %s2173 = smul.addr %s2172, 8
        %s2174 = scalar_lea.vmem %s9, %s2173
        // Predicated region
        $region77: #{qanet_tail_forward.9} parent=55 // pred_check
          %p2175 = pneg %p235
        $region78: #{qanet_tail_forward.9} parent=55 // pred_check_branch
          %2177 = sbr.rel (%p2175) target = $region80
        $region79: #{qanet_tail_forward.9} parent=55 // pred_region
          _
        $region80: #{qanet_tail_forward.9} parent=55 // pred_fallthru
          _
      $region56: #{qanet_tail_forward.9} parent=5 // pred_fallthru
        _
      %p2178 = scmp.le.s32.totalorder 2, %s18
      // Predicated region
      $region81: #{qanet_tail_forward.9} parent=5 // pred_check
        %p2179 = pneg %p2178
      $region82: #{qanet_tail_forward.9} parent=5 // pred_check_branch
        %2181 = sbr.rel (%p2179) target = $region84
      $region83: #{qanet_tail_forward.9} parent=5 // pred_region
        %s2182 = ssub.s32 %s18, 2
        // Predicated region
        $region85: #{qanet_tail_forward.9} parent=83 // pred_check
          %p2183 = pneg %p241
        $region86: #{qanet_tail_forward.9} parent=83 // pred_check_branch
          %2185 = sbr.rel (%p2183) target = $region88
        $region87: #{qanet_tail_forward.9} parent=83 // pred_region
          %p2186 = scmp.lt.s32.totalorder %s24, 1
          %s2187 = scalar_select %p2186, %s24, 1
          %s2188 = smul.addr %s2187, 2
          %s2189 = smul.addr %s2188, 8
          %s2190 = scalar_lea.vmem %s9, %s2189
        $region88: #{qanet_tail_forward.9} parent=83 // pred_fallthru
          _
      $region84: #{qanet_tail_forward.9} parent=5 // pred_fallthru
        _
    $region6: #{qanet_tail_forward.9} parent=1 // loop_footer
      %s22 = sadd.s32 1, %s18
    $region7: #{qanet_tail_forward.9} parent=1 // loop_footer_branch
      %17 = sbr.rel target = $region3
    $region8: #{qanet_tail_forward.9} parent=1 // loop_exit
      _
    %2191 = vsyncpa [#allocation3], 1
    %s2192 = scalar_lea.sflag [#allocation3], 1
    %2193 = vsyncpa %s2192, 1
    %2194 = vsyncpa [#allocation5], 1
    %2195 = vsyncpa [#allocation8], 1

// kernel: qanet_tail_forward.10
$region0: #{qanet_tail_forward.10}
  #allocation0 [shape = 'u32[]', space=smem, size = 0x4, offset = 0x4, fixed_abs, tag = 'smem constant byte address 0x4 - core index']
  #allocation1 [shape = 'u32[144,128]{1,0:T(1,128)}', space=vmem, size = 0x12000, scoped, tag = 'internal scratch']
  %s0 = inlined_call_operand.vmem [shape: f32[2,8,128], index: 0, kind: input, shape index: {}]
  %s1 = inlined_call_operand.vmem [shape: f32[8,128], index: 1, kind: input, shape index: {}]
  %s2 = inlined_call_operand.vmem [shape: f32[2,3,128], index: 2, kind: input, shape index: {}]
  %s3 = inlined_call_operand.vmem [shape: f32[2,128,128], index: 3, kind: input, shape index: {}]
  %s4 = inlined_call_operand.vmem [shape: f32[128,384], index: 4, kind: input, shape index: {}]
  %s5 = inlined_call_operand.vmem [shape: f32[128,128], index: 5, kind: input, shape index: {}]
  %s6 = inlined_call_operand.vmem [shape: f32[1,128], index: 6, kind: input, shape index: {}]
  %s7 = inlined_call_operand.vmem [shape: f32[128,128], index: 7, kind: input, shape index: {}]
  %s8 = inlined_call_operand.vmem [shape: f32[1,128], index: 8, kind: input, shape index: {}]
  %s9 = inlined_call_operand.vmem [shape: f32[2,8,128], index: 9, kind: output, shape index: {}]
  %s10 = sld [smem:[#allocation0]]
  $region69: #{qanet_tail_forward.10} parent=0
    _
  %s12 = ssub.s32 1, %s10
  %s13 = scalar_select 0, %s12, %s10
  loop: start=0, step=1, limit=4
  $region2: #{qanet_tail_forward.10} parent=0 // loop_pre_header
    _
  $region3: #{qanet_tail_forward.10} parent=0 // loop_header
    %s15 = sphi 0, %s19
    %p16 = scmp.ge.s32.totalorder %s15, 4
    %s25 = sphi 0, %s27
    %s28 = sphi 0, %s25
    %s29 = sphi 0, %s28
    %s45 = sphi 0, %s29
    %s49 = sphi 0, %s49
    %s51 = sphi 0, %s49
    %s52 = sphi 0, %s51
    %s66 = sphi 0, %s52
    %s70 = sphi 0, %s70
    %s72 = sphi 0, %s70
    %s73 = sphi 0, %s72
    %s87 = sphi 0, %s73
    %s91 = sphi 0, %s91
    %s93 = sphi 0, %s91
    %s94 = sphi 0, %s93
    %s108 = sphi 0, %s94
    %s112 = sphi 0, %s112
    %s114 = sphi 0, %s112
    %s115 = sphi 0, %s114
    %s129 = sphi 0, %s115
    %s133 = sphi 0, %s133
    %s135 = sphi 0, %s133
    %s136 = sphi 0, %s135
    %s150 = sphi 0, %s136
    %s154 = sphi 0, %s154
    %s156 = sphi 0, %s154
    %s157 = sphi 0, %s156
    %s171 = sphi 0, %s157
    %s175 = sphi 0, %s175
    %s177 = sphi 0, %s175
    %s178 = sphi 0, %s177
    %s192 = sphi 0, %s178
    %s196 = sphi 0, %s196
    %s198 = sphi 0, %s196
    %s199 = sphi 0, %s198
    %s213 = sphi 0, %s199
    %s219 = sphi 0, %s221
    %s222 = sphi 0, %s219
    %s223 = sphi 0, %s222
    %s239 = sphi 0, %s223
  $region4: #{qanet_tail_forward.10} parent=0 // loop_header_branch
    %18 = sbr.rel (%p16) target = $region8
  $region5: #{qanet_tail_forward.10} parent=0 // loop_body
    %s20 = ssub.s32 %s15, 1
    %s21 = ssub.s32 %s15, 2
    %s22 = sadd.s32 %s15, 1
    %s23 = ssub.s32 %s15, %s22
    %p24 = scmp.eq.s32.totalorder %s23, 0
    %s26 = sadd.s32 %s25, 1
    %s27 = scalar_select %p24, %s25, %s26
    %p30 = pneg %p24
    %p31 = scmp.eq.s32.totalorder %s15, 1
    %p32 = por %p30, %p31
    %p33 = scmp.ne.s32.totalorder %s25, %s28
    %p34 = scmp.eq.s32.totalorder %s15, 0
    %p35 = por %p33, %p34
    %p36 = scmp.ne.s32.totalorder %s25, %s28
    %p37 = scmp.eq.s32.totalorder %s20, 1
    %p38 = por %p36, %p37
    %p39 = scmp.ne.s32.totalorder %s28, %s29
    %p40 = scmp.eq.s32.totalorder %s20, 0
    %p41 = por %p39, %p40
    %p42 = scmp.ne.s32.totalorder %s28, %s29
    %p43 = scmp.eq.s32.totalorder %s21, 1
    %p44 = por %p42, %p43
    %p46 = scmp.ne.s32.totalorder %s29, %s45
    %p47 = scmp.eq.s32.totalorder %s21, 0
    %p48 = por %p46, %p47
    %s50 = sadd.s32 %s49, 1
    %p53 = scmp.eq.s32.totalorder %s15, 1
    %p54 = scmp.ne.s32.totalorder %s49, %s51
    %p55 = scmp.eq.s32.totalorder %s15, 0
    %p56 = por %p54, %p55
    %p57 = scmp.ne.s32.totalorder %s49, %s51
    %p58 = scmp.eq.s32.totalorder %s20, 1
    %p59 = por %p57, %p58
    %p60 = scmp.ne.s32.totalorder %s51, %s52
    %p61 = scmp.eq.s32.totalorder %s20, 0
    %p62 = por %p60, %p61
    %p63 = scmp.ne.s32.totalorder %s51, %s52
    %p64 = scmp.eq.s32.totalorder %s21, 1
    %p65 = por %p63, %p64
    %p67 = scmp.ne.s32.totalorder %s52, %s66
    %p68 = scmp.eq.s32.totalorder %s21, 0
    %p69 = por %p67, %p68
    %s71 = sadd.s32 %s70, 1
    %p74 = scmp.eq.s32.totalorder %s15, 1
    %p75 = scmp.ne.s32.totalorder %s70, %s72
    %p76 = scmp.eq.s32.totalorder %s15, 0
    %p77 = por %p75, %p76
    %p78 = scmp.ne.s32.totalorder %s70, %s72
    %p79 = scmp.eq.s32.totalorder %s20, 1
    %p80 = por %p78, %p79
    %p81 = scmp.ne.s32.totalorder %s72, %s73
    %p82 = scmp.eq.s32.totalorder %s20, 0
    %p83 = por %p81, %p82
    %p84 = scmp.ne.s32.totalorder %s72, %s73
    %p85 = scmp.eq.s32.totalorder %s21, 1
    %p86 = por %p84, %p85
    %p88 = scmp.ne.s32.totalorder %s73, %s87
    %p89 = scmp.eq.s32.totalorder %s21, 0
    %p90 = por %p88, %p89
    %s92 = sadd.s32 %s91, 1
    %p95 = scmp.eq.s32.totalorder %s15, 1
    %p96 = scmp.ne.s32.totalorder %s91, %s93
    %p97 = scmp.eq.s32.totalorder %s15, 0
    %p98 = por %p96, %p97
    %p99 = scmp.ne.s32.totalorder %s91, %s93
    %p100 = scmp.eq.s32.totalorder %s20, 1
    %p101 = por %p99, %p100
    %p102 = scmp.ne.s32.totalorder %s93, %s94
    %p103 = scmp.eq.s32.totalorder %s20, 0
    %p104 = por %p102, %p103
    %p105 = scmp.ne.s32.totalorder %s93, %s94
    %p106 = scmp.eq.s32.totalorder %s21, 1
    %p107 = por %p105, %p106
    %p109 = scmp.ne.s32.totalorder %s94, %s108
    %p110 = scmp.eq.s32.totalorder %s21, 0
    %p111 = por %p109, %p110
    %s113 = sadd.s32 %s112, 1
    %p116 = scmp.eq.s32.totalorder %s15, 1
    %p117 = scmp.ne.s32.totalorder %s112, %s114
    %p118 = scmp.eq.s32.totalorder %s15, 0
    %p119 = por %p117, %p118
    %p120 = scmp.ne.s32.totalorder %s112, %s114
    %p121 = scmp.eq.s32.totalorder %s20, 1
    %p122 = por %p120, %p121
    %p123 = scmp.ne.s32.totalorder %s114, %s115
    %p124 = scmp.eq.s32.totalorder %s20, 0
    %p125 = por %p123, %p124
    %p126 = scmp.ne.s32.totalorder %s114, %s115
    %p127 = scmp.eq.s32.totalorder %s21, 1
    %p128 = por %p126, %p127
    %p130 = scmp.ne.s32.totalorder %s115, %s129
    %p131 = scmp.eq.s32.totalorder %s21, 0
    %p132 = por %p130, %p131
    %s134 = sadd.s32 %s133, 1
    %p137 = scmp.eq.s32.totalorder %s15, 1
    %p138 = scmp.ne.s32.totalorder %s133, %s135
    %p139 = scmp.eq.s32.totalorder %s15, 0
    %p140 = por %p138, %p139
    %p141 = scmp.ne.s32.totalorder %s133, %s135
    %p142 = scmp.eq.s32.totalorder %s20, 1
    %p143 = por %p141, %p142
    %p144 = scmp.ne.s32.totalorder %s135, %s136
    %p145 = scmp.eq.s32.totalorder %s20, 0
    %p146 = por %p144, %p145
    %p147 = scmp.ne.s32.totalorder %s135, %s136
    %p148 = scmp.eq.s32.totalorder %s21, 1
    %p149 = por %p147, %p148
    %p151 = scmp.ne.s32.totalorder %s136, %s150
    %p152 = scmp.eq.s32.totalorder %s21, 0
    %p153 = por %p151, %p152
    %s155 = sadd.s32 %s154, 1
    %p158 = scmp.eq.s32.totalorder %s15, 1
    %p159 = scmp.ne.s32.totalorder %s154, %s156
    %p160 = scmp.eq.s32.totalorder %s15, 0
    %p161 = por %p159, %p160
    %p162 = scmp.ne.s32.totalorder %s154, %s156
    %p163 = scmp.eq.s32.totalorder %s20, 1
    %p164 = por %p162, %p163
    %p165 = scmp.ne.s32.totalorder %s156, %s157
    %p166 = scmp.eq.s32.totalorder %s20, 0
    %p167 = por %p165, %p166
    %p168 = scmp.ne.s32.totalorder %s156, %s157
    %p169 = scmp.eq.s32.totalorder %s21, 1
    %p170 = por %p168, %p169
    %p172 = scmp.ne.s32.totalorder %s157, %s171
    %p173 = scmp.eq.s32.totalorder %s21, 0
    %p174 = por %p172, %p173
    %s176 = sadd.s32 %s175, 1
    %p179 = scmp.eq.s32.totalorder %s15, 1
    %p180 = scmp.ne.s32.totalorder %s175, %s177
    %p181 = scmp.eq.s32.totalorder %s15, 0
    %p182 = por %p180, %p181
    %p183 = scmp.ne.s32.totalorder %s175, %s177
    %p184 = scmp.eq.s32.totalorder %s20, 1
    %p185 = por %p183, %p184
    %p186 = scmp.ne.s32.totalorder %s177, %s178
    %p187 = scmp.eq.s32.totalorder %s20, 0
    %p188 = por %p186, %p187
    %p189 = scmp.ne.s32.totalorder %s177, %s178
    %p190 = scmp.eq.s32.totalorder %s21, 1
    %p191 = por %p189, %p190
    %p193 = scmp.ne.s32.totalorder %s178, %s192
    %p194 = scmp.eq.s32.totalorder %s21, 0
    %p195 = por %p193, %p194
    %s197 = sadd.s32 %s196, 1
    %p200 = scmp.eq.s32.totalorder %s15, 1
    %p201 = scmp.ne.s32.totalorder %s196, %s198
    %p202 = scmp.eq.s32.totalorder %s15, 0
    %p203 = por %p201, %p202
    %p204 = scmp.ne.s32.totalorder %s196, %s198
    %p205 = scmp.eq.s32.totalorder %s20, 1
    %p206 = por %p204, %p205
    %p207 = scmp.ne.s32.totalorder %s198, %s199
    %p208 = scmp.eq.s32.totalorder %s20, 0
    %p209 = por %p207, %p208
    %p210 = scmp.ne.s32.totalorder %s198, %s199
    %p211 = scmp.eq.s32.totalorder %s21, 1
    %p212 = por %p210, %p211
    %p214 = scmp.ne.s32.totalorder %s199, %s213
    %p215 = scmp.eq.s32.totalorder %s21, 0
    %p216 = por %p214, %p215
    %s217 = ssub.s32 %s15, %s22
    %p218 = scmp.eq.s32.totalorder %s217, 0
    %s220 = sadd.s32 %s219, 1
    %s221 = scalar_select %p218, %s219, %s220
    %p224 = pneg %p218
    %p225 = scmp.eq.s32.totalorder %s15, 1
    %p226 = por %p224, %p225
    %p227 = scmp.ne.s32.totalorder %s219, %s222
    %p228 = scmp.eq.s32.totalorder %s15, 0
    %p229 = por %p227, %p228
    %p230 = scmp.ne.s32.totalorder %s219, %s222
    %p231 = scmp.eq.s32.totalorder %s20, 1
    %p232 = por %p230, %p231
    %p233 = scmp.ne.s32.totalorder %s222, %s223
    %p234 = scmp.eq.s32.totalorder %s20, 0
    %p235 = por %p233, %p234
    %p236 = scmp.ne.s32.totalorder %s222, %s223
    %p237 = scmp.eq.s32.totalorder %s21, 1
    %p238 = por %p236, %p237
    %p240 = scmp.ne.s32.totalorder %s223, %s239
    %p241 = scmp.eq.s32.totalorder %s21, 0
    %p242 = por %p240, %p241
    %p243 = scmp.le.s32.totalorder 1, %s15
    %p244 = scmp.lt.s32.totalorder %s15, 3
    %p245 = pnand %p243, %p244
    %p246 = pneg %p245
    // Predicated region
    $region9: #{qanet_tail_forward.10} parent=5 // pred_check
      _
    $region10: #{qanet_tail_forward.10} parent=5 // pred_check_branch
      %248 = sbr.rel (%p245) target = $region12
    $region11: #{qanet_tail_forward.10} parent=5 // pred_region
      %s249 = ssub.s32 %s15, 1
      // Predicated region
      $region13: #{qanet_tail_forward.10} parent=11 // pred_check
        %p250 = pneg %p62
      $region14: #{qanet_tail_forward.10} parent=11 // pred_check_branch
        %252 = sbr.rel (%p250) target = $region16
      $region15: #{qanet_tail_forward.10} parent=11 // pred_region
        _
      $region16: #{qanet_tail_forward.10} parent=11 // pred_fallthru
        _
      // Predicated region
      $region17: #{qanet_tail_forward.10} parent=11 // pred_check
        %p253 = pneg %p83
      $region18: #{qanet_tail_forward.10} parent=11 // pred_check_branch
        %255 = sbr.rel (%p253) target = $region20
      $region19: #{qanet_tail_forward.10} parent=11 // pred_region
        _
      $region20: #{qanet_tail_forward.10} parent=11 // pred_fallthru
        _
      // Predicated region
      $region21: #{qanet_tail_forward.10} parent=11 // pred_check
        %p256 = pneg %p104
      $region22: #{qanet_tail_forward.10} parent=11 // pred_check_branch
        %258 = sbr.rel (%p256) target = $region24
      $region23: #{qanet_tail_forward.10} parent=11 // pred_region
        _
      $region24: #{qanet_tail_forward.10} parent=11 // pred_fallthru
        _
      // Predicated region
      $region25: #{qanet_tail_forward.10} parent=11 // pred_check
        %p259 = pneg %p125
      $region26: #{qanet_tail_forward.10} parent=11 // pred_check_branch
        %261 = sbr.rel (%p259) target = $region28
      $region27: #{qanet_tail_forward.10} parent=11 // pred_region
        _
      $region28: #{qanet_tail_forward.10} parent=11 // pred_fallthru
        _
      // Predicated region
      $region29: #{qanet_tail_forward.10} parent=11 // pred_check
        %p262 = pneg %p146
      $region30: #{qanet_tail_forward.10} parent=11 // pred_check_branch
        %264 = sbr.rel (%p262) target = $region32
      $region31: #{qanet_tail_forward.10} parent=11 // pred_region
        _
      $region32: #{qanet_tail_forward.10} parent=11 // pred_fallthru
        _
      // Predicated region
      $region33: #{qanet_tail_forward.10} parent=11 // pred_check
        %p265 = pneg %p167
      $region34: #{qanet_tail_forward.10} parent=11 // pred_check_branch
        %267 = sbr.rel (%p265) target = $region36
      $region35: #{qanet_tail_forward.10} parent=11 // pred_region
        _
      $region36: #{qanet_tail_forward.10} parent=11 // pred_fallthru
        _
      // Predicated region
      $region37: #{qanet_tail_forward.10} parent=11 // pred_check
        %p268 = pneg %p188
      $region38: #{qanet_tail_forward.10} parent=11 // pred_check_branch
        %270 = sbr.rel (%p268) target = $region40
      $region39: #{qanet_tail_forward.10} parent=11 // pred_region
        _
      $region40: #{qanet_tail_forward.10} parent=11 // pred_fallthru
        _
      // Predicated region
      $region41: #{qanet_tail_forward.10} parent=11 // pred_check
        %p271 = pneg %p209
      $region42: #{qanet_tail_forward.10} parent=11 // pred_check_branch
        %273 = sbr.rel (%p271) target = $region44
      $region43: #{qanet_tail_forward.10} parent=11 // pred_region
        _
      $region44: #{qanet_tail_forward.10} parent=11 // pred_fallthru
        _
    $region12: #{qanet_tail_forward.10} parent=5 // pred_fallthru
      _
    %p274 = scmp.lt.s32.totalorder %s15, 2
    // Predicated region
    $region45: #{qanet_tail_forward.10} parent=5 // pred_check
      %p275 = pneg %p274
    $region46: #{qanet_tail_forward.10} parent=5 // pred_check_branch
      %277 = sbr.rel (%p275) target = $region48
    $region47: #{qanet_tail_forward.10} parent=5 // pred_region
      // Predicated region
      $region49: #{qanet_tail_forward.10} parent=47 // pred_check
        %p278 = pneg %p35
      $region50: #{qanet_tail_forward.10} parent=47 // pred_check_branch
        %280 = sbr.rel (%p278) target = $region52
      $region51: #{qanet_tail_forward.10} parent=47 // pred_region
        %p281 = scmp.lt.s32.totalorder %s15, 1
        %s282 = scalar_select %p281, %s15, 1
        %s283 = smul.addr %s282, 8
        %s284 = scalar_lea.vmem %s0, %s283
      $region52: #{qanet_tail_forward.10} parent=47 // pred_fallthru
        _
    $region48: #{qanet_tail_forward.10} parent=5 // pred_fallthru
      _
    %p285 = scmp.le.s32.totalorder 1, %s15
    %p286 = scmp.lt.s32.totalorder %s15, 3
    %p287 = pnand %p285, %p286
    %p288 = pneg %p287
    // Predicated region
    $region53: #{qanet_tail_forward.10} parent=5 // pred_check
      _
    $region54: #{qanet_tail_forward.10} parent=5 // pred_check_branch
      %290 = sbr.rel (%p287) target = $region56
    $region55: #{qanet_tail_forward.10} parent=5 // pred_region
      %s291 = ssub.s32 %s15, 1
      %p292 = scmp.lt.s32.totalorder %s20, 1
      %s293 = scalar_select %p292, %s20, 1
      %s294 = smul.addr %s293, 8
      %s295 = scalar_lea.vmem %s0, %s294
      %p296 = pneg %p41
      %p297 = pneg %p38
      %p298 = pneg %p62
      %p299 = pneg %p59
      %p300 = pneg %p83
      %p301 = pneg %p80
      %p302 = pneg %p104
      %p303 = pneg %p101
      %p304 = pneg %p125
      %p305 = pneg %p122
      %p306 = pneg %p146
      %p307 = pneg %p143
      %p308 = pneg %p167
      %p309 = pneg %p164
      %p310 = pneg %p188
      %p311 = pneg %p185
      %p312 = pneg %p209
      %p313 = pneg %p206
      %p314 = pneg %p235
      %p315 = pneg %p232
      %p316 = scmp.lt.s32.totalorder %s20, 1
      %s317 = scalar_select %p316, %s20, 1
      %s318 = smul.addr %s317, 8
      %s319 = scalar_lea.vmem %s9, %s318
      %p320 = scmp.lt.s32.totalorder %s20, 1
      %s321 = scalar_select %p320, %s20, 1
      %s322 = smul.addr %s321, 8
      %s323 = scalar_lea.vmem %s0, %s322
      %p324 = scmp.lt.s32.totalorder %s20, 1
      %s325 = scalar_select %p324, %s20, 1
      %s326 = smul.addr %s325, 8
      %s327 = scalar_lea.vmem %s9, %s326
      %v329 = vlaneseq
      %v330 = vshrl.u32 %v329, 7
      %v331 = vld [vmem:[%s323] sm:$0xff]
      %v332 = vld [vmem:[%s1] sm:$0xff]
      %v333 = vadd.f32 %v331, %v332
      %v334 = vrot.slane %v333, 4
      %v335 = vadd.f32 %v333, %v334
      %v336 = vrot.slane %v335, 2
      %v337 = vadd.f32 %v335, %v336
      %v338 = vrot.slane %v337, 1
      %v339 = vadd.f32 %v337, %v338
      %v340 = vrcp.pop 8.0
      %v341 = vmul.f32 %v339, %v340
      %v342 = vsub.f32 %v333, %v341
      %v343 = vmul.f32 %v342, %v342
      %v344 = vrot.slane %v343, 4
      %v345 = vadd.f32 %v343, %v344
      %v346 = vrot.slane %v345, 2
      %v347 = vadd.f32 %v345, %v346
      %v348 = vrot.slane %v347, 1
      %v349 = vadd.f32 %v347, %v348
      %v350 = vrcp.pop 7.0
      %v351 = vmul.f32 %v349, %v350
      %v352 = vrsqrt.pop %v351
      %v353 = vmul.f32 %v351, %v352
      %vm354 = vcmp.eq.f32.partialorder %v351, inf
      %v355 = vsel %vm354, %v351, %v353
      %vm356 = vcmp.eq.f32.partialorder %v351, 0.0
      %v357 = vand.u32 %v351, 2147483648
      %v358 = vsel %vm356, %v357, %v355
      %v359 = vadd.f32 %v358, 1e-06
      %v360 = vrcp.pop %v359
      %v361 = vmul.f32 %v342, %v360
      %v362 = vld [vmem:[%s2] sm:$0x7]
      %v363 = vrot.slane %v361, 7
      %vm364 = vcmp.ge.s32.totalorder %v330, 1
      %v365 = vsel %vm364, 1, 0
      %vm366 = vcmp.eq.s32.totalorder %v365, 1
      %v367 = vsel %vm366, %v363, 0.0
      %v368 = vlaneseq
      %v369 = vshrl.u32 %v368, 7
      %v370 = vsub.s32 0, %v369
      %v371 = vrot.slane %v362, %v370
      %v372 = vmul.f32 %v367, %v371
      %v373 = vadd.f32 %v372, 0.0
      %v374 = vlaneseq
      %v375 = vshrl.u32 %v374, 7
      %v376 = vsub.s32 1, %v375
      %v377 = vrot.slane %v362, %v376
      %v378 = vmul.f32 %v361, %v377
      %v379 = vadd.f32 %v373, %v378
      %v380 = vrot.slane %v361, 1
      %vm381 = vcmp.lt.s32.totalorder %v330, 7
      %v382 = vsel %vm381, 1, 0
      %vm383 = vcmp.eq.s32.totalorder %v382, 1
      %v384 = vsel %vm383, %v380, 0.0
      %v385 = vlaneseq
      %v386 = vshrl.u32 %v385, 7
      %v387 = vsub.s32 2, %v386
      %v388 = vrot.slane %v362, %v387
      %v389 = vmul.f32 %v384, %v388
      %v390 = vadd.f32 %v379, %v389
      %v391 = vpack.c.bf16 %v390, %v390
      %v392 = vld [vmem:[%s3] sm:$0xff]
      %v393 = vld [vmem:[%s3 + $0x8] sm:$0xff]
      %v394 = vld [vmem:[%s3 + $0x10] sm:$0xff]
      %v395 = vld [vmem:[%s3 + $0x18] sm:$0xff]
      %v396 = vld [vmem:[%s3 + $0x20] sm:$0xff]
      %v397 = vld [vmem:[%s3 + $0x28] sm:$0xff]
      %v398 = vld [vmem:[%s3 + $0x30] sm:$0xff]
      %v399 = vld [vmem:[%s3 + $0x38] sm:$0xff]
      %v400 = vld [vmem:[%s3 + $0x40] sm:$0xff]
      %v401 = vld [vmem:[%s3 + $0x48] sm:$0xff]
      %v402 = vld [vmem:[%s3 + $0x50] sm:$0xff]
      %v403 = vld [vmem:[%s3 + $0x58] sm:$0xff]
      %v404 = vld [vmem:[%s3 + $0x60] sm:$0xff]
      %v405 = vld [vmem:[%s3 + $0x68] sm:$0xff]
      %v406 = vld [vmem:[%s3 + $0x70] sm:$0xff]
      %v407 = vld [vmem:[%s3 + $0x78] sm:$0xff]
      %v408 = vpack.c.bf16 %v393, %v392
      %v409 = vpack.c.bf16 %v395, %v394
      %v410 = vpack.c.bf16 %v397, %v396
      %v411 = vpack.c.bf16 %v399, %v398
      %v412 = vpack.c.bf16 %v401, %v400
      %v413 = vpack.c.bf16 %v403, %v402
      %v414 = vpack.c.bf16 %v405, %v404
      %v415 = vpack.c.bf16 %v407, %v406
      %416 = vmatprep.subr.bf16.mxu0 0
      %417 = vmatpush1.bf16.msra.mxu0 %v408
      %418 = vmatprep.subr.bf16.mxu0 0
      %419 = vmatpush1.bf16.msra.mxu0 %v409
      %420 = vmatprep.subr.bf16.mxu0 0
      %421 = vmatpush1.bf16.msra.mxu0 %v410
      %422 = vmatprep.subr.bf16.mxu0 0
      %423 = vmatpush1.bf16.msra.mxu0 %v411
      %424 = vmatprep.subr.bf16.mxu0 0
      %425 = vmatpush1.bf16.msra.mxu0 %v412
      %426 = vmatprep.subr.bf16.mxu0 0
      %427 = vmatpush1.bf16.msra.mxu0 %v413
      %428 = vmatprep.subr.bf16.mxu0 0
      %429 = vmatpush1.bf16.msra.mxu0 %v414
      %430 = vmatprep.subr.bf16.mxu0 0
      %431 = vmatpush1.bf16.msra.mxu0 %v415
      %432 = vmatprep.subr.bf16.mxu0 0
      %433 = vmatpush1.bf16.msra.mxu0 0
      %434 = vmatprep.subr.bf16.mxu0 0
      %435 = vmatpush1.bf16.msra.mxu0 0
      %436 = vmatprep.subr.bf16.mxu0 0
      %437 = vmatpush1.bf16.msra.mxu0 0
      %438 = vmatprep.subr.bf16.mxu0 0
      %439 = vmatpush1.bf16.msra.mxu0 0
      %440 = vmatprep.subr.bf16.mxu0 0
      %441 = vmatpush1.bf16.msra.mxu0 0
      %442 = vmatprep.subr.bf16.mxu0 0
      %443 = vmatpush1.bf16.msra.mxu0 0
      %444 = vmatprep.subr.bf16.mxu0 0
      %445 = vmatpush1.bf16.msra.mxu0 0
      %446 = vmatprep.subr.bf16.mxu0 0
      %447 = vmatpush1.bf16.msra.mxu0 0
      %448 = vmatprep.mubr.bf16.mxu0 0
      %449 = vmatmul.mubr.bf16.gmra.mrb[0].mxu0 %v391
      %v450 = vpop.f32.mrb[0].mxu0
      %v451 = vadd.f32 0.0, %v450
      %v452 = vpop.f32.mrb[0].mxu0
      %v453 = vpop.f32.mrb[0].mxu0
      %v454 = vpop.f32.mrb[0].mxu0
      %455 = vdwg.mxu0
      %v456 = vmax.f32 %v451, 0.0
      %v457 = vadd.f32 %v333, %v456
      %v458 = vrot.slane %v457, 4
      %v459 = vadd.f32 %v457, %v458
      %v460 = vrot.slane %v459, 2
      %v461 = vadd.f32 %v459, %v460
      %v462 = vrot.slane %v461, 1
      %v463 = vadd.f32 %v461, %v462
      %v464 = vmul.f32 %v463, %v340
      %v465 = vsub.f32 %v457, %v464
      %v466 = vmul.f32 %v465, %v465
      %v467 = vrot.slane %v466, 4
      %v468 = vadd.f32 %v466, %v467
      %v469 = vrot.slane %v468, 2
      %v470 = vadd.f32 %v468, %v469
      %v471 = vrot.slane %v470, 1
      %v472 = vadd.f32 %v470, %v471
      %v473 = vmul.f32 %v472, %v350
      %v474 = vrsqrt.pop %v473
      %v475 = vmul.f32 %v473, %v474
      %vm476 = vcmp.eq.f32.partialorder %v473, inf
      %v477 = vsel %vm476, %v473, %v475
      %vm478 = vcmp.eq.f32.partialorder %v473, 0.0
      %v479 = vand.u32 %v473, 2147483648
      %v480 = vsel %vm478, %v479, %v477
      %v481 = vadd.f32 %v480, 1e-06
      %v482 = vrcp.pop %v481
      %v483 = vmul.f32 %v465, %v482
      %s484 = scalar_lea.vmem %s2, 4
      %v485 = vld [vmem:[%s484] sm:$0x7]
      %v486 = vrot.slane %v483, 7
      %v487 = vsel %vm366, %v486, 0.0
      %v488 = vlaneseq
      %v489 = vshrl.u32 %v488, 7
      %v490 = vsub.s32 0, %v489
      %v491 = vrot.slane %v485, %v490
      %v492 = vmul.f32 %v487, %v491
      %v493 = vadd.f32 %v492, 0.0
      %v494 = vlaneseq
      %v495 = vshrl.u32 %v494, 7
      %v496 = vsub.s32 1, %v495
      %v497 = vrot.slane %v485, %v496
      %v498 = vmul.f32 %v483, %v497
      %v499 = vadd.f32 %v493, %v498
      %v500 = vrot.slane %v483, 1
      %v501 = vsel %vm383, %v500, 0.0
      %v502 = vlaneseq
      %v503 = vshrl.u32 %v502, 7
      %v504 = vsub.s32 2, %v503
      %v505 = vrot.slane %v485, %v504
      %v506 = vmul.f32 %v501, %v505
      %v507 = vadd.f32 %v499, %v506
      %v508 = vpack.c.bf16 %v507, %v507
      %s509 = scalar_lea.vmem %s3, 128
      %v510 = vld [vmem:[%s509] sm:$0xff]
      %v511 = vld [vmem:[%s509 + $0x8] sm:$0xff]
      %v512 = vld [vmem:[%s509 + $0x10] sm:$0xff]
      %v513 = vld [vmem:[%s509 + $0x18] sm:$0xff]
      %v514 = vld [vmem:[%s509 + $0x20] sm:$0xff]
      %v515 = vld [vmem:[%s509 + $0x28] sm:$0xff]
      %v516 = vld [vmem:[%s509 + $0x30] sm:$0xff]
      %v517 = vld [vmem:[%s509 + $0x38] sm:$0xff]
      %v518 = vld [vmem:[%s509 + $0x40] sm:$0xff]
      %v519 = vld [vmem:[%s509 + $0x48] sm:$0xff]
      %v520 = vld [vmem:[%s509 + $0x50] sm:$0xff]
      %v521 = vld [vmem:[%s509 + $0x58] sm:$0xff]
      %v522 = vld [vmem:[%s509 + $0x60] sm:$0xff]
      %v523 = vld [vmem:[%s509 + $0x68] sm:$0xff]
      %v524 = vld [vmem:[%s509 + $0x70] sm:$0xff]
      %v525 = vld [vmem:[%s509 + $0x78] sm:$0xff]
      %v526 = vpack.c.bf16 %v511, %v510
      %v527 = vpack.c.bf16 %v513, %v512
      %v528 = vpack.c.bf16 %v515, %v514
      %v529 = vpack.c.bf16 %v517, %v516
      %v530 = vpack.c.bf16 %v519, %v518
      %v531 = vpack.c.bf16 %v521, %v520
      %v532 = vpack.c.bf16 %v523, %v522
      %v533 = vpack.c.bf16 %v525, %v524
      %534 = vmatprep.subr.bf16.mxu0 0
      %535 = vmatpush1.bf16.msra.mxu0 %v526
      %536 = vmatprep.subr.bf16.mxu0 0
      %537 = vmatpush1.bf16.msra.mxu0 %v527
      %538 = vmatprep.subr.bf16.mxu0 0
      %539 = vmatpush1.bf16.msra.mxu0 %v528
      %540 = vmatprep.subr.bf16.mxu0 0
      %541 = vmatpush1.bf16.msra.mxu0 %v529
      %542 = vmatprep.subr.bf16.mxu0 0
      %543 = vmatpush1.bf16.msra.mxu0 %v530
      %544 = vmatprep.subr.bf16.mxu0 0
      %545 = vmatpush1.bf16.msra.mxu0 %v531
      %546 = vmatprep.subr.bf16.mxu0 0
      %547 = vmatpush1.bf16.msra.mxu0 %v532
      %548 = vmatprep.subr.bf16.mxu0 0
      %549 = vmatpush1.bf16.msra.mxu0 %v533
      %550 = vmatprep.subr.bf16.mxu0 0
      %551 = vmatpush1.bf16.msra.mxu0 0
      %552 = vmatprep.subr.bf16.mxu0 0
      %553 = vmatpush1.bf16.msra.mxu0 0
      %554 = vmatprep.subr.bf16.mxu0 0
      %555 = vmatpush1.bf16.msra.mxu0 0
      %556 = vmatprep.subr.bf16.mxu0 0
      %557 = vmatpush1.bf16.msra.mxu0 0
      %558 = vmatprep.subr.bf16.mxu0 0
      %559 = vmatpush1.bf16.msra.mxu0 0
      %560 = vmatprep.subr.bf16.mxu0 0
      %561 = vmatpush1.bf16.msra.mxu0 0
      %562 = vmatprep.subr.bf16.mxu0 0
      %563 = vmatpush1.bf16.msra.mxu0 0
      %564 = vmatprep.subr.bf16.mxu0 0
      %565 = vmatpush1.bf16.msra.mxu0 0
      %566 = vmatprep.mubr.bf16.mxu0 0
      %567 = vmatmul.mubr.bf16.gmra.mrb[0].mxu0 %v508
      %v568 = vpop.f32.mrb[0].mxu0
      %v569 = vadd.f32 0.0, %v568
      %v570 = vpop.f32.mrb[0].mxu0
      %v571 = vpop.f32.mrb[0].mxu0
      %v572 = vpop.f32.mrb[0].mxu0
      %573 = vdwg.mxu0
      %v574 = vmax.f32 %v569, 0.0
      %v575 = vadd.f32 %v457, %v574
      %v576 = vrot.slane %v575, 4
      %v577 = vadd.f32 %v575, %v576
      %v578 = vrot.slane %v577, 2
      %v579 = vadd.f32 %v577, %v578
      %v580 = vrot.slane %v579, 1
      %v581 = vadd.f32 %v579, %v580
      %v582 = vmul.f32 %v581, %v340
      %v583 = vsub.f32 %v575, %v582
      %v584 = vmul.f32 %v583, %v583
      %v585 = vrot.slane %v584, 4
      %v586 = vadd.f32 %v584, %v585
      %v587 = vrot.slane %v586, 2
      %v588 = vadd.f32 %v586, %v587
      %v589 = vrot.slane %v588, 1
      %v590 = vadd.f32 %v588, %v589
      %v591 = vmul.f32 %v590, %v350
      %v592 = vrsqrt.pop %v591
      %v593 = vmul.f32 %v591, %v592
      %vm594 = vcmp.eq.f32.partialorder %v591, inf
      %v595 = vsel %vm594, %v591, %v593
      %vm596 = vcmp.eq.f32.partialorder %v591, 0.0
      %v597 = vand.u32 %v591, 2147483648
      %v598 = vsel %vm596, %v597, %v595
      %v599 = vadd.f32 %v598, 1e-06
      %v600 = vrcp.pop %v599
      %v601 = vmul.f32 %v583, %v600
      %v602 = vpack.c.bf16 %v601, %v601
      %v603 = vld [vmem:[%s4] sm:$0xff]
      %v604 = vld [vmem:[%s4 + $0x8] sm:$0xff]
      %v605 = vld [vmem:[%s4 + $0x10] sm:$0xff]
      %v606 = vld [vmem:[%s4 + $0x18] sm:$0xff]
      %v607 = vld [vmem:[%s4 + $0x20] sm:$0xff]
      %v608 = vld [vmem:[%s4 + $0x28] sm:$0xff]
      %v609 = vld [vmem:[%s4 + $0x30] sm:$0xff]
      %v610 = vld [vmem:[%s4 + $0x38] sm:$0xff]
      %v611 = vld [vmem:[%s4 + $0x40] sm:$0xff]
      %v612 = vld [vmem:[%s4 + $0x48] sm:$0xff]
      %v613 = vld [vmem:[%s4 + $0x50] sm:$0xff]
      %v614 = vld [vmem:[%s4 + $0x58] sm:$0xff]
      %v615 = vld [vmem:[%s4 + $0x60] sm:$0xff]
      %v616 = vld [vmem:[%s4 + $0x68] sm:$0xff]
      %v617 = vld [vmem:[%s4 + $0x70] sm:$0xff]
      %v618 = vld [vmem:[%s4 + $0x78] sm:$0xff]
      %v619 = vld [vmem:[%s4 + $0x80] sm:$0xff]
      %v620 = vld [vmem:[%s4 + $0x88] sm:$0xff]
      %v621 = vld [vmem:[%s4 + $0x90] sm:$0xff]
      %v622 = vld [vmem:[%s4 + $0x98] sm:$0xff]
      %v623 = vld [vmem:[%s4 + $0xa0] sm:$0xff]
      %v624 = vld [vmem:[%s4 + $0xa8] sm:$0xff]
      %v625 = vld [vmem:[%s4 + $0xb0] sm:$0xff]
      %v626 = vld [vmem:[%s4 + $0xb8] sm:$0xff]
      %v627 = vld [vmem:[%s4 + $0xc0] sm:$0xff]
      %v628 = vld [vmem:[%s4 + $0xc8] sm:$0xff]
      %v629 = vld [vmem:[%s4 + $0xd0] sm:$0xff]
      %v630 = vld [vmem:[%s4 + $0xd8] sm:$0xff]
      %v631 = vld [vmem:[%s4 + $0xe0] sm:$0xff]
      %v632 = vld [vmem:[%s4 + $0xe8] sm:$0xff]
      %v633 = vld [vmem:[%s4 + $0xf0] sm:$0xff]
      %v634 = vld [vmem:[%s4 + $0xf8] sm:$0xff]
      %v635 = vld [vmem:[%s4 + $0x100] sm:$0xff]
      %v636 = vld [vmem:[%s4 + $0x108] sm:$0xff]
      %v637 = vld [vmem:[%s4 + $0x110] sm:$0xff]
      %v638 = vld [vmem:[%s4 + $0x118] sm:$0xff]
      %v639 = vld [vmem:[%s4 + $0x120] sm:$0xff]
      %v640 = vld [vmem:[%s4 + $0x128] sm:$0xff]
      %v641 = vld [vmem:[%s4 + $0x130] sm:$0xff]
      %v642 = vld [vmem:[%s4 + $0x138] sm:$0xff]
      %v643 = vld [vmem:[%s4 + $0x140] sm:$0xff]
      %v644 = vld [vmem:[%s4 + $0x148] sm:$0xff]
      %v645 = vld [vmem:[%s4 + $0x150] sm:$0xff]
      %v646 = vld [vmem:[%s4 + $0x158] sm:$0xff]
      %v647 = vld [vmem:[%s4 + $0x160] sm:$0xff]
      %v648 = vld [vmem:[%s4 + $0x168] sm:$0xff]
      %v649 = vld [vmem:[%s4 + $0x170] sm:$0xff]
      %v650 = vld [vmem:[%s4 + $0x178] sm:$0xff]
      %v651 = vpack.c.bf16 %v606, %v603
      %v652 = vpack.c.bf16 %v607, %v604
      %v653 = vpack.c.bf16 %v608, %v605
      %v654 = vpack.c.bf16 %v612, %v609
      %v655 = vpack.c.bf16 %v613, %v610
      %v656 = vpack.c.bf16 %v614, %v611
      %v657 = vpack.c.bf16 %v618, %v615
      %v658 = vpack.c.bf16 %v619, %v616
      %v659 = vpack.c.bf16 %v620, %v617
      %v660 = vpack.c.bf16 %v624, %v621
      %v661 = vpack.c.bf16 %v625, %v622
      %v662 = vpack.c.bf16 %v626, %v623
      %v663 = vpack.c.bf16 %v630, %v627
      %v664 = vpack.c.bf16 %v631, %v628
      %v665 = vpack.c.bf16 %v632, %v629
      %v666 = vpack.c.bf16 %v636, %v633
      %v667 = vpack.c.bf16 %v637, %v634
      %v668 = vpack.c.bf16 %v638, %v635
      %v669 = vpack.c.bf16 %v642, %v639
      %v670 = vpack.c.bf16 %v643, %v640
      %v671 = vpack.c.bf16 %v644, %v641
      %v672 = vpack.c.bf16 %v648, %v645
      %v673 = vpack.c.bf16 %v649, %v646
      %v674 = vpack.c.bf16 %v650, %v647
      %675 = vmatprep.subr.bf16.mxu0 %v652
      %676 = vmatpush1.bf16.msra.mxu0 %v651
      %677 = vmatprep.subr.bf16.mxu0 %v655
      %678 = vmatpush1.bf16.msra.mxu0 %v654
      %679 = vmatprep.subr.bf16.mxu0 %v658
      %680 = vmatpush1.bf16.msra.mxu0 %v657
      %681 = vmatprep.subr.bf16.mxu0 %v661
      %682 = vmatpush1.bf16.msra.mxu0 %v660
      %683 = vmatprep.subr.bf16.mxu0 %v664
      %684 = vmatpush1.bf16.msra.mxu0 %v663
      %685 = vmatprep.subr.bf16.mxu0 %v667
      %686 = vmatpush1.bf16.msra.mxu0 %v666
      %687 = vmatprep.subr.bf16.mxu0 %v670
      %688 = vmatpush1.bf16.msra.mxu0 %v669
      %689 = vmatprep.subr.bf16.mxu0 %v673
      %690 = vmatpush1.bf16.msra.mxu0 %v672
      %691 = vmatprep.subr.bf16.mxu0 0
      %692 = vmatpush1.bf16.msra.mxu0 0
      %693 = vmatprep.subr.bf16.mxu0 0
      %694 = vmatpush1.bf16.msra.mxu0 0
      %695 = vmatprep.subr.bf16.mxu0 0
      %696 = vmatpush1.bf16.msra.mxu0 0
      %697 = vmatprep.subr.bf16.mxu0 0
      %698 = vmatpush1.bf16.msra.mxu0 0
      %699 = vmatprep.subr.bf16.mxu0 0
      %700 = vmatpush1.bf16.msra.mxu0 0
      %701 = vmatprep.subr.bf16.mxu0 0
      %702 = vmatpush1.bf16.msra.mxu0 0
      %703 = vmatprep.subr.bf16.mxu0 0
      %704 = vmatpush1.bf16.msra.mxu0 0
      %705 = vmatprep.subr.bf16.mxu0 0
      %706 = vmatpush1.bf16.msra.mxu0 0
      %707 = vmatprep.mubr.bf16.mxu0 0
      %708 = vmatmul.mubr.bf16.gmra.mrb[0].mxu0 %v602
      %v709 = vpop.f32.mrb[0].mxu0
      %v710 = vadd.f32 0.0, %v709
      %v711 = vpop.f32.mrb[0].mxu0
      %v712 = vadd.f32 0.0, %v711
      %v713 = vpop.f32.mrb[0].mxu0
      %v714 = vpop.f32.mrb[0].mxu0
      %715 = vdwg.mxu0
      %716 = vmatprep.subr.bf16.mxu0 0
      %717 = vmatpush1.bf16.msra.mxu0 %v653
      %718 = vmatprep.subr.bf16.mxu0 0
      %719 = vmatpush1.bf16.msra.mxu0 %v656
      %720 = vmatprep.subr.bf16.mxu0 0
      %721 = vmatpush1.bf16.msra.mxu0 %v659
      %722 = vmatprep.subr.bf16.mxu0 0
      %723 = vmatpush1.bf16.msra.mxu0 %v662
      %724 = vmatprep.subr.bf16.mxu0 0
      %725 = vmatpush1.bf16.msra.mxu0 %v665
      %726 = vmatprep.subr.bf16.mxu0 0
      %727 = vmatpush1.bf16.msra.mxu0 %v668
      %728 = vmatprep.subr.bf16.mxu0 0
      %729 = vmatpush1.bf16.msra.mxu0 %v671
      %730 = vmatprep.subr.bf16.mxu0 0
      %731 = vmatpush1.bf16.msra.mxu0 %v674
      %732 = vmatprep.subr.bf16.mxu0 0
      %733 = vmatpush1.bf16.msra.mxu0 0
      %734 = vmatprep.subr.bf16.mxu0 0
      %735 = vmatpush1.bf16.msra.mxu0 0
      %736 = vmatprep.subr.bf16.mxu0 0
      %737 = vmatpush1.bf16.msra.mxu0 0
      %738 = vmatprep.subr.bf16.mxu0 0
      %739 = vmatpush1.bf16.msra.mxu0 0
      %740 = vmatprep.subr.bf16.mxu0 0
      %741 = vmatpush1.bf16.msra.mxu0 0
      %742 = vmatprep.subr.bf16.mxu0 0
      %743 = vmatpush1.bf16.msra.mxu0 0
      %744 = vmatprep.subr.bf16.mxu0 0
      %745 = vmatpush1.bf16.msra.mxu0 0
      %746 = vmatprep.subr.bf16.mxu0 0
      %747 = vmatpush1.bf16.msra.mxu0 0
      %748 = vmatprep.mubr.bf16.mxu0 0
      %749 = vmatmul.mubr.bf16.gmra.mrb[0].mxu0 %v602
      %v750 = vpop.f32.mrb[0].mxu0
      %v751 = vadd.f32 0.0, %v750
      %v752 = vpop.f32.mrb[0].mxu0
      %v753 = vpop.f32.mrb[0].mxu0
      %v754 = vpop.f32.mrb[0].mxu0
      %755 = vdwg.mxu0
      %v756 = vpack.c.bf16 %v710, %v710
      %v757 = vpack.c.bf16 %v712, %v712
      %vm758 = vcmask 130048
      %v760 = vsel %vm758, %v756, 0
      %v763 = vsel %vm758, %v757, 0
      %765 = vmatprep.subr.bf16.mxu0 0
      %766 = vmatpush1.bf16.xpose.msra.mxu0 %v763
      %767 = vmatprep.subr.bf16.mxu0 0
      %768 = vmatpush1.bf16.xpose.msra.mxu0 0
      %769 = vmatprep.subr.bf16.mxu0 0
      %770 = vmatpush1.bf16.xpose.msra.mxu0 0
      %771 = vmatprep.subr.bf16.mxu0 0
      %772 = vmatpush1.bf16.xpose.msra.mxu0 0
      %773 = vmatprep.subr.bf16.mxu0 0
      %774 = vmatpush1.bf16.xpose.msra.mxu0 0
      %775 = vmatprep.subr.bf16.mxu0 0
      %776 = vmatpush1.bf16.xpose.msra.mxu0 0
      %777 = vmatprep.subr.bf16.mxu0 0
      %778 = vmatpush1.bf16.xpose.msra.mxu0 0
      %779 = vmatprep.subr.bf16.mxu0 0
      %780 = vmatpush1.bf16.xpose.msra.mxu0 0
      %781 = vmatprep.subr.bf16.mxu0 0
      %782 = vmatpush1.bf16.xpose.msra.mxu0 0
      %783 = vmatprep.subr.bf16.mxu0 0
      %784 = vmatpush1.bf16.xpose.msra.mxu0 0
      %785 = vmatprep.subr.bf16.mxu0 0
      %786 = vmatpush1.bf16.xpose.msra.mxu0 0
      %787 = vmatprep.subr.bf16.mxu0 0
      %788 = vmatpush1.bf16.xpose.msra.mxu0 0
      %789 = vmatprep.subr.bf16.mxu0 0
      %790 = vmatpush1.bf16.xpose.msra.mxu0 0
      %791 = vmatprep.subr.bf16.mxu0 0
      %792 = vmatpush1.bf16.xpose.msra.mxu0 0
      %793 = vmatprep.subr.bf16.mxu0 0
      %794 = vmatpush1.bf16.xpose.msra.mxu0 0
      %795 = vmatprep.subr.bf16.mxu0 0
      %796 = vmatpush1.bf16.xpose.msra.mxu0 0
      %797 = vmatprep.mubr.bf16.mxu0 0
      %798 = vmatmul.mubr.bf16.gmra.mrb[0].mxu0 %v760
      %v799 = vpop.f32.mrb[0].mxu0
      %v800 = vadd.f32 0.0, %v799
      %v801 = vpop.f32.mrb[0].mxu0
      %v802 = vpop.f32.mrb[0].mxu0
      %v803 = vpop.f32.mrb[0].mxu0
      %804 = vdwg.mxu0
      %v805 = vmul.f32 %v800, 0.25
      %vm806 = vcmask 64512
      %v807 = vsel %vm806, %v805, -inf
      %808 = vmax.xlane.f32.xlu0 %v807
      %v809 = vpop.xlane.xlu0 %808
      %v810 = vsub.f32 %v805, %v809
      %v811 = vmul.f32 %v810, 1.442695
      %v812 = vpow.pop %v811
      %v813 = vsel %vm806, %v812, 0.0
      %814 = vadd.xlane.f32.xlu0 %v813
      %v815 = vpop.xlane.xlu0 %814
      %v816 = vrcp.pop %v815
      %v817 = vmul.f32 %v812, %v816
      %v818 = vpack.c.bf16 %v817, %v817
      %v819 = vpack.c.bf16 %v751, %v751
      %v821 = vsel %vm806, %v818, 0
      %vm823 = vcmask 1043456
      %v825 = vsel %vm823, %v819, 0
      %827 = vmatprep.subr.bf16.mxu0 0
      %828 = vmatpush1.bf16.msra.mxu0 %v825
      %829 = vmatprep.subr.bf16.mxu0 0
      %830 = vmatpush1.bf16.msra.mxu0 0
      %831 = vmatprep.subr.bf16.mxu0 0
      %832 = vmatpush1.bf16.msra.mxu0 0
      %833 = vmatprep.subr.bf16.mxu0 0
      %834 = vmatpush1.bf16.msra.mxu0 0
      %835 = vmatprep.subr.bf16.mxu0 0
      %836 = vmatpush1.bf16.msra.mxu0 0
      %837 = vmatprep.subr.bf16.mxu0 0
      %838 = vmatpush1.bf16.msra.mxu0 0
      %839 = vmatprep.subr.bf16.mxu0 0
      %840 = vmatpush1.bf16.msra.mxu0 0
      %841 = vmatprep.subr.bf16.mxu0 0
      %842 = vmatpush1.bf16.msra.mxu0 0
      %843 = vmatprep.subr.bf16.mxu0 0
      %844 = vmatpush1.bf16.msra.mxu0 0
      %845 = vmatprep.subr.bf16.mxu0 0
      %846 = vmatpush1.bf16.msra.mxu0 0
      %847 = vmatprep.subr.bf16.mxu0 0
      %848 = vmatpush1.bf16.msra.mxu0 0
      %849 = vmatprep.subr.bf16.mxu0 0
      %850 = vmatpush1.bf16.msra.mxu0 0
      %851 = vmatprep.subr.bf16.mxu0 0
      %852 = vmatpush1.bf16.msra.mxu0 0
      %853 = vmatprep.subr.bf16.mxu0 0
      %854 = vmatpush1.bf16.msra.mxu0 0
      %855 = vmatprep.subr.bf16.mxu0 0
      %856 = vmatpush1.bf16.msra.mxu0 0
      %857 = vmatprep.subr.bf16.mxu0 0
      %858 = vmatpush1.bf16.msra.mxu0 0
      %859 = vmatprep.mubr.bf16.mxu0 0
      %860 = vmatmul.mubr.bf16.gmra.mrb[0].mxu0 %v821
      %v861 = vpop.f32.mrb[0].mxu0
      %v862 = vadd.f32 0.0, %v861
      %v863 = vpop.f32.mrb[0].mxu0
      %v864 = vpop.f32.mrb[0].mxu0
      %v865 = vpop.f32.mrb[0].mxu0
      %866 = vdwg.mxu0
      %868 = vrot.lane.b32.xlu0 %v756, 112
      %v869 = vpop.permute.xlu0 %868
      %871 = vrot.lane.b32.xlu0 %v757, 112
      %v872 = vpop.permute.xlu0 %871
      %v874 = vsel %vm758, %v869, 0
      %v877 = vsel %vm758, %v872, 0
      %879 = vmatprep.subr.bf16.mxu0 0
      %880 = vmatpush1.bf16.xpose.msra.mxu0 %v877
      %881 = vmatprep.subr.bf16.mxu0 0
      %882 = vmatpush1.bf16.xpose.msra.mxu0 0
      %883 = vmatprep.subr.bf16.mxu0 0
      %884 = vmatpush1.bf16.xpose.msra.mxu0 0
      %885 = vmatprep.subr.bf16.mxu0 0
      %886 = vmatpush1.bf16.xpose.msra.mxu0 0
      %887 = vmatprep.subr.bf16.mxu0 0
      %888 = vmatpush1.bf16.xpose.msra.mxu0 0
      %889 = vmatprep.subr.bf16.mxu0 0
      %890 = vmatpush1.bf16.xpose.msra.mxu0 0
      %891 = vmatprep.subr.bf16.mxu0 0
      %892 = vmatpush1.bf16.xpose.msra.mxu0 0
      %893 = vmatprep.subr.bf16.mxu0 0
      %894 = vmatpush1.bf16.xpose.msra.mxu0 0
      %895 = vmatprep.subr.bf16.mxu0 0
      %896 = vmatpush1.bf16.xpose.msra.mxu0 0
      %897 = vmatprep.subr.bf16.mxu0 0
      %898 = vmatpush1.bf16.xpose.msra.mxu0 0
      %899 = vmatprep.subr.bf16.mxu0 0
      %900 = vmatpush1.bf16.xpose.msra.mxu0 0
      %901 = vmatprep.subr.bf16.mxu0 0
      %902 = vmatpush1.bf16.xpose.msra.mxu0 0
      %903 = vmatprep.subr.bf16.mxu0 0
      %904 = vmatpush1.bf16.xpose.msra.mxu0 0
      %905 = vmatprep.subr.bf16.mxu0 0
      %906 = vmatpush1.bf16.xpose.msra.mxu0 0
      %907 = vmatprep.subr.bf16.mxu0 0
      %908 = vmatpush1.bf16.xpose.msra.mxu0 0
      %909 = vmatprep.subr.bf16.mxu0 0
      %910 = vmatpush1.bf16.xpose.msra.mxu0 0
      %911 = vmatprep.mubr.bf16.mxu0 0
      %912 = vmatmul.mubr.bf16.gmra.mrb[0].mxu0 %v874
      %v913 = vpop.f32.mrb[0].mxu0
      %v914 = vadd.f32 0.0, %v913
      %v915 = vpop.f32.mrb[0].mxu0
      %v916 = vpop.f32.mrb[0].mxu0
      %v917 = vpop.f32.mrb[0].mxu0
      %918 = vdwg.mxu0
      %v919 = vmul.f32 %v914, 0.25
      %v920 = vsel %vm806, %v919, -inf
      %921 = vmax.xlane.f32.xlu0 %v920
      %v922 = vpop.xlane.xlu0 %921
      %v923 = vsub.f32 %v919, %v922
      %v924 = vmul.f32 %v923, 1.442695
      %v925 = vpow.pop %v924
      %v926 = vsel %vm806, %v925, 0.0
      %927 = vadd.xlane.f32.xlu0 %v926
      %v928 = vpop.xlane.xlu0 %927
      %v929 = vrcp.pop %v928
      %v930 = vmul.f32 %v925, %v929
      %v931 = vpack.c.bf16 %v930, %v930
      %933 = vrot.lane.b32.xlu0 %v819, 112
      %v934 = vpop.permute.xlu0 %933
      %v936 = vsel %vm806, %v931, 0
      %v939 = vsel %vm823, %v934, 0
      %941 = vmatprep.subr.bf16.mxu0 0
      %942 = vmatpush1.bf16.msra.mxu0 %v939
      %943 = vmatprep.subr.bf16.mxu0 0
      %944 = vmatpush1.bf16.msra.mxu0 0
      %945 = vmatprep.subr.bf16.mxu0 0
      %946 = vmatpush1.bf16.msra.mxu0 0
      %947 = vmatprep.subr.bf16.mxu0 0
      %948 = vmatpush1.bf16.msra.mxu0 0
      %949 = vmatprep.subr.bf16.mxu0 0
      %950 = vmatpush1.bf16.msra.mxu0 0
      %951 = vmatprep.subr.bf16.mxu0 0
      %952 = vmatpush1.bf16.msra.mxu0 0
      %953 = vmatprep.subr.bf16.mxu0 0
      %954 = vmatpush1.bf16.msra.mxu0 0
      %955 = vmatprep.subr.bf16.mxu0 0
      %956 = vmatpush1.bf16.msra.mxu0 0
      %957 = vmatprep.subr.bf16.mxu0 0
      %958 = vmatpush1.bf16.msra.mxu0 0
      %959 = vmatprep.subr.bf16.mxu0 0
      %960 = vmatpush1.bf16.msra.mxu0 0
      %961 = vmatprep.subr.bf16.mxu0 0
      %962 = vmatpush1.bf16.msra.mxu0 0
      %963 = vmatprep.subr.bf16.mxu0 0
      %964 = vmatpush1.bf16.msra.mxu0 0
      %965 = vmatprep.subr.bf16.mxu0 0
      %966 = vmatpush1.bf16.msra.mxu0 0
      %967 = vmatprep.subr.bf16.mxu0 0
      %968 = vmatpush1.bf16.msra.mxu0 0
      %969 = vmatprep.subr.bf16.mxu0 0
      %970 = vmatpush1.bf16.msra.mxu0 0
      %971 = vmatprep.subr.bf16.mxu0 0
      %972 = vmatpush1.bf16.msra.mxu0 0
      %973 = vmatprep.mubr.bf16.mxu0 0
      %974 = vmatmul.mubr.bf16.gmra.mrb[0].mxu0 %v936
      %v975 = vpop.f32.mrb[0].mxu0
      %v976 = vadd.f32 0.0, %v975
      %v977 = vpop.f32.mrb[0].mxu0
      %v978 = vpop.f32.mrb[0].mxu0
      %v979 = vpop.f32.mrb[0].mxu0
      %980 = vdwg.mxu0
      %981 = vrot.lane.b32.xlu0 %v756, 96
      %v982 = vpop.permute.xlu0 %981
      %983 = vrot.lane.b32.xlu0 %v757, 96
      %v984 = vpop.permute.xlu0 %983
      %v986 = vsel %vm758, %v982, 0
      %v989 = vsel %vm758, %v984, 0
      %991 = vmatprep.subr.bf16.mxu0 0
      %992 = vmatpush1.bf16.xpose.msra.mxu0 %v989
      %993 = vmatprep.subr.bf16.mxu0 0
      %994 = vmatpush1.bf16.xpose.msra.mxu0 0
      %995 = vmatprep.subr.bf16.mxu0 0
      %996 = vmatpush1.bf16.xpose.msra.mxu0 0
      %997 = vmatprep.subr.bf16.mxu0 0
      %998 = vmatpush1.bf16.xpose.msra.mxu0 0
      %999 = vmatprep.subr.bf16.mxu0 0
      %1000 = vmatpush1.bf16.xpose.msra.mxu0 0
      %1001 = vmatprep.subr.bf16.mxu0 0
      %1002 = vmatpush1.bf16.xpose.msra.mxu0 0
      %1003 = vmatprep.subr.bf16.mxu0 0
      %1004 = vmatpush1.bf16.xpose.msra.mxu0 0
      %1005 = vmatprep.subr.bf16.mxu0 0
      %1006 = vmatpush1.bf16.xpose.msra.mxu0 0
      %1007 = vmatprep.subr.bf16.mxu0 0
      %1008 = vmatpush1.bf16.xpose.msra.mxu0 0
      %1009 = vmatprep.subr.bf16.mxu0 0
      %1010 = vmatpush1.bf16.xpose.msra.mxu0 0
      %1011 = vmatprep.subr.bf16.mxu0 0
      %1012 = vmatpush1.bf16.xpose.msra.mxu0 0
      %1013 = vmatprep.subr.bf16.mxu0 0
      %1014 = vmatpush1.bf16.xpose.msra.mxu0 0
      %1015 = vmatprep.subr.bf16.mxu0 0
      %1016 = vmatpush1.bf16.xpose.msra.mxu0 0
      %1017 = vmatprep.subr.bf16.mxu0 0
      %1018 = vmatpush1.bf16.xpose.msra.mxu0 0
      %1019 = vmatprep.subr.bf16.mxu0 0
      %1020 = vmatpush1.bf16.xpose.msra.mxu0 0
      %1021 = vmatprep.subr.bf16.mxu0 0
      %1022 = vmatpush1.bf16.xpose.msra.mxu0 0
      %1023 = vmatprep.mubr.bf16.mxu0 0
      %1024 = vmatmul.mubr.bf16.gmra.mrb[0].mxu0 %v986
      %v1025 = vpop.f32.mrb[0].mxu0
      %v1026 = vadd.f32 0.0, %v1025
      %v1027 = vpop.f32.mrb[0].mxu0
      %v1028 = vpop.f32.mrb[0].mxu0
      %v1029 = vpop.f32.mrb[0].mxu0
      %1030 = vdwg.mxu0
      %v1031 = vmul.f32 %v1026, 0.25
      %v1032 = vsel %vm806, %v1031, -inf
      %1033 = vmax.xlane.f32.xlu0 %v1032
      %v1034 = vpop.xlane.xlu0 %1033
      %v1035 = vsub.f32 %v1031, %v1034
      %v1036 = vmul.f32 %v1035, 1.442695
      %v1037 = vpow.pop %v1036
      %v1038 = vsel %vm806, %v1037, 0.0
      %1039 = vadd.xlane.f32.xlu0 %v1038
      %v1040 = vpop.xlane.xlu0 %1039
      %v1041 = vrcp.pop %v1040
      %v1042 = vmul.f32 %v1037, %v1041
      %v1043 = vpack.c.bf16 %v1042, %v1042
      %1044 = vrot.lane.b32.xlu0 %v819, 96
      %v1045 = vpop.permute.xlu0 %1044
      %v1047 = vsel %vm806, %v1043, 0
      %v1050 = vsel %vm823, %v1045, 0
      %1052 = vmatprep.subr.bf16.mxu0 0
      %1053 = vmatpush1.bf16.msra.mxu0 %v1050
      %1054 = vmatprep.subr.bf16.mxu0 0
      %1055 = vmatpush1.bf16.msra.mxu0 0
      %1056 = vmatprep.subr.bf16.mxu0 0
      %1057 = vmatpush1.bf16.msra.mxu0 0
      %1058 = vmatprep.subr.bf16.mxu0 0
      %1059 = vmatpush1.bf16.msra.mxu0 0
      %1060 = vmatprep.subr.bf16.mxu0 0
      %1061 = vmatpush1.bf16.msra.mxu0 0
      %1062 = vmatprep.subr.bf16.mxu0 0
      %1063 = vmatpush1.bf16.msra.mxu0 0
      %1064 = vmatprep.subr.bf16.mxu0 0
      %1065 = vmatpush1.bf16.msra.mxu0 0
      %1066 = vmatprep.subr.bf16.mxu0 0
      %1067 = vmatpush1.bf16.msra.mxu0 0
      %1068 = vmatprep.subr.bf16.mxu0 0
      %1069 = vmatpush1.bf16.msra.mxu0 0
      %1070 = vmatprep.subr.bf16.mxu0 0
      %1071 = vmatpush1.bf16.msra.mxu0 0
      %1072 = vmatprep.subr.bf16.mxu0 0
      %1073 = vmatpush1.bf16.msra.mxu0 0
      %1074 = vmatprep.subr.bf16.mxu0 0
      %1075 = vmatpush1.bf16.msra.mxu0 0
      %1076 = vmatprep.subr.bf16.mxu0 0
      %1077 = vmatpush1.bf16.msra.mxu0 0
      %1078 = vmatprep.subr.bf16.mxu0 0
      %1079 = vmatpush1.bf16.msra.mxu0 0
      %1080 = vmatprep.subr.bf16.mxu0 0
      %1081 = vmatpush1.bf16.msra.mxu0 0
      %1082 = vmatprep.subr.bf16.mxu0 0
      %1083 = vmatpush1.bf16.msra.mxu0 0
      %1084 = vmatprep.mubr.bf16.mxu0 0
      %1085 = vmatmul.mubr.bf16.gmra.mrb[0].mxu0 %v1047
      %v1086 = vpop.f32.mrb[0].mxu0
      %v1087 = vadd.f32 0.0, %v1086
      %v1088 = vpop.f32.mrb[0].mxu0
      %v1089 = vpop.f32.mrb[0].mxu0
      %v1090 = vpop.f32.mrb[0].mxu0
      %1091 = vdwg.mxu0
      %1092 = vrot.lane.b32.xlu0 %v756, 80
      %v1093 = vpop.permute.xlu0 %1092
      %1094 = vrot.lane.b32.xlu0 %v757, 80
      %v1095 = vpop.permute.xlu0 %1094
      %v1097 = vsel %vm758, %v1093, 0
      %v1100 = vsel %vm758, %v1095, 0
      %1102 = vmatprep.subr.bf16.mxu0 0
      %1103 = vmatpush1.bf16.xpose.msra.mxu0 %v1100
      %1104 = vmatprep.subr.bf16.mxu0 0
      %1105 = vmatpush1.bf16.xpose.msra.mxu0 0
      %1106 = vmatprep.subr.bf16.mxu0 0
      %1107 = vmatpush1.bf16.xpose.msra.mxu0 0
      %1108 = vmatprep.subr.bf16.mxu0 0
      %1109 = vmatpush1.bf16.xpose.msra.mxu0 0
      %1110 = vmatprep.subr.bf16.mxu0 0
      %1111 = vmatpush1.bf16.xpose.msra.mxu0 0
      %1112 = vmatprep.subr.bf16.mxu0 0
      %1113 = vmatpush1.bf16.xpose.msra.mxu0 0
      %1114 = vmatprep.subr.bf16.mxu0 0
      %1115 = vmatpush1.bf16.xpose.msra.mxu0 0
      %1116 = vmatprep.subr.bf16.mxu0 0
      %1117 = vmatpush1.bf16.xpose.msra.mxu0 0
      %1118 = vmatprep.subr.bf16.mxu0 0
      %1119 = vmatpush1.bf16.xpose.msra.mxu0 0
      %1120 = vmatprep.subr.bf16.mxu0 0
      %1121 = vmatpush1.bf16.xpose.msra.mxu0 0
      %1122 = vmatprep.subr.bf16.mxu0 0
      %1123 = vmatpush1.bf16.xpose.msra.mxu0 0
      %1124 = vmatprep.subr.bf16.mxu0 0
      %1125 = vmatpush1.bf16.xpose.msra.mxu0 0
      %1126 = vmatprep.subr.bf16.mxu0 0
      %1127 = vmatpush1.bf16.xpose.msra.mxu0 0
      %1128 = vmatprep.subr.bf16.mxu0 0
      %1129 = vmatpush1.bf16.xpose.msra.mxu0 0
      %1130 = vmatprep.subr.bf16.mxu0 0
      %1131 = vmatpush1.bf16.xpose.msra.mxu0 0
      %1132 = vmatprep.subr.bf16.mxu0 0
      %1133 = vmatpush1.bf16.xpose.msra.mxu0 0
      %1134 = vmatprep.mubr.bf16.mxu0 0
      %1135 = vmatmul.mubr.bf16.gmra.mrb[0].mxu0 %v1097
      %v1136 = vpop.f32.mrb[0].mxu0
      %v1137 = vadd.f32 0.0, %v1136
      %v1138 = vpop.f32.mrb[0].mxu0
      %v1139 = vpop.f32.mrb[0].mxu0
      %v1140 = vpop.f32.mrb[0].mxu0
      %1141 = vdwg.mxu0
      %v1142 = vmul.f32 %v1137, 0.25
      %v1143 = vsel %vm806, %v1142, -inf
      %1144 = vmax.xlane.f32.xlu0 %v1143
      %v1145 = vpop.xlane.xlu0 %1144
      %v1146 = vsub.f32 %v1142, %v1145
      %v1147 = vmul.f32 %v1146, 1.442695
      %v1148 = vpow.pop %v1147
      %v1149 = vsel %vm806, %v1148, 0.0
      %1150 = vadd.xlane.f32.xlu0 %v1149
      %v1151 = vpop.xlane.xlu0 %1150
      %v1152 = vrcp.pop %v1151
      %v1153 = vmul.f32 %v1148, %v1152
      %v1154 = vpack.c.bf16 %v1153, %v1153
      %1155 = vrot.lane.b32.xlu0 %v819, 80
      %v1156 = vpop.permute.xlu0 %1155
      %v1158 = vsel %vm806, %v1154, 0
      %v1161 = vsel %vm823, %v1156, 0
      %1163 = vmatprep.subr.bf16.mxu0 0
      %1164 = vmatpush1.bf16.msra.mxu0 %v1161
      %1165 = vmatprep.subr.bf16.mxu0 0
      %1166 = vmatpush1.bf16.msra.mxu0 0
      %1167 = vmatprep.subr.bf16.mxu0 0
      %1168 = vmatpush1.bf16.msra.mxu0 0
      %1169 = vmatprep.subr.bf16.mxu0 0
      %1170 = vmatpush1.bf16.msra.mxu0 0
      %1171 = vmatprep.subr.bf16.mxu0 0
      %1172 = vmatpush1.bf16.msra.mxu0 0
      %1173 = vmatprep.subr.bf16.mxu0 0
      %1174 = vmatpush1.bf16.msra.mxu0 0
      %1175 = vmatprep.subr.bf16.mxu0 0
      %1176 = vmatpush1.bf16.msra.mxu0 0
      %1177 = vmatprep.subr.bf16.mxu0 0
      %1178 = vmatpush1.bf16.msra.mxu0 0
      %1179 = vmatprep.subr.bf16.mxu0 0
      %1180 = vmatpush1.bf16.msra.mxu0 0
      %1181 = vmatprep.subr.bf16.mxu0 0
      %1182 = vmatpush1.bf16.msra.mxu0 0
      %1183 = vmatprep.subr.bf16.mxu0 0
      %1184 = vmatpush1.bf16.msra.mxu0 0
      %1185 = vmatprep.subr.bf16.mxu0 0
      %1186 = vmatpush1.bf16.msra.mxu0 0
      %1187 = vmatprep.subr.bf16.mxu0 0
      %1188 = vmatpush1.bf16.msra.mxu0 0
      %1189 = vmatprep.subr.bf16.mxu0 0
      %1190 = vmatpush1.bf16.msra.mxu0 0
      %1191 = vmatprep.subr.bf16.mxu0 0
      %1192 = vmatpush1.bf16.msra.mxu0 0
      %1193 = vmatprep.subr.bf16.mxu0 0
      %1194 = vmatpush1.bf16.msra.mxu0 0
      %1195 = vmatprep.mubr.bf16.mxu0 0
      %1196 = vmatmul.mubr.bf16.gmra.mrb[0].mxu0 %v1158
      %v1197 = vpop.f32.mrb[0].mxu0
      %v1198 = vadd.f32 0.0, %v1197
      %v1199 = vpop.f32.mrb[0].mxu0
      %v1200 = vpop.f32.mrb[0].mxu0
      %v1201 = vpop.f32.mrb[0].mxu0
      %1202 = vdwg.mxu0
      %1203 = vrot.lane.b32.xlu0 %v756, 64
      %v1204 = vpop.permute.xlu0 %1203
      %1205 = vrot.lane.b32.xlu0 %v757, 64
      %v1206 = vpop.permute.xlu0 %1205
      %v1208 = vsel %vm758, %v1204, 0
      %v1211 = vsel %vm758, %v1206, 0
      %1213 = vmatprep.subr.bf16.mxu0 0
      %1214 = vmatpush1.bf16.xpose.msra.mxu0 %v1211
      %1215 = vmatprep.subr.bf16.mxu0 0
      %1216 = vmatpush1.bf16.xpose.msra.mxu0 0
      %1217 = vmatprep.subr.bf16.mxu0 0
      %1218 = vmatpush1.bf16.xpose.msra.mxu0 0
      %1219 = vmatprep.subr.bf16.mxu0 0
      %1220 = vmatpush1.bf16.xpose.msra.mxu0 0
      %1221 = vmatprep.subr.bf16.mxu0 0
      %1222 = vmatpush1.bf16.xpose.msra.mxu0 0
      %1223 = vmatprep.subr.bf16.mxu0 0
      %1224 = vmatpush1.bf16.xpose.msra.mxu0 0
      %1225 = vmatprep.subr.bf16.mxu0 0
      %1226 = vmatpush1.bf16.xpose.msra.mxu0 0
      %1227 = vmatprep.subr.bf16.mxu0 0
      %1228 = vmatpush1.bf16.xpose.msra.mxu0 0
      %1229 = vmatprep.subr.bf16.mxu0 0
      %1230 = vmatpush1.bf16.xpose.msra.mxu0 0
      %1231 = vmatprep.subr.bf16.mxu0 0
      %1232 = vmatpush1.bf16.xpose.msra.mxu0 0
      %1233 = vmatprep.subr.bf16.mxu0 0
      %1234 = vmatpush1.bf16.xpose.msra.mxu0 0
      %1235 = vmatprep.subr.bf16.mxu0 0
      %1236 = vmatpush1.bf16.xpose.msra.mxu0 0
      %1237 = vmatprep.subr.bf16.mxu0 0
      %1238 = vmatpush1.bf16.xpose.msra.mxu0 0
      %1239 = vmatprep.subr.bf16.mxu0 0
      %1240 = vmatpush1.bf16.xpose.msra.mxu0 0
      %1241 = vmatprep.subr.bf16.mxu0 0
      %1242 = vmatpush1.bf16.xpose.msra.mxu0 0
      %1243 = vmatprep.subr.bf16.mxu0 0
      %1244 = vmatpush1.bf16.xpose.msra.mxu0 0
      %1245 = vmatprep.mubr.bf16.mxu0 0
      %1246 = vmatmul.mubr.bf16.gmra.mrb[0].mxu0 %v1208
      %v1247 = vpop.f32.mrb[0].mxu0
      %v1248 = vadd.f32 0.0, %v1247
      %v1249 = vpop.f32.mrb[0].mxu0
      %v1250 = vpop.f32.mrb[0].mxu0
      %v1251 = vpop.f32.mrb[0].mxu0
      %1252 = vdwg.mxu0
      %v1253 = vmul.f32 %v1248, 0.25
      %v1254 = vsel %vm806, %v1253, -inf
      %1255 = vmax.xlane.f32.xlu0 %v1254
      %v1256 = vpop.xlane.xlu0 %1255
      %v1257 = vsub.f32 %v1253, %v1256
      %v1258 = vmul.f32 %v1257, 1.442695
      %v1259 = vpow.pop %v1258
      %v1260 = vsel %vm806, %v1259, 0.0
      %1261 = vadd.xlane.f32.xlu0 %v1260
      %v1262 = vpop.xlane.xlu0 %1261
      %v1263 = vrcp.pop %v1262
      %v1264 = vmul.f32 %v1259, %v1263
      %v1265 = vpack.c.bf16 %v1264, %v1264
      %1266 = vrot.lane.b32.xlu0 %v819, 64
      %v1267 = vpop.permute.xlu0 %1266
      %v1269 = vsel %vm806, %v1265, 0
      %v1272 = vsel %vm823, %v1267, 0
      %1274 = vmatprep.subr.bf16.mxu0 0
      %1275 = vmatpush1.bf16.msra.mxu0 %v1272
      %1276 = vmatprep.subr.bf16.mxu0 0
      %1277 = vmatpush1.bf16.msra.mxu0 0
      %1278 = vmatprep.subr.bf16.mxu0 0
      %1279 = vmatpush1.bf16.msra.mxu0 0
      %1280 = vmatprep.subr.bf16.mxu0 0
      %1281 = vmatpush1.bf16.msra.mxu0 0
      %1282 = vmatprep.subr.bf16.mxu0 0
      %1283 = vmatpush1.bf16.msra.mxu0 0
      %1284 = vmatprep.subr.bf16.mxu0 0
      %1285 = vmatpush1.bf16.msra.mxu0 0
      %1286 = vmatprep.subr.bf16.mxu0 0
      %1287 = vmatpush1.bf16.msra.mxu0 0
      %1288 = vmatprep.subr.bf16.mxu0 0
      %1289 = vmatpush1.bf16.msra.mxu0 0
      %1290 = vmatprep.subr.bf16.mxu0 0
      %1291 = vmatpush1.bf16.msra.mxu0 0
      %1292 = vmatprep.subr.bf16.mxu0 0
      %1293 = vmatpush1.bf16.msra.mxu0 0
      %1294 = vmatprep.subr.bf16.mxu0 0
      %1295 = vmatpush1.bf16.msra.mxu0 0
      %1296 = vmatprep.subr.bf16.mxu0 0
      %1297 = vmatpush1.bf16.msra.mxu0 0
      %1298 = vmatprep.subr.bf16.mxu0 0
      %1299 = vmatpush1.bf16.msra.mxu0 0
      %1300 = vmatprep.subr.bf16.mxu0 0
      %1301 = vmatpush1.bf16.msra.mxu0 0
      %1302 = vmatprep.subr.bf16.mxu0 0
      %1303 = vmatpush1.bf16.msra.mxu0 0
      %1304 = vmatprep.subr.bf16.mxu0 0
      %1305 = vmatpush1.bf16.msra.mxu0 0
      %1306 = vmatprep.mubr.bf16.mxu0 0
      %1307 = vmatmul.mubr.bf16.gmra.mrb[0].mxu0 %v1269
      %v1308 = vpop.f32.mrb[0].mxu0
      %v1309 = vadd.f32 0.0, %v1308
      %v1310 = vpop.f32.mrb[0].mxu0
      %v1311 = vpop.f32.mrb[0].mxu0
      %v1312 = vpop.f32.mrb[0].mxu0
      %1313 = vdwg.mxu0
      %1314 = vrot.lane.b32.xlu0 %v756, 48
      %v1315 = vpop.permute.xlu0 %1314
      %1316 = vrot.lane.b32.xlu0 %v757, 48
      %v1317 = vpop.permute.xlu0 %1316
      %v1319 = vsel %vm758, %v1315, 0
      %v1322 = vsel %vm758, %v1317, 0
      %1324 = vmatprep.subr.bf16.mxu0 0
      %1325 = vmatpush1.bf16.xpose.msra.mxu0 %v1322
      %1326 = vmatprep.subr.bf16.mxu0 0
      %1327 = vmatpush1.bf16.xpose.msra.mxu0 0
      %1328 = vmatprep.subr.bf16.mxu0 0
      %1329 = vmatpush1.bf16.xpose.msra.mxu0 0
      %1330 = vmatprep.subr.bf16.mxu0 0
      %1331 = vmatpush1.bf16.xpose.msra.mxu0 0
      %1332 = vmatprep.subr.bf16.mxu0 0
      %1333 = vmatpush1.bf16.xpose.msra.mxu0 0
      %1334 = vmatprep.subr.bf16.mxu0 0
      %1335 = vmatpush1.bf16.xpose.msra.mxu0 0
      %1336 = vmatprep.subr.bf16.mxu0 0
      %1337 = vmatpush1.bf16.xpose.msra.mxu0 0
      %1338 = vmatprep.subr.bf16.mxu0 0
      %1339 = vmatpush1.bf16.xpose.msra.mxu0 0
      %1340 = vmatprep.subr.bf16.mxu0 0
      %1341 = vmatpush1.bf16.xpose.msra.mxu0 0
      %1342 = vmatprep.subr.bf16.mxu0 0
      %1343 = vmatpush1.bf16.xpose.msra.mxu0 0
      %1344 = vmatprep.subr.bf16.mxu0 0
      %1345 = vmatpush1.bf16.xpose.msra.mxu0 0
      %1346 = vmatprep.subr.bf16.mxu0 0
      %1347 = vmatpush1.bf16.xpose.msra.mxu0 0
      %1348 = vmatprep.subr.bf16.mxu0 0
      %1349 = vmatpush1.bf16.xpose.msra.mxu0 0
      %1350 = vmatprep.subr.bf16.mxu0 0
      %1351 = vmatpush1.bf16.xpose.msra.mxu0 0
      %1352 = vmatprep.subr.bf16.mxu0 0
      %1353 = vmatpush1.bf16.xpose.msra.mxu0 0
      %1354 = vmatprep.subr.bf16.mxu0 0
      %1355 = vmatpush1.bf16.xpose.msra.mxu0 0
      %1356 = vmatprep.mubr.bf16.mxu0 0
      %1357 = vmatmul.mubr.bf16.gmra.mrb[0].mxu0 %v1319
      %v1358 = vpop.f32.mrb[0].mxu0
      %v1359 = vadd.f32 0.0, %v1358
      %v1360 = vpop.f32.mrb[0].mxu0
      %v1361 = vpop.f32.mrb[0].mxu0
      %v1362 = vpop.f32.mrb[0].mxu0
      %1363 = vdwg.mxu0
      %v1364 = vmul.f32 %v1359, 0.25
      %v1365 = vsel %vm806, %v1364, -inf
      %1366 = vmax.xlane.f32.xlu0 %v1365
      %v1367 = vpop.xlane.xlu0 %1366
      %v1368 = vsub.f32 %v1364, %v1367
      %v1369 = vmul.f32 %v1368, 1.442695
      %v1370 = vpow.pop %v1369
      %v1371 = vsel %vm806, %v1370, 0.0
      %1372 = vadd.xlane.f32.xlu0 %v1371
      %v1373 = vpop.xlane.xlu0 %1372
      %v1374 = vrcp.pop %v1373
      %v1375 = vmul.f32 %v1370, %v1374
      %v1376 = vpack.c.bf16 %v1375, %v1375
      %1377 = vrot.lane.b32.xlu0 %v819, 48
      %v1378 = vpop.permute.xlu0 %1377
      %v1380 = vsel %vm806, %v1376, 0
      %v1383 = vsel %vm823, %v1378, 0
      %1385 = vmatprep.subr.bf16.mxu0 0
      %1386 = vmatpush1.bf16.msra.mxu0 %v1383
      %1387 = vmatprep.subr.bf16.mxu0 0
      %1388 = vmatpush1.bf16.msra.mxu0 0
      %1389 = vmatprep.subr.bf16.mxu0 0
      %1390 = vmatpush1.bf16.msra.mxu0 0
      %1391 = vmatprep.subr.bf16.mxu0 0
      %1392 = vmatpush1.bf16.msra.mxu0 0
      %1393 = vmatprep.subr.bf16.mxu0 0
      %1394 = vmatpush1.bf16.msra.mxu0 0
      %1395 = vmatprep.subr.bf16.mxu0 0
      %1396 = vmatpush1.bf16.msra.mxu0 0
      %1397 = vmatprep.subr.bf16.mxu0 0
      %1398 = vmatpush1.bf16.msra.mxu0 0
      %1399 = vmatprep.subr.bf16.mxu0 0
      %1400 = vmatpush1.bf16.msra.mxu0 0
      %1401 = vmatprep.subr.bf16.mxu0 0
      %1402 = vmatpush1.bf16.msra.mxu0 0
      %1403 = vmatprep.subr.bf16.mxu0 0
      %1404 = vmatpush1.bf16.msra.mxu0 0
      %1405 = vmatprep.subr.bf16.mxu0 0
      %1406 = vmatpush1.bf16.msra.mxu0 0
      %1407 = vmatprep.subr.bf16.mxu0 0
      %1408 = vmatpush1.bf16.msra.mxu0 0
      %1409 = vmatprep.subr.bf16.mxu0 0
      %1410 = vmatpush1.bf16.msra.mxu0 0
      %1411 = vmatprep.subr.bf16.mxu0 0
      %1412 = vmatpush1.bf16.msra.mxu0 0
      %1413 = vmatprep.subr.bf16.mxu0 0
      %1414 = vmatpush1.bf16.msra.mxu0 0
      %1415 = vmatprep.subr.bf16.mxu0 0
      %1416 = vmatpush1.bf16.msra.mxu0 0
      %1417 = vmatprep.mubr.bf16.mxu0 0
      %1418 = vmatmul.mubr.bf16.gmra.mrb[0].mxu0 %v1380
      %v1419 = vpop.f32.mrb[0].mxu0
      %v1420 = vadd.f32 0.0, %v1419
      %v1421 = vpop.f32.mrb[0].mxu0
      %v1422 = vpop.f32.mrb[0].mxu0
      %v1423 = vpop.f32.mrb[0].mxu0
      %1424 = vdwg.mxu0
      %1425 = vrot.lane.b32.xlu0 %v756, 32
      %v1426 = vpop.permute.xlu0 %1425
      %1427 = vrot.lane.b32.xlu0 %v757, 32
      %v1428 = vpop.permute.xlu0 %1427
      %v1430 = vsel %vm758, %v1426, 0
      %v1433 = vsel %vm758, %v1428, 0
      %1435 = vmatprep.subr.bf16.mxu0 0
      %1436 = vmatpush1.bf16.xpose.msra.mxu0 %v1433
      %1437 = vmatprep.subr.bf16.mxu0 0
      %1438 = vmatpush1.bf16.xpose.msra.mxu0 0
      %1439 = vmatprep.subr.bf16.mxu0 0
      %1440 = vmatpush1.bf16.xpose.msra.mxu0 0
      %1441 = vmatprep.subr.bf16.mxu0 0
      %1442 = vmatpush1.bf16.xpose.msra.mxu0 0
      %1443 = vmatprep.subr.bf16.mxu0 0
      %1444 = vmatpush1.bf16.xpose.msra.mxu0 0
      %1445 = vmatprep.subr.bf16.mxu0 0
      %1446 = vmatpush1.bf16.xpose.msra.mxu0 0
      %1447 = vmatprep.subr.bf16.mxu0 0
      %1448 = vmatpush1.bf16.xpose.msra.mxu0 0
      %1449 = vmatprep.subr.bf16.mxu0 0
      %1450 = vmatpush1.bf16.xpose.msra.mxu0 0
      %1451 = vmatprep.subr.bf16.mxu0 0
      %1452 = vmatpush1.bf16.xpose.msra.mxu0 0
      %1453 = vmatprep.subr.bf16.mxu0 0
      %1454 = vmatpush1.bf16.xpose.msra.mxu0 0
      %1455 = vmatprep.subr.bf16.mxu0 0
      %1456 = vmatpush1.bf16.xpose.msra.mxu0 0
      %1457 = vmatprep.subr.bf16.mxu0 0
      %1458 = vmatpush1.bf16.xpose.msra.mxu0 0
      %1459 = vmatprep.subr.bf16.mxu0 0
      %1460 = vmatpush1.bf16.xpose.msra.mxu0 0
      %1461 = vmatprep.subr.bf16.mxu0 0
      %1462 = vmatpush1.bf16.xpose.msra.mxu0 0
      %1463 = vmatprep.subr.bf16.mxu0 0
      %1464 = vmatpush1.bf16.xpose.msra.mxu0 0
      %1465 = vmatprep.subr.bf16.mxu0 0
      %1466 = vmatpush1.bf16.xpose.msra.mxu0 0
      %1467 = vmatprep.mubr.bf16.mxu0 0
      %1468 = vmatmul.mubr.bf16.gmra.mrb[0].mxu0 %v1430
      %v1469 = vpop.f32.mrb[0].mxu0
      %v1470 = vadd.f32 0.0, %v1469
      %v1471 = vpop.f32.mrb[0].mxu0
      %v1472 = vpop.f32.mrb[0].mxu0
      %v1473 = vpop.f32.mrb[0].mxu0
      %1474 = vdwg.mxu0
      %v1475 = vmul.f32 %v1470, 0.25
      %v1476 = vsel %vm806, %v1475, -inf
      %1477 = vmax.xlane.f32.xlu0 %v1476
      %v1478 = vpop.xlane.xlu0 %1477
      %v1479 = vsub.f32 %v1475, %v1478
      %v1480 = vmul.f32 %v1479, 1.442695
      %v1481 = vpow.pop %v1480
      %v1482 = vsel %vm806, %v1481, 0.0
      %1483 = vadd.xlane.f32.xlu0 %v1482
      %v1484 = vpop.xlane.xlu0 %1483
      %v1485 = vrcp.pop %v1484
      %v1486 = vmul.f32 %v1481, %v1485
      %v1487 = vpack.c.bf16 %v1486, %v1486
      %1488 = vrot.lane.b32.xlu0 %v819, 32
      %v1489 = vpop.permute.xlu0 %1488
      %v1491 = vsel %vm806, %v1487, 0
      %v1494 = vsel %vm823, %v1489, 0
      %1496 = vmatprep.subr.bf16.mxu0 0
      %1497 = vmatpush1.bf16.msra.mxu0 %v1494
      %1498 = vmatprep.subr.bf16.mxu0 0
      %1499 = vmatpush1.bf16.msra.mxu0 0
      %1500 = vmatprep.subr.bf16.mxu0 0
      %1501 = vmatpush1.bf16.msra.mxu0 0
      %1502 = vmatprep.subr.bf16.mxu0 0
      %1503 = vmatpush1.bf16.msra.mxu0 0
      %1504 = vmatprep.subr.bf16.mxu0 0
      %1505 = vmatpush1.bf16.msra.mxu0 0
      %1506 = vmatprep.subr.bf16.mxu0 0
      %1507 = vmatpush1.bf16.msra.mxu0 0
      %1508 = vmatprep.subr.bf16.mxu0 0
      %1509 = vmatpush1.bf16.msra.mxu0 0
      %1510 = vmatprep.subr.bf16.mxu0 0
      %1511 = vmatpush1.bf16.msra.mxu0 0
      %1512 = vmatprep.subr.bf16.mxu0 0
      %1513 = vmatpush1.bf16.msra.mxu0 0
      %1514 = vmatprep.subr.bf16.mxu0 0
      %1515 = vmatpush1.bf16.msra.mxu0 0
      %1516 = vmatprep.subr.bf16.mxu0 0
      %1517 = vmatpush1.bf16.msra.mxu0 0
      %1518 = vmatprep.subr.bf16.mxu0 0
      %1519 = vmatpush1.bf16.msra.mxu0 0
      %1520 = vmatprep.subr.bf16.mxu0 0
      %1521 = vmatpush1.bf16.msra.mxu0 0
      %1522 = vmatprep.subr.bf16.mxu0 0
      %1523 = vmatpush1.bf16.msra.mxu0 0
      %1524 = vmatprep.subr.bf16.mxu0 0
      %1525 = vmatpush1.bf16.msra.mxu0 0
      %1526 = vmatprep.subr.bf16.mxu0 0
      %1527 = vmatpush1.bf16.msra.mxu0 0
      %1528 = vmatprep.mubr.bf16.mxu0 0
      %1529 = vmatmul.mubr.bf16.gmra.mrb[0].mxu0 %v1491
      %v1530 = vpop.f32.mrb[0].mxu0
      %v1531 = vadd.f32 0.0, %v1530
      %v1532 = vpop.f32.mrb[0].mxu0
      %v1533 = vpop.f32.mrb[0].mxu0
      %v1534 = vpop.f32.mrb[0].mxu0
      %1535 = vdwg.mxu0
      %1536 = vrot.lane.b32.xlu0 %v756, 16
      %v1537 = vpop.permute.xlu0 %1536
      %1538 = vrot.lane.b32.xlu0 %v757, 16
      %v1539 = vpop.permute.xlu0 %1538
      %v1541 = vsel %vm758, %v1537, 0
      %v1544 = vsel %vm758, %v1539, 0
      %1546 = vmatprep.subr.bf16.mxu0 0
      %1547 = vmatpush1.bf16.xpose.msra.mxu0 %v1544
      %1548 = vmatprep.subr.bf16.mxu0 0
      %1549 = vmatpush1.bf16.xpose.msra.mxu0 0
      %1550 = vmatprep.subr.bf16.mxu0 0
      %1551 = vmatpush1.bf16.xpose.msra.mxu0 0
      %1552 = vmatprep.subr.bf16.mxu0 0
      %1553 = vmatpush1.bf16.xpose.msra.mxu0 0
      %1554 = vmatprep.subr.bf16.mxu0 0
      %1555 = vmatpush1.bf16.xpose.msra.mxu0 0
      %1556 = vmatprep.subr.bf16.mxu0 0
      %1557 = vmatpush1.bf16.xpose.msra.mxu0 0
      %1558 = vmatprep.subr.bf16.mxu0 0
      %1559 = vmatpush1.bf16.xpose.msra.mxu0 0
      %1560 = vmatprep.subr.bf16.mxu0 0
      %1561 = vmatpush1.bf16.xpose.msra.mxu0 0
      %1562 = vmatprep.subr.bf16.mxu0 0
      %1563 = vmatpush1.bf16.xpose.msra.mxu0 0
      %1564 = vmatprep.subr.bf16.mxu0 0
      %1565 = vmatpush1.bf16.xpose.msra.mxu0 0
      %1566 = vmatprep.subr.bf16.mxu0 0
      %1567 = vmatpush1.bf16.xpose.msra.mxu0 0
      %1568 = vmatprep.subr.bf16.mxu0 0
      %1569 = vmatpush1.bf16.xpose.msra.mxu0 0
      %1570 = vmatprep.subr.bf16.mxu0 0
      %1571 = vmatpush1.bf16.xpose.msra.mxu0 0
      %1572 = vmatprep.subr.bf16.mxu0 0
      %1573 = vmatpush1.bf16.xpose.msra.mxu0 0
      %1574 = vmatprep.subr.bf16.mxu0 0
      %1575 = vmatpush1.bf16.xpose.msra.mxu0 0
      %1576 = vmatprep.subr.bf16.mxu0 0
      %1577 = vmatpush1.bf16.xpose.msra.mxu0 0
      %1578 = vmatprep.mubr.bf16.mxu0 0
      %1579 = vmatmul.mubr.bf16.gmra.mrb[0].mxu0 %v1541
      %v1580 = vpop.f32.mrb[0].mxu0
      %v1581 = vadd.f32 0.0, %v1580
      %v1582 = vpop.f32.mrb[0].mxu0
      %v1583 = vpop.f32.mrb[0].mxu0
      %v1584 = vpop.f32.mrb[0].mxu0
      %1585 = vdwg.mxu0
      %v1586 = vmul.f32 %v1581, 0.25
      %v1587 = vsel %vm806, %v1586, -inf
      %1588 = vmax.xlane.f32.xlu0 %v1587
      %v1589 = vpop.xlane.xlu0 %1588
      %v1590 = vsub.f32 %v1586, %v1589
      %v1591 = vmul.f32 %v1590, 1.442695
      %v1592 = vpow.pop %v1591
      %v1593 = vsel %vm806, %v1592, 0.0
      %1594 = vadd.xlane.f32.xlu0 %v1593
      %v1595 = vpop.xlane.xlu0 %1594
      %v1596 = vrcp.pop %v1595
      %v1597 = vmul.f32 %v1592, %v1596
      %v1598 = vpack.c.bf16 %v1597, %v1597
      %1599 = vrot.lane.b32.xlu0 %v819, 16
      %v1600 = vpop.permute.xlu0 %1599
      %v1602 = vsel %vm806, %v1598, 0
      %v1605 = vsel %vm823, %v1600, 0
      %1607 = vmatprep.subr.bf16.mxu0 0
      %1608 = vmatpush1.bf16.msra.mxu0 %v1605
      %1609 = vmatprep.subr.bf16.mxu0 0
      %1610 = vmatpush1.bf16.msra.mxu0 0
      %1611 = vmatprep.subr.bf16.mxu0 0
      %1612 = vmatpush1.bf16.msra.mxu0 0
      %1613 = vmatprep.subr.bf16.mxu0 0
      %1614 = vmatpush1.bf16.msra.mxu0 0
      %1615 = vmatprep.subr.bf16.mxu0 0
      %1616 = vmatpush1.bf16.msra.mxu0 0
      %1617 = vmatprep.subr.bf16.mxu0 0
      %1618 = vmatpush1.bf16.msra.mxu0 0
      %1619 = vmatprep.subr.bf16.mxu0 0
      %1620 = vmatpush1.bf16.msra.mxu0 0
      %1621 = vmatprep.subr.bf16.mxu0 0
      %1622 = vmatpush1.bf16.msra.mxu0 0
      %1623 = vmatprep.subr.bf16.mxu0 0
      %1624 = vmatpush1.bf16.msra.mxu0 0
      %1625 = vmatprep.subr.bf16.mxu0 0
      %1626 = vmatpush1.bf16.msra.mxu0 0
      %1627 = vmatprep.subr.bf16.mxu0 0
      %1628 = vmatpush1.bf16.msra.mxu0 0
      %1629 = vmatprep.subr.bf16.mxu0 0
      %1630 = vmatpush1.bf16.msra.mxu0 0
      %1631 = vmatprep.subr.bf16.mxu0 0
      %1632 = vmatpush1.bf16.msra.mxu0 0
      %1633 = vmatprep.subr.bf16.mxu0 0
      %1634 = vmatpush1.bf16.msra.mxu0 0
      %1635 = vmatprep.subr.bf16.mxu0 0
      %1636 = vmatpush1.bf16.msra.mxu0 0
      %1637 = vmatprep.subr.bf16.mxu0 0
      %1638 = vmatpush1.bf16.msra.mxu0 0
      %1639 = vmatprep.mubr.bf16.mxu0 0
      %1640 = vmatmul.mubr.bf16.gmra.mrb[0].mxu0 %v1602
      %v1641 = vpop.f32.mrb[0].mxu0
      %v1642 = vadd.f32 0.0, %v1641
      %v1643 = vpop.f32.mrb[0].mxu0
      %v1644 = vpop.f32.mrb[0].mxu0
      %v1645 = vpop.f32.mrb[0].mxu0
      %1646 = vdwg.mxu0
      %1648 = vrot.lane.b32.xlu0 %v976, 16
      %v1649 = vpop.permute.xlu0 %1648
      %1652 = vrot.lane.b32.xlu0 %v1087, 32
      %v1653 = vpop.permute.xlu0 %1652
      %1656 = vrot.lane.b32.xlu0 %v1198, 48
      %v1657 = vpop.permute.xlu0 %1656
      %1660 = vrot.lane.b32.xlu0 %v1309, 64
      %v1661 = vpop.permute.xlu0 %1660
      %1664 = vrot.lane.b32.xlu0 %v1420, 80
      %v1665 = vpop.permute.xlu0 %1664
      %1668 = vrot.lane.b32.xlu0 %v1531, 96
      %v1669 = vpop.permute.xlu0 %1668
      %1672 = vrot.lane.b32.xlu0 %v1642, 112
      %v1673 = vpop.permute.xlu0 %1672
      %v1675 = vsel %vm758, %v862, %v1649
      %vm1676 = vcmask 261120
      %v1677 = vsel %vm1676, %v1675, %v1653
      %vm1678 = vcmask 392192
      %v1679 = vsel %vm1678, %v1677, %v1657
      %vm1680 = vcmask 523264
      %v1681 = vsel %vm1680, %v1679, %v1661
      %vm1682 = vcmask 654336
      %v1683 = vsel %vm1682, %v1681, %v1665
      %vm1684 = vcmask 785408
      %v1685 = vsel %vm1684, %v1683, %v1669
      %vm1686 = vcmask 916480
      %v1687 = vsel %vm1686, %v1685, %v1673
      %v1688 = vpack.c.bf16 %v1687, %v1687
      %v1689 = vld [vmem:[%s5] sm:$0xff]
      %v1690 = vld [vmem:[%s5 + $0x8] sm:$0xff]
      %v1691 = vld [vmem:[%s5 + $0x10] sm:$0xff]
      %v1692 = vld [vmem:[%s5 + $0x18] sm:$0xff]
      %v1693 = vld [vmem:[%s5 + $0x20] sm:$0xff]
      %v1694 = vld [vmem:[%s5 + $0x28] sm:$0xff]
      %v1695 = vld [vmem:[%s5 + $0x30] sm:$0xff]
      %v1696 = vld [vmem:[%s5 + $0x38] sm:$0xff]
      %v1697 = vld [vmem:[%s5 + $0x40] sm:$0xff]
      %v1698 = vld [vmem:[%s5 + $0x48] sm:$0xff]
      %v1699 = vld [vmem:[%s5 + $0x50] sm:$0xff]
      %v1700 = vld [vmem:[%s5 + $0x58] sm:$0xff]
      %v1701 = vld [vmem:[%s5 + $0x60] sm:$0xff]
      %v1702 = vld [vmem:[%s5 + $0x68] sm:$0xff]
      %v1703 = vld [vmem:[%s5 + $0x70] sm:$0xff]
      %v1704 = vld [vmem:[%s5 + $0x78] sm:$0xff]
      %v1705 = vpack.c.bf16 %v1690, %v1689
      %v1706 = vpack.c.bf16 %v1692, %v1691
      %v1707 = vpack.c.bf16 %v1694, %v1693
      %v1708 = vpack.c.bf16 %v1696, %v1695
      %v1709 = vpack.c.bf16 %v1698, %v1697
      %v1710 = vpack.c.bf16 %v1700, %v1699
      %v1711 = vpack.c.bf16 %v1702, %v1701
      %v1712 = vpack.c.bf16 %v1704, %v1703
      %v1713 = vld [vmem:[%s6] sm:$0x1]
      %v1715 = vlaneseq
      %v1716 = vshrl.u32 %v1715, 7
      %v1717 = vsub.s32 0, %v1716
      %v1718 = vrot.slane %v1713, %v1717
      %1720 = vmatprep.subr.bf16.mxu0 0
      %1721 = vmatpush1.bf16.msra.mxu0 %v1705
      %1722 = vmatprep.subr.bf16.mxu0 0
      %1723 = vmatpush1.bf16.msra.mxu0 %v1706
      %1724 = vmatprep.subr.bf16.mxu0 0
      %1725 = vmatpush1.bf16.msra.mxu0 %v1707
      %1726 = vmatprep.subr.bf16.mxu0 0
      %1727 = vmatpush1.bf16.msra.mxu0 %v1708
      %1728 = vmatprep.subr.bf16.mxu0 0
      %1729 = vmatpush1.bf16.msra.mxu0 %v1709
      %1730 = vmatprep.subr.bf16.mxu0 0
      %1731 = vmatpush1.bf16.msra.mxu0 %v1710
      %1732 = vmatprep.subr.bf16.mxu0 0
      %1733 = vmatpush1.bf16.msra.mxu0 %v1711
      %1734 = vmatprep.subr.bf16.mxu0 0
      %1735 = vmatpush1.bf16.msra.mxu0 %v1712
      %1736 = vmatprep.subr.bf16.mxu0 0
      %1737 = vmatpush1.bf16.msra.mxu0 0
      %1738 = vmatprep.subr.bf16.mxu0 0
      %1739 = vmatpush1.bf16.msra.mxu0 0
      %1740 = vmatprep.subr.bf16.mxu0 0
      %1741 = vmatpush1.bf16.msra.mxu0 0
      %1742 = vmatprep.subr.bf16.mxu0 0
      %1743 = vmatpush1.bf16.msra.mxu0 0
      %1744 = vmatprep.subr.bf16.mxu0 0
      %1745 = vmatpush1.bf16.msra.mxu0 0
      %1746 = vmatprep.subr.bf16.mxu0 0
      %1747 = vmatpush1.bf16.msra.mxu0 0
      %1748 = vmatprep.subr.bf16.mxu0 0
      %1749 = vmatpush1.bf16.msra.mxu0 0
      %1750 = vmatprep.subr.bf16.mxu0 0
      %1751 = vmatpush1.bf16.msra.mxu0 0
      %1752 = vmatprep.mubr.bf16.mxu0 0
      %1753 = vmatmul.mubr.bf16.gmra.mrb[0].mxu0 %v1688
      %v1754 = vpop.f32.mrb[0].mxu0
      %v1755 = vadd.f32 %v1718, %v1754
      %v1756 = vpop.f32.mrb[0].mxu0
      %v1757 = vpop.f32.mrb[0].mxu0
      %v1758 = vpop.f32.mrb[0].mxu0
      %1759 = vdwg.mxu0
      %v1760 = vadd.f32 %v1755, %v601
      %1761 = vadd.xlane.f32.xlu0 %v1760
      %v1762 = vpop.xlane.xlu0 %1761
      %v1763 = vrcp.pop 128.0
      %v1764 = vmul.f32 %v1762, %v1763
      %v1765 = vsub.f32 %v1760, %v1764
      %v1766 = vmul.f32 %v1765, %v1765
      %1767 = vadd.xlane.f32.xlu0 %v1766
      %v1768 = vpop.xlane.xlu0 %1767
      %v1769 = vmul.f32 %v1768, %v1763
      %v1770 = vadd.f32 %v1769, 1e-05
      %v1771 = vrsqrt.pop %v1770
      %v1772 = vmul.f32 %v1765, %v1771
      %v1773 = vadd.f32 %v601, %v1772
      %1774 = vadd.xlane.f32.xlu0 %v1773
      %v1775 = vpop.xlane.xlu0 %1774
      %v1776 = vmul.f32 %v1775, %v1763
      %v1777 = vsub.f32 %v1773, %v1776
      %v1778 = vmul.f32 %v1777, %v1777
      %1779 = vadd.xlane.f32.xlu0 %v1778
      %v1780 = vpop.xlane.xlu0 %1779
      %v1781 = vrcp.pop 127.0
      %v1782 = vmul.f32 %v1780, %v1781
      %v1783 = vrsqrt.pop %v1782
      %v1784 = vmul.f32 %v1782, %v1783
      %vm1785 = vcmp.eq.f32.partialorder %v1782, inf
      %v1786 = vsel %vm1785, %v1782, %v1784
      %vm1787 = vcmp.eq.f32.partialorder %v1782, 0.0
      %v1788 = vand.u32 %v1782, 2147483648
      %v1789 = vsel %vm1787, %v1788, %v1786
      %v1790 = vadd.f32 %v1789, 1e-06
      %v1791 = vrcp.pop %v1790
      %v1792 = vmul.f32 %v1777, %v1791
      %v1793 = vpack.c.bf16 %v1792, %v1792
      %v1794 = vld [vmem:[%s7] sm:$0xff]
      %v1795 = vld [vmem:[%s7 + $0x8] sm:$0xff]
      %v1796 = vld [vmem:[%s7 + $0x10] sm:$0xff]
      %v1797 = vld [vmem:[%s7 + $0x18] sm:$0xff]
      %v1798 = vld [vmem:[%s7 + $0x20] sm:$0xff]
      %v1799 = vld [vmem:[%s7 + $0x28] sm:$0xff]
      %v1800 = vld [vmem:[%s7 + $0x30] sm:$0xff]
      %v1801 = vld [vmem:[%s7 + $0x38] sm:$0xff]
      %v1802 = vld [vmem:[%s7 + $0x40] sm:$0xff]
      %v1803 = vld [vmem:[%s7 + $0x48] sm:$0xff]
      %v1804 = vld [vmem:[%s7 + $0x50] sm:$0xff]
      %v1805 = vld [vmem:[%s7 + $0x58] sm:$0xff]
      %v1806 = vld [vmem:[%s7 + $0x60] sm:$0xff]
      %v1807 = vld [vmem:[%s7 + $0x68] sm:$0xff]
      %v1808 = vld [vmem:[%s7 + $0x70] sm:$0xff]
      %v1809 = vld [vmem:[%s7 + $0x78] sm:$0xff]
      %v1810 = vpack.c.bf16 %v1795, %v1794
      %v1811 = vpack.c.bf16 %v1797, %v1796
      %v1812 = vpack.c.bf16 %v1799, %v1798
      %v1813 = vpack.c.bf16 %v1801, %v1800
      %v1814 = vpack.c.bf16 %v1803, %v1802
      %v1815 = vpack.c.bf16 %v1805, %v1804
      %v1816 = vpack.c.bf16 %v1807, %v1806
      %v1817 = vpack.c.bf16 %v1809, %v1808
      %v1818 = vld [vmem:[%s8] sm:$0x1]
      %v1820 = vlaneseq
      %v1821 = vshrl.u32 %v1820, 7
      %v1822 = vsub.s32 0, %v1821
      %v1823 = vrot.slane %v1818, %v1822
      %1825 = vmatprep.subr.bf16.mxu0 0
      %1826 = vmatpush1.bf16.msra.mxu0 %v1810
      %1827 = vmatprep.subr.bf16.mxu0 0
      %1828 = vmatpush1.bf16.msra.mxu0 %v1811
      %1829 = vmatprep.subr.bf16.mxu0 0
      %1830 = vmatpush1.bf16.msra.mxu0 %v1812
      %1831 = vmatprep.subr.bf16.mxu0 0
      %1832 = vmatpush1.bf16.msra.mxu0 %v1813
      %1833 = vmatprep.subr.bf16.mxu0 0
      %1834 = vmatpush1.bf16.msra.mxu0 %v1814
      %1835 = vmatprep.subr.bf16.mxu0 0
      %1836 = vmatpush1.bf16.msra.mxu0 %v1815
      %1837 = vmatprep.subr.bf16.mxu0 0
      %1838 = vmatpush1.bf16.msra.mxu0 %v1816
      %1839 = vmatprep.subr.bf16.mxu0 0
      %1840 = vmatpush1.bf16.msra.mxu0 %v1817
      %1841 = vmatprep.subr.bf16.mxu0 0
      %1842 = vmatpush1.bf16.msra.mxu0 0
      %1843 = vmatprep.subr.bf16.mxu0 0
      %1844 = vmatpush1.bf16.msra.mxu0 0
      %1845 = vmatprep.subr.bf16.mxu0 0
      %1846 = vmatpush1.bf16.msra.mxu0 0
      %1847 = vmatprep.subr.bf16.mxu0 0
      %1848 = vmatpush1.bf16.msra.mxu0 0
      %1849 = vmatprep.subr.bf16.mxu0 0
      %1850 = vmatpush1.bf16.msra.mxu0 0
      %1851 = vmatprep.subr.bf16.mxu0 0
      %1852 = vmatpush1.bf16.msra.mxu0 0
      %1853 = vmatprep.subr.bf16.mxu0 0
      %1854 = vmatpush1.bf16.msra.mxu0 0
      %1855 = vmatprep.subr.bf16.mxu0 0
      %1856 = vmatpush1.bf16.msra.mxu0 0
      %1857 = vmatprep.mubr.bf16.mxu0 0
      %1858 = vmatmul.mubr.bf16.gmra.mrb[0].mxu0 %v1793
      %v1859 = vpop.f32.mrb[0].mxu0
      %v1860 = vadd.f32 %v1823, %v1859
      %v1861 = vpop.f32.mrb[0].mxu0
      %v1862 = vpop.f32.mrb[0].mxu0
      %v1863 = vpop.f32.mrb[0].mxu0
      %1864 = vdwg.mxu0
      %v1865 = vmax.f32 %v1860, 0.0
      %v1866 = vadd.f32 %v1773, %v1865
      %1867 = vst [vmem:[%s327] sm:$0xff] %v1866
      %p1868 = scmp.lt.s32.totalorder %s20, 1
      %s1869 = scalar_select %p1868, %s20, 1
      %s1870 = smul.addr %s1869, 8
      %s1871 = scalar_lea.vmem %s9, %s1870
      // Predicated region
      $region57: #{qanet_tail_forward.10} parent=55 // pred_check
        %p1872 = pneg %p232
      $region58: #{qanet_tail_forward.10} parent=55 // pred_check_branch
        %1874 = sbr.rel (%p1872) target = $region60
      $region59: #{qanet_tail_forward.10} parent=55 // pred_region
        _
      $region60: #{qanet_tail_forward.10} parent=55 // pred_fallthru
        _
    $region56: #{qanet_tail_forward.10} parent=5 // pred_fallthru
      _
    %p1875 = scmp.le.s32.totalorder 2, %s15
    // Predicated region
    $region61: #{qanet_tail_forward.10} parent=5 // pred_check
      %p1876 = pneg %p1875
    $region62: #{qanet_tail_forward.10} parent=5 // pred_check_branch
      %1878 = sbr.rel (%p1876) target = $region64
    $region63: #{qanet_tail_forward.10} parent=5 // pred_region
      %s1879 = ssub.s32 %s15, 2
      // Predicated region
      $region65: #{qanet_tail_forward.10} parent=63 // pred_check
        %p1880 = pneg %p238
      $region66: #{qanet_tail_forward.10} parent=63 // pred_check_branch
        %1882 = sbr.rel (%p1880) target = $region68
      $region67: #{qanet_tail_forward.10} parent=63 // pred_region
        %p1883 = scmp.lt.s32.totalorder %s21, 1
        %s1884 = scalar_select %p1883, %s21, 1
        %s1885 = smul.addr %s1884, 8
        %s1886 = scalar_lea.vmem %s9, %s1885
      $region68: #{qanet_tail_forward.10} parent=63 // pred_fallthru
        _
    $region64: #{qanet_tail_forward.10} parent=5 // pred_fallthru
      _
  $region6: #{qanet_tail_forward.10} parent=0 // loop_footer
    %s19 = sadd.s32 1, %s15
  $region7: #{qanet_tail_forward.10} parent=0 // loop_footer_branch
    %14 = sbr.rel target = $region3
  $region8: #{qanet_tail_forward.10} parent=0 // loop_exit
    _

// kernel: qanet_tail_forward.11
$region0: #{qanet_tail_forward.11}
  #allocation0 [shape = 'u32[]', space=smem, size = 0x4, offset = 0x4, fixed_abs, tag = 'smem constant byte address 0x4 - core index']
  #allocation1 [shape = 'u32[144,128]{1,0:T(1,128)}', space=vmem, size = 0x12000, scoped, tag = 'internal scratch']
  %s0 = inlined_call_operand.vmem [shape: f32[2,16,128], index: 0, kind: input, shape index: {}]
  %s1 = inlined_call_operand.vmem [shape: f32[2,8,128], index: 1, kind: input, shape index: {}]
  %s2 = inlined_call_operand.vmem [shape: f32[3,128], index: 2, kind: input, shape index: {}]
  %s3 = inlined_call_operand.vmem [shape: f32[2,16,512], index: 3, kind: output, shape index: {}]
  %s4 = sld [smem:[#allocation0]]
  $region45: #{qanet_tail_forward.11} parent=0
    _
  %s6 = ssub.s32 1, %s4
  %s7 = scalar_select 0, %s6, %s4
  loop: start=0, step=1, limit=4
  $region2: #{qanet_tail_forward.11} parent=0 // loop_pre_header
    _
  $region3: #{qanet_tail_forward.11} parent=0 // loop_header
    %s9 = sphi 0, %s13
    %p10 = scmp.ge.s32.totalorder %s9, 4
    %s19 = sphi 0, %s21
    %s22 = sphi 0, %s19
    %s23 = sphi 0, %s22
    %s39 = sphi 0, %s23
    %s45 = sphi 0, %s47
    %s48 = sphi 0, %s45
    %s49 = sphi 0, %s48
    %s65 = sphi 0, %s49
    %s69 = sphi 0, %s69
    %s71 = sphi 0, %s69
    %s72 = sphi 0, %s71
    %s86 = sphi 0, %s72
    %s92 = sphi 0, %s94
    %s95 = sphi 0, %s92
    %s96 = sphi 0, %s95
    %s112 = sphi 0, %s96
  $region4: #{qanet_tail_forward.11} parent=0 // loop_header_branch
    %12 = sbr.rel (%p10) target = $region8
  $region5: #{qanet_tail_forward.11} parent=0 // loop_body
    %s14 = ssub.s32 %s9, 1
    %s15 = ssub.s32 %s9, 2
    %s16 = sadd.s32 %s9, 1
    %s17 = ssub.s32 %s9, %s16
    %p18 = scmp.eq.s32.totalorder %s17, 0
    %s20 = sadd.s32 %s19, 1
    %s21 = scalar_select %p18, %s19, %s20
    %p24 = pneg %p18
    %p25 = scmp.eq.s32.totalorder %s9, 1
    %p26 = por %p24, %p25
    %p27 = scmp.ne.s32.totalorder %s19, %s22
    %p28 = scmp.eq.s32.totalorder %s9, 0
    %p29 = por %p27, %p28
    %p30 = scmp.ne.s32.totalorder %s19, %s22
    %p31 = scmp.eq.s32.totalorder %s14, 1
    %p32 = por %p30, %p31
    %p33 = scmp.ne.s32.totalorder %s22, %s23
    %p34 = scmp.eq.s32.totalorder %s14, 0
    %p35 = por %p33, %p34
    %p36 = scmp.ne.s32.totalorder %s22, %s23
    %p37 = scmp.eq.s32.totalorder %s15, 1
    %p38 = por %p36, %p37
    %p40 = scmp.ne.s32.totalorder %s23, %s39
    %p41 = scmp.eq.s32.totalorder %s15, 0
    %p42 = por %p40, %p41
    %s43 = ssub.s32 %s9, %s16
    %p44 = scmp.eq.s32.totalorder %s43, 0
    %s46 = sadd.s32 %s45, 1
    %s47 = scalar_select %p44, %s45, %s46
    %p50 = pneg %p44
    %p51 = scmp.eq.s32.totalorder %s9, 1
    %p52 = por %p50, %p51
    %p53 = scmp.ne.s32.totalorder %s45, %s48
    %p54 = scmp.eq.s32.totalorder %s9, 0
    %p55 = por %p53, %p54
    %p56 = scmp.ne.s32.totalorder %s45, %s48
    %p57 = scmp.eq.s32.totalorder %s14, 1
    %p58 = por %p56, %p57
    %p59 = scmp.ne.s32.totalorder %s48, %s49
    %p60 = scmp.eq.s32.totalorder %s14, 0
    %p61 = por %p59, %p60
    %p62 = scmp.ne.s32.totalorder %s48, %s49
    %p63 = scmp.eq.s32.totalorder %s15, 1
    %p64 = por %p62, %p63
    %p66 = scmp.ne.s32.totalorder %s49, %s65
    %p67 = scmp.eq.s32.totalorder %s15, 0
    %p68 = por %p66, %p67
    %s70 = sadd.s32 %s69, 1
    %p73 = scmp.eq.s32.totalorder %s9, 1
    %p74 = scmp.ne.s32.totalorder %s69, %s71
    %p75 = scmp.eq.s32.totalorder %s9, 0
    %p76 = por %p74, %p75
    %p77 = scmp.ne.s32.totalorder %s69, %s71
    %p78 = scmp.eq.s32.totalorder %s14, 1
    %p79 = por %p77, %p78
    %p80 = scmp.ne.s32.totalorder %s71, %s72
    %p81 = scmp.eq.s32.totalorder %s14, 0
    %p82 = por %p80, %p81
    %p83 = scmp.ne.s32.totalorder %s71, %s72
    %p84 = scmp.eq.s32.totalorder %s15, 1
    %p85 = por %p83, %p84
    %p87 = scmp.ne.s32.totalorder %s72, %s86
    %p88 = scmp.eq.s32.totalorder %s15, 0
    %p89 = por %p87, %p88
    %s90 = ssub.s32 %s9, %s16
    %p91 = scmp.eq.s32.totalorder %s90, 0
    %s93 = sadd.s32 %s92, 1
    %s94 = scalar_select %p91, %s92, %s93
    %p97 = pneg %p91
    %p98 = scmp.eq.s32.totalorder %s9, 1
    %p99 = por %p97, %p98
    %p100 = scmp.ne.s32.totalorder %s92, %s95
    %p101 = scmp.eq.s32.totalorder %s9, 0
    %p102 = por %p100, %p101
    %p103 = scmp.ne.s32.totalorder %s92, %s95
    %p104 = scmp.eq.s32.totalorder %s14, 1
    %p105 = por %p103, %p104
    %p106 = scmp.ne.s32.totalorder %s95, %s96
    %p107 = scmp.eq.s32.totalorder %s14, 0
    %p108 = por %p106, %p107
    %p109 = scmp.ne.s32.totalorder %s95, %s96
    %p110 = scmp.eq.s32.totalorder %s15, 1
    %p111 = por %p109, %p110
    %p113 = scmp.ne.s32.totalorder %s96, %s112
    %p114 = scmp.eq.s32.totalorder %s15, 0
    %p115 = por %p113, %p114
    %p116 = scmp.le.s32.totalorder 1, %s9
    %p117 = scmp.lt.s32.totalorder %s9, 3
    %p118 = pnand %p116, %p117
    %p119 = pneg %p118
    // Predicated region
    $region9: #{qanet_tail_forward.11} parent=5 // pred_check
      _
    $region10: #{qanet_tail_forward.11} parent=5 // pred_check_branch
      %121 = sbr.rel (%p118) target = $region12
    $region11: #{qanet_tail_forward.11} parent=5 // pred_region
      %s122 = ssub.s32 %s9, 1
      // Predicated region
      $region13: #{qanet_tail_forward.11} parent=11 // pred_check
        %p123 = pneg %p82
      $region14: #{qanet_tail_forward.11} parent=11 // pred_check_branch
        %125 = sbr.rel (%p123) target = $region16
      $region15: #{qanet_tail_forward.11} parent=11 // pred_region
        _
      $region16: #{qanet_tail_forward.11} parent=11 // pred_fallthru
        _
    $region12: #{qanet_tail_forward.11} parent=5 // pred_fallthru
      _
    %p126 = scmp.lt.s32.totalorder %s9, 2
    // Predicated region
    $region17: #{qanet_tail_forward.11} parent=5 // pred_check
      %p127 = pneg %p126
    $region18: #{qanet_tail_forward.11} parent=5 // pred_check_branch
      %129 = sbr.rel (%p127) target = $region20
    $region19: #{qanet_tail_forward.11} parent=5 // pred_region
      // Predicated region
      $region21: #{qanet_tail_forward.11} parent=19 // pred_check
        %p130 = pneg %p29
      $region22: #{qanet_tail_forward.11} parent=19 // pred_check_branch
        %132 = sbr.rel (%p130) target = $region24
      $region23: #{qanet_tail_forward.11} parent=19 // pred_region
        %p133 = scmp.lt.s32.totalorder %s9, 1
        %s134 = scalar_select %p133, %s9, 1
        %s135 = smul.addr %s134, 2
        %s136 = smul.addr %s135, 8
        %s137 = scalar_lea.vmem %s0, %s136
      $region24: #{qanet_tail_forward.11} parent=19 // pred_fallthru
        _
      // Predicated region
      $region25: #{qanet_tail_forward.11} parent=19 // pred_check
        %p138 = pneg %p55
      $region26: #{qanet_tail_forward.11} parent=19 // pred_check_branch
        %140 = sbr.rel (%p138) target = $region28
      $region27: #{qanet_tail_forward.11} parent=19 // pred_region
        %p141 = scmp.lt.s32.totalorder %s9, 1
        %s142 = scalar_select %p141, %s9, 1
        %s143 = smul.addr %s142, 8
        %s144 = scalar_lea.vmem %s1, %s143
      $region28: #{qanet_tail_forward.11} parent=19 // pred_fallthru
        _
    $region20: #{qanet_tail_forward.11} parent=5 // pred_fallthru
      _
    %p145 = scmp.le.s32.totalorder 1, %s9
    %p146 = scmp.lt.s32.totalorder %s9, 3
    %p147 = pnand %p145, %p146
    %p148 = pneg %p147
    // Predicated region
    $region29: #{qanet_tail_forward.11} parent=5 // pred_check
      _
    $region30: #{qanet_tail_forward.11} parent=5 // pred_check_branch
      %150 = sbr.rel (%p147) target = $region32
    $region31: #{qanet_tail_forward.11} parent=5 // pred_region
      %s151 = ssub.s32 %s9, 1
      %p152 = scmp.lt.s32.totalorder %s14, 1
      %s153 = scalar_select %p152, %s14, 1
      %s154 = smul.addr %s153, 2
      %s155 = smul.addr %s154, 8
      %s156 = scalar_lea.vmem %s0, %s155
      %p157 = pneg %p35
      %p158 = pneg %p32
      %p159 = scmp.lt.s32.totalorder %s14, 1
      %s160 = scalar_select %p159, %s14, 1
      %s161 = smul.addr %s160, 8
      %s162 = scalar_lea.vmem %s1, %s161
      %p163 = pneg %p61
      %p164 = pneg %p58
      %p165 = pneg %p82
      %p166 = pneg %p79
      %p167 = pneg %p108
      %p168 = pneg %p105
      %p169 = scmp.lt.s32.totalorder %s14, 1
      %s170 = scalar_select %p169, %s14, 1
      %s171 = smul.addr %s170, 8
      %s172 = smul.addr %s171, 8
      %s173 = scalar_lea.vmem %s3, %s172
      %p174 = scmp.lt.s32.totalorder %s14, 1
      %s175 = scalar_select %p174, %s14, 1
      %s176 = smul.addr %s175, 2
      %s177 = smul.addr %s176, 8
      %s178 = scalar_lea.vmem %s0, %s177
      %p179 = scmp.lt.s32.totalorder %s14, 1
      %s180 = scalar_select %p179, %s14, 1
      %s181 = smul.addr %s180, 8
      %s182 = scalar_lea.vmem %s1, %s181
      %p183 = scmp.lt.s32.totalorder %s14, 1
      %s184 = scalar_select %p183, %s14, 1
      %s185 = smul.addr %s184, 8
      %s186 = smul.addr %s185, 8
      %s187 = scalar_lea.vmem %s3, %s186
      %v189 = vld [vmem:[%s178] sm:$0xff]
      %v190 = vld [vmem:[%s178 + $0x8] sm:$0xff]
      %v191 = vld [vmem:[%s182] sm:$0xff]
      %v192 = vld [vmem:[%s2] sm:$0x1]
      %v193 = vlaneseq
      %v194 = vshrl.u32 %v193, 7
      %v195 = vsub.s32 0, %v194
      %v196 = vrot.slane %v192, %v195
      %v197 = vmul.f32 %v189, %v196
      %v198 = vmul.f32 %v190, %v196
      %199 = vadd.xlane.f32.xlu0 %v197
      %v200 = vpop.xlane.xlu0 %199
      %201 = vadd.xlane.f32.xlu0 %v198
      %v202 = vpop.xlane.xlu0 %201
      %v203 = vld [vmem:[%s2 + $0x2] sm:$0x1]
      %v204 = vlaneseq
      %v205 = vshrl.u32 %v204, 7
      %v206 = vsub.s32 0, %v205
      %v207 = vrot.slane %v203, %v206
      %v208 = vmul.f32 %v189, %v207
      %v209 = vmul.f32 %v190, %v207
      %v210 = vld [vmem:[%s2 + $0x1] sm:$0x1]
      %v211 = vlaneseq
      %v212 = vshrl.u32 %v211, 7
      %v213 = vsub.s32 0, %v212
      %v214 = vrot.slane %v210, %v213
      %v215 = vadd.f32 %v208, %v214
      %v216 = vadd.f32 %v209, %v214
      %v217 = vpack.c.bf16 %v216, %v215
      %v218 = vpack.c.bf16 %v191, %v191
      %219 = vmatprep.subr.bf16.mxu0 0
      %220 = vmatpush1.bf16.xpose.msra.mxu0 %v218
      %221 = vmatprep.subr.bf16.mxu0 0
      %222 = vmatpush1.bf16.xpose.msra.mxu0 0
      %223 = vmatprep.subr.bf16.mxu0 0
      %224 = vmatpush1.bf16.xpose.msra.mxu0 0
      %225 = vmatprep.subr.bf16.mxu0 0
      %226 = vmatpush1.bf16.xpose.msra.mxu0 0
      %227 = vmatprep.subr.bf16.mxu0 0
      %228 = vmatpush1.bf16.xpose.msra.mxu0 0
      %229 = vmatprep.subr.bf16.mxu0 0
      %230 = vmatpush1.bf16.xpose.msra.mxu0 0
      %231 = vmatprep.subr.bf16.mxu0 0
      %232 = vmatpush1.bf16.xpose.msra.mxu0 0
      %233 = vmatprep.subr.bf16.mxu0 0
      %234 = vmatpush1.bf16.xpose.msra.mxu0 0
      %235 = vmatprep.subr.bf16.mxu0 0
      %236 = vmatpush1.bf16.xpose.msra.mxu0 0
      %237 = vmatprep.subr.bf16.mxu0 0
      %238 = vmatpush1.bf16.xpose.msra.mxu0 0
      %239 = vmatprep.subr.bf16.mxu0 0
      %240 = vmatpush1.bf16.xpose.msra.mxu0 0
      %241 = vmatprep.subr.bf16.mxu0 0
      %242 = vmatpush1.bf16.xpose.msra.mxu0 0
      %243 = vmatprep.subr.bf16.mxu0 0
      %244 = vmatpush1.bf16.xpose.msra.mxu0 0
      %245 = vmatprep.subr.bf16.mxu0 0
      %246 = vmatpush1.bf16.xpose.msra.mxu0 0
      %247 = vmatprep.subr.bf16.mxu0 0
      %248 = vmatpush1.bf16.xpose.msra.mxu0 0
      %249 = vmatprep.subr.bf16.mxu0 0
      %250 = vmatpush1.bf16.xpose.msra.mxu0 0
      %251 = vmatprep.mubr.bf16.mxu0 0
      %252 = vmatmul.mubr.bf16.gmra.mrb[0].mxu0 %v217
      %v253 = vpop.f32.mrb[0].mxu0
      %v254 = vadd.f32 %v200, %v253
      %v255 = vpop.f32.mrb[0].mxu0
      %v256 = vpop.f32.mrb[0].mxu0
      %v257 = vadd.f32 %v202, %v256
      %v258 = vpop.f32.mrb[0].mxu0
      %259 = vdwg.mxu0
      %vm260 = vcmask 64512
      %v261 = vsel %vm260, %v254, -inf
      %262 = vmax.xlane.f32.xlu0 %v261
      %v263 = vpop.xlane.xlu0 %262
      %v264 = vsel %vm260, %v257, -inf
      %265 = vmax.xlane.f32.xlu0 %v264
      %v266 = vpop.xlane.xlu0 %265
      %v267 = vsub.f32 %v254, %v263
      %v268 = vsub.f32 %v257, %v266
      %v269 = vmul.f32 %v267, 1.442695
      %v270 = vpow.pop %v269
      %v271 = vmul.f32 %v268, 1.442695
      %v272 = vpow.pop %v271
      %v273 = vsel %vm260, %v270, 0.0
      %274 = vadd.xlane.f32.xlu0 %v273
      %v275 = vpop.xlane.xlu0 %274
      %v276 = vsel %vm260, %v272, 0.0
      %277 = vadd.xlane.f32.xlu0 %v276
      %v278 = vpop.xlane.xlu0 %277
      %v279 = vrcp.pop %v275
      %v280 = vmul.f32 %v270, %v279
      %v281 = vrcp.pop %v278
      %v282 = vmul.f32 %v272, %v281
      %v283 = vmax.f32 %v261, %v264
      %v284 = vrot.slane %v283, 4
      %v285 = vmax.f32 %v283, %v284
      %v286 = vrot.slane %v285, 2
      %v287 = vmax.f32 %v285, %v286
      %v288 = vrot.slane %v287, 1
      %v289 = vmax.f32 %v287, %v288
      %v290 = vsub.f32 %v254, %v289
      %v291 = vsub.f32 %v257, %v289
      %v292 = vmul.f32 %v290, 1.442695
      %v293 = vpow.pop %v292
      %v294 = vmul.f32 %v291, 1.442695
      %v295 = vpow.pop %v294
      %v296 = vsel %vm260, %v293, 0.0
      %v297 = vsel %vm260, %v295, 0.0
      %v298 = vadd.f32 %v296, %v297
      %v299 = vrot.slane %v298, 4
      %v300 = vadd.f32 %v298, %v299
      %v301 = vrot.slane %v300, 2
      %v302 = vadd.f32 %v300, %v301
      %v303 = vrot.slane %v302, 1
      %v304 = vadd.f32 %v302, %v303
      %v305 = vrcp.pop %v304
      %v306 = vmul.f32 %v293, %v305
      %v307 = vmul.f32 %v295, %v305
      %v308 = vpack.c.bf16 %v282, %v280
      %v310 = vsel %vm260, %v308, 0
      %vm312 = vcmask 1043456
      %v314 = vsel %vm312, %v218, 0
      %316 = vmatprep.subr.bf16.mxu0 0
      %317 = vmatpush1.bf16.msra.mxu0 %v314
      %318 = vmatprep.subr.bf16.mxu0 0
      %319 = vmatpush1.bf16.msra.mxu0 0
      %320 = vmatprep.subr.bf16.mxu0 0
      %321 = vmatpush1.bf16.msra.mxu0 0
      %322 = vmatprep.subr.bf16.mxu0 0
      %323 = vmatpush1.bf16.msra.mxu0 0
      %324 = vmatprep.subr.bf16.mxu0 0
      %325 = vmatpush1.bf16.msra.mxu0 0
      %326 = vmatprep.subr.bf16.mxu0 0
      %327 = vmatpush1.bf16.msra.mxu0 0
      %328 = vmatprep.subr.bf16.mxu0 0
      %329 = vmatpush1.bf16.msra.mxu0 0
      %330 = vmatprep.subr.bf16.mxu0 0
      %331 = vmatpush1.bf16.msra.mxu0 0
      %332 = vmatprep.subr.bf16.mxu0 0
      %333 = vmatpush1.bf16.msra.mxu0 0
      %334 = vmatprep.subr.bf16.mxu0 0
      %335 = vmatpush1.bf16.msra.mxu0 0
      %336 = vmatprep.subr.bf16.mxu0 0
      %337 = vmatpush1.bf16.msra.mxu0 0
      %338 = vmatprep.subr.bf16.mxu0 0
      %339 = vmatpush1.bf16.msra.mxu0 0
      %340 = vmatprep.subr.bf16.mxu0 0
      %341 = vmatpush1.bf16.msra.mxu0 0
      %342 = vmatprep.subr.bf16.mxu0 0
      %343 = vmatpush1.bf16.msra.mxu0 0
      %344 = vmatprep.subr.bf16.mxu0 0
      %345 = vmatpush1.bf16.msra.mxu0 0
      %346 = vmatprep.subr.bf16.mxu0 0
      %347 = vmatpush1.bf16.msra.mxu0 0
      %348 = vmatprep.mubr.bf16.mxu0 0
      %349 = vmatmul.mubr.bf16.gmra.mrb[0].mxu0 %v310
      %v350 = vpop.f32.mrb[0].mxu0
      %v351 = vadd.f32 0.0, %v350
      %v352 = vpop.f32.mrb[0].mxu0
      %v353 = vpop.f32.mrb[0].mxu0
      %v354 = vadd.f32 0.0, %v353
      %v355 = vpop.f32.mrb[0].mxu0
      %356 = vdwg.mxu0
      %v357 = vpack.c.bf16 %v307, %v306
      %v359 = vsel %vm260, %v357, 0
      %361 = vmatprep.subr.bf16.mxu0 0
      %362 = vmatpush1.bf16.xpose.msra.mxu0 %v359
      %363 = vmatprep.subr.bf16.mxu0 0
      %364 = vmatpush1.bf16.xpose.msra.mxu0 0
      %365 = vmatprep.subr.bf16.mxu0 0
      %366 = vmatpush1.bf16.xpose.msra.mxu0 0
      %367 = vmatprep.subr.bf16.mxu0 0
      %368 = vmatpush1.bf16.xpose.msra.mxu0 0
      %369 = vmatprep.subr.bf16.mxu0 0
      %370 = vmatpush1.bf16.xpose.msra.mxu0 0
      %371 = vmatprep.subr.bf16.mxu0 0
      %372 = vmatpush1.bf16.xpose.msra.mxu0 0
      %373 = vmatprep.subr.bf16.mxu0 0
      %374 = vmatpush1.bf16.xpose.msra.mxu0 0
      %375 = vmatprep.subr.bf16.mxu0 0
      %376 = vmatpush1.bf16.xpose.msra.mxu0 0
      %377 = vmatprep.subr.bf16.mxu0 0
      %378 = vmatpush1.bf16.xpose.msra.mxu0 0
      %379 = vmatprep.subr.bf16.mxu0 0
      %380 = vmatpush1.bf16.xpose.msra.mxu0 0
      %381 = vmatprep.subr.bf16.mxu0 0
      %382 = vmatpush1.bf16.xpose.msra.mxu0 0
      %383 = vmatprep.subr.bf16.mxu0 0
      %384 = vmatpush1.bf16.xpose.msra.mxu0 0
      %385 = vmatprep.subr.bf16.mxu0 0
      %386 = vmatpush1.bf16.xpose.msra.mxu0 0
      %387 = vmatprep.subr.bf16.mxu0 0
      %388 = vmatpush1.bf16.xpose.msra.mxu0 0
      %389 = vmatprep.subr.bf16.mxu0 0
      %390 = vmatpush1.bf16.xpose.msra.mxu0 0
      %391 = vmatprep.subr.bf16.mxu0 0
      %392 = vmatpush1.bf16.xpose.msra.mxu0 0
      %393 = vmatprep.mubr.bf16.mxu0 0
      %394 = vmatmul.mubr.bf16.gmra.mrb[0].mxu0 %v310
      %v395 = vpop.f32.mrb[0].mxu0
      %v396 = vadd.f32 0.0, %v395
      %v397 = vpop.f32.mrb[0].mxu0
      %v398 = vpop.f32.mrb[0].mxu0
      %v399 = vadd.f32 0.0, %v398
      %v400 = vpop.f32.mrb[0].mxu0
      %401 = vdwg.mxu0
      %v402 = vpack.c.bf16 %v399, %v396
      %v403 = vpack.c.bf16 %v190, %v189
      %vm404 = vcmask 130048
      %v406 = vsel %vm404, %v402, 0
      %408 = vmatprep.subr.bf16.mxu0 0
      %409 = vmatpush1.bf16.msra.mxu0 %v403
      %410 = vmatprep.subr.bf16.mxu0 0
      %411 = vmatpush1.bf16.msra.mxu0 0
      %412 = vmatprep.subr.bf16.mxu0 0
      %413 = vmatpush1.bf16.msra.mxu0 0
      %414 = vmatprep.subr.bf16.mxu0 0
      %415 = vmatpush1.bf16.msra.mxu0 0
      %416 = vmatprep.subr.bf16.mxu0 0
      %417 = vmatpush1.bf16.msra.mxu0 0
      %418 = vmatprep.subr.bf16.mxu0 0
      %419 = vmatpush1.bf16.msra.mxu0 0
      %420 = vmatprep.subr.bf16.mxu0 0
      %421 = vmatpush1.bf16.msra.mxu0 0
      %422 = vmatprep.subr.bf16.mxu0 0
      %423 = vmatpush1.bf16.msra.mxu0 0
      %424 = vmatprep.subr.bf16.mxu0 0
      %425 = vmatpush1.bf16.msra.mxu0 0
      %426 = vmatprep.subr.bf16.mxu0 0
      %427 = vmatpush1.bf16.msra.mxu0 0
      %428 = vmatprep.subr.bf16.mxu0 0
      %429 = vmatpush1.bf16.msra.mxu0 0
      %430 = vmatprep.subr.bf16.mxu0 0
      %431 = vmatpush1.bf16.msra.mxu0 0
      %432 = vmatprep.subr.bf16.mxu0 0
      %433 = vmatpush1.bf16.msra.mxu0 0
      %434 = vmatprep.subr.bf16.mxu0 0
      %435 = vmatpush1.bf16.msra.mxu0 0
      %436 = vmatprep.subr.bf16.mxu0 0
      %437 = vmatpush1.bf16.msra.mxu0 0
      %438 = vmatprep.subr.bf16.mxu0 0
      %439 = vmatpush1.bf16.msra.mxu0 0
      %440 = vmatprep.mubr.bf16.mxu0 0
      %441 = vmatmul.mubr.bf16.gmra.mrb[0].mxu0 %v406
      %v442 = vpop.f32.mrb[0].mxu0
      %v443 = vadd.f32 0.0, %v442
      %v444 = vpop.f32.mrb[0].mxu0
      %v445 = vpop.f32.mrb[0].mxu0
      %v446 = vadd.f32 0.0, %v445
      %v447 = vpop.f32.mrb[0].mxu0
      %448 = vdwg.mxu0
      %449 = vst [vmem:[%s187] sm:$0xff] %v189
      %450 = vst [vmem:[%s187 + $0x20] sm:$0xff] %v190
      %451 = vst [vmem:[%s187 + $0x8] sm:$0xff] %v351
      %452 = vst [vmem:[%s187 + $0x28] sm:$0xff] %v354
      %v453 = vmul.f32 %v189, %v351
      %v454 = vmul.f32 %v190, %v354
      %455 = vst [vmem:[%s187 + $0x10] sm:$0xff] %v453
      %456 = vst [vmem:[%s187 + $0x30] sm:$0xff] %v454
      %v457 = vmul.f32 %v189, %v443
      %v458 = vmul.f32 %v190, %v446
      %459 = vst [vmem:[%s187 + $0x18] sm:$0xff] %v457
      %460 = vst [vmem:[%s187 + $0x38] sm:$0xff] %v458
      %p461 = scmp.lt.s32.totalorder %s14, 1
      %s462 = scalar_select %p461, %s14, 1
      %s463 = smul.addr %s462, 8
      %s464 = smul.addr %s463, 8
      %s465 = scalar_lea.vmem %s3, %s464
      // Predicated region
      $region33: #{qanet_tail_forward.11} parent=31 // pred_check
        %p466 = pneg %p105
      $region34: #{qanet_tail_forward.11} parent=31 // pred_check_branch
        %468 = sbr.rel (%p466) target = $region36
      $region35: #{qanet_tail_forward.11} parent=31 // pred_region
        _
      $region36: #{qanet_tail_forward.11} parent=31 // pred_fallthru
        _
    $region32: #{qanet_tail_forward.11} parent=5 // pred_fallthru
      _
    %p469 = scmp.le.s32.totalorder 2, %s9
    // Predicated region
    $region37: #{qanet_tail_forward.11} parent=5 // pred_check
      %p470 = pneg %p469
    $region38: #{qanet_tail_forward.11} parent=5 // pred_check_branch
      %472 = sbr.rel (%p470) target = $region40
    $region39: #{qanet_tail_forward.11} parent=5 // pred_region
      %s473 = ssub.s32 %s9, 2
      // Predicated region
      $region41: #{qanet_tail_forward.11} parent=39 // pred_check
        %p474 = pneg %p111
      $region42: #{qanet_tail_forward.11} parent=39 // pred_check_branch
        %476 = sbr.rel (%p474) target = $region44
      $region43: #{qanet_tail_forward.11} parent=39 // pred_region
        %p477 = scmp.lt.s32.totalorder %s15, 1
        %s478 = scalar_select %p477, %s15, 1
        %s479 = smul.addr %s478, 8
        %s480 = smul.addr %s479, 8
        %s481 = scalar_lea.vmem %s3, %s480
      $region44: #{qanet_tail_forward.11} parent=39 // pred_fallthru
        _
    $region40: #{qanet_tail_forward.11} parent=5 // pred_fallthru
      _
  $region6: #{qanet_tail_forward.11} parent=0 // loop_footer
    %s13 = sadd.s32 1, %s9
  $region7: #{qanet_tail_forward.11} parent=0 // loop_footer_branch
    %8 = sbr.rel target = $region3
  $region8: #{qanet_tail_forward.11} parent=0 // loop_exit
    _

// kernel: qanet_tail_forward.12
$region0: #{qanet_tail_forward.12}
  #allocation0 [shape = 'u32[]', space=smem, size = 0x4, offset = 0x4, fixed_abs, tag = 'smem constant byte address 0x4 - core index']
  #allocation1 [shape = 'u32[144,128]{1,0:T(1,128)}', space=vmem, size = 0x12000, scoped, tag = 'internal scratch']
  %s0 = inlined_call_operand.vmem [shape: f32[2,16,512], index: 0, kind: input, shape index: {}]
  %s1 = inlined_call_operand.vmem [shape: f32[3,512], index: 1, kind: input, shape index: {}]
  %s2 = inlined_call_operand.vmem [shape: f32[512,128], index: 2, kind: input, shape index: {}]
  %s3 = inlined_call_operand.vmem [shape: f32[2,16,128], index: 3, kind: output, shape index: {}]
  %s4 = sld [smem:[#allocation0]]
  $region45: #{qanet_tail_forward.12} parent=0
    _
  %s6 = ssub.s32 1, %s4
  %s7 = scalar_select 0, %s6, %s4
  loop: start=0, step=1, limit=4
  $region2: #{qanet_tail_forward.12} parent=0 // loop_pre_header
    _
  $region3: #{qanet_tail_forward.12} parent=0 // loop_header
    %s9 = sphi 0, %s13
    %p10 = scmp.ge.s32.totalorder %s9, 4
    %s19 = sphi 0, %s21
    %s22 = sphi 0, %s19
    %s23 = sphi 0, %s22
    %s39 = sphi 0, %s23
    %s43 = sphi 0, %s43
    %s45 = sphi 0, %s43
    %s46 = sphi 0, %s45
    %s60 = sphi 0, %s46
    %s64 = sphi 0, %s64
    %s66 = sphi 0, %s64
    %s67 = sphi 0, %s66
    %s81 = sphi 0, %s67
    %s87 = sphi 0, %s89
    %s90 = sphi 0, %s87
    %s91 = sphi 0, %s90
    %s107 = sphi 0, %s91
  $region4: #{qanet_tail_forward.12} parent=0 // loop_header_branch
    %12 = sbr.rel (%p10) target = $region8
  $region5: #{qanet_tail_forward.12} parent=0 // loop_body
    %s14 = ssub.s32 %s9, 1
    %s15 = ssub.s32 %s9, 2
    %s16 = sadd.s32 %s9, 1
    %s17 = ssub.s32 %s9, %s16
    %p18 = scmp.eq.s32.totalorder %s17, 0
    %s20 = sadd.s32 %s19, 1
    %s21 = scalar_select %p18, %s19, %s20
    %p24 = pneg %p18
    %p25 = scmp.eq.s32.totalorder %s9, 1
    %p26 = por %p24, %p25
    %p27 = scmp.ne.s32.totalorder %s19, %s22
    %p28 = scmp.eq.s32.totalorder %s9, 0
    %p29 = por %p27, %p28
    %p30 = scmp.ne.s32.totalorder %s19, %s22
    %p31 = scmp.eq.s32.totalorder %s14, 1
    %p32 = por %p30, %p31
    %p33 = scmp.ne.s32.totalorder %s22, %s23
    %p34 = scmp.eq.s32.totalorder %s14, 0
    %p35 = por %p33, %p34
    %p36 = scmp.ne.s32.totalorder %s22, %s23
    %p37 = scmp.eq.s32.totalorder %s15, 1
    %p38 = por %p36, %p37
    %p40 = scmp.ne.s32.totalorder %s23, %s39
    %p41 = scmp.eq.s32.totalorder %s15, 0
    %p42 = por %p40, %p41
    %s44 = sadd.s32 %s43, 1
    %p47 = scmp.eq.s32.totalorder %s9, 1
    %p48 = scmp.ne.s32.totalorder %s43, %s45
    %p49 = scmp.eq.s32.totalorder %s9, 0
    %p50 = por %p48, %p49
    %p51 = scmp.ne.s32.totalorder %s43, %s45
    %p52 = scmp.eq.s32.totalorder %s14, 1
    %p53 = por %p51, %p52
    %p54 = scmp.ne.s32.totalorder %s45, %s46
    %p55 = scmp.eq.s32.totalorder %s14, 0
    %p56 = por %p54, %p55
    %p57 = scmp.ne.s32.totalorder %s45, %s46
    %p58 = scmp.eq.s32.totalorder %s15, 1
    %p59 = por %p57, %p58
    %p61 = scmp.ne.s32.totalorder %s46, %s60
    %p62 = scmp.eq.s32.totalorder %s15, 0
    %p63 = por %p61, %p62
    %s65 = sadd.s32 %s64, 1
    %p68 = scmp.eq.s32.totalorder %s9, 1
    %p69 = scmp.ne.s32.totalorder %s64, %s66
    %p70 = scmp.eq.s32.totalorder %s9, 0
    %p71 = por %p69, %p70
    %p72 = scmp.ne.s32.totalorder %s64, %s66
    %p73 = scmp.eq.s32.totalorder %s14, 1
    %p74 = por %p72, %p73
    %p75 = scmp.ne.s32.totalorder %s66, %s67
    %p76 = scmp.eq.s32.totalorder %s14, 0
    %p77 = por %p75, %p76
    %p78 = scmp.ne.s32.totalorder %s66, %s67
    %p79 = scmp.eq.s32.totalorder %s15, 1
    %p80 = por %p78, %p79
    %p82 = scmp.ne.s32.totalorder %s67, %s81
    %p83 = scmp.eq.s32.totalorder %s15, 0
    %p84 = por %p82, %p83
    %s85 = ssub.s32 %s9, %s16
    %p86 = scmp.eq.s32.totalorder %s85, 0
    %s88 = sadd.s32 %s87, 1
    %s89 = scalar_select %p86, %s87, %s88
    %p92 = pneg %p86
    %p93 = scmp.eq.s32.totalorder %s9, 1
    %p94 = por %p92, %p93
    %p95 = scmp.ne.s32.totalorder %s87, %s90
    %p96 = scmp.eq.s32.totalorder %s9, 0
    %p97 = por %p95, %p96
    %p98 = scmp.ne.s32.totalorder %s87, %s90
    %p99 = scmp.eq.s32.totalorder %s14, 1
    %p100 = por %p98, %p99
    %p101 = scmp.ne.s32.totalorder %s90, %s91
    %p102 = scmp.eq.s32.totalorder %s14, 0
    %p103 = por %p101, %p102
    %p104 = scmp.ne.s32.totalorder %s90, %s91
    %p105 = scmp.eq.s32.totalorder %s15, 1
    %p106 = por %p104, %p105
    %p108 = scmp.ne.s32.totalorder %s91, %s107
    %p109 = scmp.eq.s32.totalorder %s15, 0
    %p110 = por %p108, %p109
    %p111 = scmp.le.s32.totalorder 1, %s9
    %p112 = scmp.lt.s32.totalorder %s9, 3
    %p113 = pnand %p111, %p112
    %p114 = pneg %p113
    // Predicated region
    $region9: #{qanet_tail_forward.12} parent=5 // pred_check
      _
    $region10: #{qanet_tail_forward.12} parent=5 // pred_check_branch
      %116 = sbr.rel (%p113) target = $region12
    $region11: #{qanet_tail_forward.12} parent=5 // pred_region
      %s117 = ssub.s32 %s9, 1
      // Predicated region
      $region13: #{qanet_tail_forward.12} parent=11 // pred_check
        %p118 = pneg %p56
      $region14: #{qanet_tail_forward.12} parent=11 // pred_check_branch
        %120 = sbr.rel (%p118) target = $region16
      $region15: #{qanet_tail_forward.12} parent=11 // pred_region
        _
      $region16: #{qanet_tail_forward.12} parent=11 // pred_fallthru
        _
      // Predicated region
      $region17: #{qanet_tail_forward.12} parent=11 // pred_check
        %p121 = pneg %p77
      $region18: #{qanet_tail_forward.12} parent=11 // pred_check_branch
        %123 = sbr.rel (%p121) target = $region20
      $region19: #{qanet_tail_forward.12} parent=11 // pred_region
        _
      $region20: #{qanet_tail_forward.12} parent=11 // pred_fallthru
        _
    $region12: #{qanet_tail_forward.12} parent=5 // pred_fallthru
      _
    %p124 = scmp.lt.s32.totalorder %s9, 2
    // Predicated region
    $region21: #{qanet_tail_forward.12} parent=5 // pred_check
      %p125 = pneg %p124
    $region22: #{qanet_tail_forward.12} parent=5 // pred_check_branch
      %127 = sbr.rel (%p125) target = $region24
    $region23: #{qanet_tail_forward.12} parent=5 // pred_region
      // Predicated region
      $region25: #{qanet_tail_forward.12} parent=23 // pred_check
        %p128 = pneg %p29
      $region26: #{qanet_tail_forward.12} parent=23 // pred_check_branch
        %130 = sbr.rel (%p128) target = $region28
      $region27: #{qanet_tail_forward.12} parent=23 // pred_region
        %p131 = scmp.lt.s32.totalorder %s9, 1
        %s132 = scalar_select %p131, %s9, 1
        %s133 = smul.addr %s132, 8
        %s134 = smul.addr %s133, 8
        %s135 = scalar_lea.vmem %s0, %s134
      $region28: #{qanet_tail_forward.12} parent=23 // pred_fallthru
        _
    $region24: #{qanet_tail_forward.12} parent=5 // pred_fallthru
      _
    %p136 = scmp.le.s32.totalorder 1, %s9
    %p137 = scmp.lt.s32.totalorder %s9, 3
    %p138 = pnand %p136, %p137
    %p139 = pneg %p138
    // Predicated region
    $region29: #{qanet_tail_forward.12} parent=5 // pred_check
      _
    $region30: #{qanet_tail_forward.12} parent=5 // pred_check_branch
      %141 = sbr.rel (%p138) target = $region32
    $region31: #{qanet_tail_forward.12} parent=5 // pred_region
      %s142 = ssub.s32 %s9, 1
      %p143 = scmp.lt.s32.totalorder %s14, 1
      %s144 = scalar_select %p143, %s14, 1
      %s145 = smul.addr %s144, 8
      %s146 = smul.addr %s145, 8
      %s147 = scalar_lea.vmem %s0, %s146
      %p148 = pneg %p35
      %p149 = pneg %p32
      %p150 = pneg %p56
      %p151 = pneg %p53
      %p152 = pneg %p77
      %p153 = pneg %p74
      %p154 = pneg %p103
      %p155 = pneg %p100
      %p156 = scmp.lt.s32.totalorder %s14, 1
      %s157 = scalar_select %p156, %s14, 1
      %s158 = smul.addr %s157, 2
      %s159 = smul.addr %s158, 8
      %s160 = scalar_lea.vmem %s3, %s159
      %p161 = scmp.lt.s32.totalorder %s14, 1
      %s162 = scalar_select %p161, %s14, 1
      %s163 = smul.addr %s162, 8
      %s164 = smul.addr %s163, 8
      %s165 = scalar_lea.vmem %s0, %s164
      %p166 = scmp.lt.s32.totalorder %s14, 1
      %s167 = scalar_select %p166, %s14, 1
      %s168 = smul.addr %s167, 2
      %s169 = smul.addr %s168, 8
      %s170 = scalar_lea.vmem %s3, %s169
      %v172 = vld [vmem:[%s165] sm:$0xff]
      %v173 = vld [vmem:[%s165 + $0x8] sm:$0xff]
      %v174 = vld [vmem:[%s165 + $0x10] sm:$0xff]
      %v175 = vld [vmem:[%s165 + $0x18] sm:$0xff]
      %v176 = vld [vmem:[%s165 + $0x20] sm:$0xff]
      %v177 = vld [vmem:[%s165 + $0x28] sm:$0xff]
      %v178 = vld [vmem:[%s165 + $0x30] sm:$0xff]
      %v179 = vld [vmem:[%s165 + $0x38] sm:$0xff]
      %v180 = vlaneseq
      %v181 = vshrl.u32 %v180, 7
      %v182 = vadd.s32 %v181, 8
      %v183 = vld [vmem:[%s1] sm:$0x77]
      %v184 = vld [vmem:[%s1 + $0x8] sm:$0x77]
      %v185 = vrot.slane %v172, 7
      %v186 = vrot.slane %v173, 7
      %v187 = vrot.slane %v174, 7
      %v188 = vrot.slane %v175, 7
      %v189 = vrot.slane %v176, 7
      %v190 = vrot.slane %v177, 7
      %v191 = vrot.slane %v178, 7
      %v192 = vrot.slane %v179, 7
      %vm193 = vcmp.lt.s32.totalorder %v181, 1
      %v194 = vsel %vm193, %v185, %v189
      %v195 = vsel %vm193, %v186, %v190
      %v196 = vsel %vm193, %v187, %v191
      %v197 = vsel %vm193, %v188, %v192
      %v198 = vsel %vm193, %v189, %v185
      %v199 = vsel %vm193, %v190, %v186
      %v200 = vsel %vm193, %v191, %v187
      %v201 = vsel %vm193, %v192, %v188
      %vm202 = vcmp.ge.s32.totalorder %v181, 1
      %vm203 = vcmp.ge.s32.totalorder %v182, 1
      %v204 = vsel %vm202, 1, 0
      %v205 = vsel %vm203, 1, 0
      %vm206 = vcmp.eq.s32.totalorder %v204, 1
      %vm207 = vcmp.eq.s32.totalorder %v205, 1
      %v208 = vsel %vm206, %v198, 0.0
      %v209 = vsel %vm206, %v199, 0.0
      %v210 = vsel %vm206, %v200, 0.0
      %v211 = vsel %vm206, %v201, 0.0
      %v212 = vsel %vm207, %v194, 0.0
      %v213 = vsel %vm207, %v195, 0.0
      %v214 = vsel %vm207, %v196, 0.0
      %v215 = vsel %vm207, %v197, 0.0
      %v218 = vlaneseq
      %v219 = vshrl.u32 %v218, 7
      %v220 = vsub.s32 0, %v219
      %v221 = vrot.slane %v183, %v220
      %v222 = vlaneseq
      %v223 = vshrl.u32 %v222, 7
      %v224 = vsub.s32 4, %v223
      %v225 = vrot.slane %v183, %v224
      %v226 = vlaneseq
      %v227 = vshrl.u32 %v226, 7
      %v228 = vsub.s32 0, %v227
      %v229 = vrot.slane %v184, %v228
      %v230 = vlaneseq
      %v231 = vshrl.u32 %v230, 7
      %v232 = vsub.s32 4, %v231
      %v233 = vrot.slane %v184, %v232
      %v238 = vlaneseq
      %v239 = vshrl.u32 %v238, 7
      %v240 = vsub.s32 0, %v239
      %v241 = vrot.slane %v221, %v240
      %v242 = vlaneseq
      %v243 = vshrl.u32 %v242, 7
      %v244 = vsub.s32 0, %v243
      %v245 = vrot.slane %v225, %v244
      %v246 = vlaneseq
      %v247 = vshrl.u32 %v246, 7
      %v248 = vsub.s32 0, %v247
      %v249 = vrot.slane %v229, %v248
      %v250 = vlaneseq
      %v251 = vshrl.u32 %v250, 7
      %v252 = vsub.s32 0, %v251
      %v253 = vrot.slane %v233, %v252
      %v254 = vmul.f32 %v208, %v241
      %v255 = vmul.f32 %v209, %v245
      %v256 = vmul.f32 %v210, %v249
      %v257 = vmul.f32 %v211, %v253
      %v258 = vmul.f32 %v212, %v241
      %v259 = vmul.f32 %v213, %v245
      %v260 = vmul.f32 %v214, %v249
      %v261 = vmul.f32 %v215, %v253
      %v262 = vadd.f32 %v254, 0.0
      %v263 = vadd.f32 %v255, 0.0
      %v264 = vadd.f32 %v256, 0.0
      %v265 = vadd.f32 %v257, 0.0
      %v266 = vadd.f32 %v258, 0.0
      %v267 = vadd.f32 %v259, 0.0
      %v268 = vadd.f32 %v260, 0.0
      %v269 = vadd.f32 %v261, 0.0
      %v270 = vlaneseq
      %v271 = vshrl.u32 %v270, 7
      %v272 = vsub.s32 1, %v271
      %v273 = vrot.slane %v183, %v272
      %v274 = vlaneseq
      %v275 = vshrl.u32 %v274, 7
      %v276 = vsub.s32 5, %v275
      %v277 = vrot.slane %v183, %v276
      %v278 = vlaneseq
      %v279 = vshrl.u32 %v278, 7
      %v280 = vsub.s32 1, %v279
      %v281 = vrot.slane %v184, %v280
      %v282 = vlaneseq
      %v283 = vshrl.u32 %v282, 7
      %v284 = vsub.s32 5, %v283
      %v285 = vrot.slane %v184, %v284
      %v290 = vlaneseq
      %v291 = vshrl.u32 %v290, 7
      %v292 = vsub.s32 1, %v291
      %v293 = vrot.slane %v273, %v292
      %v294 = vlaneseq
      %v295 = vshrl.u32 %v294, 7
      %v296 = vsub.s32 1, %v295
      %v297 = vrot.slane %v277, %v296
      %v298 = vlaneseq
      %v299 = vshrl.u32 %v298, 7
      %v300 = vsub.s32 1, %v299
      %v301 = vrot.slane %v281, %v300
      %v302 = vlaneseq
      %v303 = vshrl.u32 %v302, 7
      %v304 = vsub.s32 1, %v303
      %v305 = vrot.slane %v285, %v304
      %v306 = vmul.f32 %v172, %v293
      %v307 = vmul.f32 %v173, %v297
      %v308 = vmul.f32 %v174, %v301
      %v309 = vmul.f32 %v175, %v305
      %v310 = vmul.f32 %v176, %v293
      %v311 = vmul.f32 %v177, %v297
      %v312 = vmul.f32 %v178, %v301
      %v313 = vmul.f32 %v179, %v305
      %v314 = vadd.f32 %v262, %v306
      %v315 = vadd.f32 %v263, %v307
      %v316 = vadd.f32 %v264, %v308
      %v317 = vadd.f32 %v265, %v309
      %v318 = vadd.f32 %v266, %v310
      %v319 = vadd.f32 %v267, %v311
      %v320 = vadd.f32 %v268, %v312
      %v321 = vadd.f32 %v269, %v313
      %v322 = vrot.slane %v172, 1
      %v323 = vrot.slane %v173, 1
      %v324 = vrot.slane %v174, 1
      %v325 = vrot.slane %v175, 1
      %v326 = vrot.slane %v176, 1
      %v327 = vrot.slane %v177, 1
      %v328 = vrot.slane %v178, 1
      %v329 = vrot.slane %v179, 1
      %vm330 = vcmp.lt.s32.totalorder %v181, 7
      %v331 = vsel %vm330, %v322, %v326
      %v332 = vsel %vm330, %v323, %v327
      %v333 = vsel %vm330, %v324, %v328
      %v334 = vsel %vm330, %v325, %v329
      %v335 = vsel %vm330, %v326, %v322
      %v336 = vsel %vm330, %v327, %v323
      %v337 = vsel %vm330, %v328, %v324
      %v338 = vsel %vm330, %v329, %v325
      %vm339 = vcmp.lt.s32.totalorder %v181, 15
      %vm340 = vcmp.lt.s32.totalorder %v182, 15
      %v341 = vsel %vm339, 1, 0
      %v342 = vsel %vm340, 1, 0
      %vm343 = vcmp.eq.s32.totalorder %v341, 1
      %vm344 = vcmp.eq.s32.totalorder %v342, 1
      %v345 = vsel %vm343, %v331, 0.0
      %v346 = vsel %vm343, %v332, 0.0
      %v347 = vsel %vm343, %v333, 0.0
      %v348 = vsel %vm343, %v334, 0.0
      %v349 = vsel %vm344, %v335, 0.0
      %v350 = vsel %vm344, %v336, 0.0
      %v351 = vsel %vm344, %v337, 0.0
      %v352 = vsel %vm344, %v338, 0.0
      %v353 = vlaneseq
      %v354 = vshrl.u32 %v353, 7
      %v355 = vsub.s32 2, %v354
      %v356 = vrot.slane %v183, %v355
      %v357 = vlaneseq
      %v358 = vshrl.u32 %v357, 7
      %v359 = vsub.s32 6, %v358
      %v360 = vrot.slane %v183, %v359
      %v361 = vlaneseq
      %v362 = vshrl.u32 %v361, 7
      %v363 = vsub.s32 2, %v362
      %v364 = vrot.slane %v184, %v363
      %v365 = vlaneseq
      %v366 = vshrl.u32 %v365, 7
      %v367 = vsub.s32 6, %v366
      %v368 = vrot.slane %v184, %v367
      %v373 = vlaneseq
      %v374 = vshrl.u32 %v373, 7
      %v375 = vsub.s32 2, %v374
      %v376 = vrot.slane %v356, %v375
      %v377 = vlaneseq
      %v378 = vshrl.u32 %v377, 7
      %v379 = vsub.s32 2, %v378
      %v380 = vrot.slane %v360, %v379
      %v381 = vlaneseq
      %v382 = vshrl.u32 %v381, 7
      %v383 = vsub.s32 2, %v382
      %v384 = vrot.slane %v364, %v383
      %v385 = vlaneseq
      %v386 = vshrl.u32 %v385, 7
      %v387 = vsub.s32 2, %v386
      %v388 = vrot.slane %v368, %v387
      %v389 = vmul.f32 %v345, %v376
      %v390 = vmul.f32 %v346, %v380
      %v391 = vmul.f32 %v347, %v384
      %v392 = vmul.f32 %v348, %v388
      %v393 = vmul.f32 %v349, %v376
      %v394 = vmul.f32 %v350, %v380
      %v395 = vmul.f32 %v351, %v384
      %v396 = vmul.f32 %v352, %v388
      %v397 = vadd.f32 %v314, %v389
      %v398 = vadd.f32 %v315, %v390
      %v399 = vadd.f32 %v316, %v391
      %v400 = vadd.f32 %v317, %v392
      %v401 = vadd.f32 %v318, %v393
      %v402 = vadd.f32 %v319, %v394
      %v403 = vadd.f32 %v320, %v395
      %v404 = vadd.f32 %v321, %v396
      %v405 = vpack.c.bf16 %v401, %v397
      %v406 = vpack.c.bf16 %v402, %v398
      %v407 = vpack.c.bf16 %v403, %v399
      %v408 = vpack.c.bf16 %v404, %v400
      %v409 = vld [vmem:[%s2] sm:$0xff]
      %v410 = vld [vmem:[%s2 + $0x8] sm:$0xff]
      %v411 = vld [vmem:[%s2 + $0x10] sm:$0xff]
      %v412 = vld [vmem:[%s2 + $0x18] sm:$0xff]
      %v413 = vld [vmem:[%s2 + $0x20] sm:$0xff]
      %v414 = vld [vmem:[%s2 + $0x28] sm:$0xff]
      %v415 = vld [vmem:[%s2 + $0x30] sm:$0xff]
      %v416 = vld [vmem:[%s2 + $0x38] sm:$0xff]
      %v417 = vld [vmem:[%s2 + $0x40] sm:$0xff]
      %v418 = vld [vmem:[%s2 + $0x48] sm:$0xff]
      %v419 = vld [vmem:[%s2 + $0x50] sm:$0xff]
      %v420 = vld [vmem:[%s2 + $0x58] sm:$0xff]
      %v421 = vld [vmem:[%s2 + $0x60] sm:$0xff]
      %v422 = vld [vmem:[%s2 + $0x68] sm:$0xff]
      %v423 = vld [vmem:[%s2 + $0x70] sm:$0xff]
      %v424 = vld [vmem:[%s2 + $0x78] sm:$0xff]
      %v425 = vld [vmem:[%s2 + $0x80] sm:$0xff]
      %v426 = vld [vmem:[%s2 + $0x88] sm:$0xff]
      %v427 = vld [vmem:[%s2 + $0x90] sm:$0xff]
      %v428 = vld [vmem:[%s2 + $0x98] sm:$0xff]
      %v429 = vld [vmem:[%s2 + $0xa0] sm:$0xff]
      %v430 = vld [vmem:[%s2 + $0xa8] sm:$0xff]
      %v431 = vld [vmem:[%s2 + $0xb0] sm:$0xff]
      %v432 = vld [vmem:[%s2 + $0xb8] sm:$0xff]
      %v433 = vld [vmem:[%s2 + $0xc0] sm:$0xff]
      %v434 = vld [vmem:[%s2 + $0xc8] sm:$0xff]
      %v435 = vld [vmem:[%s2 + $0xd0] sm:$0xff]
      %v436 = vld [vmem:[%s2 + $0xd8] sm:$0xff]
      %v437 = vld [vmem:[%s2 + $0xe0] sm:$0xff]
      %v438 = vld [vmem:[%s2 + $0xe8] sm:$0xff]
      %v439 = vld [vmem:[%s2 + $0xf0] sm:$0xff]
      %v440 = vld [vmem:[%s2 + $0xf8] sm:$0xff]
      %v441 = vld [vmem:[%s2 + $0x100] sm:$0xff]
      %v442 = vld [vmem:[%s2 + $0x108] sm:$0xff]
      %v443 = vld [vmem:[%s2 + $0x110] sm:$0xff]
      %v444 = vld [vmem:[%s2 + $0x118] sm:$0xff]
      %v445 = vld [vmem:[%s2 + $0x120] sm:$0xff]
      %v446 = vld [vmem:[%s2 + $0x128] sm:$0xff]
      %v447 = vld [vmem:[%s2 + $0x130] sm:$0xff]
      %v448 = vld [vmem:[%s2 + $0x138] sm:$0xff]
      %v449 = vld [vmem:[%s2 + $0x140] sm:$0xff]
      %v450 = vld [vmem:[%s2 + $0x148] sm:$0xff]
      %v451 = vld [vmem:[%s2 + $0x150] sm:$0xff]
      %v452 = vld [vmem:[%s2 + $0x158] sm:$0xff]
      %v453 = vld [vmem:[%s2 + $0x160] sm:$0xff]
      %v454 = vld [vmem:[%s2 + $0x168] sm:$0xff]
      %v455 = vld [vmem:[%s2 + $0x170] sm:$0xff]
      %v456 = vld [vmem:[%s2 + $0x178] sm:$0xff]
      %v457 = vld [vmem:[%s2 + $0x180] sm:$0xff]
      %v458 = vld [vmem:[%s2 + $0x188] sm:$0xff]
      %v459 = vld [vmem:[%s2 + $0x190] sm:$0xff]
      %v460 = vld [vmem:[%s2 + $0x198] sm:$0xff]
      %v461 = vld [vmem:[%s2 + $0x1a0] sm:$0xff]
      %v462 = vld [vmem:[%s2 + $0x1a8] sm:$0xff]
      %v463 = vld [vmem:[%s2 + $0x1b0] sm:$0xff]
      %v464 = vld [vmem:[%s2 + $0x1b8] sm:$0xff]
      %v465 = vld [vmem:[%s2 + $0x1c0] sm:$0xff]
      %v466 = vld [vmem:[%s2 + $0x1c8] sm:$0xff]
      %v467 = vld [vmem:[%s2 + $0x1d0] sm:$0xff]
      %v468 = vld [vmem:[%s2 + $0x1d8] sm:$0xff]
      %v469 = vld [vmem:[%s2 + $0x1e0] sm:$0xff]
      %v470 = vld [vmem:[%s2 + $0x1e8] sm:$0xff]
      %v471 = vld [vmem:[%s2 + $0x1f0] sm:$0xff]
      %v472 = vld [vmem:[%s2 + $0x1f8] sm:$0xff]
      %v473 = vpack.c.bf16 %v410, %v409
      %v474 = vpack.c.bf16 %v412, %v411
      %v475 = vpack.c.bf16 %v414, %v413
      %v476 = vpack.c.bf16 %v416, %v415
      %v477 = vpack.c.bf16 %v418, %v417
      %v478 = vpack.c.bf16 %v420, %v419
      %v479 = vpack.c.bf16 %v422, %v421
      %v480 = vpack.c.bf16 %v424, %v423
      %v481 = vpack.c.bf16 %v426, %v425
      %v482 = vpack.c.bf16 %v428, %v427
      %v483 = vpack.c.bf16 %v430, %v429
      %v484 = vpack.c.bf16 %v432, %v431
      %v485 = vpack.c.bf16 %v434, %v433
      %v486 = vpack.c.bf16 %v436, %v435
      %v487 = vpack.c.bf16 %v438, %v437
      %v488 = vpack.c.bf16 %v440, %v439
      %v489 = vpack.c.bf16 %v442, %v441
      %v490 = vpack.c.bf16 %v444, %v443
      %v491 = vpack.c.bf16 %v446, %v445
      %v492 = vpack.c.bf16 %v448, %v447
      %v493 = vpack.c.bf16 %v450, %v449
      %v494 = vpack.c.bf16 %v452, %v451
      %v495 = vpack.c.bf16 %v454, %v453
      %v496 = vpack.c.bf16 %v456, %v455
      %v497 = vpack.c.bf16 %v458, %v457
      %v498 = vpack.c.bf16 %v460, %v459
      %v499 = vpack.c.bf16 %v462, %v461
      %v500 = vpack.c.bf16 %v464, %v463
      %v501 = vpack.c.bf16 %v466, %v465
      %v502 = vpack.c.bf16 %v468, %v467
      %v503 = vpack.c.bf16 %v470, %v469
      %v504 = vpack.c.bf16 %v472, %v471
      %505 = vmatprep.subr.bf16.mxu0 0
      %506 = vmatpush1.bf16.msra.mxu0 %v473
      %507 = vmatprep.subr.bf16.mxu0 0
      %508 = vmatpush1.bf16.msra.mxu0 %v474
      %509 = vmatprep.subr.bf16.mxu0 0
      %510 = vmatpush1.bf16.msra.mxu0 %v475
      %511 = vmatprep.subr.bf16.mxu0 0
      %512 = vmatpush1.bf16.msra.mxu0 %v476
      %513 = vmatprep.subr.bf16.mxu0 0
      %514 = vmatpush1.bf16.msra.mxu0 %v477
      %515 = vmatprep.subr.bf16.mxu0 0
      %516 = vmatpush1.bf16.msra.mxu0 %v478
      %517 = vmatprep.subr.bf16.mxu0 0
      %518 = vmatpush1.bf16.msra.mxu0 %v479
      %519 = vmatprep.subr.bf16.mxu0 0
      %520 = vmatpush1.bf16.msra.mxu0 %v480
      %521 = vmatprep.subr.bf16.mxu0 0
      %522 = vmatpush1.bf16.msra.mxu0 %v481
      %523 = vmatprep.subr.bf16.mxu0 0
      %524 = vmatpush1.bf16.msra.mxu0 %v482
      %525 = vmatprep.subr.bf16.mxu0 0
      %526 = vmatpush1.bf16.msra.mxu0 %v483
      %527 = vmatprep.subr.bf16.mxu0 0
      %528 = vmatpush1.bf16.msra.mxu0 %v484
      %529 = vmatprep.subr.bf16.mxu0 0
      %530 = vmatpush1.bf16.msra.mxu0 %v485
      %531 = vmatprep.subr.bf16.mxu0 0
      %532 = vmatpush1.bf16.msra.mxu0 %v486
      %533 = vmatprep.subr.bf16.mxu0 0
      %534 = vmatpush1.bf16.msra.mxu0 %v487
      %535 = vmatprep.subr.bf16.mxu0 0
      %536 = vmatpush1.bf16.msra.mxu0 %v488
      %537 = vmatprep.mubr.bf16.mxu0 %v406
      %538 = vmatmul.mubr.bf16.gmra.mrb[0].mxu0 %v405
      %v539 = vpop.f32.mrb[0].mxu0
      %v540 = vadd.f32 0.0, %v539
      %v541 = vpop.f32.mrb[0].mxu0
      %v542 = vpop.f32.mrb[0].mxu0
      %v543 = vadd.f32 0.0, %v542
      %v544 = vpop.f32.mrb[0].mxu0
      %545 = vdwg.mxu0
      %546 = vmatprep.subr.bf16.mxu0 0
      %547 = vmatpush1.bf16.msra.mxu0 %v489
      %548 = vmatprep.subr.bf16.mxu0 0
      %549 = vmatpush1.bf16.msra.mxu0 %v490
      %550 = vmatprep.subr.bf16.mxu0 0
      %551 = vmatpush1.bf16.msra.mxu0 %v491
      %552 = vmatprep.subr.bf16.mxu0 0
      %553 = vmatpush1.bf16.msra.mxu0 %v492
      %554 = vmatprep.subr.bf16.mxu0 0
      %555 = vmatpush1.bf16.msra.mxu0 %v493
      %556 = vmatprep.subr.bf16.mxu0 0
      %557 = vmatpush1.bf16.msra.mxu0 %v494
      %558 = vmatprep.subr.bf16.mxu0 0
      %559 = vmatpush1.bf16.msra.mxu0 %v495
      %560 = vmatprep.subr.bf16.mxu0 0
      %561 = vmatpush1.bf16.msra.mxu0 %v496
      %562 = vmatprep.subr.bf16.mxu0 0
      %563 = vmatpush1.bf16.msra.mxu0 %v497
      %564 = vmatprep.subr.bf16.mxu0 0
      %565 = vmatpush1.bf16.msra.mxu0 %v498
      %566 = vmatprep.subr.bf16.mxu0 0
      %567 = vmatpush1.bf16.msra.mxu0 %v499
      %568 = vmatprep.subr.bf16.mxu0 0
      %569 = vmatpush1.bf16.msra.mxu0 %v500
      %570 = vmatprep.subr.bf16.mxu0 0
      %571 = vmatpush1.bf16.msra.mxu0 %v501
      %572 = vmatprep.subr.bf16.mxu0 0
      %573 = vmatpush1.bf16.msra.mxu0 %v502
      %574 = vmatprep.subr.bf16.mxu0 0
      %575 = vmatpush1.bf16.msra.mxu0 %v503
      %576 = vmatprep.subr.bf16.mxu0 0
      %577 = vmatpush1.bf16.msra.mxu0 %v504
      %578 = vmatprep.mubr.bf16.mxu0 %v408
      %579 = vmatmul.mubr.bf16.gmra.mrb[0].mxu0 %v407
      %v580 = vpop.f32.mrb[0].mxu0
      %v581 = vadd.f32 %v540, %v580
      %v582 = vpop.f32.mrb[0].mxu0
      %v583 = vpop.f32.mrb[0].mxu0
      %v584 = vadd.f32 %v543, %v583
      %v585 = vpop.f32.mrb[0].mxu0
      %586 = vdwg.mxu0
      %587 = vst [vmem:[%s170] sm:$0xff] %v581
      %588 = vst [vmem:[%s170 + $0x8] sm:$0xff] %v584
      %p589 = scmp.lt.s32.totalorder %s14, 1
      %s590 = scalar_select %p589, %s14, 1
      %s591 = smul.addr %s590, 2
      %s592 = smul.addr %s591, 8
      %s593 = scalar_lea.vmem %s3, %s592
      // Predicated region
      $region33: #{qanet_tail_forward.12} parent=31 // pred_check
        %p594 = pneg %p100
      $region34: #{qanet_tail_forward.12} parent=31 // pred_check_branch
        %596 = sbr.rel (%p594) target = $region36
      $region35: #{qanet_tail_forward.12} parent=31 // pred_region
        _
      $region36: #{qanet_tail_forward.12} parent=31 // pred_fallthru
        _
    $region32: #{qanet_tail_forward.12} parent=5 // pred_fallthru
      _
    %p597 = scmp.le.s32.totalorder 2, %s9
    // Predicated region
    $region37: #{qanet_tail_forward.12} parent=5 // pred_check
      %p598 = pneg %p597
    $region38: #{qanet_tail_forward.12} parent=5 // pred_check_branch
      %600 = sbr.rel (%p598) target = $region40
    $region39: #{qanet_tail_forward.12} parent=5 // pred_region
      %s601 = ssub.s32 %s9, 2
      // Predicated region
      $region41: #{qanet_tail_forward.12} parent=39 // pred_check
        %p602 = pneg %p106
      $region42: #{qanet_tail_forward.12} parent=39 // pred_check_branch
        %604 = sbr.rel (%p602) target = $region44
      $region43: #{qanet_tail_forward.12} parent=39 // pred_region
        %p605 = scmp.lt.s32.totalorder %s15, 1
        %s606 = scalar_select %p605, %s15, 1
        %s607 = smul.addr %s606, 2
        %s608 = smul.addr %s607, 8
        %s609 = scalar_lea.vmem %s3, %s608
      $region44: #{qanet_tail_forward.12} parent=39 // pred_fallthru
        _
    $region40: #{qanet_tail_forward.12} parent=5 // pred_fallthru
      _
  $region6: #{qanet_tail_forward.12} parent=0 // loop_footer
    %s13 = sadd.s32 1, %s9
  $region7: #{qanet_tail_forward.12} parent=0 // loop_footer_branch
    %8 = sbr.rel target = $region3
  $region8: #{qanet_tail_forward.12} parent=0 // loop_exit
    _

// kernel: qanet_tail_forward.13
$region0: #{qanet_tail_forward.13}
  #allocation0 [shape = 'u32[]', space=smem, size = 0x4, offset = 0x4, fixed_abs, tag = 'smem constant byte address 0x4 - core index']
  #allocation1 [shape = 'u32[144,128]{1,0:T(1,128)}', space=vmem, size = 0x12000, scoped, tag = 'internal scratch']
  #allocation2 [shape = 'f32[1,1]{1,0:T(1,128)S(1)}', space=vmem, size = 0x200, scoped, tag = 'scoped memory for qanet_tail_forward.13']
  #allocation3 [shape = 'f32[1,1]{1,0:T(1,128)S(1)}', space=vmem, size = 0x200, scoped, tag = 'scoped memory for qanet_tail_forward.13']
  %s0 = inlined_call_operand.vmem [shape: f32[2,16,128], index: 0, kind: input, shape index: {}]
  %s1 = inlined_call_operand.vmem [shape: f32[2,128], index: 1, kind: input, shape index: {}]
  %s2 = inlined_call_operand.<no memory space> [shape: f32[1,1], index: 2, kind: input, shape index: {}]
  %s3 = inlined_call_operand.vmem [shape: f32[2,128], index: 3, kind: input, shape index: {}]
  %s4 = inlined_call_operand.<no memory space> [shape: f32[1,1], index: 4, kind: input, shape index: {}]
  %s5 = inlined_call_operand.hbm [shape: f32[2,16], index: 5, kind: output, shape index: {0}]
  %s6 = inlined_call_operand.hbm [shape: f32[2,16], index: 6, kind: output, shape index: {1}]
  %7 = xla_tuple %s5, %s6
  %s8 = sld [smem:[#allocation0]]
  $region38: #{qanet_tail_forward.13} parent=0
    _
  %s10 = ssub.s32 1, %s8
  %s11 = scalar_select 0, %s10, %s8
  %v12 = vstv %s2
  %13 = vst [vmem:[#allocation2] sm:$0x1] %v12
  %v14 = vstv %s4
  %15 = vst [vmem:[#allocation3] sm:$0x1] %v14
  $region1: #{qanet_tail_forward.13} parent=0
    #allocation4 [shape = 'u8[1024]{0}', space=vmem, size = 0x400, scoped, tag = 'output window, operand 0, single buffered']
    #allocation5 [shape = 's32[1]{0}', space=sflag, size = 0x4, scoped, tag = 'scoped memory for qanet_tail_forward.13']
    #allocation6 [shape = 'u8[1024]{0}', space=vmem, size = 0x400, scoped, tag = 'output window, operand 1, single buffered']
    #allocation7 [shape = 's32[1]{0}', space=sflag, size = 0x4, scoped, tag = 'scoped memory for qanet_tail_forward.13']
    %16 = vsyncpa [#allocation5], 0
    %17 = vsyncpa [#allocation7], 0
    // Predicated region
    $region2: #{qanet_tail_forward.13} parent=1 // pred_check
      _
    $region3: #{qanet_tail_forward.13} parent=1 // pred_check_branch
      %19 = sbr.rel (0) target = $region5
    $region4: #{qanet_tail_forward.13} parent=1 // pred_region
      _
    $region5: #{qanet_tail_forward.13} parent=1 // pred_fallthru
      _
    // Predicated region
    $region6: #{qanet_tail_forward.13} parent=1 // pred_check
      _
    $region7: #{qanet_tail_forward.13} parent=1 // pred_check_branch
      %21 = sbr.rel (0) target = $region9
    $region8: #{qanet_tail_forward.13} parent=1 // pred_region
      _
    $region9: #{qanet_tail_forward.13} parent=1 // pred_fallthru
      _
    // Predicated region
    $region10: #{qanet_tail_forward.13} parent=1 // pred_check
      _
    $region11: #{qanet_tail_forward.13} parent=1 // pred_check_branch
      %23 = sbr.rel (0) target = $region13
    $region12: #{qanet_tail_forward.13} parent=1 // pred_region
      _
    $region13: #{qanet_tail_forward.13} parent=1 // pred_fallthru
      _
    // Predicated region
    $region14: #{qanet_tail_forward.13} parent=1 // pred_check
      _
    $region15: #{qanet_tail_forward.13} parent=1 // pred_check_branch
      %25 = sbr.rel (0) target = $region17
    $region16: #{qanet_tail_forward.13} parent=1 // pred_region
      _
    $region17: #{qanet_tail_forward.13} parent=1 // pred_fallthru
      _
    // Predicated region
    $region18: #{qanet_tail_forward.13} parent=1 // pred_check
      _
    $region19: #{qanet_tail_forward.13} parent=1 // pred_check_branch
      %27 = sbr.rel (0) target = $region21
    $region20: #{qanet_tail_forward.13} parent=1 // pred_region
      _
    $region21: #{qanet_tail_forward.13} parent=1 // pred_fallthru
      _
    %v28 = vld [vmem:[%s0] sm:$0xff]
    %v29 = vld [vmem:[%s0 + $0x8] sm:$0xff]
    %v30 = vld [vmem:[%s0 + $0x10] sm:$0xff]
    %v31 = vld [vmem:[%s0 + $0x18] sm:$0xff]
    %v32 = vld [vmem:[%s1] sm:$0x1]
    %v33 = vld [vmem:[%s1 + $0x1] sm:$0x1]
    %v34 = vadd.f32 %v32, %v33
    %v35 = vld [vmem:[%s3] sm:$0x1]
    %v36 = vld [vmem:[%s3 + $0x1] sm:$0x1]
    %v37 = vadd.f32 %v35, %v36
    %v38 = vlaneseq
    %v39 = vshrl.u32 %v38, 7
    %v40 = vsub.s32 0, %v39
    %v41 = vrot.slane %v34, %v40
    %v42 = vmul.f32 %v28, %v41
    %v43 = vmul.f32 %v29, %v41
    %v44 = vmul.f32 %v30, %v41
    %v45 = vmul.f32 %v31, %v41
    %46 = vadd.xlane.f32.xlu0 %v42
    %v47 = vpop.xlane.xlu0 %46
    %48 = vadd.xlane.f32.xlu0 %v43
    %v49 = vpop.xlane.xlu0 %48
    %50 = vadd.xlane.f32.xlu0 %v44
    %v51 = vpop.xlane.xlu0 %50
    %52 = vadd.xlane.f32.xlu0 %v45
    %v53 = vpop.xlane.xlu0 %52
    %v54 = vld [vmem:[#allocation2] sm:$0x1]
    %v56 = vlaneseq
    %v57 = vshrl.u32 %v56, 7
    %v58 = vsub.s32 0, %v57
    %v59 = vrot.slane %v54, %v58
    %60 = vset.pattern.permute.xlu0 0
    %61 = vperm.xlu0 %60, %v59
    %v62 = vpop.permute.xlu0 %61
    %v64 = vadd.f32 %v47, %v62
    %v65 = vadd.f32 %v49, %v62
    %v66 = vadd.f32 %v51, %v62
    %v67 = vadd.f32 %v53, %v62
    %v68 = vlaneseq
    %v69 = vshrl.u32 %v68, 7
    %v70 = vsub.s32 0, %v69
    %v71 = vrot.slane %v37, %v70
    %v72 = vmul.f32 %v28, %v71
    %v73 = vmul.f32 %v29, %v71
    %v74 = vmul.f32 %v30, %v71
    %v75 = vmul.f32 %v31, %v71
    %76 = vadd.xlane.f32.xlu0 %v72
    %v77 = vpop.xlane.xlu0 %76
    %78 = vadd.xlane.f32.xlu0 %v73
    %v79 = vpop.xlane.xlu0 %78
    %80 = vadd.xlane.f32.xlu0 %v74
    %v81 = vpop.xlane.xlu0 %80
    %82 = vadd.xlane.f32.xlu0 %v75
    %v83 = vpop.xlane.xlu0 %82
    %v84 = vld [vmem:[#allocation3] sm:$0x1]
    %v86 = vlaneseq
    %v87 = vshrl.u32 %v86, 7
    %v88 = vsub.s32 0, %v87
    %v89 = vrot.slane %v84, %v88
    %90 = vset.pattern.permute.xlu0 0
    %91 = vperm.xlu0 %90, %v89
    %v92 = vpop.permute.xlu0 %91
    %v94 = vadd.f32 %v77, %v92
    %v95 = vadd.f32 %v79, %v92
    %v96 = vadd.f32 %v81, %v92
    %v97 = vadd.f32 %v83, %v92
    %v102 = vlaneseq
    %v103 = vand.u32 %v102, 127
    %v104 = vlaneseq
    %v105 = vshrl.u32 %v104, 7
    %v106 = vsub.s32 %v103, %v105
    %v107 = vrot.slane %v64, %v106
    %v108 = vadd.s32 %v103, 4294967288
    %v109 = vlaneseq
    %v110 = vshrl.u32 %v109, 7
    %v111 = vsub.s32 %v108, %v110
    %v112 = vrot.slane %v65, %v111
    %vm113 = vcmask 130112
    %v114 = vsel %vm113, %v112, %v107
    %v115 = vlaneseq
    %v116 = vshrl.u32 %v115, 7
    %v117 = vsub.s32 %v103, %v116
    %v118 = vrot.slane %v66, %v117
    %v119 = vlaneseq
    %v120 = vshrl.u32 %v119, 7
    %v121 = vsub.s32 %v108, %v120
    %v122 = vrot.slane %v67, %v121
    %v123 = vsel %vm113, %v122, %v118
    %vm124 = vcmask 1041409
    %v125 = vsel %vm124, %v123, %v114
    %vm127 = vcmask 123904
    %v128 = vsel %vm127, %v125, -inf
    %129 = vmax.xlane.f32.xlu0 %v128
    %v130 = vpop.xlane.xlu0 %129
    %v132 = vlaneseq
    %v133 = vshrl.u32 %v132, 7
    %v134 = vsub.s32 0, %v133
    %v135 = vrot.slane %v130, %v134
    %v136 = vlaneseq
    %v137 = vshrl.u32 %v136, 7
    %v138 = vsub.s32 1, %v137
    %v139 = vrot.slane %v130, %v138
    %v142 = vsub.f32 %v64, %v135
    %v143 = vsub.f32 %v65, %v135
    %v144 = vsub.f32 %v66, %v139
    %v145 = vsub.f32 %v67, %v139
    %v146 = vmul.f32 %v142, 1.442695
    %v147 = vpow.pop %v146
    %v148 = vmul.f32 %v143, 1.442695
    %v149 = vpow.pop %v148
    %v150 = vmul.f32 %v144, 1.442695
    %v151 = vpow.pop %v150
    %v152 = vmul.f32 %v145, 1.442695
    %v153 = vpow.pop %v152
    %158 = vset.pattern.permute.xlu0 0
    %159 = vperm.xlu0 %158, %v147
    %v160 = vpop.permute.xlu0 %159
    %161 = vset.pattern.permute.xlu0 0
    %162 = vperm.xlu0 %161, %v149
    %v163 = vpop.permute.xlu0 %162
    %164 = vset.pattern.permute.xlu0 0
    %165 = vperm.xlu0 %164, %v151
    %v166 = vpop.permute.xlu0 %165
    %167 = vset.pattern.permute.xlu0 0
    %168 = vperm.xlu0 %167, %v153
    %v169 = vpop.permute.xlu0 %168
    %v170 = vlaneseq
    %v171 = vshrl.u32 %v170, 7
    %v172 = vsub.s32 %v103, %v171
    %v173 = vrot.slane %v160, %v172
    %v174 = vlaneseq
    %v175 = vshrl.u32 %v174, 7
    %v176 = vsub.s32 %v108, %v175
    %v177 = vrot.slane %v163, %v176
    %v178 = vsel %vm113, %v177, %v173
    %v179 = vlaneseq
    %v180 = vshrl.u32 %v179, 7
    %v181 = vsub.s32 %v103, %v180
    %v182 = vrot.slane %v166, %v181
    %v183 = vlaneseq
    %v184 = vshrl.u32 %v183, 7
    %v185 = vsub.s32 %v108, %v184
    %v186 = vrot.slane %v169, %v185
    %v187 = vsel %vm113, %v186, %v182
    %v188 = vsel %vm124, %v187, %v178
    %v190 = vsel %vm127, %v188, 0.0
    %191 = vadd.xlane.f32.xlu0 %v190
    %v192 = vpop.xlane.xlu0 %191
    %v194 = vlaneseq
    %v195 = vshrl.u32 %v194, 7
    %v196 = vsub.s32 0, %v195
    %v197 = vrot.slane %v192, %v196
    %v198 = vlaneseq
    %v199 = vshrl.u32 %v198, 7
    %v200 = vsub.s32 1, %v199
    %v201 = vrot.slane %v192, %v200
    %v204 = vrcp.pop %v197
    %v205 = vmul.f32 %v147, %v204
    %v206 = vmul.f32 %v149, %v204
    %v207 = vrcp.pop %v201
    %v208 = vmul.f32 %v151, %v207
    %v209 = vmul.f32 %v153, %v207
    %214 = vset.pattern.permute.xlu0 0
    %215 = vperm.xlu0 %214, %v205
    %v216 = vpop.permute.xlu0 %215
    %217 = vset.pattern.permute.xlu0 0
    %218 = vperm.xlu0 %217, %v206
    %v219 = vpop.permute.xlu0 %218
    %220 = vset.pattern.permute.xlu0 0
    %221 = vperm.xlu0 %220, %v208
    %v222 = vpop.permute.xlu0 %221
    %223 = vset.pattern.permute.xlu0 0
    %224 = vperm.xlu0 %223, %v209
    %v225 = vpop.permute.xlu0 %224
    %v226 = vlaneseq
    %v227 = vshrl.u32 %v226, 7
    %v228 = vsub.s32 %v103, %v227
    %v229 = vrot.slane %v216, %v228
    %v230 = vlaneseq
    %v231 = vshrl.u32 %v230, 7
    %v232 = vsub.s32 %v108, %v231
    %v233 = vrot.slane %v219, %v232
    %v234 = vsel %vm113, %v233, %v229
    %v235 = vlaneseq
    %v236 = vshrl.u32 %v235, 7
    %v237 = vsub.s32 %v103, %v236
    %v238 = vrot.slane %v222, %v237
    %v239 = vlaneseq
    %v240 = vshrl.u32 %v239, 7
    %v241 = vsub.s32 %v108, %v240
    %v242 = vrot.slane %v225, %v241
    %v243 = vsel %vm113, %v242, %v238
    %v244 = vsel %vm124, %v243, %v234
    %246 = vst.msk [vmem:[#allocation4] sm:$0x3] %vm127, %v244
    %v251 = vlaneseq
    %v252 = vshrl.u32 %v251, 7
    %v253 = vsub.s32 %v103, %v252
    %v254 = vrot.slane %v94, %v253
    %v255 = vlaneseq
    %v256 = vshrl.u32 %v255, 7
    %v257 = vsub.s32 %v108, %v256
    %v258 = vrot.slane %v95, %v257
    %v259 = vsel %vm113, %v258, %v254
    %v260 = vlaneseq
    %v261 = vshrl.u32 %v260, 7
    %v262 = vsub.s32 %v103, %v261
    %v263 = vrot.slane %v96, %v262
    %v264 = vlaneseq
    %v265 = vshrl.u32 %v264, 7
    %v266 = vsub.s32 %v108, %v265
    %v267 = vrot.slane %v97, %v266
    %v268 = vsel %vm113, %v267, %v263
    %v269 = vsel %vm124, %v268, %v259
    %v271 = vsel %vm127, %v269, -inf
    %272 = vmax.xlane.f32.xlu0 %v271
    %v273 = vpop.xlane.xlu0 %272
    %v275 = vlaneseq
    %v276 = vshrl.u32 %v275, 7
    %v277 = vsub.s32 0, %v276
    %v278 = vrot.slane %v273, %v277
    %v279 = vlaneseq
    %v280 = vshrl.u32 %v279, 7
    %v281 = vsub.s32 1, %v280
    %v282 = vrot.slane %v273, %v281
    %v285 = vsub.f32 %v94, %v278
    %v286 = vsub.f32 %v95, %v278
    %v287 = vsub.f32 %v96, %v282
    %v288 = vsub.f32 %v97, %v282
    %v289 = vmul.f32 %v285, 1.442695
    %v290 = vpow.pop %v289
    %v291 = vmul.f32 %v286, 1.442695
    %v292 = vpow.pop %v291
    %v293 = vmul.f32 %v287, 1.442695
    %v294 = vpow.pop %v293
    %v295 = vmul.f32 %v288, 1.442695
    %v296 = vpow.pop %v295
    %301 = vset.pattern.permute.xlu0 0
    %302 = vperm.xlu0 %301, %v290
    %v303 = vpop.permute.xlu0 %302
    %304 = vset.pattern.permute.xlu0 0
    %305 = vperm.xlu0 %304, %v292
    %v306 = vpop.permute.xlu0 %305
    %307 = vset.pattern.permute.xlu0 0
    %308 = vperm.xlu0 %307, %v294
    %v309 = vpop.permute.xlu0 %308
    %310 = vset.pattern.permute.xlu0 0
    %311 = vperm.xlu0 %310, %v296
    %v312 = vpop.permute.xlu0 %311
    %v313 = vlaneseq
    %v314 = vshrl.u32 %v313, 7
    %v315 = vsub.s32 %v103, %v314
    %v316 = vrot.slane %v303, %v315
    %v317 = vlaneseq
    %v318 = vshrl.u32 %v317, 7
    %v319 = vsub.s32 %v108, %v318
    %v320 = vrot.slane %v306, %v319
    %v321 = vsel %vm113, %v320, %v316
    %v322 = vlaneseq
    %v323 = vshrl.u32 %v322, 7
    %v324 = vsub.s32 %v103, %v323
    %v325 = vrot.slane %v309, %v324
    %v326 = vlaneseq
    %v327 = vshrl.u32 %v326, 7
    %v328 = vsub.s32 %v108, %v327
    %v329 = vrot.slane %v312, %v328
    %v330 = vsel %vm113, %v329, %v325
    %v331 = vsel %vm124, %v330, %v321
    %v333 = vsel %vm127, %v331, 0.0
    %334 = vadd.xlane.f32.xlu0 %v333
    %v335 = vpop.xlane.xlu0 %334
    %v337 = vlaneseq
    %v338 = vshrl.u32 %v337, 7
    %v339 = vsub.s32 0, %v338
    %v340 = vrot.slane %v335, %v339
    %v341 = vlaneseq
    %v342 = vshrl.u32 %v341, 7
    %v343 = vsub.s32 1, %v342
    %v344 = vrot.slane %v335, %v343
    %v347 = vrcp.pop %v340
    %v348 = vmul.f32 %v290, %v347
    %v349 = vmul.f32 %v292, %v347
    %v350 = vrcp.pop %v344
    %v351 = vmul.f32 %v294, %v350
    %v352 = vmul.f32 %v296, %v350
    %357 = vset.pattern.permute.xlu0 0
    %358 = vperm.xlu0 %357, %v348
    %v359 = vpop.permute.xlu0 %358
    %360 = vset.pattern.permute.xlu0 0
    %361 = vperm.xlu0 %360, %v349
    %v362 = vpop.permute.xlu0 %361
    %363 = vset.pattern.permute.xlu0 0
    %364 = vperm.xlu0 %363, %v351
    %v365 = vpop.permute.xlu0 %364
    %366 = vset.pattern.permute.xlu0 0
    %367 = vperm.xlu0 %366, %v352
    %v368 = vpop.permute.xlu0 %367
    %v369 = vlaneseq
    %v370 = vshrl.u32 %v369, 7
    %v371 = vsub.s32 %v103, %v370
    %v372 = vrot.slane %v359, %v371
    %v373 = vlaneseq
    %v374 = vshrl.u32 %v373, 7
    %v375 = vsub.s32 %v108, %v374
    %v376 = vrot.slane %v362, %v375
    %v377 = vsel %vm113, %v376, %v372
    %v378 = vlaneseq
    %v379 = vshrl.u32 %v378, 7
    %v380 = vsub.s32 %v103, %v379
    %v381 = vrot.slane %v365, %v380
    %v382 = vlaneseq
    %v383 = vshrl.u32 %v382, 7
    %v384 = vsub.s32 %v108, %v383
    %v385 = vrot.slane %v368, %v384
    %v386 = vsel %vm113, %v385, %v381
    %v387 = vsel %vm124, %v386, %v377
    %389 = vst.msk [vmem:[#allocation6] sm:$0x3] %vm127, %v387
    // Predicated region
    $region22: #{qanet_tail_forward.13} parent=1 // pred_check
      _
    $region23: #{qanet_tail_forward.13} parent=1 // pred_check_branch
      %391 = sbr.rel (0) target = $region25
    $region24: #{qanet_tail_forward.13} parent=1 // pred_region
      %s393 = ssub.s32 32, 32
      %394 = vsyncadd [#allocation5], %s393
      %s396 = sshll.u32 [#allocation4], 4
      %s397 = int_to_ptr.vmem [resolvable:$true] %s396
      %399 = dma.vmem_to_hbm [thread:$0]  %s397, 32, %s5, [#allocation5]
    $region25: #{qanet_tail_forward.13} parent=1 // pred_fallthru
      _
    // Predicated region
    $region26: #{qanet_tail_forward.13} parent=1 // pred_check
      _
    $region27: #{qanet_tail_forward.13} parent=1 // pred_check_branch
      %401 = sbr.rel (0) target = $region29
    $region28: #{qanet_tail_forward.13} parent=1 // pred_region
      %s403 = ssub.s32 32, 32
      %404 = vsyncadd [#allocation7], %s403
      %s406 = sshll.u32 [#allocation6], 4
      %s407 = int_to_ptr.vmem [resolvable:$true] %s406
      %409 = dma.vmem_to_hbm [thread:$0]  %s407, 32, %s6, [#allocation7]
    $region29: #{qanet_tail_forward.13} parent=1 // pred_fallthru
      _
    // Predicated region
    $region30: #{qanet_tail_forward.13} parent=1 // pred_check
      _
    $region31: #{qanet_tail_forward.13} parent=1 // pred_check_branch
      %411 = sbr.rel (0) target = $region33
    $region32: #{qanet_tail_forward.13} parent=1 // pred_region
      %412 = dma.done [#allocation5], 32
    $region33: #{qanet_tail_forward.13} parent=1 // pred_fallthru
      _
    // Predicated region
    $region34: #{qanet_tail_forward.13} parent=1 // pred_check
      _
    $region35: #{qanet_tail_forward.13} parent=1 // pred_check_branch
      %414 = sbr.rel (0) target = $region37
    $region36: #{qanet_tail_forward.13} parent=1 // pred_region
      %415 = dma.done [#allocation7], 32
    $region37: #{qanet_tail_forward.13} parent=1 // pred_fallthru
      _
    %416 = vsyncpa [#allocation5], 1
    %417 = vsyncpa [#allocation7], 1

</llo_original>
